<compile_context>
chip_gen: v6e
topology: v6e:2x2x1
jax: 0.10.0
libtpu: 0.0.40
codegen_flags: <defaults>
</compile_context>

<pallas_src>
import jax
import jax.numpy as jnp
from jax.experimental import pallas as pl
from jax.experimental.pallas import tpu as pltpu

E = 840                     # embedding_size (fixed by feedforward Linear(840, 480))
EP = 896                    # E padded to a multiple of 128 lanes
FF_DIMS = (840, 480, 240, 64, 8)
FF_PAD = (896, 512, 256, 128, 128)      # lane-padded MLP widths
OUT_DIM = FF_DIMS[-1]
OUT_DIM_P = FF_PAD[-1]


# ---------------- stage 1: K / V projections (K stored pre-transposed) ----------------
def _kv_kernel(x_ref, wk_ref, bk_ref, wv_ref, bv_ref, kt_ref, v_ref):
    xb = x_ref[...].astype(jnp.bfloat16)                                   # (T, EP)
    k = jnp.dot(xb, wk_ref[...], preferred_element_type=jnp.float32) + bk_ref[...]
    v = jnp.dot(xb, wv_ref[...], preferred_element_type=jnp.float32) + bv_ref[...]
    # One-time transpose here so stage 2's scores are a plain q @ K^T matmul
    # (no per-grid-step XLU transpose of the resident K).
    kt_ref[...] = k.T.astype(jnp.bfloat16)                                 # (EP, T) bf16
    v_ref[...] = v.astype(jnp.bfloat16)                                    # (T, EP) bf16


# ------- stage 2: Q projection + attention + fc + residual + 4-layer ReLU MLP -------
def _make_attn_mlp_kernel(n_valid, n_padded):
    def kernel(x_ref, kt_ref, v_ref, wq_ref, bq_ref, wfc_ref, bfc_ref,
               w1_ref, b1_ref, w2_ref, b2_ref, w3_ref, b3_ref, w4_ref, b4_ref,
               out_ref):
        x = x_ref[...]                                  # (T, EP) f32, pad lanes are zero
        xb = x.astype(jnp.bfloat16)

        # Q projection folded into this stage; 1/sqrt(E) pre-folded into wq/bq.
        q = jnp.dot(xb, wq_ref[...], preferred_element_type=jnp.float32) + bq_ref[...]

        # scores = q @ K^T with bf16 MXU operands (K already transposed & resident).
        scores = jnp.dot(q.astype(jnp.bfloat16), kt_ref[...],
                         preferred_element_type=jnp.float32)               # (T, NP)
        if n_padded > n_valid:                          # mask zero-padded key rows
            col = jax.lax.broadcasted_iota(jnp.int32, scores.shape, 1)
            scores = jnp.where(col < n_valid, scores, -jnp.inf)
        # TODO(synk): optional query_mask (masked_fill(mask == 0, -inf)) not implemented.

        m = jnp.max(scores, axis=-1, keepdims=True)     # softmax kept in f32 (v5e VPU)
        p = jnp.exp(scores - m)
        s = jnp.sum(p, axis=-1, keepdims=True)
        attn = p * pl.reciprocal(s, approx=True)        # EUP reciprocal frees the VALU

        attended = jnp.dot(attn.astype(jnp.bfloat16), v_ref[...],
                           preferred_element_type=jnp.float32)             # (T, EP)
        att_out = jnp.dot(attended.astype(jnp.bfloat16), wfc_ref[...],
                          preferred_element_type=jnp.float32) + bfc_ref[...]

        h = x + att_out                                 # residual; dropout = identity (eval)

        h = jnp.maximum(jnp.dot(h.astype(jnp.bfloat16), w1_ref[...],
                                preferred_element_type=jnp.float32) + b1_ref[...], 0.0)
        h = jnp.maximum(jnp.dot(h.astype(jnp.bfloat16), w2_ref[...],
                                preferred_element_type=jnp.float32) + b2_ref[...], 0.0)
        h = jnp.maximum(jnp.dot(h.astype(jnp.bfloat16), w3_ref[...],
                                preferred_element_type=jnp.float32) + b3_ref[...], 0.0)
        out_ref[...] = jnp.dot(h.astype(jnp.bfloat16), w4_ref[...],
                               preferred_element_type=jnp.float32) + b4_ref[...]
    return kernel


def _resident(arr):
    """Full-array VMEM block with a constant index map: fetched once, kept resident
    across all grid steps.
    TODO(synk): if profiling shows these constant blocks being double-buffered on
    v7x at large N, single-buffer them or DMA once into scratch via pl.ANY."""
    return pl.BlockSpec(arr.shape, lambda i, _nd=arr.ndim: (0,) * _nd)


def _pad_w(w, rows, cols):
    out = jnp.zeros((rows, cols), jnp.float32).at[:w.shape[0], :w.shape[1]].set(w)
    return out.astype(jnp.bfloat16)          # weights in bf16 (MXU operands)


def _pad_b(b, cols):
    return jnp.zeros((1, cols), jnp.float32).at[:, :b.shape[1]].set(b)   # biases stay f32


def custom_transformer(x, params):
    """x: (N, 840) float32; params: 8 (W:(in,out), b:(1,out)) f32 pairs in order
    [W_q, W_k, W_v, fc, ff1, ff2, ff3, ff4]."""
    n = x.shape[0]

    kind = jax.devices()[0].device_kind.lower()
    small_vmem = ("v7" in kind) or ("7x" in kind)      # v7x: 64 MiB VMEM per TensorCore
    tile = 128 if small_vmem else 256                  # bigger tiles on v5e/v6e (128 MiB)
    vmem_limit = (48 if small_vmem else 100) * 1024 * 1024
    n_pad = pl.cdiv(n, tile) * tile
    grid = (n_pad // tile,)

    (wq, bq), (wk, bk), (wv, bv), (wfc, bfc), (w1, b1), (w2, b2), (w3, b3), (w4, b4) = params

    # Lane-pad x to EP columns / tile-pad rows once on the host (zero pads).
    x_p = jnp.zeros((n_pad, EP), jnp.float32).at[:n, :E].set(x)

    scale = 1.0 / (E ** 0.5)
    wq_p, bq_p = _pad_w(wq * scale, EP, EP), _pad_b(bq * scale, EP)   # fold 1/sqrt(E)
    wk_p, bk_p = _pad_w(wk, EP, EP), _pad_b(bk, EP)
    wv_p, bv_p = _pad_w(wv, EP, EP), _pad_b(bv, EP)
    wfc_p, bfc_p = _pad_w(wfc, EP, EP), _pad_b(bfc, EP)
    w1_p, b1_p = _pad_w(w1, FF_PAD[0], FF_PAD[1]), _pad_b(b1, FF_PAD[1])
    w2_p, b2_p = _pad_w(w2, FF_PAD[1], FF_PAD[2]), _pad_b(b2, FF_PAD[2])
    w3_p, b3_p = _pad_w(w3, FF_PAD[2], FF_PAD[3]), _pad_b(b3, FF_PAD[3])
    w4_p, b4_p = _pad_w(w4, FF_PAD[3], FF_PAD[4]), _pad_b(b4, FF_PAD[4])

    row = pl.BlockSpec((tile, EP), lambda i: (i, 0))
    cparams = pltpu.CompilerParams(
        dimension_semantics=("parallel",),             # row tiles shard across v7x's 2 TCs
        vmem_limit_bytes=vmem_limit,
    )

    # Stage 1: K / V projections; K emitted pre-transposed (EP, N), both bf16.
    kt, v = pl.pallas_call(
        _kv_kernel,
        grid=grid,
        in_specs=[row, _resident(wk_p), _resident(bk_p),
                  _resident(wv_p), _resident(bv_p)],
        out_specs=(pl.BlockSpec((EP, tile), lambda i: (0, i)),
                   pl.BlockSpec((tile, EP), lambda i: (i, 0))),
        out_shape=(jax.ShapeDtypeStruct((EP, n_pad), jnp.bfloat16),
                   jax.ShapeDtypeStruct((n_pad, EP), jnp.bfloat16)),
        compiler_params=cparams,
    )(x_p, wk_p, bk_p, wv_p, bv_p)

    # Stage 2: Q projection + attention + fc + residual + MLP over query-row tiles,
    # with bf16 K^T / V and all weights VMEM-resident.
    # TODO(synk): for very large N, tile K/V with an online (flash-style) softmax
    # (inner pltpu.emit_pipeline) instead of keeping the full K^T/V resident.
    weights = (wq_p, bq_p, wfc_p, bfc_p, w1_p, b1_p, w2_p, b2_p, w3_p, b3_p, w4_p, b4_p)
    out = pl.pallas_call(
        _make_attn_mlp_kernel(n, n_pad),
        grid=grid,
        in_specs=[row, _resident(kt), _resident(v)] + [_resident(w) for w in weights],
        out_specs=pl.BlockSpec((tile, OUT_DIM_P), lambda i: (i, 0)),
        out_shape=jax.ShapeDtypeStruct((n_pad, OUT_DIM_P), jnp.float32),
        compiler_params=cparams,
    )(x_p, kt, v, *weights)

    return out[:n, :OUT_DIM]


def init_params(key):
    """Deterministic PyTorch-Linear-style init: U(-1/sqrt(fan_in), 1/sqrt(fan_in)).
    Weights stored pre-transposed as (in, out)."""
    dims = [(E, E)] * 4 + list(zip(FF_DIMS[:-1], FF_DIMS[1:]))
    params = []
    for i, (din, dout) in enumerate(dims):
        kw, kb = jax.random.split(jax.random.fold_in(key, i))
        bound = 1.0 / (din ** 0.5)
        w = jax.random.uniform(kw, (din, dout), jnp.float32, -bound, bound)
        b = jax.random.uniform(kb, (1, dout), jnp.float32, -bound, bound)
        params.append((w, b))
    return params


def reference(x, params):
    """Pure-JAX reference of the PyTorch forward (eval mode), using the same
    bf16-rounded weights as the kernel but f32 activations/accumulation."""
    qz = lambda w: w.astype(jnp.bfloat16).astype(jnp.float32)
    (wq, bq), (wk, bk), (wv, bv), (wfc, bfc), (w1, b1), (w2, b2), (w3, b3), (w4, b4) = params
    q = x @ qz(wq) + bq
    k = x @ qz(wk) + bk
    v = x @ qz(wv) + bv
    scores = (q @ k.T) / (E ** 0.5)
    attn = jax.nn.softmax(scores, axis=-1)
    attended = attn @ v
    h = x + (attended @ qz(wfc) + bfc)                  # dropout = identity (eval)
    h = jax.nn.relu(h @ qz(w1) + b1)
    h = jax.nn.relu(h @ qz(w2) + b2)
    h = jax.nn.relu(h @ qz(w3) + b3)
    return h @ qz(w4) + b4


if __name__ == "__main__":
    key = jax.random.PRNGKey(0)
    k_x, k_p = jax.random.split(key)

    N = 256                                                    # multiple of both 128 and 256
    x = jax.random.normal(k_x, (N, E), dtype=jnp.float32)      # input_embeddings (N, 840)
    params = init_params(k_p)

    out = custom_transformer(x, params)
    out = jax.block_until_ready(out)

    ref = reference(x, params)
    assert out.shape == (N, OUT_DIM), out.shape
    max_err = float(jnp.max(jnp.abs(out - ref)))
    assert jnp.allclose(out, ref, atol=4e-2, rtol=4e-2), max_err

    print("KERNEL_OK")
</pallas_src>

<mosaic_0001>
module attributes {stable_mosaic.version = 11 : i64} {
  func.func @_kv_kernel(%arg0: i32, %arg1: memref<256x896xf32, #tpu.memory_space<vmem>>, %arg2: memref<896x896xbf16, #tpu.memory_space<vmem>>, %arg3: memref<1x896xf32, #tpu.memory_space<vmem>>, %arg4: memref<896x896xbf16, #tpu.memory_space<vmem>>, %arg5: memref<1x896xf32, #tpu.memory_space<vmem>>, %arg6: memref<896x256xbf16, #tpu.memory_space<vmem>>, %arg7: memref<256x896xbf16, #tpu.memory_space<vmem>>) attributes {dimension_semantics = [#tpu.dimension_semantics<parallel>], iteration_bounds = array<i64: 1>, scalar_prefetch = 0 : i64, scratch_operands = 0 : i64, tpu.core_type = #tpu.core_type<tc>, window_params = [{transform_indices = @transform_0, window_bounds = array<i64: 256, 896>}, {pipeline_mode = #tpu.pipeline_mode<synchronous>, transform_indices = @transform_1, window_bounds = array<i64: 896, 896>}, {pipeline_mode = #tpu.pipeline_mode<synchronous>, transform_indices = @transform_2, window_bounds = array<i64: 1, 896>}, {pipeline_mode = #tpu.pipeline_mode<synchronous>, transform_indices = @transform_3, window_bounds = array<i64: 896, 896>}, {pipeline_mode = #tpu.pipeline_mode<synchronous>, transform_indices = @transform_4, window_bounds = array<i64: 1, 896>}, {transform_indices = @transform_5, window_bounds = array<i64: 896, 256>}, {transform_indices = @transform_6, window_bounds = array<i64: 256, 896>}]} {
    %c0 = arith.constant 0 : index
    %c0_0 = arith.constant 0 : index
    %0 = vector.load %arg1[%c0, %c0_0] : memref<256x896xf32, #tpu.memory_space<vmem>>, vector<256x896xf32>
    %1 = arith.truncf %0 : vector<256x896xf32> to vector<256x896xbf16>
    %c0_1 = arith.constant 0 : index
    %c0_2 = arith.constant 0 : index
    %2 = vector.load %arg2[%c0_1, %c0_2] : memref<896x896xbf16, #tpu.memory_space<vmem>>, vector<896x896xbf16>
    %cst = arith.constant dense<0.000000e+00> : vector<256x896xf32>
    %3 = tpu.matmul %1, %2, %cst {dimension_numbers = #tpu.dot_dimension_numbers<[1], [0], [0], [1], [0, 0, 1, 1], [], []>} : vector<256x896xbf16>, vector<896x896xbf16>, vector<256x896xf32> -> vector<256x896xf32>
    %c0_3 = arith.constant 0 : index
    %c0_4 = arith.constant 0 : index
    %4 = vector.load %arg3[%c0_3, %c0_4] : memref<1x896xf32, #tpu.memory_space<vmem>>, vector<1x896xf32>
    %5 = vector.broadcast %4 : vector<1x896xf32> to vector<256x896xf32>
    %6 = arith.addf %3, %5 : vector<256x896xf32>
    %c0_5 = arith.constant 0 : index
    %c0_6 = arith.constant 0 : index
    %7 = vector.load %arg4[%c0_5, %c0_6] : memref<896x896xbf16, #tpu.memory_space<vmem>>, vector<896x896xbf16>
    %cst_7 = arith.constant dense<0.000000e+00> : vector<256x896xf32>
    %8 = tpu.matmul %1, %7, %cst_7 {dimension_numbers = #tpu.dot_dimension_numbers<[1], [0], [0], [1], [0, 0, 1, 1], [], []>} : vector<256x896xbf16>, vector<896x896xbf16>, vector<256x896xf32> -> vector<256x896xf32>
    %c0_8 = arith.constant 0 : index
    %c0_9 = arith.constant 0 : index
    %9 = vector.load %arg5[%c0_8, %c0_9] : memref<1x896xf32, #tpu.memory_space<vmem>>, vector<1x896xf32>
    %10 = vector.broadcast %9 : vector<1x896xf32> to vector<256x896xf32>
    %11 = arith.addf %8, %10 : vector<256x896xf32>
    %12 = tpu.transpose %6, [1, 0] : vector<256x896xf32> -> vector<896x256xf32>
    %13 = arith.truncf %12 : vector<896x256xf32> to vector<896x256xbf16>
    %c0_10 = arith.constant 0 : index
    %c0_11 = arith.constant 0 : index
    %14 = vector.load %arg6[%c0_10, %c0_11] : memref<896x256xbf16, #tpu.memory_space<vmem>>, vector<896x256xbf16>
    tpu.vector_store %arg6[%c0_10, %c0_11], %13 {strides = array<i32>} : memref<896x256xbf16, #tpu.memory_space<vmem>>, vector<896x256xbf16>,
    %15 = arith.truncf %11 : vector<256x896xf32> to vector<256x896xbf16>
    %c0_12 = arith.constant 0 : index
    %c0_13 = arith.constant 0 : index
    %16 = vector.load %arg7[%c0_12, %c0_13] : memref<256x896xbf16, #tpu.memory_space<vmem>>, vector<256x896xbf16>
    tpu.vector_store %arg7[%c0_12, %c0_13], %15 {strides = array<i32>} : memref<256x896xbf16, #tpu.memory_space<vmem>>, vector<256x896xbf16>,
    return
  }
  func.func @transform_0(%arg0: i32) -> (i32, i32) {
    %c0_i32 = arith.constant 0 : i32
    %c0_i32_0 = arith.constant 0 : i32
    return %arg0, %c0_i32 : i32, i32
  }
  func.func @transform_1(%arg0: i32) -> (i32, i32) {
    %c0_i32 = arith.constant 0 : i32
    %c0_i32_0 = arith.constant 0 : i32
    %c0_i32_1 = arith.constant 0 : i32
    return %c0_i32, %c0_i32_0 : i32, i32
  }
  func.func @transform_2(%arg0: i32) -> (i32, i32) {
    %c0_i32 = arith.constant 0 : i32
    %c0_i32_0 = arith.constant 0 : i32
    %c0_i32_1 = arith.constant 0 : i32
    return %c0_i32, %c0_i32_0 : i32, i32
  }
  func.func @transform_3(%arg0: i32) -> (i32, i32) {
    %c0_i32 = arith.constant 0 : i32
    %c0_i32_0 = arith.constant 0 : i32
    %c0_i32_1 = arith.constant 0 : i32
    return %c0_i32, %c0_i32_0 : i32, i32
  }
  func.func @transform_4(%arg0: i32) -> (i32, i32) {
    %c0_i32 = arith.constant 0 : i32
    %c0_i32_0 = arith.constant 0 : i32
    %c0_i32_1 = arith.constant 0 : i32
    return %c0_i32, %c0_i32_0 : i32, i32
  }
  func.func @transform_5(%arg0: i32) -> (i32, i32) {
    %c0_i32 = arith.constant 0 : i32
    %c0_i32_0 = arith.constant 0 : i32
    return %c0_i32, %arg0 : i32, i32
  }
  func.func @transform_6(%arg0: i32) -> (i32, i32) {
    %c0_i32 = arith.constant 0 : i32
    %c0_i32_0 = arith.constant 0 : i32
    return %arg0, %c0_i32 : i32, i32
  }
}

</mosaic_0001>

<llo_original>
// kernel: tpu_custom_call.1
$region0: #{tpu_custom_call.1}
  #allocation0 [shape = 'u32[]', space=smem, size = 0x4, offset = 0x4, fixed_abs, tag = 'smem constant byte address 0x4 - core index']
  #allocation1 [shape = 'u32[144,128]{1,0:T(1,128)}', space=vmem, size = 0x12000, scoped, tag = 'internal scratch']
  %s0 = inlined_call_operand.hbm [shape: f32[256,896], index: 0, kind: input, shape index: {}]
  %s1 = inlined_call_operand.hbm [shape: bf16[896,896], index: 1, kind: input, shape index: {}]
  %s2 = inlined_call_operand.hbm [shape: f32[1,896], index: 2, kind: input, shape index: {}]
  %s3 = inlined_call_operand.hbm [shape: bf16[896,896], index: 3, kind: input, shape index: {}]
  %s4 = inlined_call_operand.hbm [shape: f32[1,896], index: 4, kind: input, shape index: {}]
  %s5 = inlined_call_operand.hbm [shape: bf16[896,256], index: 5, kind: output, shape index: {0}]
  %s6 = inlined_call_operand.hbm [shape: bf16[256,896], index: 6, kind: output, shape index: {1}]
  %7 = xla_tuple %s5, %s6
  %s8 = sld [smem:[#allocation0]]
  $region58: #{tpu_custom_call.1} parent=0
    _
  %s10 = ssub.s32 1, %s8
  %s11 = scalar_select 0, %s10, %s8
  $region1: #{tpu_custom_call.1} parent=0
    #allocation2 [shape = 'u8[917504]{0}', space=vmem, size = 0xe0000, scoped, tag = 'input window, operand 0, single buffered']
    #allocation3 [shape = 's32[1]{0}', space=sflag, size = 0x4, scoped, tag = 'scoped memory for tpu_custom_call.1']
    #allocation4 [shape = 's32[1]{0}', space=sflag, size = 0x4, scoped, tag = 'scoped memory for tpu_custom_call.1']
    #allocation5 [shape = 'u8[1605632]{0}', space=vmem, size = 0x188000, scoped, tag = 'input window, operand 1, single buffered']
    #allocation6 [shape = 's32[1]{0}', space=sflag, size = 0x4, scoped, tag = 'scoped memory for tpu_custom_call.1']
    #allocation7 [shape = 'u8[3584]{0}', space=vmem, size = 0x1000, scoped, tag = 'input window, operand 2, single buffered']
    #allocation8 [shape = 'u8[1605632]{0}', space=vmem, size = 0x188000, scoped, tag = 'input window, operand 3, single buffered']
    #allocation9 [shape = 's32[1]{0}', space=sflag, size = 0x4, scoped, tag = 'scoped memory for tpu_custom_call.1']
    #allocation10 [shape = 'u8[3584]{0}', space=vmem, size = 0x1000, scoped, tag = 'input window, operand 4, single buffered']
    #allocation11 [shape = 'u8[458752]{0}', space=vmem, size = 0x70000, scoped, tag = 'output window, operand 0, single buffered']
    #allocation12 [shape = 'u8[458752]{0}', space=vmem, size = 0x70000, scoped, tag = 'output window, operand 1, single buffered']
    #allocation13 [shape = 's32[1]{0}', space=sflag, size = 0x4, scoped, tag = 'scoped memory for tpu_custom_call.1']
    %12 = vsyncpa [#allocation3], 0
    %13 = vsyncpa [#allocation6], 0
    %14 = vsyncpa [#allocation9], 0
    %15 = vsyncpa [#allocation4], 0
    %16 = vsyncpa [#allocation13], 0
    // Predicated region
    $region2: #{tpu_custom_call.1} parent=1 // pred_check
      _
    $region3: #{tpu_custom_call.1} parent=1 // pred_check_branch
      %18 = sbr.rel (0) target = $region5
    $region4: #{tpu_custom_call.1} parent=1 // pred_region
      %s20 = ssub.s32 28672, 28672
      %21 = vsyncadd [#allocation3], %s20
      %s22 = sshll.u32 [#allocation2], 4
      %s23 = int_to_ptr.vmem [resolvable:$true] %s22
      %28 = dma.hbm_to_vmem [thread:$0]  %s0, 28672, %s23, [#allocation3], 896, 896, 56
    $region5: #{tpu_custom_call.1} parent=1 // pred_fallthru
      _
    // Predicated region
    $region6: #{tpu_custom_call.1} parent=1 // pred_check
      _
    $region7: #{tpu_custom_call.1} parent=1 // pred_check_branch
      %30 = sbr.rel (0) target = $region9
    $region8: #{tpu_custom_call.1} parent=1 // pred_region
      %s32 = ssub.s32 50176, 50176
      %33 = vsyncadd [#allocation6], %s32
      %s34 = sshll.u32 [#allocation5], 4
      %s35 = int_to_ptr.vmem [resolvable:$true] %s34
      %40 = dma.hbm_to_vmem [thread:$0]  %s1, 50176, %s35, [#allocation6], 448, 448, 28
    $region9: #{tpu_custom_call.1} parent=1 // pred_fallthru
      _
    // Predicated region
    $region10: #{tpu_custom_call.1} parent=1 // pred_check
      _
    $region11: #{tpu_custom_call.1} parent=1 // pred_check_branch
      %42 = sbr.rel (0) target = $region13
    $region12: #{tpu_custom_call.1} parent=1 // pred_region
      %s44 = ssub.s32 112, 112
      %45 = vsyncadd [#allocation6], %s44
      %s47 = sshll.u32 [#allocation7], 4
      %s48 = int_to_ptr.vmem [resolvable:$true] %s47
      %50 = dma.hbm_to_vmem [thread:$0]  %s2, 112, %s48, [#allocation6]
    $region13: #{tpu_custom_call.1} parent=1 // pred_fallthru
      _
    // Predicated region
    $region14: #{tpu_custom_call.1} parent=1 // pred_check
      _
    $region15: #{tpu_custom_call.1} parent=1 // pred_check_branch
      %52 = sbr.rel (0) target = $region17
    $region16: #{tpu_custom_call.1} parent=1 // pred_region
      %s54 = ssub.s32 50176, 50176
      %55 = vsyncadd [#allocation9], %s54
      %s56 = sshll.u32 [#allocation8], 4
      %s57 = int_to_ptr.vmem [resolvable:$true] %s56
      %62 = dma.hbm_to_vmem [thread:$0]  %s3, 50176, %s57, [#allocation9], 448, 448, 28
    $region17: #{tpu_custom_call.1} parent=1 // pred_fallthru
      _
    // Predicated region
    $region18: #{tpu_custom_call.1} parent=1 // pred_check
      _
    $region19: #{tpu_custom_call.1} parent=1 // pred_check_branch
      %64 = sbr.rel (0) target = $region21
    $region20: #{tpu_custom_call.1} parent=1 // pred_region
      %s66 = ssub.s32 112, 112
      %67 = vsyncadd [#allocation9], %s66
      %s69 = sshll.u32 [#allocation10], 4
      %s70 = int_to_ptr.vmem [resolvable:$true] %s69
      %72 = dma.hbm_to_vmem [thread:$0]  %s4, 112, %s70, [#allocation9]
    $region21: #{tpu_custom_call.1} parent=1 // pred_fallthru
      _
    // Predicated region
    $region22: #{tpu_custom_call.1} parent=1 // pred_check
      _
    $region23: #{tpu_custom_call.1} parent=1 // pred_check_branch
      %74 = sbr.rel (0) target = $region25
    $region24: #{tpu_custom_call.1} parent=1 // pred_region
      %75 = dma.done [#allocation3], 28672
    $region25: #{tpu_custom_call.1} parent=1 // pred_fallthru
      _
    // Predicated region
    $region26: #{tpu_custom_call.1} parent=1 // pred_check
      _
    $region27: #{tpu_custom_call.1} parent=1 // pred_check_branch
      %77 = sbr.rel (0) target = $region29
    $region28: #{tpu_custom_call.1} parent=1 // pred_region
      %78 = dma.done [#allocation6], 50176
    $region29: #{tpu_custom_call.1} parent=1 // pred_fallthru
      _
    // Predicated region
    $region30: #{tpu_custom_call.1} parent=1 // pred_check
      _
    $region31: #{tpu_custom_call.1} parent=1 // pred_check_branch
      %80 = sbr.rel (0) target = $region33
    $region32: #{tpu_custom_call.1} parent=1 // pred_region
      %81 = dma.done [#allocation6], 112
    $region33: #{tpu_custom_call.1} parent=1 // pred_fallthru
      _
    // Predicated region
    $region34: #{tpu_custom_call.1} parent=1 // pred_check
      _
    $region35: #{tpu_custom_call.1} parent=1 // pred_check_branch
      %83 = sbr.rel (0) target = $region37
    $region36: #{tpu_custom_call.1} parent=1 // pred_region
      %84 = dma.done [#allocation9], 50176
    $region37: #{tpu_custom_call.1} parent=1 // pred_fallthru
      _
    // Predicated region
    $region38: #{tpu_custom_call.1} parent=1 // pred_check
      _
    $region39: #{tpu_custom_call.1} parent=1 // pred_check_branch
      %86 = sbr.rel (0) target = $region41
    $region40: #{tpu_custom_call.1} parent=1 // pred_region
      %87 = dma.done [#allocation9], 112
    $region41: #{tpu_custom_call.1} parent=1 // pred_fallthru
      _
    %v89 = vld [vmem:[#allocation2] sm:$0xff]
    %v90 = vld [vmem:[#allocation2 + $0x8] sm:$0xff]
    %v91 = vld [vmem:[#allocation2 + $0x10] sm:$0xff]
    %v92 = vld [vmem:[#allocation2 + $0x18] sm:$0xff]
    %v93 = vld [vmem:[#allocation2 + $0x20] sm:$0xff]
    %v94 = vld [vmem:[#allocation2 + $0x28] sm:$0xff]
    %v95 = vld [vmem:[#allocation2 + $0x30] sm:$0xff]
    %v96 = vld [vmem:[#allocation2 + $0x38] sm:$0xff]
    %v97 = vld [vmem:[#allocation2 + $0x40] sm:$0xff]
    %v98 = vld [vmem:[#allocation2 + $0x48] sm:$0xff]
    %v99 = vld [vmem:[#allocation2 + $0x50] sm:$0xff]
    %v100 = vld [vmem:[#allocation2 + $0x58] sm:$0xff]
    %v101 = vld [vmem:[#allocation2 + $0x60] sm:$0xff]
    %v102 = vld [vmem:[#allocation2 + $0x68] sm:$0xff]
    %v103 = vld [vmem:[#allocation2 + $0x70] sm:$0xff]
    %v104 = vld [vmem:[#allocation2 + $0x78] sm:$0xff]
    %v105 = vld [vmem:[#allocation2 + $0x80] sm:$0xff]
    %v106 = vld [vmem:[#allocation2 + $0x88] sm:$0xff]
    %v107 = vld [vmem:[#allocation2 + $0x90] sm:$0xff]
    %v108 = vld [vmem:[#allocation2 + $0x98] sm:$0xff]
    %v109 = vld [vmem:[#allocation2 + $0xa0] sm:$0xff]
    %v110 = vld [vmem:[#allocation2 + $0xa8] sm:$0xff]
    %v111 = vld [vmem:[#allocation2 + $0xb0] sm:$0xff]
    %v112 = vld [vmem:[#allocation2 + $0xb8] sm:$0xff]
    %v113 = vld [vmem:[#allocation2 + $0xc0] sm:$0xff]
    %v114 = vld [vmem:[#allocation2 + $0xc8] sm:$0xff]
    %v115 = vld [vmem:[#allocation2 + $0xd0] sm:$0xff]
    %v116 = vld [vmem:[#allocation2 + $0xd8] sm:$0xff]
    %v117 = vld [vmem:[#allocation2 + $0xe0] sm:$0xff]
    %v118 = vld [vmem:[#allocation2 + $0xe8] sm:$0xff]
    %v119 = vld [vmem:[#allocation2 + $0xf0] sm:$0xff]
    %v120 = vld [vmem:[#allocation2 + $0xf8] sm:$0xff]
    %v121 = vld [vmem:[#allocation2 + $0x100] sm:$0xff]
    %v122 = vld [vmem:[#allocation2 + $0x108] sm:$0xff]
    %v123 = vld [vmem:[#allocation2 + $0x110] sm:$0xff]
    %v124 = vld [vmem:[#allocation2 + $0x118] sm:$0xff]
    %v125 = vld [vmem:[#allocation2 + $0x120] sm:$0xff]
    %v126 = vld [vmem:[#allocation2 + $0x128] sm:$0xff]
    %v127 = vld [vmem:[#allocation2 + $0x130] sm:$0xff]
    %v128 = vld [vmem:[#allocation2 + $0x138] sm:$0xff]
    %v129 = vld [vmem:[#allocation2 + $0x140] sm:$0xff]
    %v130 = vld [vmem:[#allocation2 + $0x148] sm:$0xff]
    %v131 = vld [vmem:[#allocation2 + $0x150] sm:$0xff]
    %v132 = vld [vmem:[#allocation2 + $0x158] sm:$0xff]
    %v133 = vld [vmem:[#allocation2 + $0x160] sm:$0xff]
    %v134 = vld [vmem:[#allocation2 + $0x168] sm:$0xff]
    %v135 = vld [vmem:[#allocation2 + $0x170] sm:$0xff]
    %v136 = vld [vmem:[#allocation2 + $0x178] sm:$0xff]
    %v137 = vld [vmem:[#allocation2 + $0x180] sm:$0xff]
    %v138 = vld [vmem:[#allocation2 + $0x188] sm:$0xff]
    %v139 = vld [vmem:[#allocation2 + $0x190] sm:$0xff]
    %v140 = vld [vmem:[#allocation2 + $0x198] sm:$0xff]
    %v141 = vld [vmem:[#allocation2 + $0x1a0] sm:$0xff]
    %v142 = vld [vmem:[#allocation2 + $0x1a8] sm:$0xff]
    %v143 = vld [vmem:[#allocation2 + $0x1b0] sm:$0xff]
    %v144 = vld [vmem:[#allocation2 + $0x1b8] sm:$0xff]
    %v145 = vld [vmem:[#allocation2 + $0x1c0] sm:$0xff]
    %v146 = vld [vmem:[#allocation2 + $0x1c8] sm:$0xff]
    %v147 = vld [vmem:[#allocation2 + $0x1d0] sm:$0xff]
    %v148 = vld [vmem:[#allocation2 + $0x1d8] sm:$0xff]
    %v149 = vld [vmem:[#allocation2 + $0x1e0] sm:$0xff]
    %v150 = vld [vmem:[#allocation2 + $0x1e8] sm:$0xff]
    %v151 = vld [vmem:[#allocation2 + $0x1f0] sm:$0xff]
    %v152 = vld [vmem:[#allocation2 + $0x1f8] sm:$0xff]
    %v153 = vld [vmem:[#allocation2 + $0x200] sm:$0xff]
    %v154 = vld [vmem:[#allocation2 + $0x208] sm:$0xff]
    %v155 = vld [vmem:[#allocation2 + $0x210] sm:$0xff]
    %v156 = vld [vmem:[#allocation2 + $0x218] sm:$0xff]
    %v157 = vld [vmem:[#allocation2 + $0x220] sm:$0xff]
    %v158 = vld [vmem:[#allocation2 + $0x228] sm:$0xff]
    %v159 = vld [vmem:[#allocation2 + $0x230] sm:$0xff]
    %v160 = vld [vmem:[#allocation2 + $0x238] sm:$0xff]
    %v161 = vld [vmem:[#allocation2 + $0x240] sm:$0xff]
    %v162 = vld [vmem:[#allocation2 + $0x248] sm:$0xff]
    %v163 = vld [vmem:[#allocation2 + $0x250] sm:$0xff]
    %v164 = vld [vmem:[#allocation2 + $0x258] sm:$0xff]
    %v165 = vld [vmem:[#allocation2 + $0x260] sm:$0xff]
    %v166 = vld [vmem:[#allocation2 + $0x268] sm:$0xff]
    %v167 = vld [vmem:[#allocation2 + $0x270] sm:$0xff]
    %v168 = vld [vmem:[#allocation2 + $0x278] sm:$0xff]
    %v169 = vld [vmem:[#allocation2 + $0x280] sm:$0xff]
    %v170 = vld [vmem:[#allocation2 + $0x288] sm:$0xff]
    %v171 = vld [vmem:[#allocation2 + $0x290] sm:$0xff]
    %v172 = vld [vmem:[#allocation2 + $0x298] sm:$0xff]
    %v173 = vld [vmem:[#allocation2 + $0x2a0] sm:$0xff]
    %v174 = vld [vmem:[#allocation2 + $0x2a8] sm:$0xff]
    %v175 = vld [vmem:[#allocation2 + $0x2b0] sm:$0xff]
    %v176 = vld [vmem:[#allocation2 + $0x2b8] sm:$0xff]
    %v177 = vld [vmem:[#allocation2 + $0x2c0] sm:$0xff]
    %v178 = vld [vmem:[#allocation2 + $0x2c8] sm:$0xff]
    %v179 = vld [vmem:[#allocation2 + $0x2d0] sm:$0xff]
    %v180 = vld [vmem:[#allocation2 + $0x2d8] sm:$0xff]
    %v181 = vld [vmem:[#allocation2 + $0x2e0] sm:$0xff]
    %v182 = vld [vmem:[#allocation2 + $0x2e8] sm:$0xff]
    %v183 = vld [vmem:[#allocation2 + $0x2f0] sm:$0xff]
    %v184 = vld [vmem:[#allocation2 + $0x2f8] sm:$0xff]
    %v185 = vld [vmem:[#allocation2 + $0x300] sm:$0xff]
    %v186 = vld [vmem:[#allocation2 + $0x308] sm:$0xff]
    %v187 = vld [vmem:[#allocation2 + $0x310] sm:$0xff]
    %v188 = vld [vmem:[#allocation2 + $0x318] sm:$0xff]
    %v189 = vld [vmem:[#allocation2 + $0x320] sm:$0xff]
    %v190 = vld [vmem:[#allocation2 + $0x328] sm:$0xff]
    %v191 = vld [vmem:[#allocation2 + $0x330] sm:$0xff]
    %v192 = vld [vmem:[#allocation2 + $0x338] sm:$0xff]
    %v193 = vld [vmem:[#allocation2 + $0x340] sm:$0xff]
    %v194 = vld [vmem:[#allocation2 + $0x348] sm:$0xff]
    %v195 = vld [vmem:[#allocation2 + $0x350] sm:$0xff]
    %v196 = vld [vmem:[#allocation2 + $0x358] sm:$0xff]
    %v197 = vld [vmem:[#allocation2 + $0x360] sm:$0xff]
    %v198 = vld [vmem:[#allocation2 + $0x368] sm:$0xff]
    %v199 = vld [vmem:[#allocation2 + $0x370] sm:$0xff]
    %v200 = vld [vmem:[#allocation2 + $0x378] sm:$0xff]
    %v201 = vld [vmem:[#allocation2 + $0x380] sm:$0xff]
    %v202 = vld [vmem:[#allocation2 + $0x388] sm:$0xff]
    %v203 = vld [vmem:[#allocation2 + $0x390] sm:$0xff]
    %v204 = vld [vmem:[#allocation2 + $0x398] sm:$0xff]
    %v205 = vld [vmem:[#allocation2 + $0x3a0] sm:$0xff]
    %v206 = vld [vmem:[#allocation2 + $0x3a8] sm:$0xff]
    %v207 = vld [vmem:[#allocation2 + $0x3b0] sm:$0xff]
    %v208 = vld [vmem:[#allocation2 + $0x3b8] sm:$0xff]
    %v209 = vld [vmem:[#allocation2 + $0x3c0] sm:$0xff]
    %v210 = vld [vmem:[#allocation2 + $0x3c8] sm:$0xff]
    %v211 = vld [vmem:[#allocation2 + $0x3d0] sm:$0xff]
    %v212 = vld [vmem:[#allocation2 + $0x3d8] sm:$0xff]
    %v213 = vld [vmem:[#allocation2 + $0x3e0] sm:$0xff]
    %v214 = vld [vmem:[#allocation2 + $0x3e8] sm:$0xff]
    %v215 = vld [vmem:[#allocation2 + $0x3f0] sm:$0xff]
    %v216 = vld [vmem:[#allocation2 + $0x3f8] sm:$0xff]
    %v217 = vld [vmem:[#allocation2 + $0x400] sm:$0xff]
    %v218 = vld [vmem:[#allocation2 + $0x408] sm:$0xff]
    %v219 = vld [vmem:[#allocation2 + $0x410] sm:$0xff]
    %v220 = vld [vmem:[#allocation2 + $0x418] sm:$0xff]
    %v221 = vld [vmem:[#allocation2 + $0x420] sm:$0xff]
    %v222 = vld [vmem:[#allocation2 + $0x428] sm:$0xff]
    %v223 = vld [vmem:[#allocation2 + $0x430] sm:$0xff]
    %v224 = vld [vmem:[#allocation2 + $0x438] sm:$0xff]
    %v225 = vld [vmem:[#allocation2 + $0x440] sm:$0xff]
    %v226 = vld [vmem:[#allocation2 + $0x448] sm:$0xff]
    %v227 = vld [vmem:[#allocation2 + $0x450] sm:$0xff]
    %v228 = vld [vmem:[#allocation2 + $0x458] sm:$0xff]
    %v229 = vld [vmem:[#allocation2 + $0x460] sm:$0xff]
    %v230 = vld [vmem:[#allocation2 + $0x468] sm:$0xff]
    %v231 = vld [vmem:[#allocation2 + $0x470] sm:$0xff]
    %v232 = vld [vmem:[#allocation2 + $0x478] sm:$0xff]
    %v233 = vld [vmem:[#allocation2 + $0x480] sm:$0xff]
    %v234 = vld [vmem:[#allocation2 + $0x488] sm:$0xff]
    %v235 = vld [vmem:[#allocation2 + $0x490] sm:$0xff]
    %v236 = vld [vmem:[#allocation2 + $0x498] sm:$0xff]
    %v237 = vld [vmem:[#allocation2 + $0x4a0] sm:$0xff]
    %v238 = vld [vmem:[#allocation2 + $0x4a8] sm:$0xff]
    %v239 = vld [vmem:[#allocation2 + $0x4b0] sm:$0xff]
    %v240 = vld [vmem:[#allocation2 + $0x4b8] sm:$0xff]
    %v241 = vld [vmem:[#allocation2 + $0x4c0] sm:$0xff]
    %v242 = vld [vmem:[#allocation2 + $0x4c8] sm:$0xff]
    %v243 = vld [vmem:[#allocation2 + $0x4d0] sm:$0xff]
    %v244 = vld [vmem:[#allocation2 + $0x4d8] sm:$0xff]
    %v245 = vld [vmem:[#allocation2 + $0x4e0] sm:$0xff]
    %v246 = vld [vmem:[#allocation2 + $0x4e8] sm:$0xff]
    %v247 = vld [vmem:[#allocation2 + $0x4f0] sm:$0xff]
    %v248 = vld [vmem:[#allocation2 + $0x4f8] sm:$0xff]
    %v249 = vld [vmem:[#allocation2 + $0x500] sm:$0xff]
    %v250 = vld [vmem:[#allocation2 + $0x508] sm:$0xff]
    %v251 = vld [vmem:[#allocation2 + $0x510] sm:$0xff]
    %v252 = vld [vmem:[#allocation2 + $0x518] sm:$0xff]
    %v253 = vld [vmem:[#allocation2 + $0x520] sm:$0xff]
    %v254 = vld [vmem:[#allocation2 + $0x528] sm:$0xff]
    %v255 = vld [vmem:[#allocation2 + $0x530] sm:$0xff]
    %v256 = vld [vmem:[#allocation2 + $0x538] sm:$0xff]
    %v257 = vld [vmem:[#allocation2 + $0x540] sm:$0xff]
    %v258 = vld [vmem:[#allocation2 + $0x548] sm:$0xff]
    %v259 = vld [vmem:[#allocation2 + $0x550] sm:$0xff]
    %v260 = vld [vmem:[#allocation2 + $0x558] sm:$0xff]
    %v261 = vld [vmem:[#allocation2 + $0x560] sm:$0xff]
    %v262 = vld [vmem:[#allocation2 + $0x568] sm:$0xff]
    %v263 = vld [vmem:[#allocation2 + $0x570] sm:$0xff]
    %v264 = vld [vmem:[#allocation2 + $0x578] sm:$0xff]
    %v265 = vld [vmem:[#allocation2 + $0x580] sm:$0xff]
    %v266 = vld [vmem:[#allocation2 + $0x588] sm:$0xff]
    %v267 = vld [vmem:[#allocation2 + $0x590] sm:$0xff]
    %v268 = vld [vmem:[#allocation2 + $0x598] sm:$0xff]
    %v269 = vld [vmem:[#allocation2 + $0x5a0] sm:$0xff]
    %v270 = vld [vmem:[#allocation2 + $0x5a8] sm:$0xff]
    %v271 = vld [vmem:[#allocation2 + $0x5b0] sm:$0xff]
    %v272 = vld [vmem:[#allocation2 + $0x5b8] sm:$0xff]
    %v273 = vld [vmem:[#allocation2 + $0x5c0] sm:$0xff]
    %v274 = vld [vmem:[#allocation2 + $0x5c8] sm:$0xff]
    %v275 = vld [vmem:[#allocation2 + $0x5d0] sm:$0xff]
    %v276 = vld [vmem:[#allocation2 + $0x5d8] sm:$0xff]
    %v277 = vld [vmem:[#allocation2 + $0x5e0] sm:$0xff]
    %v278 = vld [vmem:[#allocation2 + $0x5e8] sm:$0xff]
    %v279 = vld [vmem:[#allocation2 + $0x5f0] sm:$0xff]
    %v280 = vld [vmem:[#allocation2 + $0x5f8] sm:$0xff]
    %v281 = vld [vmem:[#allocation2 + $0x600] sm:$0xff]
    %v282 = vld [vmem:[#allocation2 + $0x608] sm:$0xff]
    %v283 = vld [vmem:[#allocation2 + $0x610] sm:$0xff]
    %v284 = vld [vmem:[#allocation2 + $0x618] sm:$0xff]
    %v285 = vld [vmem:[#allocation2 + $0x620] sm:$0xff]
    %v286 = vld [vmem:[#allocation2 + $0x628] sm:$0xff]
    %v287 = vld [vmem:[#allocation2 + $0x630] sm:$0xff]
    %v288 = vld [vmem:[#allocation2 + $0x638] sm:$0xff]
    %v289 = vld [vmem:[#allocation2 + $0x640] sm:$0xff]
    %v290 = vld [vmem:[#allocation2 + $0x648] sm:$0xff]
    %v291 = vld [vmem:[#allocation2 + $0x650] sm:$0xff]
    %v292 = vld [vmem:[#allocation2 + $0x658] sm:$0xff]
    %v293 = vld [vmem:[#allocation2 + $0x660] sm:$0xff]
    %v294 = vld [vmem:[#allocation2 + $0x668] sm:$0xff]
    %v295 = vld [vmem:[#allocation2 + $0x670] sm:$0xff]
    %v296 = vld [vmem:[#allocation2 + $0x678] sm:$0xff]
    %v297 = vld [vmem:[#allocation2 + $0x680] sm:$0xff]
    %v298 = vld [vmem:[#allocation2 + $0x688] sm:$0xff]
    %v299 = vld [vmem:[#allocation2 + $0x690] sm:$0xff]
    %v300 = vld [vmem:[#allocation2 + $0x698] sm:$0xff]
    %v301 = vld [vmem:[#allocation2 + $0x6a0] sm:$0xff]
    %v302 = vld [vmem:[#allocation2 + $0x6a8] sm:$0xff]
    %v303 = vld [vmem:[#allocation2 + $0x6b0] sm:$0xff]
    %v304 = vld [vmem:[#allocation2 + $0x6b8] sm:$0xff]
    %v305 = vld [vmem:[#allocation2 + $0x6c0] sm:$0xff]
    %v306 = vld [vmem:[#allocation2 + $0x6c8] sm:$0xff]
    %v307 = vld [vmem:[#allocation2 + $0x6d0] sm:$0xff]
    %v308 = vld [vmem:[#allocation2 + $0x6d8] sm:$0xff]
    %v309 = vld [vmem:[#allocation2 + $0x6e0] sm:$0xff]
    %v310 = vld [vmem:[#allocation2 + $0x6e8] sm:$0xff]
    %v311 = vld [vmem:[#allocation2 + $0x6f0] sm:$0xff]
    %v312 = vld [vmem:[#allocation2 + $0x6f8] sm:$0xff]
    %v313 = vpack.c.bf16 %v96, %v89
    %v314 = vpack.c.bf16 %v97, %v90
    %v315 = vpack.c.bf16 %v98, %v91
    %v316 = vpack.c.bf16 %v99, %v92
    %v317 = vpack.c.bf16 %v100, %v93
    %v318 = vpack.c.bf16 %v101, %v94
    %v319 = vpack.c.bf16 %v102, %v95
    %v320 = vpack.c.bf16 %v110, %v103
    %v321 = vpack.c.bf16 %v111, %v104
    %v322 = vpack.c.bf16 %v112, %v105
    %v323 = vpack.c.bf16 %v113, %v106
    %v324 = vpack.c.bf16 %v114, %v107
    %v325 = vpack.c.bf16 %v115, %v108
    %v326 = vpack.c.bf16 %v116, %v109
    %v327 = vpack.c.bf16 %v124, %v117
    %v328 = vpack.c.bf16 %v125, %v118
    %v329 = vpack.c.bf16 %v126, %v119
    %v330 = vpack.c.bf16 %v127, %v120
    %v331 = vpack.c.bf16 %v128, %v121
    %v332 = vpack.c.bf16 %v129, %v122
    %v333 = vpack.c.bf16 %v130, %v123
    %v334 = vpack.c.bf16 %v138, %v131
    %v335 = vpack.c.bf16 %v139, %v132
    %v336 = vpack.c.bf16 %v140, %v133
    %v337 = vpack.c.bf16 %v141, %v134
    %v338 = vpack.c.bf16 %v142, %v135
    %v339 = vpack.c.bf16 %v143, %v136
    %v340 = vpack.c.bf16 %v144, %v137
    %v341 = vpack.c.bf16 %v152, %v145
    %v342 = vpack.c.bf16 %v153, %v146
    %v343 = vpack.c.bf16 %v154, %v147
    %v344 = vpack.c.bf16 %v155, %v148
    %v345 = vpack.c.bf16 %v156, %v149
    %v346 = vpack.c.bf16 %v157, %v150
    %v347 = vpack.c.bf16 %v158, %v151
    %v348 = vpack.c.bf16 %v166, %v159
    %v349 = vpack.c.bf16 %v167, %v160
    %v350 = vpack.c.bf16 %v168, %v161
    %v351 = vpack.c.bf16 %v169, %v162
    %v352 = vpack.c.bf16 %v170, %v163
    %v353 = vpack.c.bf16 %v171, %v164
    %v354 = vpack.c.bf16 %v172, %v165
    %v355 = vpack.c.bf16 %v180, %v173
    %v356 = vpack.c.bf16 %v181, %v174
    %v357 = vpack.c.bf16 %v182, %v175
    %v358 = vpack.c.bf16 %v183, %v176
    %v359 = vpack.c.bf16 %v184, %v177
    %v360 = vpack.c.bf16 %v185, %v178
    %v361 = vpack.c.bf16 %v186, %v179
    %v362 = vpack.c.bf16 %v194, %v187
    %v363 = vpack.c.bf16 %v195, %v188
    %v364 = vpack.c.bf16 %v196, %v189
    %v365 = vpack.c.bf16 %v197, %v190
    %v366 = vpack.c.bf16 %v198, %v191
    %v367 = vpack.c.bf16 %v199, %v192
    %v368 = vpack.c.bf16 %v200, %v193
    %v369 = vpack.c.bf16 %v208, %v201
    %v370 = vpack.c.bf16 %v209, %v202
    %v371 = vpack.c.bf16 %v210, %v203
    %v372 = vpack.c.bf16 %v211, %v204
    %v373 = vpack.c.bf16 %v212, %v205
    %v374 = vpack.c.bf16 %v213, %v206
    %v375 = vpack.c.bf16 %v214, %v207
    %v376 = vpack.c.bf16 %v222, %v215
    %v377 = vpack.c.bf16 %v223, %v216
    %v378 = vpack.c.bf16 %v224, %v217
    %v379 = vpack.c.bf16 %v225, %v218
    %v380 = vpack.c.bf16 %v226, %v219
    %v381 = vpack.c.bf16 %v227, %v220
    %v382 = vpack.c.bf16 %v228, %v221
    %v383 = vpack.c.bf16 %v236, %v229
    %v384 = vpack.c.bf16 %v237, %v230
    %v385 = vpack.c.bf16 %v238, %v231
    %v386 = vpack.c.bf16 %v239, %v232
    %v387 = vpack.c.bf16 %v240, %v233
    %v388 = vpack.c.bf16 %v241, %v234
    %v389 = vpack.c.bf16 %v242, %v235
    %v390 = vpack.c.bf16 %v250, %v243
    %v391 = vpack.c.bf16 %v251, %v244
    %v392 = vpack.c.bf16 %v252, %v245
    %v393 = vpack.c.bf16 %v253, %v246
    %v394 = vpack.c.bf16 %v254, %v247
    %v395 = vpack.c.bf16 %v255, %v248
    %v396 = vpack.c.bf16 %v256, %v249
    %v397 = vpack.c.bf16 %v264, %v257
    %v398 = vpack.c.bf16 %v265, %v258
    %v399 = vpack.c.bf16 %v266, %v259
    %v400 = vpack.c.bf16 %v267, %v260
    %v401 = vpack.c.bf16 %v268, %v261
    %v402 = vpack.c.bf16 %v269, %v262
    %v403 = vpack.c.bf16 %v270, %v263
    %v404 = vpack.c.bf16 %v278, %v271
    %v405 = vpack.c.bf16 %v279, %v272
    %v406 = vpack.c.bf16 %v280, %v273
    %v407 = vpack.c.bf16 %v281, %v274
    %v408 = vpack.c.bf16 %v282, %v275
    %v409 = vpack.c.bf16 %v283, %v276
    %v410 = vpack.c.bf16 %v284, %v277
    %v411 = vpack.c.bf16 %v292, %v285
    %v412 = vpack.c.bf16 %v293, %v286
    %v413 = vpack.c.bf16 %v294, %v287
    %v414 = vpack.c.bf16 %v295, %v288
    %v415 = vpack.c.bf16 %v296, %v289
    %v416 = vpack.c.bf16 %v297, %v290
    %v417 = vpack.c.bf16 %v298, %v291
    %v418 = vpack.c.bf16 %v306, %v299
    %v419 = vpack.c.bf16 %v307, %v300
    %v420 = vpack.c.bf16 %v308, %v301
    %v421 = vpack.c.bf16 %v309, %v302
    %v422 = vpack.c.bf16 %v310, %v303
    %v423 = vpack.c.bf16 %v311, %v304
    %v424 = vpack.c.bf16 %v312, %v305
    %v425 = vld [vmem:[#allocation5] sm:$0xff]
    %v426 = vld [vmem:[#allocation5 + $0x8] sm:$0xff]
    %v427 = vld [vmem:[#allocation5 + $0x10] sm:$0xff]
    %v428 = vld [vmem:[#allocation5 + $0x18] sm:$0xf]
    %v429 = vld [vmem:[#allocation5 + $0x1c] sm:$0xff]
    %v430 = vld [vmem:[#allocation5 + $0x24] sm:$0xff]
    %v431 = vld [vmem:[#allocation5 + $0x2c] sm:$0xff]
    %v432 = vld [vmem:[#allocation5 + $0x34] sm:$0xf]
    %v433 = vld [vmem:[#allocation5 + $0x38] sm:$0xff]
    %v434 = vld [vmem:[#allocation5 + $0x40] sm:$0xff]
    %v435 = vld [vmem:[#allocation5 + $0x48] sm:$0xff]
    %v436 = vld [vmem:[#allocation5 + $0x50] sm:$0xf]
    %v437 = vld [vmem:[#allocation5 + $0x54] sm:$0xff]
    %v438 = vld [vmem:[#allocation5 + $0x5c] sm:$0xff]
    %v439 = vld [vmem:[#allocation5 + $0x64] sm:$0xff]
    %v440 = vld [vmem:[#allocation5 + $0x6c] sm:$0xf]
    %v441 = vld [vmem:[#allocation5 + $0x70] sm:$0xff]
    %v442 = vld [vmem:[#allocation5 + $0x78] sm:$0xff]
    %v443 = vld [vmem:[#allocation5 + $0x80] sm:$0xff]
    %v444 = vld [vmem:[#allocation5 + $0x88] sm:$0xf]
    %v445 = vld [vmem:[#allocation5 + $0x8c] sm:$0xff]
    %v446 = vld [vmem:[#allocation5 + $0x94] sm:$0xff]
    %v447 = vld [vmem:[#allocation5 + $0x9c] sm:$0xff]
    %v448 = vld [vmem:[#allocation5 + $0xa4] sm:$0xf]
    %v449 = vld [vmem:[#allocation5 + $0xa8] sm:$0xff]
    %v450 = vld [vmem:[#allocation5 + $0xb0] sm:$0xff]
    %v451 = vld [vmem:[#allocation5 + $0xb8] sm:$0xff]
    %v452 = vld [vmem:[#allocation5 + $0xc0] sm:$0xf]
    %v453 = vld [vmem:[#allocation5 + $0xc4] sm:$0xff]
    %v454 = vld [vmem:[#allocation5 + $0xcc] sm:$0xff]
    %v455 = vld [vmem:[#allocation5 + $0xd4] sm:$0xff]
    %v456 = vld [vmem:[#allocation5 + $0xdc] sm:$0xf]
    %v457 = vld [vmem:[#allocation5 + $0xe0] sm:$0xff]
    %v458 = vld [vmem:[#allocation5 + $0xe8] sm:$0xff]
    %v459 = vld [vmem:[#allocation5 + $0xf0] sm:$0xff]
    %v460 = vld [vmem:[#allocation5 + $0xf8] sm:$0xf]
    %v461 = vld [vmem:[#allocation5 + $0xfc] sm:$0xff]
    %v462 = vld [vmem:[#allocation5 + $0x104] sm:$0xff]
    %v463 = vld [vmem:[#allocation5 + $0x10c] sm:$0xff]
    %v464 = vld [vmem:[#allocation5 + $0x114] sm:$0xf]
    %v465 = vld [vmem:[#allocation5 + $0x118] sm:$0xff]
    %v466 = vld [vmem:[#allocation5 + $0x120] sm:$0xff]
    %v467 = vld [vmem:[#allocation5 + $0x128] sm:$0xff]
    %v468 = vld [vmem:[#allocation5 + $0x130] sm:$0xf]
    %v469 = vld [vmem:[#allocation5 + $0x134] sm:$0xff]
    %v470 = vld [vmem:[#allocation5 + $0x13c] sm:$0xff]
    %v471 = vld [vmem:[#allocation5 + $0x144] sm:$0xff]
    %v472 = vld [vmem:[#allocation5 + $0x14c] sm:$0xf]
    %v473 = vld [vmem:[#allocation5 + $0x150] sm:$0xff]
    %v474 = vld [vmem:[#allocation5 + $0x158] sm:$0xff]
    %v475 = vld [vmem:[#allocation5 + $0x160] sm:$0xff]
    %v476 = vld [vmem:[#allocation5 + $0x168] sm:$0xf]
    %v477 = vld [vmem:[#allocation5 + $0x16c] sm:$0xff]
    %v478 = vld [vmem:[#allocation5 + $0x174] sm:$0xff]
    %v479 = vld [vmem:[#allocation5 + $0x17c] sm:$0xff]
    %v480 = vld [vmem:[#allocation5 + $0x184] sm:$0xf]
    %v481 = vld [vmem:[#allocation5 + $0x188] sm:$0xff]
    %v482 = vld [vmem:[#allocation5 + $0x190] sm:$0xff]
    %v483 = vld [vmem:[#allocation5 + $0x198] sm:$0xff]
    %v484 = vld [vmem:[#allocation5 + $0x1a0] sm:$0xf]
    %v485 = vld [vmem:[#allocation5 + $0x1a4] sm:$0xff]
    %v486 = vld [vmem:[#allocation5 + $0x1ac] sm:$0xff]
    %v487 = vld [vmem:[#allocation5 + $0x1b4] sm:$0xff]
    %v488 = vld [vmem:[#allocation5 + $0x1bc] sm:$0xf]
    %v489 = vld [vmem:[#allocation5 + $0x1c0] sm:$0xff]
    %v490 = vld [vmem:[#allocation5 + $0x1c8] sm:$0xff]
    %v491 = vld [vmem:[#allocation5 + $0x1d0] sm:$0xff]
    %v492 = vld [vmem:[#allocation5 + $0x1d8] sm:$0xf]
    %v493 = vld [vmem:[#allocation5 + $0x1dc] sm:$0xff]
    %v494 = vld [vmem:[#allocation5 + $0x1e4] sm:$0xff]
    %v495 = vld [vmem:[#allocation5 + $0x1ec] sm:$0xff]
    %v496 = vld [vmem:[#allocation5 + $0x1f4] sm:$0xf]
    %v497 = vld [vmem:[#allocation5 + $0x1f8] sm:$0xff]
    %v498 = vld [vmem:[#allocation5 + $0x200] sm:$0xff]
    %v499 = vld [vmem:[#allocation5 + $0x208] sm:$0xff]
    %v500 = vld [vmem:[#allocation5 + $0x210] sm:$0xf]
    %v501 = vld [vmem:[#allocation5 + $0x214] sm:$0xff]
    %v502 = vld [vmem:[#allocation5 + $0x21c] sm:$0xff]
    %v503 = vld [vmem:[#allocation5 + $0x224] sm:$0xff]
    %v504 = vld [vmem:[#allocation5 + $0x22c] sm:$0xf]
    %v505 = vld [vmem:[#allocation5 + $0x230] sm:$0xff]
    %v506 = vld [vmem:[#allocation5 + $0x238] sm:$0xff]
    %v507 = vld [vmem:[#allocation5 + $0x240] sm:$0xff]
    %v508 = vld [vmem:[#allocation5 + $0x248] sm:$0xf]
    %v509 = vld [vmem:[#allocation5 + $0x24c] sm:$0xff]
    %v510 = vld [vmem:[#allocation5 + $0x254] sm:$0xff]
    %v511 = vld [vmem:[#allocation5 + $0x25c] sm:$0xff]
    %v512 = vld [vmem:[#allocation5 + $0x264] sm:$0xf]
    %v513 = vld [vmem:[#allocation5 + $0x268] sm:$0xff]
    %v514 = vld [vmem:[#allocation5 + $0x270] sm:$0xff]
    %v515 = vld [vmem:[#allocation5 + $0x278] sm:$0xff]
    %v516 = vld [vmem:[#allocation5 + $0x280] sm:$0xf]
    %v517 = vld [vmem:[#allocation5 + $0x284] sm:$0xff]
    %v518 = vld [vmem:[#allocation5 + $0x28c] sm:$0xff]
    %v519 = vld [vmem:[#allocation5 + $0x294] sm:$0xff]
    %v520 = vld [vmem:[#allocation5 + $0x29c] sm:$0xf]
    %v521 = vld [vmem:[#allocation5 + $0x2a0] sm:$0xff]
    %v522 = vld [vmem:[#allocation5 + $0x2a8] sm:$0xff]
    %v523 = vld [vmem:[#allocation5 + $0x2b0] sm:$0xff]
    %v524 = vld [vmem:[#allocation5 + $0x2b8] sm:$0xf]
    %v525 = vld [vmem:[#allocation5 + $0x2bc] sm:$0xff]
    %v526 = vld [vmem:[#allocation5 + $0x2c4] sm:$0xff]
    %v527 = vld [vmem:[#allocation5 + $0x2cc] sm:$0xff]
    %v528 = vld [vmem:[#allocation5 + $0x2d4] sm:$0xf]
    %v529 = vld [vmem:[#allocation5 + $0x2d8] sm:$0xff]
    %v530 = vld [vmem:[#allocation5 + $0x2e0] sm:$0xff]
    %v531 = vld [vmem:[#allocation5 + $0x2e8] sm:$0xff]
    %v532 = vld [vmem:[#allocation5 + $0x2f0] sm:$0xf]
    %v533 = vld [vmem:[#allocation5 + $0x2f4] sm:$0xff]
    %v534 = vld [vmem:[#allocation5 + $0x2fc] sm:$0xff]
    %v535 = vld [vmem:[#allocation5 + $0x304] sm:$0xff]
    %v536 = vld [vmem:[#allocation5 + $0x30c] sm:$0xf]
    %v537 = vld [vmem:[#allocation5 + $0x310] sm:$0xff]
    %v538 = vld [vmem:[#allocation5 + $0x318] sm:$0xff]
    %v539 = vld [vmem:[#allocation5 + $0x320] sm:$0xff]
    %v540 = vld [vmem:[#allocation5 + $0x328] sm:$0xf]
    %v541 = vld [vmem:[#allocation5 + $0x32c] sm:$0xff]
    %v542 = vld [vmem:[#allocation5 + $0x334] sm:$0xff]
    %v543 = vld [vmem:[#allocation5 + $0x33c] sm:$0xff]
    %v544 = vld [vmem:[#allocation5 + $0x344] sm:$0xf]
    %v545 = vld [vmem:[#allocation5 + $0x348] sm:$0xff]
    %v546 = vld [vmem:[#allocation5 + $0x350] sm:$0xff]
    %v547 = vld [vmem:[#allocation5 + $0x358] sm:$0xff]
    %v548 = vld [vmem:[#allocation5 + $0x360] sm:$0xf]
    %v549 = vld [vmem:[#allocation5 + $0x364] sm:$0xff]
    %v550 = vld [vmem:[#allocation5 + $0x36c] sm:$0xff]
    %v551 = vld [vmem:[#allocation5 + $0x374] sm:$0xff]
    %v552 = vld [vmem:[#allocation5 + $0x37c] sm:$0xf]
    %v553 = vld [vmem:[#allocation5 + $0x380] sm:$0xff]
    %v554 = vld [vmem:[#allocation5 + $0x388] sm:$0xff]
    %v555 = vld [vmem:[#allocation5 + $0x390] sm:$0xff]
    %v556 = vld [vmem:[#allocation5 + $0x398] sm:$0xf]
    %v557 = vld [vmem:[#allocation5 + $0x39c] sm:$0xff]
    %v558 = vld [vmem:[#allocation5 + $0x3a4] sm:$0xff]
    %v559 = vld [vmem:[#allocation5 + $0x3ac] sm:$0xff]
    %v560 = vld [vmem:[#allocation5 + $0x3b4] sm:$0xf]
    %v561 = vld [vmem:[#allocation5 + $0x3b8] sm:$0xff]
    %v562 = vld [vmem:[#allocation5 + $0x3c0] sm:$0xff]
    %v563 = vld [vmem:[#allocation5 + $0x3c8] sm:$0xff]
    %v564 = vld [vmem:[#allocation5 + $0x3d0] sm:$0xf]
    %v565 = vld [vmem:[#allocation5 + $0x3d4] sm:$0xff]
    %v566 = vld [vmem:[#allocation5 + $0x3dc] sm:$0xff]
    %v567 = vld [vmem:[#allocation5 + $0x3e4] sm:$0xff]
    %v568 = vld [vmem:[#allocation5 + $0x3ec] sm:$0xf]
    %v569 = vld [vmem:[#allocation5 + $0x3f0] sm:$0xff]
    %v570 = vld [vmem:[#allocation5 + $0x3f8] sm:$0xff]
    %v571 = vld [vmem:[#allocation5 + $0x400] sm:$0xff]
    %v572 = vld [vmem:[#allocation5 + $0x408] sm:$0xf]
    %v573 = vld [vmem:[#allocation5 + $0x40c] sm:$0xff]
    %v574 = vld [vmem:[#allocation5 + $0x414] sm:$0xff]
    %v575 = vld [vmem:[#allocation5 + $0x41c] sm:$0xff]
    %v576 = vld [vmem:[#allocation5 + $0x424] sm:$0xf]
    %v577 = vld [vmem:[#allocation5 + $0x428] sm:$0xff]
    %v578 = vld [vmem:[#allocation5 + $0x430] sm:$0xff]
    %v579 = vld [vmem:[#allocation5 + $0x438] sm:$0xff]
    %v580 = vld [vmem:[#allocation5 + $0x440] sm:$0xf]
    %v581 = vld [vmem:[#allocation5 + $0x444] sm:$0xff]
    %v582 = vld [vmem:[#allocation5 + $0x44c] sm:$0xff]
    %v583 = vld [vmem:[#allocation5 + $0x454] sm:$0xff]
    %v584 = vld [vmem:[#allocation5 + $0x45c] sm:$0xf]
    %v585 = vld [vmem:[#allocation5 + $0x460] sm:$0xff]
    %v586 = vld [vmem:[#allocation5 + $0x468] sm:$0xff]
    %v587 = vld [vmem:[#allocation5 + $0x470] sm:$0xff]
    %v588 = vld [vmem:[#allocation5 + $0x478] sm:$0xf]
    %v589 = vld [vmem:[#allocation5 + $0x47c] sm:$0xff]
    %v590 = vld [vmem:[#allocation5 + $0x484] sm:$0xff]
    %v591 = vld [vmem:[#allocation5 + $0x48c] sm:$0xff]
    %v592 = vld [vmem:[#allocation5 + $0x494] sm:$0xf]
    %v593 = vld [vmem:[#allocation5 + $0x498] sm:$0xff]
    %v594 = vld [vmem:[#allocation5 + $0x4a0] sm:$0xff]
    %v595 = vld [vmem:[#allocation5 + $0x4a8] sm:$0xff]
    %v596 = vld [vmem:[#allocation5 + $0x4b0] sm:$0xf]
    %v597 = vld [vmem:[#allocation5 + $0x4b4] sm:$0xff]
    %v598 = vld [vmem:[#allocation5 + $0x4bc] sm:$0xff]
    %v599 = vld [vmem:[#allocation5 + $0x4c4] sm:$0xff]
    %v600 = vld [vmem:[#allocation5 + $0x4cc] sm:$0xf]
    %v601 = vld [vmem:[#allocation5 + $0x4d0] sm:$0xff]
    %v602 = vld [vmem:[#allocation5 + $0x4d8] sm:$0xff]
    %v603 = vld [vmem:[#allocation5 + $0x4e0] sm:$0xff]
    %v604 = vld [vmem:[#allocation5 + $0x4e8] sm:$0xf]
    %v605 = vld [vmem:[#allocation5 + $0x4ec] sm:$0xff]
    %v606 = vld [vmem:[#allocation5 + $0x4f4] sm:$0xff]
    %v607 = vld [vmem:[#allocation5 + $0x4fc] sm:$0xff]
    %v608 = vld [vmem:[#allocation5 + $0x504] sm:$0xf]
    %v609 = vld [vmem:[#allocation5 + $0x508] sm:$0xff]
    %v610 = vld [vmem:[#allocation5 + $0x510] sm:$0xff]
    %v611 = vld [vmem:[#allocation5 + $0x518] sm:$0xff]
    %v612 = vld [vmem:[#allocation5 + $0x520] sm:$0xf]
    %v613 = vld [vmem:[#allocation5 + $0x524] sm:$0xff]
    %v614 = vld [vmem:[#allocation5 + $0x52c] sm:$0xff]
    %v615 = vld [vmem:[#allocation5 + $0x534] sm:$0xff]
    %v616 = vld [vmem:[#allocation5 + $0x53c] sm:$0xf]
    %v617 = vld [vmem:[#allocation5 + $0x540] sm:$0xff]
    %v618 = vld [vmem:[#allocation5 + $0x548] sm:$0xff]
    %v619 = vld [vmem:[#allocation5 + $0x550] sm:$0xff]
    %v620 = vld [vmem:[#allocation5 + $0x558] sm:$0xf]
    %v621 = vld [vmem:[#allocation5 + $0x55c] sm:$0xff]
    %v622 = vld [vmem:[#allocation5 + $0x564] sm:$0xff]
    %v623 = vld [vmem:[#allocation5 + $0x56c] sm:$0xff]
    %v624 = vld [vmem:[#allocation5 + $0x574] sm:$0xf]
    %v625 = vld [vmem:[#allocation5 + $0x578] sm:$0xff]
    %v626 = vld [vmem:[#allocation5 + $0x580] sm:$0xff]
    %v627 = vld [vmem:[#allocation5 + $0x588] sm:$0xff]
    %v628 = vld [vmem:[#allocation5 + $0x590] sm:$0xf]
    %v629 = vld [vmem:[#allocation5 + $0x594] sm:$0xff]
    %v630 = vld [vmem:[#allocation5 + $0x59c] sm:$0xff]
    %v631 = vld [vmem:[#allocation5 + $0x5a4] sm:$0xff]
    %v632 = vld [vmem:[#allocation5 + $0x5ac] sm:$0xf]
    %v633 = vld [vmem:[#allocation5 + $0x5b0] sm:$0xff]
    %v634 = vld [vmem:[#allocation5 + $0x5b8] sm:$0xff]
    %v635 = vld [vmem:[#allocation5 + $0x5c0] sm:$0xff]
    %v636 = vld [vmem:[#allocation5 + $0x5c8] sm:$0xf]
    %v637 = vld [vmem:[#allocation5 + $0x5cc] sm:$0xff]
    %v638 = vld [vmem:[#allocation5 + $0x5d4] sm:$0xff]
    %v639 = vld [vmem:[#allocation5 + $0x5dc] sm:$0xff]
    %v640 = vld [vmem:[#allocation5 + $0x5e4] sm:$0xf]
    %v641 = vld [vmem:[#allocation5 + $0x5e8] sm:$0xff]
    %v642 = vld [vmem:[#allocation5 + $0x5f0] sm:$0xff]
    %v643 = vld [vmem:[#allocation5 + $0x5f8] sm:$0xff]
    %v644 = vld [vmem:[#allocation5 + $0x600] sm:$0xf]
    %v645 = vld [vmem:[#allocation5 + $0x604] sm:$0xff]
    %v646 = vld [vmem:[#allocation5 + $0x60c] sm:$0xff]
    %v647 = vld [vmem:[#allocation5 + $0x614] sm:$0xff]
    %v648 = vld [vmem:[#allocation5 + $0x61c] sm:$0xf]
    %v649 = vld [vmem:[#allocation5 + $0x620] sm:$0xff]
    %v650 = vld [vmem:[#allocation5 + $0x628] sm:$0xff]
    %v651 = vld [vmem:[#allocation5 + $0x630] sm:$0xff]
    %v652 = vld [vmem:[#allocation5 + $0x638] sm:$0xf]
    %v653 = vld [vmem:[#allocation5 + $0x63c] sm:$0xff]
    %v654 = vld [vmem:[#allocation5 + $0x644] sm:$0xff]
    %v655 = vld [vmem:[#allocation5 + $0x64c] sm:$0xff]
    %v656 = vld [vmem:[#allocation5 + $0x654] sm:$0xf]
    %v657 = vld [vmem:[#allocation5 + $0x658] sm:$0xff]
    %v658 = vld [vmem:[#allocation5 + $0x660] sm:$0xff]
    %v659 = vld [vmem:[#allocation5 + $0x668] sm:$0xff]
    %v660 = vld [vmem:[#allocation5 + $0x670] sm:$0xf]
    %v661 = vld [vmem:[#allocation5 + $0x674] sm:$0xff]
    %v662 = vld [vmem:[#allocation5 + $0x67c] sm:$0xff]
    %v663 = vld [vmem:[#allocation5 + $0x684] sm:$0xff]
    %v664 = vld [vmem:[#allocation5 + $0x68c] sm:$0xf]
    %v665 = vld [vmem:[#allocation5 + $0x690] sm:$0xff]
    %v666 = vld [vmem:[#allocation5 + $0x698] sm:$0xff]
    %v667 = vld [vmem:[#allocation5 + $0x6a0] sm:$0xff]
    %v668 = vld [vmem:[#allocation5 + $0x6a8] sm:$0xf]
    %v669 = vld [vmem:[#allocation5 + $0x6ac] sm:$0xff]
    %v670 = vld [vmem:[#allocation5 + $0x6b4] sm:$0xff]
    %v671 = vld [vmem:[#allocation5 + $0x6bc] sm:$0xff]
    %v672 = vld [vmem:[#allocation5 + $0x6c4] sm:$0xf]
    %v673 = vld [vmem:[#allocation5 + $0x6c8] sm:$0xff]
    %v674 = vld [vmem:[#allocation5 + $0x6d0] sm:$0xff]
    %v675 = vld [vmem:[#allocation5 + $0x6d8] sm:$0xff]
    %v676 = vld [vmem:[#allocation5 + $0x6e0] sm:$0xf]
    %v677 = vld [vmem:[#allocation5 + $0x6e4] sm:$0xff]
    %v678 = vld [vmem:[#allocation5 + $0x6ec] sm:$0xff]
    %v679 = vld [vmem:[#allocation5 + $0x6f4] sm:$0xff]
    %v680 = vld [vmem:[#allocation5 + $0x6fc] sm:$0xf]
    %v681 = vld [vmem:[#allocation5 + $0x700] sm:$0xff]
    %v682 = vld [vmem:[#allocation5 + $0x708] sm:$0xff]
    %v683 = vld [vmem:[#allocation5 + $0x710] sm:$0xff]
    %v684 = vld [vmem:[#allocation5 + $0x718] sm:$0xf]
    %v685 = vld [vmem:[#allocation5 + $0x71c] sm:$0xff]
    %v686 = vld [vmem:[#allocation5 + $0x724] sm:$0xff]
    %v687 = vld [vmem:[#allocation5 + $0x72c] sm:$0xff]
    %v688 = vld [vmem:[#allocation5 + $0x734] sm:$0xf]
    %v689 = vld [vmem:[#allocation5 + $0x738] sm:$0xff]
    %v690 = vld [vmem:[#allocation5 + $0x740] sm:$0xff]
    %v691 = vld [vmem:[#allocation5 + $0x748] sm:$0xff]
    %v692 = vld [vmem:[#allocation5 + $0x750] sm:$0xf]
    %v693 = vld [vmem:[#allocation5 + $0x754] sm:$0xff]
    %v694 = vld [vmem:[#allocation5 + $0x75c] sm:$0xff]
    %v695 = vld [vmem:[#allocation5 + $0x764] sm:$0xff]
    %v696 = vld [vmem:[#allocation5 + $0x76c] sm:$0xf]
    %v697 = vld [vmem:[#allocation5 + $0x770] sm:$0xff]
    %v698 = vld [vmem:[#allocation5 + $0x778] sm:$0xff]
    %v699 = vld [vmem:[#allocation5 + $0x780] sm:$0xff]
    %v700 = vld [vmem:[#allocation5 + $0x788] sm:$0xf]
    %v701 = vld [vmem:[#allocation5 + $0x78c] sm:$0xff]
    %v702 = vld [vmem:[#allocation5 + $0x794] sm:$0xff]
    %v703 = vld [vmem:[#allocation5 + $0x79c] sm:$0xff]
    %v704 = vld [vmem:[#allocation5 + $0x7a4] sm:$0xf]
    %v705 = vld [vmem:[#allocation5 + $0x7a8] sm:$0xff]
    %v706 = vld [vmem:[#allocation5 + $0x7b0] sm:$0xff]
    %v707 = vld [vmem:[#allocation5 + $0x7b8] sm:$0xff]
    %v708 = vld [vmem:[#allocation5 + $0x7c0] sm:$0xf]
    %v709 = vld [vmem:[#allocation5 + $0x7c4] sm:$0xff]
    %v710 = vld [vmem:[#allocation5 + $0x7cc] sm:$0xff]
    %v711 = vld [vmem:[#allocation5 + $0x7d4] sm:$0xff]
    %v712 = vld [vmem:[#allocation5 + $0x7dc] sm:$0xf]
    %v713 = vld [vmem:[#allocation5 + $0x7e0] sm:$0xff]
    %v714 = vld [vmem:[#allocation5 + $0x7e8] sm:$0xff]
    %v715 = vld [vmem:[#allocation5 + $0x7f0] sm:$0xff]
    %v716 = vld [vmem:[#allocation5 + $0x7f8] sm:$0xf]
    %v717 = vld [vmem:[#allocation5 + $0x7fc] sm:$0xff]
    %v718 = vld [vmem:[#allocation5 + $0x804] sm:$0xff]
    %v719 = vld [vmem:[#allocation5 + $0x80c] sm:$0xff]
    %v720 = vld [vmem:[#allocation5 + $0x814] sm:$0xf]
    %v721 = vld [vmem:[#allocation5 + $0x818] sm:$0xff]
    %v722 = vld [vmem:[#allocation5 + $0x820] sm:$0xff]
    %v723 = vld [vmem:[#allocation5 + $0x828] sm:$0xff]
    %v724 = vld [vmem:[#allocation5 + $0x830] sm:$0xf]
    %v725 = vld [vmem:[#allocation5 + $0x834] sm:$0xff]
    %v726 = vld [vmem:[#allocation5 + $0x83c] sm:$0xff]
    %v727 = vld [vmem:[#allocation5 + $0x844] sm:$0xff]
    %v728 = vld [vmem:[#allocation5 + $0x84c] sm:$0xf]
    %v729 = vld [vmem:[#allocation5 + $0x850] sm:$0xff]
    %v730 = vld [vmem:[#allocation5 + $0x858] sm:$0xff]
    %v731 = vld [vmem:[#allocation5 + $0x860] sm:$0xff]
    %v732 = vld [vmem:[#allocation5 + $0x868] sm:$0xf]
    %v733 = vld [vmem:[#allocation5 + $0x86c] sm:$0xff]
    %v734 = vld [vmem:[#allocation5 + $0x874] sm:$0xff]
    %v735 = vld [vmem:[#allocation5 + $0x87c] sm:$0xff]
    %v736 = vld [vmem:[#allocation5 + $0x884] sm:$0xf]
    %v737 = vld [vmem:[#allocation5 + $0x888] sm:$0xff]
    %v738 = vld [vmem:[#allocation5 + $0x890] sm:$0xff]
    %v739 = vld [vmem:[#allocation5 + $0x898] sm:$0xff]
    %v740 = vld [vmem:[#allocation5 + $0x8a0] sm:$0xf]
    %v741 = vld [vmem:[#allocation5 + $0x8a4] sm:$0xff]
    %v742 = vld [vmem:[#allocation5 + $0x8ac] sm:$0xff]
    %v743 = vld [vmem:[#allocation5 + $0x8b4] sm:$0xff]
    %v744 = vld [vmem:[#allocation5 + $0x8bc] sm:$0xf]
    %v745 = vld [vmem:[#allocation5 + $0x8c0] sm:$0xff]
    %v746 = vld [vmem:[#allocation5 + $0x8c8] sm:$0xff]
    %v747 = vld [vmem:[#allocation5 + $0x8d0] sm:$0xff]
    %v748 = vld [vmem:[#allocation5 + $0x8d8] sm:$0xf]
    %v749 = vld [vmem:[#allocation5 + $0x8dc] sm:$0xff]
    %v750 = vld [vmem:[#allocation5 + $0x8e4] sm:$0xff]
    %v751 = vld [vmem:[#allocation5 + $0x8ec] sm:$0xff]
    %v752 = vld [vmem:[#allocation5 + $0x8f4] sm:$0xf]
    %v753 = vld [vmem:[#allocation5 + $0x8f8] sm:$0xff]
    %v754 = vld [vmem:[#allocation5 + $0x900] sm:$0xff]
    %v755 = vld [vmem:[#allocation5 + $0x908] sm:$0xff]
    %v756 = vld [vmem:[#allocation5 + $0x910] sm:$0xf]
    %v757 = vld [vmem:[#allocation5 + $0x914] sm:$0xff]
    %v758 = vld [vmem:[#allocation5 + $0x91c] sm:$0xff]
    %v759 = vld [vmem:[#allocation5 + $0x924] sm:$0xff]
    %v760 = vld [vmem:[#allocation5 + $0x92c] sm:$0xf]
    %v761 = vld [vmem:[#allocation5 + $0x930] sm:$0xff]
    %v762 = vld [vmem:[#allocation5 + $0x938] sm:$0xff]
    %v763 = vld [vmem:[#allocation5 + $0x940] sm:$0xff]
    %v764 = vld [vmem:[#allocation5 + $0x948] sm:$0xf]
    %v765 = vld [vmem:[#allocation5 + $0x94c] sm:$0xff]
    %v766 = vld [vmem:[#allocation5 + $0x954] sm:$0xff]
    %v767 = vld [vmem:[#allocation5 + $0x95c] sm:$0xff]
    %v768 = vld [vmem:[#allocation5 + $0x964] sm:$0xf]
    %v769 = vld [vmem:[#allocation5 + $0x968] sm:$0xff]
    %v770 = vld [vmem:[#allocation5 + $0x970] sm:$0xff]
    %v771 = vld [vmem:[#allocation5 + $0x978] sm:$0xff]
    %v772 = vld [vmem:[#allocation5 + $0x980] sm:$0xf]
    %v773 = vld [vmem:[#allocation5 + $0x984] sm:$0xff]
    %v774 = vld [vmem:[#allocation5 + $0x98c] sm:$0xff]
    %v775 = vld [vmem:[#allocation5 + $0x994] sm:$0xff]
    %v776 = vld [vmem:[#allocation5 + $0x99c] sm:$0xf]
    %v777 = vld [vmem:[#allocation5 + $0x9a0] sm:$0xff]
    %v778 = vld [vmem:[#allocation5 + $0x9a8] sm:$0xff]
    %v779 = vld [vmem:[#allocation5 + $0x9b0] sm:$0xff]
    %v780 = vld [vmem:[#allocation5 + $0x9b8] sm:$0xf]
    %v781 = vld [vmem:[#allocation5 + $0x9bc] sm:$0xff]
    %v782 = vld [vmem:[#allocation5 + $0x9c4] sm:$0xff]
    %v783 = vld [vmem:[#allocation5 + $0x9cc] sm:$0xff]
    %v784 = vld [vmem:[#allocation5 + $0x9d4] sm:$0xf]
    %v785 = vld [vmem:[#allocation5 + $0x9d8] sm:$0xff]
    %v786 = vld [vmem:[#allocation5 + $0x9e0] sm:$0xff]
    %v787 = vld [vmem:[#allocation5 + $0x9e8] sm:$0xff]
    %v788 = vld [vmem:[#allocation5 + $0x9f0] sm:$0xf]
    %v789 = vld [vmem:[#allocation5 + $0x9f4] sm:$0xff]
    %v790 = vld [vmem:[#allocation5 + $0x9fc] sm:$0xff]
    %v791 = vld [vmem:[#allocation5 + $0xa04] sm:$0xff]
    %v792 = vld [vmem:[#allocation5 + $0xa0c] sm:$0xf]
    %v793 = vld [vmem:[#allocation5 + $0xa10] sm:$0xff]
    %v794 = vld [vmem:[#allocation5 + $0xa18] sm:$0xff]
    %v795 = vld [vmem:[#allocation5 + $0xa20] sm:$0xff]
    %v796 = vld [vmem:[#allocation5 + $0xa28] sm:$0xf]
    %v797 = vld [vmem:[#allocation5 + $0xa2c] sm:$0xff]
    %v798 = vld [vmem:[#allocation5 + $0xa34] sm:$0xff]
    %v799 = vld [vmem:[#allocation5 + $0xa3c] sm:$0xff]
    %v800 = vld [vmem:[#allocation5 + $0xa44] sm:$0xf]
    %v801 = vld [vmem:[#allocation5 + $0xa48] sm:$0xff]
    %v802 = vld [vmem:[#allocation5 + $0xa50] sm:$0xff]
    %v803 = vld [vmem:[#allocation5 + $0xa58] sm:$0xff]
    %v804 = vld [vmem:[#allocation5 + $0xa60] sm:$0xf]
    %v805 = vld [vmem:[#allocation5 + $0xa64] sm:$0xff]
    %v806 = vld [vmem:[#allocation5 + $0xa6c] sm:$0xff]
    %v807 = vld [vmem:[#allocation5 + $0xa74] sm:$0xff]
    %v808 = vld [vmem:[#allocation5 + $0xa7c] sm:$0xf]
    %v809 = vld [vmem:[#allocation5 + $0xa80] sm:$0xff]
    %v810 = vld [vmem:[#allocation5 + $0xa88] sm:$0xff]
    %v811 = vld [vmem:[#allocation5 + $0xa90] sm:$0xff]
    %v812 = vld [vmem:[#allocation5 + $0xa98] sm:$0xf]
    %v813 = vld [vmem:[#allocation5 + $0xa9c] sm:$0xff]
    %v814 = vld [vmem:[#allocation5 + $0xaa4] sm:$0xff]
    %v815 = vld [vmem:[#allocation5 + $0xaac] sm:$0xff]
    %v816 = vld [vmem:[#allocation5 + $0xab4] sm:$0xf]
    %v817 = vld [vmem:[#allocation5 + $0xab8] sm:$0xff]
    %v818 = vld [vmem:[#allocation5 + $0xac0] sm:$0xff]
    %v819 = vld [vmem:[#allocation5 + $0xac8] sm:$0xff]
    %v820 = vld [vmem:[#allocation5 + $0xad0] sm:$0xf]
    %v821 = vld [vmem:[#allocation5 + $0xad4] sm:$0xff]
    %v822 = vld [vmem:[#allocation5 + $0xadc] sm:$0xff]
    %v823 = vld [vmem:[#allocation5 + $0xae4] sm:$0xff]
    %v824 = vld [vmem:[#allocation5 + $0xaec] sm:$0xf]
    %v825 = vld [vmem:[#allocation5 + $0xaf0] sm:$0xff]
    %v826 = vld [vmem:[#allocation5 + $0xaf8] sm:$0xff]
    %v827 = vld [vmem:[#allocation5 + $0xb00] sm:$0xff]
    %v828 = vld [vmem:[#allocation5 + $0xb08] sm:$0xf]
    %v829 = vld [vmem:[#allocation5 + $0xb0c] sm:$0xff]
    %v830 = vld [vmem:[#allocation5 + $0xb14] sm:$0xff]
    %v831 = vld [vmem:[#allocation5 + $0xb1c] sm:$0xff]
    %v832 = vld [vmem:[#allocation5 + $0xb24] sm:$0xf]
    %v833 = vld [vmem:[#allocation5 + $0xb28] sm:$0xff]
    %v834 = vld [vmem:[#allocation5 + $0xb30] sm:$0xff]
    %v835 = vld [vmem:[#allocation5 + $0xb38] sm:$0xff]
    %v836 = vld [vmem:[#allocation5 + $0xb40] sm:$0xf]
    %v837 = vld [vmem:[#allocation5 + $0xb44] sm:$0xff]
    %v838 = vld [vmem:[#allocation5 + $0xb4c] sm:$0xff]
    %v839 = vld [vmem:[#allocation5 + $0xb54] sm:$0xff]
    %v840 = vld [vmem:[#allocation5 + $0xb5c] sm:$0xf]
    %v841 = vld [vmem:[#allocation5 + $0xb60] sm:$0xff]
    %v842 = vld [vmem:[#allocation5 + $0xb68] sm:$0xff]
    %v843 = vld [vmem:[#allocation5 + $0xb70] sm:$0xff]
    %v844 = vld [vmem:[#allocation5 + $0xb78] sm:$0xf]
    %v845 = vld [vmem:[#allocation5 + $0xb7c] sm:$0xff]
    %v846 = vld [vmem:[#allocation5 + $0xb84] sm:$0xff]
    %v847 = vld [vmem:[#allocation5 + $0xb8c] sm:$0xff]
    %v848 = vld [vmem:[#allocation5 + $0xb94] sm:$0xf]
    %v849 = vld [vmem:[#allocation5 + $0xb98] sm:$0xff]
    %v850 = vld [vmem:[#allocation5 + $0xba0] sm:$0xff]
    %v851 = vld [vmem:[#allocation5 + $0xba8] sm:$0xff]
    %v852 = vld [vmem:[#allocation5 + $0xbb0] sm:$0xf]
    %v853 = vld [vmem:[#allocation5 + $0xbb4] sm:$0xff]
    %v854 = vld [vmem:[#allocation5 + $0xbbc] sm:$0xff]
    %v855 = vld [vmem:[#allocation5 + $0xbc4] sm:$0xff]
    %v856 = vld [vmem:[#allocation5 + $0xbcc] sm:$0xf]
    %v857 = vld [vmem:[#allocation5 + $0xbd0] sm:$0xff]
    %v858 = vld [vmem:[#allocation5 + $0xbd8] sm:$0xff]
    %v859 = vld [vmem:[#allocation5 + $0xbe0] sm:$0xff]
    %v860 = vld [vmem:[#allocation5 + $0xbe8] sm:$0xf]
    %v861 = vld [vmem:[#allocation5 + $0xbec] sm:$0xff]
    %v862 = vld [vmem:[#allocation5 + $0xbf4] sm:$0xff]
    %v863 = vld [vmem:[#allocation5 + $0xbfc] sm:$0xff]
    %v864 = vld [vmem:[#allocation5 + $0xc04] sm:$0xf]
    %v865 = vld [vmem:[#allocation5 + $0xc08] sm:$0xff]
    %v866 = vld [vmem:[#allocation5 + $0xc10] sm:$0xff]
    %v867 = vld [vmem:[#allocation5 + $0xc18] sm:$0xff]
    %v868 = vld [vmem:[#allocation5 + $0xc20] sm:$0xf]
    %v869 = vld [vmem:[#allocation5 + $0xc24] sm:$0xff]
    %v870 = vld [vmem:[#allocation5 + $0xc2c] sm:$0xff]
    %v871 = vld [vmem:[#allocation5 + $0xc34] sm:$0xff]
    %v872 = vld [vmem:[#allocation5 + $0xc3c] sm:$0xf]
    %v873 = vld [vmem:[#allocation7] sm:$0xff]
    %v875 = vlaneseq
    %v876 = vshrl.u32 %v875, 7
    %v877 = vsub.s32 0, %v876
    %v878 = vrot.slane %v873, %v877
    %v879 = vlaneseq
    %v880 = vshrl.u32 %v879, 7
    %v881 = vsub.s32 1, %v880
    %v882 = vrot.slane %v873, %v881
    %v883 = vlaneseq
    %v884 = vshrl.u32 %v883, 7
    %v885 = vsub.s32 2, %v884
    %v886 = vrot.slane %v873, %v885
    %v887 = vlaneseq
    %v888 = vshrl.u32 %v887, 7
    %v889 = vsub.s32 3, %v888
    %v890 = vrot.slane %v873, %v889
    %v891 = vlaneseq
    %v892 = vshrl.u32 %v891, 7
    %v893 = vsub.s32 4, %v892
    %v894 = vrot.slane %v873, %v893
    %v895 = vlaneseq
    %v896 = vshrl.u32 %v895, 7
    %v897 = vsub.s32 5, %v896
    %v898 = vrot.slane %v873, %v897
    %v899 = vlaneseq
    %v900 = vshrl.u32 %v899, 7
    %v901 = vsub.s32 6, %v900
    %v902 = vrot.slane %v873, %v901
    %v1358 = vunpack.c.l.b16 %v425
    %v1359 = vunpack.c.h.b16 %v425
    %v1360 = vunpack.c.l.b16 %v426
    %v1361 = vunpack.c.h.b16 %v426
    %v1362 = vunpack.c.l.b16 %v427
    %v1363 = vunpack.c.h.b16 %v427
    %v1364 = vunpack.c.l.b16 %v428
    %v1365 = vunpack.c.l.b16 %v429
    %v1366 = vunpack.c.h.b16 %v429
    %v1367 = vunpack.c.l.b16 %v430
    %v1368 = vunpack.c.h.b16 %v430
    %v1369 = vunpack.c.l.b16 %v431
    %v1370 = vunpack.c.h.b16 %v431
    %v1371 = vunpack.c.l.b16 %v432
    %v1372 = vunpack.c.l.b16 %v433
    %v1373 = vunpack.c.h.b16 %v433
    %v1374 = vunpack.c.l.b16 %v434
    %v1375 = vunpack.c.h.b16 %v434
    %v1376 = vunpack.c.l.b16 %v435
    %v1377 = vunpack.c.h.b16 %v435
    %v1378 = vunpack.c.l.b16 %v436
    %v1379 = vunpack.c.l.b16 %v437
    %v1380 = vunpack.c.h.b16 %v437
    %v1381 = vunpack.c.l.b16 %v438
    %v1382 = vunpack.c.h.b16 %v438
    %v1383 = vunpack.c.l.b16 %v439
    %v1384 = vunpack.c.h.b16 %v439
    %v1385 = vunpack.c.l.b16 %v440
    %v1386 = vunpack.c.l.b16 %v441
    %v1387 = vunpack.c.h.b16 %v441
    %v1388 = vunpack.c.l.b16 %v442
    %v1389 = vunpack.c.h.b16 %v442
    %v1390 = vunpack.c.l.b16 %v443
    %v1391 = vunpack.c.h.b16 %v443
    %v1392 = vunpack.c.l.b16 %v444
    %v1393 = vunpack.c.l.b16 %v445
    %v1394 = vunpack.c.h.b16 %v445
    %v1395 = vunpack.c.l.b16 %v446
    %v1396 = vunpack.c.h.b16 %v446
    %v1397 = vunpack.c.l.b16 %v447
    %v1398 = vunpack.c.h.b16 %v447
    %v1399 = vunpack.c.l.b16 %v448
    %v1400 = vunpack.c.l.b16 %v449
    %v1401 = vunpack.c.h.b16 %v449
    %v1402 = vunpack.c.l.b16 %v450
    %v1403 = vunpack.c.h.b16 %v450
    %v1404 = vunpack.c.l.b16 %v451
    %v1405 = vunpack.c.h.b16 %v451
    %v1406 = vunpack.c.l.b16 %v452
    %v1407 = vunpack.c.l.b16 %v453
    %v1408 = vunpack.c.h.b16 %v453
    %v1409 = vunpack.c.l.b16 %v454
    %v1410 = vunpack.c.h.b16 %v454
    %v1411 = vunpack.c.l.b16 %v455
    %v1412 = vunpack.c.h.b16 %v455
    %v1413 = vunpack.c.l.b16 %v456
    %v1414 = vunpack.c.l.b16 %v457
    %v1415 = vunpack.c.h.b16 %v457
    %v1416 = vunpack.c.l.b16 %v458
    %v1417 = vunpack.c.h.b16 %v458
    %v1418 = vunpack.c.l.b16 %v459
    %v1419 = vunpack.c.h.b16 %v459
    %v1420 = vunpack.c.l.b16 %v460
    %v1421 = vunpack.c.l.b16 %v461
    %v1422 = vunpack.c.h.b16 %v461
    %v1423 = vunpack.c.l.b16 %v462
    %v1424 = vunpack.c.h.b16 %v462
    %v1425 = vunpack.c.l.b16 %v463
    %v1426 = vunpack.c.h.b16 %v463
    %v1427 = vunpack.c.l.b16 %v464
    %v1428 = vunpack.c.l.b16 %v465
    %v1429 = vunpack.c.h.b16 %v465
    %v1430 = vunpack.c.l.b16 %v466
    %v1431 = vunpack.c.h.b16 %v466
    %v1432 = vunpack.c.l.b16 %v467
    %v1433 = vunpack.c.h.b16 %v467
    %v1434 = vunpack.c.l.b16 %v468
    %v1435 = vunpack.c.l.b16 %v469
    %v1436 = vunpack.c.h.b16 %v469
    %v1437 = vunpack.c.l.b16 %v470
    %v1438 = vunpack.c.h.b16 %v470
    %v1439 = vunpack.c.l.b16 %v471
    %v1440 = vunpack.c.h.b16 %v471
    %v1441 = vunpack.c.l.b16 %v472
    %v1442 = vunpack.c.l.b16 %v473
    %v1443 = vunpack.c.h.b16 %v473
    %v1444 = vunpack.c.l.b16 %v474
    %v1445 = vunpack.c.h.b16 %v474
    %v1446 = vunpack.c.l.b16 %v475
    %v1447 = vunpack.c.h.b16 %v475
    %v1448 = vunpack.c.l.b16 %v476
    %v1449 = vunpack.c.l.b16 %v477
    %v1450 = vunpack.c.h.b16 %v477
    %v1451 = vunpack.c.l.b16 %v478
    %v1452 = vunpack.c.h.b16 %v478
    %v1453 = vunpack.c.l.b16 %v479
    %v1454 = vunpack.c.h.b16 %v479
    %v1455 = vunpack.c.l.b16 %v480
    %v1456 = vunpack.c.l.b16 %v481
    %v1457 = vunpack.c.h.b16 %v481
    %v1458 = vunpack.c.l.b16 %v482
    %v1459 = vunpack.c.h.b16 %v482
    %v1460 = vunpack.c.l.b16 %v483
    %v1461 = vunpack.c.h.b16 %v483
    %v1462 = vunpack.c.l.b16 %v484
    %v1463 = vunpack.c.l.b16 %v485
    %v1464 = vunpack.c.h.b16 %v485
    %v1465 = vunpack.c.l.b16 %v486
    %v1466 = vunpack.c.h.b16 %v486
    %v1467 = vunpack.c.l.b16 %v487
    %v1468 = vunpack.c.h.b16 %v487
    %v1469 = vunpack.c.l.b16 %v488
    %v1470 = vunpack.c.l.b16 %v489
    %v1471 = vunpack.c.h.b16 %v489
    %v1472 = vunpack.c.l.b16 %v490
    %v1473 = vunpack.c.h.b16 %v490
    %v1474 = vunpack.c.l.b16 %v491
    %v1475 = vunpack.c.h.b16 %v491
    %v1476 = vunpack.c.l.b16 %v492
    %v1477 = vunpack.c.l.b16 %v493
    %v1478 = vunpack.c.h.b16 %v493
    %v1479 = vunpack.c.l.b16 %v494
    %v1480 = vunpack.c.h.b16 %v494
    %v1481 = vunpack.c.l.b16 %v495
    %v1482 = vunpack.c.h.b16 %v495
    %v1483 = vunpack.c.l.b16 %v496
    %v1484 = vunpack.c.l.b16 %v497
    %v1485 = vunpack.c.h.b16 %v497
    %v1486 = vunpack.c.l.b16 %v498
    %v1487 = vunpack.c.h.b16 %v498
    %v1488 = vunpack.c.l.b16 %v499
    %v1489 = vunpack.c.h.b16 %v499
    %v1490 = vunpack.c.l.b16 %v500
    %v1491 = vunpack.c.l.b16 %v501
    %v1492 = vunpack.c.h.b16 %v501
    %v1493 = vunpack.c.l.b16 %v502
    %v1494 = vunpack.c.h.b16 %v502
    %v1495 = vunpack.c.l.b16 %v503
    %v1496 = vunpack.c.h.b16 %v503
    %v1497 = vunpack.c.l.b16 %v504
    %v1498 = vunpack.c.l.b16 %v505
    %v1499 = vunpack.c.h.b16 %v505
    %v1500 = vunpack.c.l.b16 %v506
    %v1501 = vunpack.c.h.b16 %v506
    %v1502 = vunpack.c.l.b16 %v507
    %v1503 = vunpack.c.h.b16 %v507
    %v1504 = vunpack.c.l.b16 %v508
    %v1505 = vunpack.c.l.b16 %v509
    %v1506 = vunpack.c.h.b16 %v509
    %v1507 = vunpack.c.l.b16 %v510
    %v1508 = vunpack.c.h.b16 %v510
    %v1509 = vunpack.c.l.b16 %v511
    %v1510 = vunpack.c.h.b16 %v511
    %v1511 = vunpack.c.l.b16 %v512
    %v1512 = vunpack.c.l.b16 %v513
    %v1513 = vunpack.c.h.b16 %v513
    %v1514 = vunpack.c.l.b16 %v514
    %v1515 = vunpack.c.h.b16 %v514
    %v1516 = vunpack.c.l.b16 %v515
    %v1517 = vunpack.c.h.b16 %v515
    %v1518 = vunpack.c.l.b16 %v516
    %v1519 = vunpack.c.l.b16 %v517
    %v1520 = vunpack.c.h.b16 %v517
    %v1521 = vunpack.c.l.b16 %v518
    %v1522 = vunpack.c.h.b16 %v518
    %v1523 = vunpack.c.l.b16 %v519
    %v1524 = vunpack.c.h.b16 %v519
    %v1525 = vunpack.c.l.b16 %v520
    %v1526 = vunpack.c.l.b16 %v521
    %v1527 = vunpack.c.h.b16 %v521
    %v1528 = vunpack.c.l.b16 %v522
    %v1529 = vunpack.c.h.b16 %v522
    %v1530 = vunpack.c.l.b16 %v523
    %v1531 = vunpack.c.h.b16 %v523
    %v1532 = vunpack.c.l.b16 %v524
    %v1533 = vunpack.c.l.b16 %v525
    %v1534 = vunpack.c.h.b16 %v525
    %v1535 = vunpack.c.l.b16 %v526
    %v1536 = vunpack.c.h.b16 %v526
    %v1537 = vunpack.c.l.b16 %v527
    %v1538 = vunpack.c.h.b16 %v527
    %v1539 = vunpack.c.l.b16 %v528
    %v1540 = vunpack.c.l.b16 %v529
    %v1541 = vunpack.c.h.b16 %v529
    %v1542 = vunpack.c.l.b16 %v530
    %v1543 = vunpack.c.h.b16 %v530
    %v1544 = vunpack.c.l.b16 %v531
    %v1545 = vunpack.c.h.b16 %v531
    %v1546 = vunpack.c.l.b16 %v532
    %v1547 = vunpack.c.l.b16 %v533
    %v1548 = vunpack.c.h.b16 %v533
    %v1549 = vunpack.c.l.b16 %v534
    %v1550 = vunpack.c.h.b16 %v534
    %v1551 = vunpack.c.l.b16 %v535
    %v1552 = vunpack.c.h.b16 %v535
    %v1553 = vunpack.c.l.b16 %v536
    %v1554 = vunpack.c.l.b16 %v537
    %v1555 = vunpack.c.h.b16 %v537
    %v1556 = vunpack.c.l.b16 %v538
    %v1557 = vunpack.c.h.b16 %v538
    %v1558 = vunpack.c.l.b16 %v539
    %v1559 = vunpack.c.h.b16 %v539
    %v1560 = vunpack.c.l.b16 %v540
    %v1561 = vunpack.c.l.b16 %v541
    %v1562 = vunpack.c.h.b16 %v541
    %v1563 = vunpack.c.l.b16 %v542
    %v1564 = vunpack.c.h.b16 %v542
    %v1565 = vunpack.c.l.b16 %v543
    %v1566 = vunpack.c.h.b16 %v543
    %v1567 = vunpack.c.l.b16 %v544
    %v1568 = vunpack.c.l.b16 %v545
    %v1569 = vunpack.c.h.b16 %v545
    %v1570 = vunpack.c.l.b16 %v546
    %v1571 = vunpack.c.h.b16 %v546
    %v1572 = vunpack.c.l.b16 %v547
    %v1573 = vunpack.c.h.b16 %v547
    %v1574 = vunpack.c.l.b16 %v548
    %v1575 = vunpack.c.l.b16 %v549
    %v1576 = vunpack.c.h.b16 %v549
    %v1577 = vunpack.c.l.b16 %v550
    %v1578 = vunpack.c.h.b16 %v550
    %v1579 = vunpack.c.l.b16 %v551
    %v1580 = vunpack.c.h.b16 %v551
    %v1581 = vunpack.c.l.b16 %v552
    %v1582 = vunpack.c.l.b16 %v553
    %v1583 = vunpack.c.h.b16 %v553
    %v1584 = vunpack.c.l.b16 %v554
    %v1585 = vunpack.c.h.b16 %v554
    %v1586 = vunpack.c.l.b16 %v555
    %v1587 = vunpack.c.h.b16 %v555
    %v1588 = vunpack.c.l.b16 %v556
    %v1589 = vunpack.c.l.b16 %v557
    %v1590 = vunpack.c.h.b16 %v557
    %v1591 = vunpack.c.l.b16 %v558
    %v1592 = vunpack.c.h.b16 %v558
    %v1593 = vunpack.c.l.b16 %v559
    %v1594 = vunpack.c.h.b16 %v559
    %v1595 = vunpack.c.l.b16 %v560
    %v1596 = vunpack.c.l.b16 %v561
    %v1597 = vunpack.c.h.b16 %v561
    %v1598 = vunpack.c.l.b16 %v562
    %v1599 = vunpack.c.h.b16 %v562
    %v1600 = vunpack.c.l.b16 %v563
    %v1601 = vunpack.c.h.b16 %v563
    %v1602 = vunpack.c.l.b16 %v564
    %v1603 = vunpack.c.l.b16 %v565
    %v1604 = vunpack.c.h.b16 %v565
    %v1605 = vunpack.c.l.b16 %v566
    %v1606 = vunpack.c.h.b16 %v566
    %v1607 = vunpack.c.l.b16 %v567
    %v1608 = vunpack.c.h.b16 %v567
    %v1609 = vunpack.c.l.b16 %v568
    %v1610 = vunpack.c.l.b16 %v569
    %v1611 = vunpack.c.h.b16 %v569
    %v1612 = vunpack.c.l.b16 %v570
    %v1613 = vunpack.c.h.b16 %v570
    %v1614 = vunpack.c.l.b16 %v571
    %v1615 = vunpack.c.h.b16 %v571
    %v1616 = vunpack.c.l.b16 %v572
    %v1617 = vunpack.c.l.b16 %v573
    %v1618 = vunpack.c.h.b16 %v573
    %v1619 = vunpack.c.l.b16 %v574
    %v1620 = vunpack.c.h.b16 %v574
    %v1621 = vunpack.c.l.b16 %v575
    %v1622 = vunpack.c.h.b16 %v575
    %v1623 = vunpack.c.l.b16 %v576
    %v1624 = vunpack.c.l.b16 %v577
    %v1625 = vunpack.c.h.b16 %v577
    %v1626 = vunpack.c.l.b16 %v578
    %v1627 = vunpack.c.h.b16 %v578
    %v1628 = vunpack.c.l.b16 %v579
    %v1629 = vunpack.c.h.b16 %v579
    %v1630 = vunpack.c.l.b16 %v580
    %v1631 = vunpack.c.l.b16 %v581
    %v1632 = vunpack.c.h.b16 %v581
    %v1633 = vunpack.c.l.b16 %v582
    %v1634 = vunpack.c.h.b16 %v582
    %v1635 = vunpack.c.l.b16 %v583
    %v1636 = vunpack.c.h.b16 %v583
    %v1637 = vunpack.c.l.b16 %v584
    %v1638 = vunpack.c.l.b16 %v585
    %v1639 = vunpack.c.h.b16 %v585
    %v1640 = vunpack.c.l.b16 %v586
    %v1641 = vunpack.c.h.b16 %v586
    %v1642 = vunpack.c.l.b16 %v587
    %v1643 = vunpack.c.h.b16 %v587
    %v1644 = vunpack.c.l.b16 %v588
    %v1645 = vunpack.c.l.b16 %v589
    %v1646 = vunpack.c.h.b16 %v589
    %v1647 = vunpack.c.l.b16 %v590
    %v1648 = vunpack.c.h.b16 %v590
    %v1649 = vunpack.c.l.b16 %v591
    %v1650 = vunpack.c.h.b16 %v591
    %v1651 = vunpack.c.l.b16 %v592
    %v1652 = vunpack.c.l.b16 %v593
    %v1653 = vunpack.c.h.b16 %v593
    %v1654 = vunpack.c.l.b16 %v594
    %v1655 = vunpack.c.h.b16 %v594
    %v1656 = vunpack.c.l.b16 %v595
    %v1657 = vunpack.c.h.b16 %v595
    %v1658 = vunpack.c.l.b16 %v596
    %v1659 = vunpack.c.l.b16 %v597
    %v1660 = vunpack.c.h.b16 %v597
    %v1661 = vunpack.c.l.b16 %v598
    %v1662 = vunpack.c.h.b16 %v598
    %v1663 = vunpack.c.l.b16 %v599
    %v1664 = vunpack.c.h.b16 %v599
    %v1665 = vunpack.c.l.b16 %v600
    %v1666 = vunpack.c.l.b16 %v601
    %v1667 = vunpack.c.h.b16 %v601
    %v1668 = vunpack.c.l.b16 %v602
    %v1669 = vunpack.c.h.b16 %v602
    %v1670 = vunpack.c.l.b16 %v603
    %v1671 = vunpack.c.h.b16 %v603
    %v1672 = vunpack.c.l.b16 %v604
    %v1673 = vunpack.c.l.b16 %v605
    %v1674 = vunpack.c.h.b16 %v605
    %v1675 = vunpack.c.l.b16 %v606
    %v1676 = vunpack.c.h.b16 %v606
    %v1677 = vunpack.c.l.b16 %v607
    %v1678 = vunpack.c.h.b16 %v607
    %v1679 = vunpack.c.l.b16 %v608
    %v1680 = vunpack.c.l.b16 %v609
    %v1681 = vunpack.c.h.b16 %v609
    %v1682 = vunpack.c.l.b16 %v610
    %v1683 = vunpack.c.h.b16 %v610
    %v1684 = vunpack.c.l.b16 %v611
    %v1685 = vunpack.c.h.b16 %v611
    %v1686 = vunpack.c.l.b16 %v612
    %v1687 = vunpack.c.l.b16 %v613
    %v1688 = vunpack.c.h.b16 %v613
    %v1689 = vunpack.c.l.b16 %v614
    %v1690 = vunpack.c.h.b16 %v614
    %v1691 = vunpack.c.l.b16 %v615
    %v1692 = vunpack.c.h.b16 %v615
    %v1693 = vunpack.c.l.b16 %v616
    %v1694 = vunpack.c.l.b16 %v617
    %v1695 = vunpack.c.h.b16 %v617
    %v1696 = vunpack.c.l.b16 %v618
    %v1697 = vunpack.c.h.b16 %v618
    %v1698 = vunpack.c.l.b16 %v619
    %v1699 = vunpack.c.h.b16 %v619
    %v1700 = vunpack.c.l.b16 %v620
    %v1701 = vunpack.c.l.b16 %v621
    %v1702 = vunpack.c.h.b16 %v621
    %v1703 = vunpack.c.l.b16 %v622
    %v1704 = vunpack.c.h.b16 %v622
    %v1705 = vunpack.c.l.b16 %v623
    %v1706 = vunpack.c.h.b16 %v623
    %v1707 = vunpack.c.l.b16 %v624
    %v1708 = vunpack.c.l.b16 %v625
    %v1709 = vunpack.c.h.b16 %v625
    %v1710 = vunpack.c.l.b16 %v626
    %v1711 = vunpack.c.h.b16 %v626
    %v1712 = vunpack.c.l.b16 %v627
    %v1713 = vunpack.c.h.b16 %v627
    %v1714 = vunpack.c.l.b16 %v628
    %v1715 = vunpack.c.l.b16 %v629
    %v1716 = vunpack.c.h.b16 %v629
    %v1717 = vunpack.c.l.b16 %v630
    %v1718 = vunpack.c.h.b16 %v630
    %v1719 = vunpack.c.l.b16 %v631
    %v1720 = vunpack.c.h.b16 %v631
    %v1721 = vunpack.c.l.b16 %v632
    %v1722 = vunpack.c.l.b16 %v633
    %v1723 = vunpack.c.h.b16 %v633
    %v1724 = vunpack.c.l.b16 %v634
    %v1725 = vunpack.c.h.b16 %v634
    %v1726 = vunpack.c.l.b16 %v635
    %v1727 = vunpack.c.h.b16 %v635
    %v1728 = vunpack.c.l.b16 %v636
    %v1729 = vunpack.c.l.b16 %v637
    %v1730 = vunpack.c.h.b16 %v637
    %v1731 = vunpack.c.l.b16 %v638
    %v1732 = vunpack.c.h.b16 %v638
    %v1733 = vunpack.c.l.b16 %v639
    %v1734 = vunpack.c.h.b16 %v639
    %v1735 = vunpack.c.l.b16 %v640
    %v1736 = vunpack.c.l.b16 %v641
    %v1737 = vunpack.c.h.b16 %v641
    %v1738 = vunpack.c.l.b16 %v642
    %v1739 = vunpack.c.h.b16 %v642
    %v1740 = vunpack.c.l.b16 %v643
    %v1741 = vunpack.c.h.b16 %v643
    %v1742 = vunpack.c.l.b16 %v644
    %v1743 = vunpack.c.l.b16 %v645
    %v1744 = vunpack.c.h.b16 %v645
    %v1745 = vunpack.c.l.b16 %v646
    %v1746 = vunpack.c.h.b16 %v646
    %v1747 = vunpack.c.l.b16 %v647
    %v1748 = vunpack.c.h.b16 %v647
    %v1749 = vunpack.c.l.b16 %v648
    %v1750 = vunpack.c.l.b16 %v649
    %v1751 = vunpack.c.h.b16 %v649
    %v1752 = vunpack.c.l.b16 %v650
    %v1753 = vunpack.c.h.b16 %v650
    %v1754 = vunpack.c.l.b16 %v651
    %v1755 = vunpack.c.h.b16 %v651
    %v1756 = vunpack.c.l.b16 %v652
    %v1757 = vunpack.c.l.b16 %v653
    %v1758 = vunpack.c.h.b16 %v653
    %v1759 = vunpack.c.l.b16 %v654
    %v1760 = vunpack.c.h.b16 %v654
    %v1761 = vunpack.c.l.b16 %v655
    %v1762 = vunpack.c.h.b16 %v655
    %v1763 = vunpack.c.l.b16 %v656
    %v1764 = vunpack.c.l.b16 %v657
    %v1765 = vunpack.c.h.b16 %v657
    %v1766 = vunpack.c.l.b16 %v658
    %v1767 = vunpack.c.h.b16 %v658
    %v1768 = vunpack.c.l.b16 %v659
    %v1769 = vunpack.c.h.b16 %v659
    %v1770 = vunpack.c.l.b16 %v660
    %v1771 = vunpack.c.l.b16 %v661
    %v1772 = vunpack.c.h.b16 %v661
    %v1773 = vunpack.c.l.b16 %v662
    %v1774 = vunpack.c.h.b16 %v662
    %v1775 = vunpack.c.l.b16 %v663
    %v1776 = vunpack.c.h.b16 %v663
    %v1777 = vunpack.c.l.b16 %v664
    %v1778 = vunpack.c.l.b16 %v665
    %v1779 = vunpack.c.h.b16 %v665
    %v1780 = vunpack.c.l.b16 %v666
    %v1781 = vunpack.c.h.b16 %v666
    %v1782 = vunpack.c.l.b16 %v667
    %v1783 = vunpack.c.h.b16 %v667
    %v1784 = vunpack.c.l.b16 %v668
    %v1785 = vunpack.c.l.b16 %v669
    %v1786 = vunpack.c.h.b16 %v669
    %v1787 = vunpack.c.l.b16 %v670
    %v1788 = vunpack.c.h.b16 %v670
    %v1789 = vunpack.c.l.b16 %v671
    %v1790 = vunpack.c.h.b16 %v671
    %v1791 = vunpack.c.l.b16 %v672
    %v1792 = vunpack.c.l.b16 %v673
    %v1793 = vunpack.c.h.b16 %v673
    %v1794 = vunpack.c.l.b16 %v674
    %v1795 = vunpack.c.h.b16 %v674
    %v1796 = vunpack.c.l.b16 %v675
    %v1797 = vunpack.c.h.b16 %v675
    %v1798 = vunpack.c.l.b16 %v676
    %v1799 = vunpack.c.l.b16 %v677
    %v1800 = vunpack.c.h.b16 %v677
    %v1801 = vunpack.c.l.b16 %v678
    %v1802 = vunpack.c.h.b16 %v678
    %v1803 = vunpack.c.l.b16 %v679
    %v1804 = vunpack.c.h.b16 %v679
    %v1805 = vunpack.c.l.b16 %v680
    %v1806 = vunpack.c.l.b16 %v681
    %v1807 = vunpack.c.h.b16 %v681
    %v1808 = vunpack.c.l.b16 %v682
    %v1809 = vunpack.c.h.b16 %v682
    %v1810 = vunpack.c.l.b16 %v683
    %v1811 = vunpack.c.h.b16 %v683
    %v1812 = vunpack.c.l.b16 %v684
    %v1813 = vunpack.c.l.b16 %v685
    %v1814 = vunpack.c.h.b16 %v685
    %v1815 = vunpack.c.l.b16 %v686
    %v1816 = vunpack.c.h.b16 %v686
    %v1817 = vunpack.c.l.b16 %v687
    %v1818 = vunpack.c.h.b16 %v687
    %v1819 = vunpack.c.l.b16 %v688
    %v1820 = vunpack.c.l.b16 %v689
    %v1821 = vunpack.c.h.b16 %v689
    %v1822 = vunpack.c.l.b16 %v690
    %v1823 = vunpack.c.h.b16 %v690
    %v1824 = vunpack.c.l.b16 %v691
    %v1825 = vunpack.c.h.b16 %v691
    %v1826 = vunpack.c.l.b16 %v692
    %v1827 = vunpack.c.l.b16 %v693
    %v1828 = vunpack.c.h.b16 %v693
    %v1829 = vunpack.c.l.b16 %v694
    %v1830 = vunpack.c.h.b16 %v694
    %v1831 = vunpack.c.l.b16 %v695
    %v1832 = vunpack.c.h.b16 %v695
    %v1833 = vunpack.c.l.b16 %v696
    %v1834 = vunpack.c.l.b16 %v697
    %v1835 = vunpack.c.h.b16 %v697
    %v1836 = vunpack.c.l.b16 %v698
    %v1837 = vunpack.c.h.b16 %v698
    %v1838 = vunpack.c.l.b16 %v699
    %v1839 = vunpack.c.h.b16 %v699
    %v1840 = vunpack.c.l.b16 %v700
    %v1841 = vunpack.c.l.b16 %v701
    %v1842 = vunpack.c.h.b16 %v701
    %v1843 = vunpack.c.l.b16 %v702
    %v1844 = vunpack.c.h.b16 %v702
    %v1845 = vunpack.c.l.b16 %v703
    %v1846 = vunpack.c.h.b16 %v703
    %v1847 = vunpack.c.l.b16 %v704
    %v1848 = vunpack.c.l.b16 %v705
    %v1849 = vunpack.c.h.b16 %v705
    %v1850 = vunpack.c.l.b16 %v706
    %v1851 = vunpack.c.h.b16 %v706
    %v1852 = vunpack.c.l.b16 %v707
    %v1853 = vunpack.c.h.b16 %v707
    %v1854 = vunpack.c.l.b16 %v708
    %v1855 = vunpack.c.l.b16 %v709
    %v1856 = vunpack.c.h.b16 %v709
    %v1857 = vunpack.c.l.b16 %v710
    %v1858 = vunpack.c.h.b16 %v710
    %v1859 = vunpack.c.l.b16 %v711
    %v1860 = vunpack.c.h.b16 %v711
    %v1861 = vunpack.c.l.b16 %v712
    %v1862 = vunpack.c.l.b16 %v713
    %v1863 = vunpack.c.h.b16 %v713
    %v1864 = vunpack.c.l.b16 %v714
    %v1865 = vunpack.c.h.b16 %v714
    %v1866 = vunpack.c.l.b16 %v715
    %v1867 = vunpack.c.h.b16 %v715
    %v1868 = vunpack.c.l.b16 %v716
    %v1869 = vunpack.c.l.b16 %v717
    %v1870 = vunpack.c.h.b16 %v717
    %v1871 = vunpack.c.l.b16 %v718
    %v1872 = vunpack.c.h.b16 %v718
    %v1873 = vunpack.c.l.b16 %v719
    %v1874 = vunpack.c.h.b16 %v719
    %v1875 = vunpack.c.l.b16 %v720
    %v1876 = vunpack.c.l.b16 %v721
    %v1877 = vunpack.c.h.b16 %v721
    %v1878 = vunpack.c.l.b16 %v722
    %v1879 = vunpack.c.h.b16 %v722
    %v1880 = vunpack.c.l.b16 %v723
    %v1881 = vunpack.c.h.b16 %v723
    %v1882 = vunpack.c.l.b16 %v724
    %v1883 = vunpack.c.l.b16 %v725
    %v1884 = vunpack.c.h.b16 %v725
    %v1885 = vunpack.c.l.b16 %v726
    %v1886 = vunpack.c.h.b16 %v726
    %v1887 = vunpack.c.l.b16 %v727
    %v1888 = vunpack.c.h.b16 %v727
    %v1889 = vunpack.c.l.b16 %v728
    %v1890 = vunpack.c.l.b16 %v729
    %v1891 = vunpack.c.h.b16 %v729
    %v1892 = vunpack.c.l.b16 %v730
    %v1893 = vunpack.c.h.b16 %v730
    %v1894 = vunpack.c.l.b16 %v731
    %v1895 = vunpack.c.h.b16 %v731
    %v1896 = vunpack.c.l.b16 %v732
    %v1897 = vunpack.c.l.b16 %v733
    %v1898 = vunpack.c.h.b16 %v733
    %v1899 = vunpack.c.l.b16 %v734
    %v1900 = vunpack.c.h.b16 %v734
    %v1901 = vunpack.c.l.b16 %v735
    %v1902 = vunpack.c.h.b16 %v735
    %v1903 = vunpack.c.l.b16 %v736
    %v1904 = vunpack.c.l.b16 %v737
    %v1905 = vunpack.c.h.b16 %v737
    %v1906 = vunpack.c.l.b16 %v738
    %v1907 = vunpack.c.h.b16 %v738
    %v1908 = vunpack.c.l.b16 %v739
    %v1909 = vunpack.c.h.b16 %v739
    %v1910 = vunpack.c.l.b16 %v740
    %v1911 = vunpack.c.l.b16 %v741
    %v1912 = vunpack.c.h.b16 %v741
    %v1913 = vunpack.c.l.b16 %v742
    %v1914 = vunpack.c.h.b16 %v742
    %v1915 = vunpack.c.l.b16 %v743
    %v1916 = vunpack.c.h.b16 %v743
    %v1917 = vunpack.c.l.b16 %v744
    %v1918 = vunpack.c.l.b16 %v745
    %v1919 = vunpack.c.h.b16 %v745
    %v1920 = vunpack.c.l.b16 %v746
    %v1921 = vunpack.c.h.b16 %v746
    %v1922 = vunpack.c.l.b16 %v747
    %v1923 = vunpack.c.h.b16 %v747
    %v1924 = vunpack.c.l.b16 %v748
    %v1925 = vunpack.c.l.b16 %v749
    %v1926 = vunpack.c.h.b16 %v749
    %v1927 = vunpack.c.l.b16 %v750
    %v1928 = vunpack.c.h.b16 %v750
    %v1929 = vunpack.c.l.b16 %v751
    %v1930 = vunpack.c.h.b16 %v751
    %v1931 = vunpack.c.l.b16 %v752
    %v1932 = vunpack.c.l.b16 %v753
    %v1933 = vunpack.c.h.b16 %v753
    %v1934 = vunpack.c.l.b16 %v754
    %v1935 = vunpack.c.h.b16 %v754
    %v1936 = vunpack.c.l.b16 %v755
    %v1937 = vunpack.c.h.b16 %v755
    %v1938 = vunpack.c.l.b16 %v756
    %v1939 = vunpack.c.l.b16 %v757
    %v1940 = vunpack.c.h.b16 %v757
    %v1941 = vunpack.c.l.b16 %v758
    %v1942 = vunpack.c.h.b16 %v758
    %v1943 = vunpack.c.l.b16 %v759
    %v1944 = vunpack.c.h.b16 %v759
    %v1945 = vunpack.c.l.b16 %v760
    %v1946 = vunpack.c.l.b16 %v761
    %v1947 = vunpack.c.h.b16 %v761
    %v1948 = vunpack.c.l.b16 %v762
    %v1949 = vunpack.c.h.b16 %v762
    %v1950 = vunpack.c.l.b16 %v763
    %v1951 = vunpack.c.h.b16 %v763
    %v1952 = vunpack.c.l.b16 %v764
    %v1953 = vunpack.c.l.b16 %v765
    %v1954 = vunpack.c.h.b16 %v765
    %v1955 = vunpack.c.l.b16 %v766
    %v1956 = vunpack.c.h.b16 %v766
    %v1957 = vunpack.c.l.b16 %v767
    %v1958 = vunpack.c.h.b16 %v767
    %v1959 = vunpack.c.l.b16 %v768
    %v1960 = vunpack.c.l.b16 %v769
    %v1961 = vunpack.c.h.b16 %v769
    %v1962 = vunpack.c.l.b16 %v770
    %v1963 = vunpack.c.h.b16 %v770
    %v1964 = vunpack.c.l.b16 %v771
    %v1965 = vunpack.c.h.b16 %v771
    %v1966 = vunpack.c.l.b16 %v772
    %v1967 = vunpack.c.l.b16 %v773
    %v1968 = vunpack.c.h.b16 %v773
    %v1969 = vunpack.c.l.b16 %v774
    %v1970 = vunpack.c.h.b16 %v774
    %v1971 = vunpack.c.l.b16 %v775
    %v1972 = vunpack.c.h.b16 %v775
    %v1973 = vunpack.c.l.b16 %v776
    %v1974 = vunpack.c.l.b16 %v777
    %v1975 = vunpack.c.h.b16 %v777
    %v1976 = vunpack.c.l.b16 %v778
    %v1977 = vunpack.c.h.b16 %v778
    %v1978 = vunpack.c.l.b16 %v779
    %v1979 = vunpack.c.h.b16 %v779
    %v1980 = vunpack.c.l.b16 %v780
    %v1981 = vunpack.c.l.b16 %v781
    %v1982 = vunpack.c.h.b16 %v781
    %v1983 = vunpack.c.l.b16 %v782
    %v1984 = vunpack.c.h.b16 %v782
    %v1985 = vunpack.c.l.b16 %v783
    %v1986 = vunpack.c.h.b16 %v783
    %v1987 = vunpack.c.l.b16 %v784
    %v1988 = vunpack.c.l.b16 %v785
    %v1989 = vunpack.c.h.b16 %v785
    %v1990 = vunpack.c.l.b16 %v786
    %v1991 = vunpack.c.h.b16 %v786
    %v1992 = vunpack.c.l.b16 %v787
    %v1993 = vunpack.c.h.b16 %v787
    %v1994 = vunpack.c.l.b16 %v788
    %v1995 = vunpack.c.l.b16 %v789
    %v1996 = vunpack.c.h.b16 %v789
    %v1997 = vunpack.c.l.b16 %v790
    %v1998 = vunpack.c.h.b16 %v790
    %v1999 = vunpack.c.l.b16 %v791
    %v2000 = vunpack.c.h.b16 %v791
    %v2001 = vunpack.c.l.b16 %v792
    %v2002 = vunpack.c.l.b16 %v793
    %v2003 = vunpack.c.h.b16 %v793
    %v2004 = vunpack.c.l.b16 %v794
    %v2005 = vunpack.c.h.b16 %v794
    %v2006 = vunpack.c.l.b16 %v795
    %v2007 = vunpack.c.h.b16 %v795
    %v2008 = vunpack.c.l.b16 %v796
    %v2009 = vunpack.c.l.b16 %v797
    %v2010 = vunpack.c.h.b16 %v797
    %v2011 = vunpack.c.l.b16 %v798
    %v2012 = vunpack.c.h.b16 %v798
    %v2013 = vunpack.c.l.b16 %v799
    %v2014 = vunpack.c.h.b16 %v799
    %v2015 = vunpack.c.l.b16 %v800
    %v2016 = vunpack.c.l.b16 %v801
    %v2017 = vunpack.c.h.b16 %v801
    %v2018 = vunpack.c.l.b16 %v802
    %v2019 = vunpack.c.h.b16 %v802
    %v2020 = vunpack.c.l.b16 %v803
    %v2021 = vunpack.c.h.b16 %v803
    %v2022 = vunpack.c.l.b16 %v804
    %v2023 = vunpack.c.l.b16 %v805
    %v2024 = vunpack.c.h.b16 %v805
    %v2025 = vunpack.c.l.b16 %v806
    %v2026 = vunpack.c.h.b16 %v806
    %v2027 = vunpack.c.l.b16 %v807
    %v2028 = vunpack.c.h.b16 %v807
    %v2029 = vunpack.c.l.b16 %v808
    %v2030 = vunpack.c.l.b16 %v809
    %v2031 = vunpack.c.h.b16 %v809
    %v2032 = vunpack.c.l.b16 %v810
    %v2033 = vunpack.c.h.b16 %v810
    %v2034 = vunpack.c.l.b16 %v811
    %v2035 = vunpack.c.h.b16 %v811
    %v2036 = vunpack.c.l.b16 %v812
    %v2037 = vunpack.c.l.b16 %v813
    %v2038 = vunpack.c.h.b16 %v813
    %v2039 = vunpack.c.l.b16 %v814
    %v2040 = vunpack.c.h.b16 %v814
    %v2041 = vunpack.c.l.b16 %v815
    %v2042 = vunpack.c.h.b16 %v815
    %v2043 = vunpack.c.l.b16 %v816
    %v2044 = vunpack.c.l.b16 %v817
    %v2045 = vunpack.c.h.b16 %v817
    %v2046 = vunpack.c.l.b16 %v818
    %v2047 = vunpack.c.h.b16 %v818
    %v2048 = vunpack.c.l.b16 %v819
    %v2049 = vunpack.c.h.b16 %v819
    %v2050 = vunpack.c.l.b16 %v820
    %v2051 = vunpack.c.l.b16 %v821
    %v2052 = vunpack.c.h.b16 %v821
    %v2053 = vunpack.c.l.b16 %v822
    %v2054 = vunpack.c.h.b16 %v822
    %v2055 = vunpack.c.l.b16 %v823
    %v2056 = vunpack.c.h.b16 %v823
    %v2057 = vunpack.c.l.b16 %v824
    %v2058 = vunpack.c.l.b16 %v825
    %v2059 = vunpack.c.h.b16 %v825
    %v2060 = vunpack.c.l.b16 %v826
    %v2061 = vunpack.c.h.b16 %v826
    %v2062 = vunpack.c.l.b16 %v827
    %v2063 = vunpack.c.h.b16 %v827
    %v2064 = vunpack.c.l.b16 %v828
    %v2065 = vunpack.c.l.b16 %v829
    %v2066 = vunpack.c.h.b16 %v829
    %v2067 = vunpack.c.l.b16 %v830
    %v2068 = vunpack.c.h.b16 %v830
    %v2069 = vunpack.c.l.b16 %v831
    %v2070 = vunpack.c.h.b16 %v831
    %v2071 = vunpack.c.l.b16 %v832
    %v2072 = vunpack.c.l.b16 %v833
    %v2073 = vunpack.c.h.b16 %v833
    %v2074 = vunpack.c.l.b16 %v834
    %v2075 = vunpack.c.h.b16 %v834
    %v2076 = vunpack.c.l.b16 %v835
    %v2077 = vunpack.c.h.b16 %v835
    %v2078 = vunpack.c.l.b16 %v836
    %v2079 = vunpack.c.l.b16 %v837
    %v2080 = vunpack.c.h.b16 %v837
    %v2081 = vunpack.c.l.b16 %v838
    %v2082 = vunpack.c.h.b16 %v838
    %v2083 = vunpack.c.l.b16 %v839
    %v2084 = vunpack.c.h.b16 %v839
    %v2085 = vunpack.c.l.b16 %v840
    %v2086 = vunpack.c.l.b16 %v841
    %v2087 = vunpack.c.h.b16 %v841
    %v2088 = vunpack.c.l.b16 %v842
    %v2089 = vunpack.c.h.b16 %v842
    %v2090 = vunpack.c.l.b16 %v843
    %v2091 = vunpack.c.h.b16 %v843
    %v2092 = vunpack.c.l.b16 %v844
    %v2093 = vunpack.c.l.b16 %v845
    %v2094 = vunpack.c.h.b16 %v845
    %v2095 = vunpack.c.l.b16 %v846
    %v2096 = vunpack.c.h.b16 %v846
    %v2097 = vunpack.c.l.b16 %v847
    %v2098 = vunpack.c.h.b16 %v847
    %v2099 = vunpack.c.l.b16 %v848
    %v2100 = vunpack.c.l.b16 %v849
    %v2101 = vunpack.c.h.b16 %v849
    %v2102 = vunpack.c.l.b16 %v850
    %v2103 = vunpack.c.h.b16 %v850
    %v2104 = vunpack.c.l.b16 %v851
    %v2105 = vunpack.c.h.b16 %v851
    %v2106 = vunpack.c.l.b16 %v852
    %v2107 = vunpack.c.l.b16 %v853
    %v2108 = vunpack.c.h.b16 %v853
    %v2109 = vunpack.c.l.b16 %v854
    %v2110 = vunpack.c.h.b16 %v854
    %v2111 = vunpack.c.l.b16 %v855
    %v2112 = vunpack.c.h.b16 %v855
    %v2113 = vunpack.c.l.b16 %v856
    %v2114 = vunpack.c.l.b16 %v857
    %v2115 = vunpack.c.h.b16 %v857
    %v2116 = vunpack.c.l.b16 %v858
    %v2117 = vunpack.c.h.b16 %v858
    %v2118 = vunpack.c.l.b16 %v859
    %v2119 = vunpack.c.h.b16 %v859
    %v2120 = vunpack.c.l.b16 %v860
    %v2121 = vunpack.c.l.b16 %v861
    %v2122 = vunpack.c.h.b16 %v861
    %v2123 = vunpack.c.l.b16 %v862
    %v2124 = vunpack.c.h.b16 %v862
    %v2125 = vunpack.c.l.b16 %v863
    %v2126 = vunpack.c.h.b16 %v863
    %v2127 = vunpack.c.l.b16 %v864
    %v2128 = vunpack.c.l.b16 %v865
    %v2129 = vunpack.c.h.b16 %v865
    %v2130 = vunpack.c.l.b16 %v866
    %v2131 = vunpack.c.h.b16 %v866
    %v2132 = vunpack.c.l.b16 %v867
    %v2133 = vunpack.c.h.b16 %v867
    %v2134 = vunpack.c.l.b16 %v868
    %v2135 = vunpack.c.l.b16 %v869
    %v2136 = vunpack.c.h.b16 %v869
    %v2137 = vunpack.c.l.b16 %v870
    %v2138 = vunpack.c.h.b16 %v870
    %v2139 = vunpack.c.l.b16 %v871
    %v2140 = vunpack.c.h.b16 %v871
    %v2141 = vunpack.c.l.b16 %v872
    %v2142 = vpack.c.b16 %v1365, %v1358
    %v2143 = vpack.c.b16 %v1366, %v1359
    %v2144 = vpack.c.b16 %v1367, %v1360
    %v2145 = vpack.c.b16 %v1368, %v1361
    %v2146 = vpack.c.b16 %v1369, %v1362
    %v2147 = vpack.c.b16 %v1370, %v1363
    %v2148 = vpack.c.b16 %v1371, %v1364
    %v2149 = vpack.c.b16 %v1379, %v1372
    %v2150 = vpack.c.b16 %v1380, %v1373
    %v2151 = vpack.c.b16 %v1381, %v1374
    %v2152 = vpack.c.b16 %v1382, %v1375
    %v2153 = vpack.c.b16 %v1383, %v1376
    %v2154 = vpack.c.b16 %v1384, %v1377
    %v2155 = vpack.c.b16 %v1385, %v1378
    %v2156 = vpack.c.b16 %v1393, %v1386
    %v2157 = vpack.c.b16 %v1394, %v1387
    %v2158 = vpack.c.b16 %v1395, %v1388
    %v2159 = vpack.c.b16 %v1396, %v1389
    %v2160 = vpack.c.b16 %v1397, %v1390
    %v2161 = vpack.c.b16 %v1398, %v1391
    %v2162 = vpack.c.b16 %v1399, %v1392
    %v2163 = vpack.c.b16 %v1407, %v1400
    %v2164 = vpack.c.b16 %v1408, %v1401
    %v2165 = vpack.c.b16 %v1409, %v1402
    %v2166 = vpack.c.b16 %v1410, %v1403
    %v2167 = vpack.c.b16 %v1411, %v1404
    %v2168 = vpack.c.b16 %v1412, %v1405
    %v2169 = vpack.c.b16 %v1413, %v1406
    %v2170 = vpack.c.b16 %v1421, %v1414
    %v2171 = vpack.c.b16 %v1422, %v1415
    %v2172 = vpack.c.b16 %v1423, %v1416
    %v2173 = vpack.c.b16 %v1424, %v1417
    %v2174 = vpack.c.b16 %v1425, %v1418
    %v2175 = vpack.c.b16 %v1426, %v1419
    %v2176 = vpack.c.b16 %v1427, %v1420
    %v2177 = vpack.c.b16 %v1435, %v1428
    %v2178 = vpack.c.b16 %v1436, %v1429
    %v2179 = vpack.c.b16 %v1437, %v1430
    %v2180 = vpack.c.b16 %v1438, %v1431
    %v2181 = vpack.c.b16 %v1439, %v1432
    %v2182 = vpack.c.b16 %v1440, %v1433
    %v2183 = vpack.c.b16 %v1441, %v1434
    %v2184 = vpack.c.b16 %v1449, %v1442
    %v2185 = vpack.c.b16 %v1450, %v1443
    %v2186 = vpack.c.b16 %v1451, %v1444
    %v2187 = vpack.c.b16 %v1452, %v1445
    %v2188 = vpack.c.b16 %v1453, %v1446
    %v2189 = vpack.c.b16 %v1454, %v1447
    %v2190 = vpack.c.b16 %v1455, %v1448
    %v2191 = vpack.c.b16 %v1463, %v1456
    %v2192 = vpack.c.b16 %v1464, %v1457
    %v2193 = vpack.c.b16 %v1465, %v1458
    %v2194 = vpack.c.b16 %v1466, %v1459
    %v2195 = vpack.c.b16 %v1467, %v1460
    %v2196 = vpack.c.b16 %v1468, %v1461
    %v2197 = vpack.c.b16 %v1469, %v1462
    %v2198 = vpack.c.b16 %v1477, %v1470
    %v2199 = vpack.c.b16 %v1478, %v1471
    %v2200 = vpack.c.b16 %v1479, %v1472
    %v2201 = vpack.c.b16 %v1480, %v1473
    %v2202 = vpack.c.b16 %v1481, %v1474
    %v2203 = vpack.c.b16 %v1482, %v1475
    %v2204 = vpack.c.b16 %v1483, %v1476
    %v2205 = vpack.c.b16 %v1491, %v1484
    %v2206 = vpack.c.b16 %v1492, %v1485
    %v2207 = vpack.c.b16 %v1493, %v1486
    %v2208 = vpack.c.b16 %v1494, %v1487
    %v2209 = vpack.c.b16 %v1495, %v1488
    %v2210 = vpack.c.b16 %v1496, %v1489
    %v2211 = vpack.c.b16 %v1497, %v1490
    %v2212 = vpack.c.b16 %v1505, %v1498
    %v2213 = vpack.c.b16 %v1506, %v1499
    %v2214 = vpack.c.b16 %v1507, %v1500
    %v2215 = vpack.c.b16 %v1508, %v1501
    %v2216 = vpack.c.b16 %v1509, %v1502
    %v2217 = vpack.c.b16 %v1510, %v1503
    %v2218 = vpack.c.b16 %v1511, %v1504
    %v2219 = vpack.c.b16 %v1519, %v1512
    %v2220 = vpack.c.b16 %v1520, %v1513
    %v2221 = vpack.c.b16 %v1521, %v1514
    %v2222 = vpack.c.b16 %v1522, %v1515
    %v2223 = vpack.c.b16 %v1523, %v1516
    %v2224 = vpack.c.b16 %v1524, %v1517
    %v2225 = vpack.c.b16 %v1525, %v1518
    %v2226 = vpack.c.b16 %v1533, %v1526
    %v2227 = vpack.c.b16 %v1534, %v1527
    %v2228 = vpack.c.b16 %v1535, %v1528
    %v2229 = vpack.c.b16 %v1536, %v1529
    %v2230 = vpack.c.b16 %v1537, %v1530
    %v2231 = vpack.c.b16 %v1538, %v1531
    %v2232 = vpack.c.b16 %v1539, %v1532
    %v2233 = vpack.c.b16 %v1547, %v1540
    %v2234 = vpack.c.b16 %v1548, %v1541
    %v2235 = vpack.c.b16 %v1549, %v1542
    %v2236 = vpack.c.b16 %v1550, %v1543
    %v2237 = vpack.c.b16 %v1551, %v1544
    %v2238 = vpack.c.b16 %v1552, %v1545
    %v2239 = vpack.c.b16 %v1553, %v1546
    %v2240 = vpack.c.b16 %v1561, %v1554
    %v2241 = vpack.c.b16 %v1562, %v1555
    %v2242 = vpack.c.b16 %v1563, %v1556
    %v2243 = vpack.c.b16 %v1564, %v1557
    %v2244 = vpack.c.b16 %v1565, %v1558
    %v2245 = vpack.c.b16 %v1566, %v1559
    %v2246 = vpack.c.b16 %v1567, %v1560
    %v2247 = vpack.c.b16 %v1575, %v1568
    %v2248 = vpack.c.b16 %v1576, %v1569
    %v2249 = vpack.c.b16 %v1577, %v1570
    %v2250 = vpack.c.b16 %v1578, %v1571
    %v2251 = vpack.c.b16 %v1579, %v1572
    %v2252 = vpack.c.b16 %v1580, %v1573
    %v2253 = vpack.c.b16 %v1581, %v1574
    %v2254 = vpack.c.b16 %v1589, %v1582
    %v2255 = vpack.c.b16 %v1590, %v1583
    %v2256 = vpack.c.b16 %v1591, %v1584
    %v2257 = vpack.c.b16 %v1592, %v1585
    %v2258 = vpack.c.b16 %v1593, %v1586
    %v2259 = vpack.c.b16 %v1594, %v1587
    %v2260 = vpack.c.b16 %v1595, %v1588
    %v2261 = vpack.c.b16 %v1603, %v1596
    %v2262 = vpack.c.b16 %v1604, %v1597
    %v2263 = vpack.c.b16 %v1605, %v1598
    %v2264 = vpack.c.b16 %v1606, %v1599
    %v2265 = vpack.c.b16 %v1607, %v1600
    %v2266 = vpack.c.b16 %v1608, %v1601
    %v2267 = vpack.c.b16 %v1609, %v1602
    %v2268 = vpack.c.b16 %v1617, %v1610
    %v2269 = vpack.c.b16 %v1618, %v1611
    %v2270 = vpack.c.b16 %v1619, %v1612
    %v2271 = vpack.c.b16 %v1620, %v1613
    %v2272 = vpack.c.b16 %v1621, %v1614
    %v2273 = vpack.c.b16 %v1622, %v1615
    %v2274 = vpack.c.b16 %v1623, %v1616
    %v2275 = vpack.c.b16 %v1631, %v1624
    %v2276 = vpack.c.b16 %v1632, %v1625
    %v2277 = vpack.c.b16 %v1633, %v1626
    %v2278 = vpack.c.b16 %v1634, %v1627
    %v2279 = vpack.c.b16 %v1635, %v1628
    %v2280 = vpack.c.b16 %v1636, %v1629
    %v2281 = vpack.c.b16 %v1637, %v1630
    %v2282 = vpack.c.b16 %v1645, %v1638
    %v2283 = vpack.c.b16 %v1646, %v1639
    %v2284 = vpack.c.b16 %v1647, %v1640
    %v2285 = vpack.c.b16 %v1648, %v1641
    %v2286 = vpack.c.b16 %v1649, %v1642
    %v2287 = vpack.c.b16 %v1650, %v1643
    %v2288 = vpack.c.b16 %v1651, %v1644
    %v2289 = vpack.c.b16 %v1659, %v1652
    %v2290 = vpack.c.b16 %v1660, %v1653
    %v2291 = vpack.c.b16 %v1661, %v1654
    %v2292 = vpack.c.b16 %v1662, %v1655
    %v2293 = vpack.c.b16 %v1663, %v1656
    %v2294 = vpack.c.b16 %v1664, %v1657
    %v2295 = vpack.c.b16 %v1665, %v1658
    %v2296 = vpack.c.b16 %v1673, %v1666
    %v2297 = vpack.c.b16 %v1674, %v1667
    %v2298 = vpack.c.b16 %v1675, %v1668
    %v2299 = vpack.c.b16 %v1676, %v1669
    %v2300 = vpack.c.b16 %v1677, %v1670
    %v2301 = vpack.c.b16 %v1678, %v1671
    %v2302 = vpack.c.b16 %v1679, %v1672
    %v2303 = vpack.c.b16 %v1687, %v1680
    %v2304 = vpack.c.b16 %v1688, %v1681
    %v2305 = vpack.c.b16 %v1689, %v1682
    %v2306 = vpack.c.b16 %v1690, %v1683
    %v2307 = vpack.c.b16 %v1691, %v1684
    %v2308 = vpack.c.b16 %v1692, %v1685
    %v2309 = vpack.c.b16 %v1693, %v1686
    %v2310 = vpack.c.b16 %v1701, %v1694
    %v2311 = vpack.c.b16 %v1702, %v1695
    %v2312 = vpack.c.b16 %v1703, %v1696
    %v2313 = vpack.c.b16 %v1704, %v1697
    %v2314 = vpack.c.b16 %v1705, %v1698
    %v2315 = vpack.c.b16 %v1706, %v1699
    %v2316 = vpack.c.b16 %v1707, %v1700
    %v2317 = vpack.c.b16 %v1715, %v1708
    %v2318 = vpack.c.b16 %v1716, %v1709
    %v2319 = vpack.c.b16 %v1717, %v1710
    %v2320 = vpack.c.b16 %v1718, %v1711
    %v2321 = vpack.c.b16 %v1719, %v1712
    %v2322 = vpack.c.b16 %v1720, %v1713
    %v2323 = vpack.c.b16 %v1721, %v1714
    %v2324 = vpack.c.b16 %v1729, %v1722
    %v2325 = vpack.c.b16 %v1730, %v1723
    %v2326 = vpack.c.b16 %v1731, %v1724
    %v2327 = vpack.c.b16 %v1732, %v1725
    %v2328 = vpack.c.b16 %v1733, %v1726
    %v2329 = vpack.c.b16 %v1734, %v1727
    %v2330 = vpack.c.b16 %v1735, %v1728
    %v2331 = vpack.c.b16 %v1743, %v1736
    %v2332 = vpack.c.b16 %v1744, %v1737
    %v2333 = vpack.c.b16 %v1745, %v1738
    %v2334 = vpack.c.b16 %v1746, %v1739
    %v2335 = vpack.c.b16 %v1747, %v1740
    %v2336 = vpack.c.b16 %v1748, %v1741
    %v2337 = vpack.c.b16 %v1749, %v1742
    %v2338 = vpack.c.b16 %v1757, %v1750
    %v2339 = vpack.c.b16 %v1758, %v1751
    %v2340 = vpack.c.b16 %v1759, %v1752
    %v2341 = vpack.c.b16 %v1760, %v1753
    %v2342 = vpack.c.b16 %v1761, %v1754
    %v2343 = vpack.c.b16 %v1762, %v1755
    %v2344 = vpack.c.b16 %v1763, %v1756
    %v2345 = vpack.c.b16 %v1771, %v1764
    %v2346 = vpack.c.b16 %v1772, %v1765
    %v2347 = vpack.c.b16 %v1773, %v1766
    %v2348 = vpack.c.b16 %v1774, %v1767
    %v2349 = vpack.c.b16 %v1775, %v1768
    %v2350 = vpack.c.b16 %v1776, %v1769
    %v2351 = vpack.c.b16 %v1777, %v1770
    %v2352 = vpack.c.b16 %v1785, %v1778
    %v2353 = vpack.c.b16 %v1786, %v1779
    %v2354 = vpack.c.b16 %v1787, %v1780
    %v2355 = vpack.c.b16 %v1788, %v1781
    %v2356 = vpack.c.b16 %v1789, %v1782
    %v2357 = vpack.c.b16 %v1790, %v1783
    %v2358 = vpack.c.b16 %v1791, %v1784
    %v2359 = vpack.c.b16 %v1799, %v1792
    %v2360 = vpack.c.b16 %v1800, %v1793
    %v2361 = vpack.c.b16 %v1801, %v1794
    %v2362 = vpack.c.b16 %v1802, %v1795
    %v2363 = vpack.c.b16 %v1803, %v1796
    %v2364 = vpack.c.b16 %v1804, %v1797
    %v2365 = vpack.c.b16 %v1805, %v1798
    %v2366 = vpack.c.b16 %v1813, %v1806
    %v2367 = vpack.c.b16 %v1814, %v1807
    %v2368 = vpack.c.b16 %v1815, %v1808
    %v2369 = vpack.c.b16 %v1816, %v1809
    %v2370 = vpack.c.b16 %v1817, %v1810
    %v2371 = vpack.c.b16 %v1818, %v1811
    %v2372 = vpack.c.b16 %v1819, %v1812
    %v2373 = vpack.c.b16 %v1827, %v1820
    %v2374 = vpack.c.b16 %v1828, %v1821
    %v2375 = vpack.c.b16 %v1829, %v1822
    %v2376 = vpack.c.b16 %v1830, %v1823
    %v2377 = vpack.c.b16 %v1831, %v1824
    %v2378 = vpack.c.b16 %v1832, %v1825
    %v2379 = vpack.c.b16 %v1833, %v1826
    %v2380 = vpack.c.b16 %v1841, %v1834
    %v2381 = vpack.c.b16 %v1842, %v1835
    %v2382 = vpack.c.b16 %v1843, %v1836
    %v2383 = vpack.c.b16 %v1844, %v1837
    %v2384 = vpack.c.b16 %v1845, %v1838
    %v2385 = vpack.c.b16 %v1846, %v1839
    %v2386 = vpack.c.b16 %v1847, %v1840
    %v2387 = vpack.c.b16 %v1855, %v1848
    %v2388 = vpack.c.b16 %v1856, %v1849
    %v2389 = vpack.c.b16 %v1857, %v1850
    %v2390 = vpack.c.b16 %v1858, %v1851
    %v2391 = vpack.c.b16 %v1859, %v1852
    %v2392 = vpack.c.b16 %v1860, %v1853
    %v2393 = vpack.c.b16 %v1861, %v1854
    %v2394 = vpack.c.b16 %v1869, %v1862
    %v2395 = vpack.c.b16 %v1870, %v1863
    %v2396 = vpack.c.b16 %v1871, %v1864
    %v2397 = vpack.c.b16 %v1872, %v1865
    %v2398 = vpack.c.b16 %v1873, %v1866
    %v2399 = vpack.c.b16 %v1874, %v1867
    %v2400 = vpack.c.b16 %v1875, %v1868
    %v2401 = vpack.c.b16 %v1883, %v1876
    %v2402 = vpack.c.b16 %v1884, %v1877
    %v2403 = vpack.c.b16 %v1885, %v1878
    %v2404 = vpack.c.b16 %v1886, %v1879
    %v2405 = vpack.c.b16 %v1887, %v1880
    %v2406 = vpack.c.b16 %v1888, %v1881
    %v2407 = vpack.c.b16 %v1889, %v1882
    %v2408 = vpack.c.b16 %v1897, %v1890
    %v2409 = vpack.c.b16 %v1898, %v1891
    %v2410 = vpack.c.b16 %v1899, %v1892
    %v2411 = vpack.c.b16 %v1900, %v1893
    %v2412 = vpack.c.b16 %v1901, %v1894
    %v2413 = vpack.c.b16 %v1902, %v1895
    %v2414 = vpack.c.b16 %v1903, %v1896
    %v2415 = vpack.c.b16 %v1911, %v1904
    %v2416 = vpack.c.b16 %v1912, %v1905
    %v2417 = vpack.c.b16 %v1913, %v1906
    %v2418 = vpack.c.b16 %v1914, %v1907
    %v2419 = vpack.c.b16 %v1915, %v1908
    %v2420 = vpack.c.b16 %v1916, %v1909
    %v2421 = vpack.c.b16 %v1917, %v1910
    %v2422 = vpack.c.b16 %v1925, %v1918
    %v2423 = vpack.c.b16 %v1926, %v1919
    %v2424 = vpack.c.b16 %v1927, %v1920
    %v2425 = vpack.c.b16 %v1928, %v1921
    %v2426 = vpack.c.b16 %v1929, %v1922
    %v2427 = vpack.c.b16 %v1930, %v1923
    %v2428 = vpack.c.b16 %v1931, %v1924
    %v2429 = vpack.c.b16 %v1939, %v1932
    %v2430 = vpack.c.b16 %v1940, %v1933
    %v2431 = vpack.c.b16 %v1941, %v1934
    %v2432 = vpack.c.b16 %v1942, %v1935
    %v2433 = vpack.c.b16 %v1943, %v1936
    %v2434 = vpack.c.b16 %v1944, %v1937
    %v2435 = vpack.c.b16 %v1945, %v1938
    %v2436 = vpack.c.b16 %v1953, %v1946
    %v2437 = vpack.c.b16 %v1954, %v1947
    %v2438 = vpack.c.b16 %v1955, %v1948
    %v2439 = vpack.c.b16 %v1956, %v1949
    %v2440 = vpack.c.b16 %v1957, %v1950
    %v2441 = vpack.c.b16 %v1958, %v1951
    %v2442 = vpack.c.b16 %v1959, %v1952
    %v2443 = vpack.c.b16 %v1967, %v1960
    %v2444 = vpack.c.b16 %v1968, %v1961
    %v2445 = vpack.c.b16 %v1969, %v1962
    %v2446 = vpack.c.b16 %v1970, %v1963
    %v2447 = vpack.c.b16 %v1971, %v1964
    %v2448 = vpack.c.b16 %v1972, %v1965
    %v2449 = vpack.c.b16 %v1973, %v1966
    %v2450 = vpack.c.b16 %v1981, %v1974
    %v2451 = vpack.c.b16 %v1982, %v1975
    %v2452 = vpack.c.b16 %v1983, %v1976
    %v2453 = vpack.c.b16 %v1984, %v1977
    %v2454 = vpack.c.b16 %v1985, %v1978
    %v2455 = vpack.c.b16 %v1986, %v1979
    %v2456 = vpack.c.b16 %v1987, %v1980
    %v2457 = vpack.c.b16 %v1995, %v1988
    %v2458 = vpack.c.b16 %v1996, %v1989
    %v2459 = vpack.c.b16 %v1997, %v1990
    %v2460 = vpack.c.b16 %v1998, %v1991
    %v2461 = vpack.c.b16 %v1999, %v1992
    %v2462 = vpack.c.b16 %v2000, %v1993
    %v2463 = vpack.c.b16 %v2001, %v1994
    %v2464 = vpack.c.b16 %v2009, %v2002
    %v2465 = vpack.c.b16 %v2010, %v2003
    %v2466 = vpack.c.b16 %v2011, %v2004
    %v2467 = vpack.c.b16 %v2012, %v2005
    %v2468 = vpack.c.b16 %v2013, %v2006
    %v2469 = vpack.c.b16 %v2014, %v2007
    %v2470 = vpack.c.b16 %v2015, %v2008
    %v2471 = vpack.c.b16 %v2023, %v2016
    %v2472 = vpack.c.b16 %v2024, %v2017
    %v2473 = vpack.c.b16 %v2025, %v2018
    %v2474 = vpack.c.b16 %v2026, %v2019
    %v2475 = vpack.c.b16 %v2027, %v2020
    %v2476 = vpack.c.b16 %v2028, %v2021
    %v2477 = vpack.c.b16 %v2029, %v2022
    %v2478 = vpack.c.b16 %v2037, %v2030
    %v2479 = vpack.c.b16 %v2038, %v2031
    %v2480 = vpack.c.b16 %v2039, %v2032
    %v2481 = vpack.c.b16 %v2040, %v2033
    %v2482 = vpack.c.b16 %v2041, %v2034
    %v2483 = vpack.c.b16 %v2042, %v2035
    %v2484 = vpack.c.b16 %v2043, %v2036
    %v2485 = vpack.c.b16 %v2051, %v2044
    %v2486 = vpack.c.b16 %v2052, %v2045
    %v2487 = vpack.c.b16 %v2053, %v2046
    %v2488 = vpack.c.b16 %v2054, %v2047
    %v2489 = vpack.c.b16 %v2055, %v2048
    %v2490 = vpack.c.b16 %v2056, %v2049
    %v2491 = vpack.c.b16 %v2057, %v2050
    %v2492 = vpack.c.b16 %v2065, %v2058
    %v2493 = vpack.c.b16 %v2066, %v2059
    %v2494 = vpack.c.b16 %v2067, %v2060
    %v2495 = vpack.c.b16 %v2068, %v2061
    %v2496 = vpack.c.b16 %v2069, %v2062
    %v2497 = vpack.c.b16 %v2070, %v2063
    %v2498 = vpack.c.b16 %v2071, %v2064
    %v2499 = vpack.c.b16 %v2079, %v2072
    %v2500 = vpack.c.b16 %v2080, %v2073
    %v2501 = vpack.c.b16 %v2081, %v2074
    %v2502 = vpack.c.b16 %v2082, %v2075
    %v2503 = vpack.c.b16 %v2083, %v2076
    %v2504 = vpack.c.b16 %v2084, %v2077
    %v2505 = vpack.c.b16 %v2085, %v2078
    %v2506 = vpack.c.b16 %v2093, %v2086
    %v2507 = vpack.c.b16 %v2094, %v2087
    %v2508 = vpack.c.b16 %v2095, %v2088
    %v2509 = vpack.c.b16 %v2096, %v2089
    %v2510 = vpack.c.b16 %v2097, %v2090
    %v2511 = vpack.c.b16 %v2098, %v2091
    %v2512 = vpack.c.b16 %v2099, %v2092
    %v2513 = vpack.c.b16 %v2107, %v2100
    %v2514 = vpack.c.b16 %v2108, %v2101
    %v2515 = vpack.c.b16 %v2109, %v2102
    %v2516 = vpack.c.b16 %v2110, %v2103
    %v2517 = vpack.c.b16 %v2111, %v2104
    %v2518 = vpack.c.b16 %v2112, %v2105
    %v2519 = vpack.c.b16 %v2113, %v2106
    %v2520 = vpack.c.b16 %v2121, %v2114
    %v2521 = vpack.c.b16 %v2122, %v2115
    %v2522 = vpack.c.b16 %v2123, %v2116
    %v2523 = vpack.c.b16 %v2124, %v2117
    %v2524 = vpack.c.b16 %v2125, %v2118
    %v2525 = vpack.c.b16 %v2126, %v2119
    %v2526 = vpack.c.b16 %v2127, %v2120
    %v2527 = vpack.c.b16 %v2135, %v2128
    %v2528 = vpack.c.b16 %v2136, %v2129
    %v2529 = vpack.c.b16 %v2137, %v2130
    %v2530 = vpack.c.b16 %v2138, %v2131
    %v2531 = vpack.c.b16 %v2139, %v2132
    %v2532 = vpack.c.b16 %v2140, %v2133
    %v2533 = vpack.c.b16 %v2141, %v2134
    %2926 = vmatprep.subr.bf16.mxu0 %v2192
    %2927 = vmatpush1.bf16.msra.mxu0 %v2191
    %2928 = vmatprep.subr.bf16.mxu0 %v2185
    %2929 = vmatpush1.bf16.msra.mxu0 %v2184
    %2930 = vmatprep.subr.bf16.mxu0 %v2178
    %2931 = vmatpush1.bf16.msra.mxu0 %v2177
    %2932 = vmatprep.subr.bf16.mxu0 %v2171
    %2933 = vmatpush1.bf16.msra.mxu0 %v2170
    %2934 = vmatprep.subr.bf16.mxu0 %v2164
    %2935 = vmatpush1.bf16.msra.mxu0 %v2163
    %2936 = vmatprep.subr.bf16.mxu0 %v2157
    %2937 = vmatpush1.bf16.msra.mxu0 %v2156
    %2938 = vmatprep.subr.bf16.mxu0 %v2150
    %2939 = vmatpush1.bf16.msra.mxu0 %v2149
    %2940 = vmatprep.subr.bf16.mxu0 %v2143
    %2941 = vmatpush1.bf16.msra.mxu0 %v2142
    %2942 = vmatprep.subr.bf16.mxu0 %v2248
    %2943 = vmatpush2.bf16.msra.mxu0 %v2247
    %2944 = vmatprep.subr.bf16.mxu0 %v2241
    %2945 = vmatpush2.bf16.msra.mxu0 %v2240
    %2946 = vmatprep.subr.bf16.mxu0 %v2234
    %2947 = vmatpush2.bf16.msra.mxu0 %v2233
    %2948 = vmatprep.subr.bf16.mxu0 %v2227
    %2949 = vmatpush2.bf16.msra.mxu0 %v2226
    %2950 = vmatprep.subr.bf16.mxu0 %v2220
    %2951 = vmatpush2.bf16.msra.mxu0 %v2219
    %2952 = vmatprep.subr.bf16.mxu0 %v2213
    %2953 = vmatpush2.bf16.msra.mxu0 %v2212
    %2954 = vmatprep.subr.bf16.mxu0 %v2206
    %2955 = vmatpush2.bf16.msra.mxu0 %v2205
    %2956 = vmatprep.subr.bf16.mxu0 %v2199
    %2957 = vmatpush2.bf16.msra.mxu0 %v2198
    %2958 = vmatprep.mubr.bf16.mxu0 %v314
    %2959 = vmatmul.mubr.bf16.gmra.mxu0 %v313
    %v2960 = vpop.f32.mrf.mxu0
    %v2961 = vadd.f32 %v878, %v2960
    %v2962 = vpop.f32.mrf.mxu0
    %v2963 = vadd.f32 %v882, %v2962
    %v2964 = vpop.f32.mrf.mxu0
    %v2965 = vadd.f32 %v878, %v2964
    %v2966 = vpop.f32.mrf.mxu0
    %v2967 = vadd.f32 %v882, %v2966
    %2968 = vmatprep.mubr.bf16.mxu0 %v321
    %2969 = vmatmul.mubr.bf16.gmra.mxu0 %v320
    %v2970 = vpop.f32.mrf.mxu0
    %v2971 = vadd.f32 %v878, %v2970
    %v2972 = vpop.f32.mrf.mxu0
    %v2973 = vadd.f32 %v882, %v2972
    %v2974 = vpop.f32.mrf.mxu0
    %v2975 = vadd.f32 %v878, %v2974
    %v2976 = vpop.f32.mrf.mxu0
    %v2977 = vadd.f32 %v882, %v2976
    %2978 = vmatprep.mubr.bf16.mxu0 %v328
    %2979 = vmatmul.mubr.bf16.gmra.mxu0 %v327
    %v2980 = vpop.f32.mrf.mxu0
    %v2981 = vadd.f32 %v878, %v2980
    %v2982 = vpop.f32.mrf.mxu0
    %v2983 = vadd.f32 %v882, %v2982
    %v2984 = vpop.f32.mrf.mxu0
    %v2985 = vadd.f32 %v878, %v2984
    %v2986 = vpop.f32.mrf.mxu0
    %v2987 = vadd.f32 %v882, %v2986
    %2988 = vmatprep.mubr.bf16.mxu0 %v335
    %2989 = vmatmul.mubr.bf16.gmra.mxu0 %v334
    %v2990 = vpop.f32.mrf.mxu0
    %v2991 = vadd.f32 %v878, %v2990
    %v2992 = vpop.f32.mrf.mxu0
    %v2993 = vadd.f32 %v882, %v2992
    %v2994 = vpop.f32.mrf.mxu0
    %v2995 = vadd.f32 %v878, %v2994
    %v2996 = vpop.f32.mrf.mxu0
    %v2997 = vadd.f32 %v882, %v2996
    %2998 = vmatprep.mubr.bf16.mxu0 %v342
    %2999 = vmatmul.mubr.bf16.gmra.mxu0 %v341
    %v3000 = vpop.f32.mrf.mxu0
    %v3001 = vadd.f32 %v878, %v3000
    %v3002 = vpop.f32.mrf.mxu0
    %v3003 = vadd.f32 %v882, %v3002
    %v3004 = vpop.f32.mrf.mxu0
    %v3005 = vadd.f32 %v878, %v3004
    %v3006 = vpop.f32.mrf.mxu0
    %v3007 = vadd.f32 %v882, %v3006
    %3008 = vmatprep.mubr.bf16.mxu0 %v349
    %3009 = vmatmul.mubr.bf16.gmra.mxu0 %v348
    %v3010 = vpop.f32.mrf.mxu0
    %v3011 = vadd.f32 %v878, %v3010
    %v3012 = vpop.f32.mrf.mxu0
    %v3013 = vadd.f32 %v882, %v3012
    %v3014 = vpop.f32.mrf.mxu0
    %v3015 = vadd.f32 %v878, %v3014
    %v3016 = vpop.f32.mrf.mxu0
    %v3017 = vadd.f32 %v882, %v3016
    %3018 = vmatprep.mubr.bf16.mxu0 %v356
    %3019 = vmatmul.mubr.bf16.gmra.mxu0 %v355
    %v3020 = vpop.f32.mrf.mxu0
    %v3021 = vadd.f32 %v878, %v3020
    %v3022 = vpop.f32.mrf.mxu0
    %v3023 = vadd.f32 %v882, %v3022
    %v3024 = vpop.f32.mrf.mxu0
    %v3025 = vadd.f32 %v878, %v3024
    %v3026 = vpop.f32.mrf.mxu0
    %v3027 = vadd.f32 %v882, %v3026
    %3028 = vmatprep.mubr.bf16.mxu0 %v363
    %3029 = vmatmul.mubr.bf16.gmra.mxu0 %v362
    %v3030 = vpop.f32.mrf.mxu0
    %v3031 = vadd.f32 %v878, %v3030
    %v3032 = vpop.f32.mrf.mxu0
    %v3033 = vadd.f32 %v882, %v3032
    %v3034 = vpop.f32.mrf.mxu0
    %v3035 = vadd.f32 %v878, %v3034
    %v3036 = vpop.f32.mrf.mxu0
    %v3037 = vadd.f32 %v882, %v3036
    %3038 = vmatprep.mubr.bf16.mxu0 %v370
    %3039 = vmatmul.mubr.bf16.gmra.mxu0 %v369
    %v3040 = vpop.f32.mrf.mxu0
    %v3041 = vadd.f32 %v878, %v3040
    %v3042 = vpop.f32.mrf.mxu0
    %v3043 = vadd.f32 %v882, %v3042
    %v3044 = vpop.f32.mrf.mxu0
    %v3045 = vadd.f32 %v878, %v3044
    %v3046 = vpop.f32.mrf.mxu0
    %v3047 = vadd.f32 %v882, %v3046
    %3048 = vmatprep.mubr.bf16.mxu0 %v377
    %3049 = vmatmul.mubr.bf16.gmra.mxu0 %v376
    %v3050 = vpop.f32.mrf.mxu0
    %v3051 = vadd.f32 %v878, %v3050
    %v3052 = vpop.f32.mrf.mxu0
    %v3053 = vadd.f32 %v882, %v3052
    %v3054 = vpop.f32.mrf.mxu0
    %v3055 = vadd.f32 %v878, %v3054
    %v3056 = vpop.f32.mrf.mxu0
    %v3057 = vadd.f32 %v882, %v3056
    %3058 = vmatprep.mubr.bf16.mxu0 %v384
    %3059 = vmatmul.mubr.bf16.gmra.mxu0 %v383
    %v3060 = vpop.f32.mrf.mxu0
    %v3061 = vadd.f32 %v878, %v3060
    %v3062 = vpop.f32.mrf.mxu0
    %v3063 = vadd.f32 %v882, %v3062
    %v3064 = vpop.f32.mrf.mxu0
    %v3065 = vadd.f32 %v878, %v3064
    %v3066 = vpop.f32.mrf.mxu0
    %v3067 = vadd.f32 %v882, %v3066
    %3068 = vmatprep.mubr.bf16.mxu0 %v391
    %3069 = vmatmul.mubr.bf16.gmra.mxu0 %v390
    %v3070 = vpop.f32.mrf.mxu0
    %v3071 = vadd.f32 %v878, %v3070
    %v3072 = vpop.f32.mrf.mxu0
    %v3073 = vadd.f32 %v882, %v3072
    %v3074 = vpop.f32.mrf.mxu0
    %v3075 = vadd.f32 %v878, %v3074
    %v3076 = vpop.f32.mrf.mxu0
    %v3077 = vadd.f32 %v882, %v3076
    %3078 = vmatprep.mubr.bf16.mxu0 %v398
    %3079 = vmatmul.mubr.bf16.gmra.mxu0 %v397
    %v3080 = vpop.f32.mrf.mxu0
    %v3081 = vadd.f32 %v878, %v3080
    %v3082 = vpop.f32.mrf.mxu0
    %v3083 = vadd.f32 %v882, %v3082
    %v3084 = vpop.f32.mrf.mxu0
    %v3085 = vadd.f32 %v878, %v3084
    %v3086 = vpop.f32.mrf.mxu0
    %v3087 = vadd.f32 %v882, %v3086
    %3088 = vmatprep.mubr.bf16.mxu0 %v405
    %3089 = vmatmul.mubr.bf16.gmra.mxu0 %v404
    %v3090 = vpop.f32.mrf.mxu0
    %v3091 = vadd.f32 %v878, %v3090
    %v3092 = vpop.f32.mrf.mxu0
    %v3093 = vadd.f32 %v882, %v3092
    %v3094 = vpop.f32.mrf.mxu0
    %v3095 = vadd.f32 %v878, %v3094
    %v3096 = vpop.f32.mrf.mxu0
    %v3097 = vadd.f32 %v882, %v3096
    %3098 = vmatprep.mubr.bf16.mxu0 %v412
    %3099 = vmatmul.mubr.bf16.gmra.mxu0 %v411
    %v3100 = vpop.f32.mrf.mxu0
    %v3101 = vadd.f32 %v878, %v3100
    %v3102 = vpop.f32.mrf.mxu0
    %v3103 = vadd.f32 %v882, %v3102
    %v3104 = vpop.f32.mrf.mxu0
    %v3105 = vadd.f32 %v878, %v3104
    %v3106 = vpop.f32.mrf.mxu0
    %v3107 = vadd.f32 %v882, %v3106
    %3108 = vmatprep.mubr.bf16.mxu0 %v419
    %3109 = vmatmul.mubr.bf16.gmra.mxu0 %v418
    %v3110 = vpop.f32.mrf.mxu0
    %v3111 = vadd.f32 %v878, %v3110
    %v3112 = vpop.f32.mrf.mxu0
    %v3113 = vadd.f32 %v882, %v3112
    %v3114 = vpop.f32.mrf.mxu0
    %v3115 = vadd.f32 %v878, %v3114
    %v3116 = vpop.f32.mrf.mxu0
    %v3117 = vadd.f32 %v882, %v3116
    %3118 = vdwg.mxu0
    %3119 = vmatprep.subr.bf16.mxu0 %v2304
    %3120 = vmatpush1.bf16.msra.mxu0 %v2303
    %3121 = vmatprep.subr.bf16.mxu0 %v2297
    %3122 = vmatpush1.bf16.msra.mxu0 %v2296
    %3123 = vmatprep.subr.bf16.mxu0 %v2290
    %3124 = vmatpush1.bf16.msra.mxu0 %v2289
    %3125 = vmatprep.subr.bf16.mxu0 %v2283
    %3126 = vmatpush1.bf16.msra.mxu0 %v2282
    %3127 = vmatprep.subr.bf16.mxu0 %v2276
    %3128 = vmatpush1.bf16.msra.mxu0 %v2275
    %3129 = vmatprep.subr.bf16.mxu0 %v2269
    %3130 = vmatpush1.bf16.msra.mxu0 %v2268
    %3131 = vmatprep.subr.bf16.mxu0 %v2262
    %3132 = vmatpush1.bf16.msra.mxu0 %v2261
    %3133 = vmatprep.subr.bf16.mxu0 %v2255
    %3134 = vmatpush1.bf16.msra.mxu0 %v2254
    %3135 = vmatprep.subr.bf16.mxu0 %v2360
    %3136 = vmatpush2.bf16.msra.mxu0 %v2359
    %3137 = vmatprep.subr.bf16.mxu0 %v2353
    %3138 = vmatpush2.bf16.msra.mxu0 %v2352
    %3139 = vmatprep.subr.bf16.mxu0 %v2346
    %3140 = vmatpush2.bf16.msra.mxu0 %v2345
    %3141 = vmatprep.subr.bf16.mxu0 %v2339
    %3142 = vmatpush2.bf16.msra.mxu0 %v2338
    %3143 = vmatprep.subr.bf16.mxu0 %v2332
    %3144 = vmatpush2.bf16.msra.mxu0 %v2331
    %3145 = vmatprep.subr.bf16.mxu0 %v2325
    %3146 = vmatpush2.bf16.msra.mxu0 %v2324
    %3147 = vmatprep.subr.bf16.mxu0 %v2318
    %3148 = vmatpush2.bf16.msra.mxu0 %v2317
    %3149 = vmatprep.subr.bf16.mxu0 %v2311
    %3150 = vmatpush2.bf16.msra.mxu0 %v2310
    %3151 = vmatprep.mubr.bf16.mxu0 %v316
    %3152 = vmatmul.mubr.bf16.gmra.mxu0 %v315
    %v3153 = vpop.f32.mrf.mxu0
    %v3154 = vadd.f32 %v2961, %v3153
    %v3155 = vpop.f32.mrf.mxu0
    %v3156 = vadd.f32 %v2963, %v3155
    %v3157 = vpop.f32.mrf.mxu0
    %v3158 = vadd.f32 %v2965, %v3157
    %v3159 = vpop.f32.mrf.mxu0
    %v3160 = vadd.f32 %v2967, %v3159
    %3161 = vmatprep.mubr.bf16.mxu0 %v323
    %3162 = vmatmul.mubr.bf16.gmra.mxu0 %v322
    %v3163 = vpop.f32.mrf.mxu0
    %v3164 = vadd.f32 %v2971, %v3163
    %v3165 = vpop.f32.mrf.mxu0
    %v3166 = vadd.f32 %v2973, %v3165
    %v3167 = vpop.f32.mrf.mxu0
    %v3168 = vadd.f32 %v2975, %v3167
    %v3169 = vpop.f32.mrf.mxu0
    %v3170 = vadd.f32 %v2977, %v3169
    %3171 = vmatprep.mubr.bf16.mxu0 %v330
    %3172 = vmatmul.mubr.bf16.gmra.mxu0 %v329
    %v3173 = vpop.f32.mrf.mxu0
    %v3174 = vadd.f32 %v2981, %v3173
    %v3175 = vpop.f32.mrf.mxu0
    %v3176 = vadd.f32 %v2983, %v3175
    %v3177 = vpop.f32.mrf.mxu0
    %v3178 = vadd.f32 %v2985, %v3177
    %v3179 = vpop.f32.mrf.mxu0
    %v3180 = vadd.f32 %v2987, %v3179
    %3181 = vmatprep.mubr.bf16.mxu0 %v337
    %3182 = vmatmul.mubr.bf16.gmra.mxu0 %v336
    %v3183 = vpop.f32.mrf.mxu0
    %v3184 = vadd.f32 %v2991, %v3183
    %v3185 = vpop.f32.mrf.mxu0
    %v3186 = vadd.f32 %v2993, %v3185
    %v3187 = vpop.f32.mrf.mxu0
    %v3188 = vadd.f32 %v2995, %v3187
    %v3189 = vpop.f32.mrf.mxu0
    %v3190 = vadd.f32 %v2997, %v3189
    %3191 = vmatprep.mubr.bf16.mxu0 %v344
    %3192 = vmatmul.mubr.bf16.gmra.mxu0 %v343
    %v3193 = vpop.f32.mrf.mxu0
    %v3194 = vadd.f32 %v3001, %v3193
    %v3195 = vpop.f32.mrf.mxu0
    %v3196 = vadd.f32 %v3003, %v3195
    %v3197 = vpop.f32.mrf.mxu0
    %v3198 = vadd.f32 %v3005, %v3197
    %v3199 = vpop.f32.mrf.mxu0
    %v3200 = vadd.f32 %v3007, %v3199
    %3201 = vmatprep.mubr.bf16.mxu0 %v351
    %3202 = vmatmul.mubr.bf16.gmra.mxu0 %v350
    %v3203 = vpop.f32.mrf.mxu0
    %v3204 = vadd.f32 %v3011, %v3203
    %v3205 = vpop.f32.mrf.mxu0
    %v3206 = vadd.f32 %v3013, %v3205
    %v3207 = vpop.f32.mrf.mxu0
    %v3208 = vadd.f32 %v3015, %v3207
    %v3209 = vpop.f32.mrf.mxu0
    %v3210 = vadd.f32 %v3017, %v3209
    %3211 = vmatprep.mubr.bf16.mxu0 %v358
    %3212 = vmatmul.mubr.bf16.gmra.mxu0 %v357
    %v3213 = vpop.f32.mrf.mxu0
    %v3214 = vadd.f32 %v3021, %v3213
    %v3215 = vpop.f32.mrf.mxu0
    %v3216 = vadd.f32 %v3023, %v3215
    %v3217 = vpop.f32.mrf.mxu0
    %v3218 = vadd.f32 %v3025, %v3217
    %v3219 = vpop.f32.mrf.mxu0
    %v3220 = vadd.f32 %v3027, %v3219
    %3221 = vmatprep.mubr.bf16.mxu0 %v365
    %3222 = vmatmul.mubr.bf16.gmra.mxu0 %v364
    %v3223 = vpop.f32.mrf.mxu0
    %v3224 = vadd.f32 %v3031, %v3223
    %v3225 = vpop.f32.mrf.mxu0
    %v3226 = vadd.f32 %v3033, %v3225
    %v3227 = vpop.f32.mrf.mxu0
    %v3228 = vadd.f32 %v3035, %v3227
    %v3229 = vpop.f32.mrf.mxu0
    %v3230 = vadd.f32 %v3037, %v3229
    %3231 = vmatprep.mubr.bf16.mxu0 %v372
    %3232 = vmatmul.mubr.bf16.gmra.mxu0 %v371
    %v3233 = vpop.f32.mrf.mxu0
    %v3234 = vadd.f32 %v3041, %v3233
    %v3235 = vpop.f32.mrf.mxu0
    %v3236 = vadd.f32 %v3043, %v3235
    %v3237 = vpop.f32.mrf.mxu0
    %v3238 = vadd.f32 %v3045, %v3237
    %v3239 = vpop.f32.mrf.mxu0
    %v3240 = vadd.f32 %v3047, %v3239
    %3241 = vmatprep.mubr.bf16.mxu0 %v379
    %3242 = vmatmul.mubr.bf16.gmra.mxu0 %v378
    %v3243 = vpop.f32.mrf.mxu0
    %v3244 = vadd.f32 %v3051, %v3243
    %v3245 = vpop.f32.mrf.mxu0
    %v3246 = vadd.f32 %v3053, %v3245
    %v3247 = vpop.f32.mrf.mxu0
    %v3248 = vadd.f32 %v3055, %v3247
    %v3249 = vpop.f32.mrf.mxu0
    %v3250 = vadd.f32 %v3057, %v3249
    %3251 = vmatprep.mubr.bf16.mxu0 %v386
    %3252 = vmatmul.mubr.bf16.gmra.mxu0 %v385
    %v3253 = vpop.f32.mrf.mxu0
    %v3254 = vadd.f32 %v3061, %v3253
    %v3255 = vpop.f32.mrf.mxu0
    %v3256 = vadd.f32 %v3063, %v3255
    %v3257 = vpop.f32.mrf.mxu0
    %v3258 = vadd.f32 %v3065, %v3257
    %v3259 = vpop.f32.mrf.mxu0
    %v3260 = vadd.f32 %v3067, %v3259
    %3261 = vmatprep.mubr.bf16.mxu0 %v393
    %3262 = vmatmul.mubr.bf16.gmra.mxu0 %v392
    %v3263 = vpop.f32.mrf.mxu0
    %v3264 = vadd.f32 %v3071, %v3263
    %v3265 = vpop.f32.mrf.mxu0
    %v3266 = vadd.f32 %v3073, %v3265
    %v3267 = vpop.f32.mrf.mxu0
    %v3268 = vadd.f32 %v3075, %v3267
    %v3269 = vpop.f32.mrf.mxu0
    %v3270 = vadd.f32 %v3077, %v3269
    %3271 = vmatprep.mubr.bf16.mxu0 %v400
    %3272 = vmatmul.mubr.bf16.gmra.mxu0 %v399
    %v3273 = vpop.f32.mrf.mxu0
    %v3274 = vadd.f32 %v3081, %v3273
    %v3275 = vpop.f32.mrf.mxu0
    %v3276 = vadd.f32 %v3083, %v3275
    %v3277 = vpop.f32.mrf.mxu0
    %v3278 = vadd.f32 %v3085, %v3277
    %v3279 = vpop.f32.mrf.mxu0
    %v3280 = vadd.f32 %v3087, %v3279
    %3281 = vmatprep.mubr.bf16.mxu0 %v407
    %3282 = vmatmul.mubr.bf16.gmra.mxu0 %v406
    %v3283 = vpop.f32.mrf.mxu0
    %v3284 = vadd.f32 %v3091, %v3283
    %v3285 = vpop.f32.mrf.mxu0
    %v3286 = vadd.f32 %v3093, %v3285
    %v3287 = vpop.f32.mrf.mxu0
    %v3288 = vadd.f32 %v3095, %v3287
    %v3289 = vpop.f32.mrf.mxu0
    %v3290 = vadd.f32 %v3097, %v3289
    %3291 = vmatprep.mubr.bf16.mxu0 %v414
    %3292 = vmatmul.mubr.bf16.gmra.mxu0 %v413
    %v3293 = vpop.f32.mrf.mxu0
    %v3294 = vadd.f32 %v3101, %v3293
    %v3295 = vpop.f32.mrf.mxu0
    %v3296 = vadd.f32 %v3103, %v3295
    %v3297 = vpop.f32.mrf.mxu0
    %v3298 = vadd.f32 %v3105, %v3297
    %v3299 = vpop.f32.mrf.mxu0
    %v3300 = vadd.f32 %v3107, %v3299
    %3301 = vmatprep.mubr.bf16.mxu0 %v421
    %3302 = vmatmul.mubr.bf16.gmra.mxu0 %v420
    %v3303 = vpop.f32.mrf.mxu0
    %v3304 = vadd.f32 %v3111, %v3303
    %v3305 = vpop.f32.mrf.mxu0
    %v3306 = vadd.f32 %v3113, %v3305
    %v3307 = vpop.f32.mrf.mxu0
    %v3308 = vadd.f32 %v3115, %v3307
    %v3309 = vpop.f32.mrf.mxu0
    %v3310 = vadd.f32 %v3117, %v3309
    %3311 = vdwg.mxu0
    %3312 = vmatprep.subr.bf16.mxu0 %v2416
    %3313 = vmatpush1.bf16.msra.mxu0 %v2415
    %3314 = vmatprep.subr.bf16.mxu0 %v2409
    %3315 = vmatpush1.bf16.msra.mxu0 %v2408
    %3316 = vmatprep.subr.bf16.mxu0 %v2402
    %3317 = vmatpush1.bf16.msra.mxu0 %v2401
    %3318 = vmatprep.subr.bf16.mxu0 %v2395
    %3319 = vmatpush1.bf16.msra.mxu0 %v2394
    %3320 = vmatprep.subr.bf16.mxu0 %v2388
    %3321 = vmatpush1.bf16.msra.mxu0 %v2387
    %3322 = vmatprep.subr.bf16.mxu0 %v2381
    %3323 = vmatpush1.bf16.msra.mxu0 %v2380
    %3324 = vmatprep.subr.bf16.mxu0 %v2374
    %3325 = vmatpush1.bf16.msra.mxu0 %v2373
    %3326 = vmatprep.subr.bf16.mxu0 %v2367
    %3327 = vmatpush1.bf16.msra.mxu0 %v2366
    %3328 = vmatprep.subr.bf16.mxu0 %v2472
    %3329 = vmatpush2.bf16.msra.mxu0 %v2471
    %3330 = vmatprep.subr.bf16.mxu0 %v2465
    %3331 = vmatpush2.bf16.msra.mxu0 %v2464
    %3332 = vmatprep.subr.bf16.mxu0 %v2458
    %3333 = vmatpush2.bf16.msra.mxu0 %v2457
    %3334 = vmatprep.subr.bf16.mxu0 %v2451
    %3335 = vmatpush2.bf16.msra.mxu0 %v2450
    %3336 = vmatprep.subr.bf16.mxu0 %v2444
    %3337 = vmatpush2.bf16.msra.mxu0 %v2443
    %3338 = vmatprep.subr.bf16.mxu0 %v2437
    %3339 = vmatpush2.bf16.msra.mxu0 %v2436
    %3340 = vmatprep.subr.bf16.mxu0 %v2430
    %3341 = vmatpush2.bf16.msra.mxu0 %v2429
    %3342 = vmatprep.subr.bf16.mxu0 %v2423
    %3343 = vmatpush2.bf16.msra.mxu0 %v2422
    %3344 = vmatprep.mubr.bf16.mxu0 %v318
    %3345 = vmatmul.mubr.bf16.gmra.mxu0 %v317
    %v3346 = vpop.f32.mrf.mxu0
    %v3347 = vadd.f32 %v3154, %v3346
    %v3348 = vpop.f32.mrf.mxu0
    %v3349 = vadd.f32 %v3156, %v3348
    %v3350 = vpop.f32.mrf.mxu0
    %v3351 = vadd.f32 %v3158, %v3350
    %v3352 = vpop.f32.mrf.mxu0
    %v3353 = vadd.f32 %v3160, %v3352
    %3354 = vmatprep.mubr.bf16.mxu0 %v325
    %3355 = vmatmul.mubr.bf16.gmra.mxu0 %v324
    %v3356 = vpop.f32.mrf.mxu0
    %v3357 = vadd.f32 %v3164, %v3356
    %v3358 = vpop.f32.mrf.mxu0
    %v3359 = vadd.f32 %v3166, %v3358
    %v3360 = vpop.f32.mrf.mxu0
    %v3361 = vadd.f32 %v3168, %v3360
    %v3362 = vpop.f32.mrf.mxu0
    %v3363 = vadd.f32 %v3170, %v3362
    %3364 = vmatprep.mubr.bf16.mxu0 %v332
    %3365 = vmatmul.mubr.bf16.gmra.mxu0 %v331
    %v3366 = vpop.f32.mrf.mxu0
    %v3367 = vadd.f32 %v3174, %v3366
    %v3368 = vpop.f32.mrf.mxu0
    %v3369 = vadd.f32 %v3176, %v3368
    %v3370 = vpop.f32.mrf.mxu0
    %v3371 = vadd.f32 %v3178, %v3370
    %v3372 = vpop.f32.mrf.mxu0
    %v3373 = vadd.f32 %v3180, %v3372
    %3374 = vmatprep.mubr.bf16.mxu0 %v339
    %3375 = vmatmul.mubr.bf16.gmra.mxu0 %v338
    %v3376 = vpop.f32.mrf.mxu0
    %v3377 = vadd.f32 %v3184, %v3376
    %v3378 = vpop.f32.mrf.mxu0
    %v3379 = vadd.f32 %v3186, %v3378
    %v3380 = vpop.f32.mrf.mxu0
    %v3381 = vadd.f32 %v3188, %v3380
    %v3382 = vpop.f32.mrf.mxu0
    %v3383 = vadd.f32 %v3190, %v3382
    %3384 = vmatprep.mubr.bf16.mxu0 %v346
    %3385 = vmatmul.mubr.bf16.gmra.mxu0 %v345
    %v3386 = vpop.f32.mrf.mxu0
    %v3387 = vadd.f32 %v3194, %v3386
    %v3388 = vpop.f32.mrf.mxu0
    %v3389 = vadd.f32 %v3196, %v3388
    %v3390 = vpop.f32.mrf.mxu0
    %v3391 = vadd.f32 %v3198, %v3390
    %v3392 = vpop.f32.mrf.mxu0
    %v3393 = vadd.f32 %v3200, %v3392
    %3394 = vmatprep.mubr.bf16.mxu0 %v353
    %3395 = vmatmul.mubr.bf16.gmra.mxu0 %v352
    %v3396 = vpop.f32.mrf.mxu0
    %v3397 = vadd.f32 %v3204, %v3396
    %v3398 = vpop.f32.mrf.mxu0
    %v3399 = vadd.f32 %v3206, %v3398
    %v3400 = vpop.f32.mrf.mxu0
    %v3401 = vadd.f32 %v3208, %v3400
    %v3402 = vpop.f32.mrf.mxu0
    %v3403 = vadd.f32 %v3210, %v3402
    %3404 = vmatprep.mubr.bf16.mxu0 %v360
    %3405 = vmatmul.mubr.bf16.gmra.mxu0 %v359
    %v3406 = vpop.f32.mrf.mxu0
    %v3407 = vadd.f32 %v3214, %v3406
    %v3408 = vpop.f32.mrf.mxu0
    %v3409 = vadd.f32 %v3216, %v3408
    %v3410 = vpop.f32.mrf.mxu0
    %v3411 = vadd.f32 %v3218, %v3410
    %v3412 = vpop.f32.mrf.mxu0
    %v3413 = vadd.f32 %v3220, %v3412
    %3414 = vmatprep.mubr.bf16.mxu0 %v367
    %3415 = vmatmul.mubr.bf16.gmra.mxu0 %v366
    %v3416 = vpop.f32.mrf.mxu0
    %v3417 = vadd.f32 %v3224, %v3416
    %v3418 = vpop.f32.mrf.mxu0
    %v3419 = vadd.f32 %v3226, %v3418
    %v3420 = vpop.f32.mrf.mxu0
    %v3421 = vadd.f32 %v3228, %v3420
    %v3422 = vpop.f32.mrf.mxu0
    %v3423 = vadd.f32 %v3230, %v3422
    %3424 = vmatprep.mubr.bf16.mxu0 %v374
    %3425 = vmatmul.mubr.bf16.gmra.mxu0 %v373
    %v3426 = vpop.f32.mrf.mxu0
    %v3427 = vadd.f32 %v3234, %v3426
    %v3428 = vpop.f32.mrf.mxu0
    %v3429 = vadd.f32 %v3236, %v3428
    %v3430 = vpop.f32.mrf.mxu0
    %v3431 = vadd.f32 %v3238, %v3430
    %v3432 = vpop.f32.mrf.mxu0
    %v3433 = vadd.f32 %v3240, %v3432
    %3434 = vmatprep.mubr.bf16.mxu0 %v381
    %3435 = vmatmul.mubr.bf16.gmra.mxu0 %v380
    %v3436 = vpop.f32.mrf.mxu0
    %v3437 = vadd.f32 %v3244, %v3436
    %v3438 = vpop.f32.mrf.mxu0
    %v3439 = vadd.f32 %v3246, %v3438
    %v3440 = vpop.f32.mrf.mxu0
    %v3441 = vadd.f32 %v3248, %v3440
    %v3442 = vpop.f32.mrf.mxu0
    %v3443 = vadd.f32 %v3250, %v3442
    %3444 = vmatprep.mubr.bf16.mxu0 %v388
    %3445 = vmatmul.mubr.bf16.gmra.mxu0 %v387
    %v3446 = vpop.f32.mrf.mxu0
    %v3447 = vadd.f32 %v3254, %v3446
    %v3448 = vpop.f32.mrf.mxu0
    %v3449 = vadd.f32 %v3256, %v3448
    %v3450 = vpop.f32.mrf.mxu0
    %v3451 = vadd.f32 %v3258, %v3450
    %v3452 = vpop.f32.mrf.mxu0
    %v3453 = vadd.f32 %v3260, %v3452
    %3454 = vmatprep.mubr.bf16.mxu0 %v395
    %3455 = vmatmul.mubr.bf16.gmra.mxu0 %v394
    %v3456 = vpop.f32.mrf.mxu0
    %v3457 = vadd.f32 %v3264, %v3456
    %v3458 = vpop.f32.mrf.mxu0
    %v3459 = vadd.f32 %v3266, %v3458
    %v3460 = vpop.f32.mrf.mxu0
    %v3461 = vadd.f32 %v3268, %v3460
    %v3462 = vpop.f32.mrf.mxu0
    %v3463 = vadd.f32 %v3270, %v3462
    %3464 = vmatprep.mubr.bf16.mxu0 %v402
    %3465 = vmatmul.mubr.bf16.gmra.mxu0 %v401
    %v3466 = vpop.f32.mrf.mxu0
    %v3467 = vadd.f32 %v3274, %v3466
    %v3468 = vpop.f32.mrf.mxu0
    %v3469 = vadd.f32 %v3276, %v3468
    %v3470 = vpop.f32.mrf.mxu0
    %v3471 = vadd.f32 %v3278, %v3470
    %v3472 = vpop.f32.mrf.mxu0
    %v3473 = vadd.f32 %v3280, %v3472
    %3474 = vmatprep.mubr.bf16.mxu0 %v409
    %3475 = vmatmul.mubr.bf16.gmra.mxu0 %v408
    %v3476 = vpop.f32.mrf.mxu0
    %v3477 = vadd.f32 %v3284, %v3476
    %v3478 = vpop.f32.mrf.mxu0
    %v3479 = vadd.f32 %v3286, %v3478
    %v3480 = vpop.f32.mrf.mxu0
    %v3481 = vadd.f32 %v3288, %v3480
    %v3482 = vpop.f32.mrf.mxu0
    %v3483 = vadd.f32 %v3290, %v3482
    %3484 = vmatprep.mubr.bf16.mxu0 %v416
    %3485 = vmatmul.mubr.bf16.gmra.mxu0 %v415
    %v3486 = vpop.f32.mrf.mxu0
    %v3487 = vadd.f32 %v3294, %v3486
    %v3488 = vpop.f32.mrf.mxu0
    %v3489 = vadd.f32 %v3296, %v3488
    %v3490 = vpop.f32.mrf.mxu0
    %v3491 = vadd.f32 %v3298, %v3490
    %v3492 = vpop.f32.mrf.mxu0
    %v3493 = vadd.f32 %v3300, %v3492
    %3494 = vmatprep.mubr.bf16.mxu0 %v423
    %3495 = vmatmul.mubr.bf16.gmra.mxu0 %v422
    %v3496 = vpop.f32.mrf.mxu0
    %v3497 = vadd.f32 %v3304, %v3496
    %v3498 = vpop.f32.mrf.mxu0
    %v3499 = vadd.f32 %v3306, %v3498
    %v3500 = vpop.f32.mrf.mxu0
    %v3501 = vadd.f32 %v3308, %v3500
    %v3502 = vpop.f32.mrf.mxu0
    %v3503 = vadd.f32 %v3310, %v3502
    %3504 = vdwg.mxu0
    %3505 = vmatprep.subr.bf16.mxu0 %v2528
    %3506 = vmatpush1.bf16.msra.mxu0 %v2527
    %3507 = vmatprep.subr.bf16.mxu0 %v2521
    %3508 = vmatpush1.bf16.msra.mxu0 %v2520
    %3509 = vmatprep.subr.bf16.mxu0 %v2514
    %3510 = vmatpush1.bf16.msra.mxu0 %v2513
    %3511 = vmatprep.subr.bf16.mxu0 %v2507
    %3512 = vmatpush1.bf16.msra.mxu0 %v2506
    %3513 = vmatprep.subr.bf16.mxu0 %v2500
    %3514 = vmatpush1.bf16.msra.mxu0 %v2499
    %3515 = vmatprep.subr.bf16.mxu0 %v2493
    %3516 = vmatpush1.bf16.msra.mxu0 %v2492
    %3517 = vmatprep.subr.bf16.mxu0 %v2486
    %3518 = vmatpush1.bf16.msra.mxu0 %v2485
    %3519 = vmatprep.subr.bf16.mxu0 %v2479
    %3520 = vmatpush1.bf16.msra.mxu0 %v2478
    %3521 = vmatprep.subr.bf16.mxu0 0
    %3522 = vmatpush2.bf16.msra.mxu0 0
    %3523 = vmatprep.subr.bf16.mxu0 0
    %3524 = vmatpush2.bf16.msra.mxu0 0
    %3525 = vmatprep.subr.bf16.mxu0 0
    %3526 = vmatpush2.bf16.msra.mxu0 0
    %3527 = vmatprep.subr.bf16.mxu0 0
    %3528 = vmatpush2.bf16.msra.mxu0 0
    %3529 = vmatprep.subr.bf16.mxu0 0
    %3530 = vmatpush2.bf16.msra.mxu0 0
    %3531 = vmatprep.subr.bf16.mxu0 0
    %3532 = vmatpush2.bf16.msra.mxu0 0
    %3533 = vmatprep.subr.bf16.mxu0 0
    %3534 = vmatpush2.bf16.msra.mxu0 0
    %3535 = vmatprep.subr.bf16.mxu0 0
    %3536 = vmatpush2.bf16.msra.mxu0 0
    %3537 = vmatprep.mubr.bf16.mxu0 0
    %3538 = vmatmul.mubr.bf16.gmra.mxu0 %v319
    %v3539 = vpop.f32.mrf.mxu0
    %v3540 = vadd.f32 %v3347, %v3539
    %v3541 = vpop.f32.mrf.mxu0
    %v3542 = vadd.f32 %v3349, %v3541
    %v3543 = vpop.f32.mrf.mxu0
    %v3544 = vadd.f32 %v3351, %v3543
    %v3545 = vpop.f32.mrf.mxu0
    %v3546 = vadd.f32 %v3353, %v3545
    %3547 = vmatprep.mubr.bf16.mxu0 0
    %3548 = vmatmul.mubr.bf16.gmra.mxu0 %v326
    %v3549 = vpop.f32.mrf.mxu0
    %v3550 = vadd.f32 %v3357, %v3549
    %v3551 = vpop.f32.mrf.mxu0
    %v3552 = vadd.f32 %v3359, %v3551
    %v3553 = vpop.f32.mrf.mxu0
    %v3554 = vadd.f32 %v3361, %v3553
    %v3555 = vpop.f32.mrf.mxu0
    %v3556 = vadd.f32 %v3363, %v3555
    %3557 = vmatprep.mubr.bf16.mxu0 0
    %3558 = vmatmul.mubr.bf16.gmra.mxu0 %v333
    %v3559 = vpop.f32.mrf.mxu0
    %v3560 = vadd.f32 %v3367, %v3559
    %v3561 = vpop.f32.mrf.mxu0
    %v3562 = vadd.f32 %v3369, %v3561
    %v3563 = vpop.f32.mrf.mxu0
    %v3564 = vadd.f32 %v3371, %v3563
    %v3565 = vpop.f32.mrf.mxu0
    %v3566 = vadd.f32 %v3373, %v3565
    %3567 = vmatprep.mubr.bf16.mxu0 0
    %3568 = vmatmul.mubr.bf16.gmra.mxu0 %v340
    %v3569 = vpop.f32.mrf.mxu0
    %v3570 = vadd.f32 %v3377, %v3569
    %v3571 = vpop.f32.mrf.mxu0
    %v3572 = vadd.f32 %v3379, %v3571
    %v3573 = vpop.f32.mrf.mxu0
    %v3574 = vadd.f32 %v3381, %v3573
    %v3575 = vpop.f32.mrf.mxu0
    %v3576 = vadd.f32 %v3383, %v3575
    %3577 = vmatprep.mubr.bf16.mxu0 0
    %3578 = vmatmul.mubr.bf16.gmra.mxu0 %v347
    %v3579 = vpop.f32.mrf.mxu0
    %v3580 = vadd.f32 %v3387, %v3579
    %v3581 = vpop.f32.mrf.mxu0
    %v3582 = vadd.f32 %v3389, %v3581
    %v3583 = vpop.f32.mrf.mxu0
    %v3584 = vadd.f32 %v3391, %v3583
    %v3585 = vpop.f32.mrf.mxu0
    %v3586 = vadd.f32 %v3393, %v3585
    %3587 = vmatprep.mubr.bf16.mxu0 0
    %3588 = vmatmul.mubr.bf16.gmra.mxu0 %v354
    %v3589 = vpop.f32.mrf.mxu0
    %v3590 = vadd.f32 %v3397, %v3589
    %v3591 = vpop.f32.mrf.mxu0
    %v3592 = vadd.f32 %v3399, %v3591
    %v3593 = vpop.f32.mrf.mxu0
    %v3594 = vadd.f32 %v3401, %v3593
    %v3595 = vpop.f32.mrf.mxu0
    %v3596 = vadd.f32 %v3403, %v3595
    %3597 = vmatprep.mubr.bf16.mxu0 0
    %3598 = vmatmul.mubr.bf16.gmra.mxu0 %v361
    %v3599 = vpop.f32.mrf.mxu0
    %v3600 = vadd.f32 %v3407, %v3599
    %v3601 = vpop.f32.mrf.mxu0
    %v3602 = vadd.f32 %v3409, %v3601
    %v3603 = vpop.f32.mrf.mxu0
    %v3604 = vadd.f32 %v3411, %v3603
    %v3605 = vpop.f32.mrf.mxu0
    %v3606 = vadd.f32 %v3413, %v3605
    %3607 = vmatprep.mubr.bf16.mxu0 0
    %3608 = vmatmul.mubr.bf16.gmra.mxu0 %v368
    %v3609 = vpop.f32.mrf.mxu0
    %v3610 = vadd.f32 %v3417, %v3609
    %v3611 = vpop.f32.mrf.mxu0
    %v3612 = vadd.f32 %v3419, %v3611
    %v3613 = vpop.f32.mrf.mxu0
    %v3614 = vadd.f32 %v3421, %v3613
    %v3615 = vpop.f32.mrf.mxu0
    %v3616 = vadd.f32 %v3423, %v3615
    %3617 = vmatprep.mubr.bf16.mxu0 0
    %3618 = vmatmul.mubr.bf16.gmra.mxu0 %v375
    %v3619 = vpop.f32.mrf.mxu0
    %v3620 = vadd.f32 %v3427, %v3619
    %v3621 = vpop.f32.mrf.mxu0
    %v3622 = vadd.f32 %v3429, %v3621
    %v3623 = vpop.f32.mrf.mxu0
    %v3624 = vadd.f32 %v3431, %v3623
    %v3625 = vpop.f32.mrf.mxu0
    %v3626 = vadd.f32 %v3433, %v3625
    %3627 = vmatprep.mubr.bf16.mxu0 0
    %3628 = vmatmul.mubr.bf16.gmra.mxu0 %v382
    %v3629 = vpop.f32.mrf.mxu0
    %v3630 = vadd.f32 %v3437, %v3629
    %v3631 = vpop.f32.mrf.mxu0
    %v3632 = vadd.f32 %v3439, %v3631
    %v3633 = vpop.f32.mrf.mxu0
    %v3634 = vadd.f32 %v3441, %v3633
    %v3635 = vpop.f32.mrf.mxu0
    %v3636 = vadd.f32 %v3443, %v3635
    %3637 = vmatprep.mubr.bf16.mxu0 0
    %3638 = vmatmul.mubr.bf16.gmra.mxu0 %v389
    %v3639 = vpop.f32.mrf.mxu0
    %v3640 = vadd.f32 %v3447, %v3639
    %v3641 = vpop.f32.mrf.mxu0
    %v3642 = vadd.f32 %v3449, %v3641
    %v3643 = vpop.f32.mrf.mxu0
    %v3644 = vadd.f32 %v3451, %v3643
    %v3645 = vpop.f32.mrf.mxu0
    %v3646 = vadd.f32 %v3453, %v3645
    %3647 = vmatprep.mubr.bf16.mxu0 0
    %3648 = vmatmul.mubr.bf16.gmra.mxu0 %v396
    %v3649 = vpop.f32.mrf.mxu0
    %v3650 = vadd.f32 %v3457, %v3649
    %v3651 = vpop.f32.mrf.mxu0
    %v3652 = vadd.f32 %v3459, %v3651
    %v3653 = vpop.f32.mrf.mxu0
    %v3654 = vadd.f32 %v3461, %v3653
    %v3655 = vpop.f32.mrf.mxu0
    %v3656 = vadd.f32 %v3463, %v3655
    %3657 = vmatprep.mubr.bf16.mxu0 0
    %3658 = vmatmul.mubr.bf16.gmra.mxu0 %v403
    %v3659 = vpop.f32.mrf.mxu0
    %v3660 = vadd.f32 %v3467, %v3659
    %v3661 = vpop.f32.mrf.mxu0
    %v3662 = vadd.f32 %v3469, %v3661
    %v3663 = vpop.f32.mrf.mxu0
    %v3664 = vadd.f32 %v3471, %v3663
    %v3665 = vpop.f32.mrf.mxu0
    %v3666 = vadd.f32 %v3473, %v3665
    %3667 = vmatprep.mubr.bf16.mxu0 0
    %3668 = vmatmul.mubr.bf16.gmra.mxu0 %v410
    %v3669 = vpop.f32.mrf.mxu0
    %v3670 = vadd.f32 %v3477, %v3669
    %v3671 = vpop.f32.mrf.mxu0
    %v3672 = vadd.f32 %v3479, %v3671
    %v3673 = vpop.f32.mrf.mxu0
    %v3674 = vadd.f32 %v3481, %v3673
    %v3675 = vpop.f32.mrf.mxu0
    %v3676 = vadd.f32 %v3483, %v3675
    %3677 = vmatprep.mubr.bf16.mxu0 0
    %3678 = vmatmul.mubr.bf16.gmra.mxu0 %v417
    %v3679 = vpop.f32.mrf.mxu0
    %v3680 = vadd.f32 %v3487, %v3679
    %v3681 = vpop.f32.mrf.mxu0
    %v3682 = vadd.f32 %v3489, %v3681
    %v3683 = vpop.f32.mrf.mxu0
    %v3684 = vadd.f32 %v3491, %v3683
    %v3685 = vpop.f32.mrf.mxu0
    %v3686 = vadd.f32 %v3493, %v3685
    %3687 = vmatprep.mubr.bf16.mxu0 0
    %3688 = vmatmul.mubr.bf16.gmra.mxu0 %v424
    %v3689 = vpop.f32.mrf.mxu0
    %v3690 = vadd.f32 %v3497, %v3689
    %v3691 = vpop.f32.mrf.mxu0
    %v3692 = vadd.f32 %v3499, %v3691
    %v3693 = vpop.f32.mrf.mxu0
    %v3694 = vadd.f32 %v3501, %v3693
    %v3695 = vpop.f32.mrf.mxu0
    %v3696 = vadd.f32 %v3503, %v3695
    %3697 = vdwg.mxu0
    %3698 = vmatprep.subr.bf16.mxu0 %v2194
    %3699 = vmatpush1.bf16.msra.mxu0 %v2193
    %3700 = vmatprep.subr.bf16.mxu0 %v2187
    %3701 = vmatpush1.bf16.msra.mxu0 %v2186
    %3702 = vmatprep.subr.bf16.mxu0 %v2180
    %3703 = vmatpush1.bf16.msra.mxu0 %v2179
    %3704 = vmatprep.subr.bf16.mxu0 %v2173
    %3705 = vmatpush1.bf16.msra.mxu0 %v2172
    %3706 = vmatprep.subr.bf16.mxu0 %v2166
    %3707 = vmatpush1.bf16.msra.mxu0 %v2165
    %3708 = vmatprep.subr.bf16.mxu0 %v2159
    %3709 = vmatpush1.bf16.msra.mxu0 %v2158
    %3710 = vmatprep.subr.bf16.mxu0 %v2152
    %3711 = vmatpush1.bf16.msra.mxu0 %v2151
    %3712 = vmatprep.subr.bf16.mxu0 %v2145
    %3713 = vmatpush1.bf16.msra.mxu0 %v2144
    %3714 = vmatprep.subr.bf16.mxu0 %v2250
    %3715 = vmatpush2.bf16.msra.mxu0 %v2249
    %3716 = vmatprep.subr.bf16.mxu0 %v2243
    %3717 = vmatpush2.bf16.msra.mxu0 %v2242
    %3718 = vmatprep.subr.bf16.mxu0 %v2236
    %3719 = vmatpush2.bf16.msra.mxu0 %v2235
    %3720 = vmatprep.subr.bf16.mxu0 %v2229
    %3721 = vmatpush2.bf16.msra.mxu0 %v2228
    %3722 = vmatprep.subr.bf16.mxu0 %v2222
    %3723 = vmatpush2.bf16.msra.mxu0 %v2221
    %3724 = vmatprep.subr.bf16.mxu0 %v2215
    %3725 = vmatpush2.bf16.msra.mxu0 %v2214
    %3726 = vmatprep.subr.bf16.mxu0 %v2208
    %3727 = vmatpush2.bf16.msra.mxu0 %v2207
    %3728 = vmatprep.subr.bf16.mxu0 %v2201
    %3729 = vmatpush2.bf16.msra.mxu0 %v2200
    %3730 = vmatprep.mubr.bf16.mxu0 %v314
    %3731 = vmatmul.mubr.bf16.gmra.mxu0 %v313
    %v3732 = vpop.f32.mrf.mxu0
    %v3733 = vadd.f32 %v886, %v3732
    %v3734 = vpop.f32.mrf.mxu0
    %v3735 = vadd.f32 %v890, %v3734
    %v3736 = vpop.f32.mrf.mxu0
    %v3737 = vadd.f32 %v886, %v3736
    %v3738 = vpop.f32.mrf.mxu0
    %v3739 = vadd.f32 %v890, %v3738
    %3740 = vmatprep.mubr.bf16.mxu0 %v321
    %3741 = vmatmul.mubr.bf16.gmra.mxu0 %v320
    %v3742 = vpop.f32.mrf.mxu0
    %v3743 = vadd.f32 %v886, %v3742
    %v3744 = vpop.f32.mrf.mxu0
    %v3745 = vadd.f32 %v890, %v3744
    %v3746 = vpop.f32.mrf.mxu0
    %v3747 = vadd.f32 %v886, %v3746
    %v3748 = vpop.f32.mrf.mxu0
    %v3749 = vadd.f32 %v890, %v3748
    %3750 = vmatprep.mubr.bf16.mxu0 %v328
    %3751 = vmatmul.mubr.bf16.gmra.mxu0 %v327
    %v3752 = vpop.f32.mrf.mxu0
    %v3753 = vadd.f32 %v886, %v3752
    %v3754 = vpop.f32.mrf.mxu0
    %v3755 = vadd.f32 %v890, %v3754
    %v3756 = vpop.f32.mrf.mxu0
    %v3757 = vadd.f32 %v886, %v3756
    %v3758 = vpop.f32.mrf.mxu0
    %v3759 = vadd.f32 %v890, %v3758
    %3760 = vmatprep.mubr.bf16.mxu0 %v335
    %3761 = vmatmul.mubr.bf16.gmra.mxu0 %v334
    %v3762 = vpop.f32.mrf.mxu0
    %v3763 = vadd.f32 %v886, %v3762
    %v3764 = vpop.f32.mrf.mxu0
    %v3765 = vadd.f32 %v890, %v3764
    %v3766 = vpop.f32.mrf.mxu0
    %v3767 = vadd.f32 %v886, %v3766
    %v3768 = vpop.f32.mrf.mxu0
    %v3769 = vadd.f32 %v890, %v3768
    %3770 = vmatprep.mubr.bf16.mxu0 %v342
    %3771 = vmatmul.mubr.bf16.gmra.mxu0 %v341
    %v3772 = vpop.f32.mrf.mxu0
    %v3773 = vadd.f32 %v886, %v3772
    %v3774 = vpop.f32.mrf.mxu0
    %v3775 = vadd.f32 %v890, %v3774
    %v3776 = vpop.f32.mrf.mxu0
    %v3777 = vadd.f32 %v886, %v3776
    %v3778 = vpop.f32.mrf.mxu0
    %v3779 = vadd.f32 %v890, %v3778
    %3780 = vmatprep.mubr.bf16.mxu0 %v349
    %3781 = vmatmul.mubr.bf16.gmra.mxu0 %v348
    %v3782 = vpop.f32.mrf.mxu0
    %v3783 = vadd.f32 %v886, %v3782
    %v3784 = vpop.f32.mrf.mxu0
    %v3785 = vadd.f32 %v890, %v3784
    %v3786 = vpop.f32.mrf.mxu0
    %v3787 = vadd.f32 %v886, %v3786
    %v3788 = vpop.f32.mrf.mxu0
    %v3789 = vadd.f32 %v890, %v3788
    %3790 = vmatprep.mubr.bf16.mxu0 %v356
    %3791 = vmatmul.mubr.bf16.gmra.mxu0 %v355
    %v3792 = vpop.f32.mrf.mxu0
    %v3793 = vadd.f32 %v886, %v3792
    %v3794 = vpop.f32.mrf.mxu0
    %v3795 = vadd.f32 %v890, %v3794
    %v3796 = vpop.f32.mrf.mxu0
    %v3797 = vadd.f32 %v886, %v3796
    %v3798 = vpop.f32.mrf.mxu0
    %v3799 = vadd.f32 %v890, %v3798
    %3800 = vmatprep.mubr.bf16.mxu0 %v363
    %3801 = vmatmul.mubr.bf16.gmra.mxu0 %v362
    %v3802 = vpop.f32.mrf.mxu0
    %v3803 = vadd.f32 %v886, %v3802
    %v3804 = vpop.f32.mrf.mxu0
    %v3805 = vadd.f32 %v890, %v3804
    %v3806 = vpop.f32.mrf.mxu0
    %v3807 = vadd.f32 %v886, %v3806
    %v3808 = vpop.f32.mrf.mxu0
    %v3809 = vadd.f32 %v890, %v3808
    %3810 = vmatprep.mubr.bf16.mxu0 %v370
    %3811 = vmatmul.mubr.bf16.gmra.mxu0 %v369
    %v3812 = vpop.f32.mrf.mxu0
    %v3813 = vadd.f32 %v886, %v3812
    %v3814 = vpop.f32.mrf.mxu0
    %v3815 = vadd.f32 %v890, %v3814
    %v3816 = vpop.f32.mrf.mxu0
    %v3817 = vadd.f32 %v886, %v3816
    %v3818 = vpop.f32.mrf.mxu0
    %v3819 = vadd.f32 %v890, %v3818
    %3820 = vmatprep.mubr.bf16.mxu0 %v377
    %3821 = vmatmul.mubr.bf16.gmra.mxu0 %v376
    %v3822 = vpop.f32.mrf.mxu0
    %v3823 = vadd.f32 %v886, %v3822
    %v3824 = vpop.f32.mrf.mxu0
    %v3825 = vadd.f32 %v890, %v3824
    %v3826 = vpop.f32.mrf.mxu0
    %v3827 = vadd.f32 %v886, %v3826
    %v3828 = vpop.f32.mrf.mxu0
    %v3829 = vadd.f32 %v890, %v3828
    %3830 = vmatprep.mubr.bf16.mxu0 %v384
    %3831 = vmatmul.mubr.bf16.gmra.mxu0 %v383
    %v3832 = vpop.f32.mrf.mxu0
    %v3833 = vadd.f32 %v886, %v3832
    %v3834 = vpop.f32.mrf.mxu0
    %v3835 = vadd.f32 %v890, %v3834
    %v3836 = vpop.f32.mrf.mxu0
    %v3837 = vadd.f32 %v886, %v3836
    %v3838 = vpop.f32.mrf.mxu0
    %v3839 = vadd.f32 %v890, %v3838
    %3840 = vmatprep.mubr.bf16.mxu0 %v391
    %3841 = vmatmul.mubr.bf16.gmra.mxu0 %v390
    %v3842 = vpop.f32.mrf.mxu0
    %v3843 = vadd.f32 %v886, %v3842
    %v3844 = vpop.f32.mrf.mxu0
    %v3845 = vadd.f32 %v890, %v3844
    %v3846 = vpop.f32.mrf.mxu0
    %v3847 = vadd.f32 %v886, %v3846
    %v3848 = vpop.f32.mrf.mxu0
    %v3849 = vadd.f32 %v890, %v3848
    %3850 = vmatprep.mubr.bf16.mxu0 %v398
    %3851 = vmatmul.mubr.bf16.gmra.mxu0 %v397
    %v3852 = vpop.f32.mrf.mxu0
    %v3853 = vadd.f32 %v886, %v3852
    %v3854 = vpop.f32.mrf.mxu0
    %v3855 = vadd.f32 %v890, %v3854
    %v3856 = vpop.f32.mrf.mxu0
    %v3857 = vadd.f32 %v886, %v3856
    %v3858 = vpop.f32.mrf.mxu0
    %v3859 = vadd.f32 %v890, %v3858
    %3860 = vmatprep.mubr.bf16.mxu0 %v405
    %3861 = vmatmul.mubr.bf16.gmra.mxu0 %v404
    %v3862 = vpop.f32.mrf.mxu0
    %v3863 = vadd.f32 %v886, %v3862
    %v3864 = vpop.f32.mrf.mxu0
    %v3865 = vadd.f32 %v890, %v3864
    %v3866 = vpop.f32.mrf.mxu0
    %v3867 = vadd.f32 %v886, %v3866
    %v3868 = vpop.f32.mrf.mxu0
    %v3869 = vadd.f32 %v890, %v3868
    %3870 = vmatprep.mubr.bf16.mxu0 %v412
    %3871 = vmatmul.mubr.bf16.gmra.mxu0 %v411
    %v3872 = vpop.f32.mrf.mxu0
    %v3873 = vadd.f32 %v886, %v3872
    %v3874 = vpop.f32.mrf.mxu0
    %v3875 = vadd.f32 %v890, %v3874
    %v3876 = vpop.f32.mrf.mxu0
    %v3877 = vadd.f32 %v886, %v3876
    %v3878 = vpop.f32.mrf.mxu0
    %v3879 = vadd.f32 %v890, %v3878
    %3880 = vmatprep.mubr.bf16.mxu0 %v419
    %3881 = vmatmul.mubr.bf16.gmra.mxu0 %v418
    %v3882 = vpop.f32.mrf.mxu0
    %v3883 = vadd.f32 %v886, %v3882
    %v3884 = vpop.f32.mrf.mxu0
    %v3885 = vadd.f32 %v890, %v3884
    %v3886 = vpop.f32.mrf.mxu0
    %v3887 = vadd.f32 %v886, %v3886
    %v3888 = vpop.f32.mrf.mxu0
    %v3889 = vadd.f32 %v890, %v3888
    %3890 = vdwg.mxu0
    %3891 = vmatprep.subr.bf16.mxu0 %v2306
    %3892 = vmatpush1.bf16.msra.mxu0 %v2305
    %3893 = vmatprep.subr.bf16.mxu0 %v2299
    %3894 = vmatpush1.bf16.msra.mxu0 %v2298
    %3895 = vmatprep.subr.bf16.mxu0 %v2292
    %3896 = vmatpush1.bf16.msra.mxu0 %v2291
    %3897 = vmatprep.subr.bf16.mxu0 %v2285
    %3898 = vmatpush1.bf16.msra.mxu0 %v2284
    %3899 = vmatprep.subr.bf16.mxu0 %v2278
    %3900 = vmatpush1.bf16.msra.mxu0 %v2277
    %3901 = vmatprep.subr.bf16.mxu0 %v2271
    %3902 = vmatpush1.bf16.msra.mxu0 %v2270
    %3903 = vmatprep.subr.bf16.mxu0 %v2264
    %3904 = vmatpush1.bf16.msra.mxu0 %v2263
    %3905 = vmatprep.subr.bf16.mxu0 %v2257
    %3906 = vmatpush1.bf16.msra.mxu0 %v2256
    %3907 = vmatprep.subr.bf16.mxu0 %v2362
    %3908 = vmatpush2.bf16.msra.mxu0 %v2361
    %3909 = vmatprep.subr.bf16.mxu0 %v2355
    %3910 = vmatpush2.bf16.msra.mxu0 %v2354
    %3911 = vmatprep.subr.bf16.mxu0 %v2348
    %3912 = vmatpush2.bf16.msra.mxu0 %v2347
    %3913 = vmatprep.subr.bf16.mxu0 %v2341
    %3914 = vmatpush2.bf16.msra.mxu0 %v2340
    %3915 = vmatprep.subr.bf16.mxu0 %v2334
    %3916 = vmatpush2.bf16.msra.mxu0 %v2333
    %3917 = vmatprep.subr.bf16.mxu0 %v2327
    %3918 = vmatpush2.bf16.msra.mxu0 %v2326
    %3919 = vmatprep.subr.bf16.mxu0 %v2320
    %3920 = vmatpush2.bf16.msra.mxu0 %v2319
    %3921 = vmatprep.subr.bf16.mxu0 %v2313
    %3922 = vmatpush2.bf16.msra.mxu0 %v2312
    %3923 = vmatprep.mubr.bf16.mxu0 %v316
    %3924 = vmatmul.mubr.bf16.gmra.mxu0 %v315
    %v3925 = vpop.f32.mrf.mxu0
    %v3926 = vadd.f32 %v3733, %v3925
    %v3927 = vpop.f32.mrf.mxu0
    %v3928 = vadd.f32 %v3735, %v3927
    %v3929 = vpop.f32.mrf.mxu0
    %v3930 = vadd.f32 %v3737, %v3929
    %v3931 = vpop.f32.mrf.mxu0
    %v3932 = vadd.f32 %v3739, %v3931
    %3933 = vmatprep.mubr.bf16.mxu0 %v323
    %3934 = vmatmul.mubr.bf16.gmra.mxu0 %v322
    %v3935 = vpop.f32.mrf.mxu0
    %v3936 = vadd.f32 %v3743, %v3935
    %v3937 = vpop.f32.mrf.mxu0
    %v3938 = vadd.f32 %v3745, %v3937
    %v3939 = vpop.f32.mrf.mxu0
    %v3940 = vadd.f32 %v3747, %v3939
    %v3941 = vpop.f32.mrf.mxu0
    %v3942 = vadd.f32 %v3749, %v3941
    %3943 = vmatprep.mubr.bf16.mxu0 %v330
    %3944 = vmatmul.mubr.bf16.gmra.mxu0 %v329
    %v3945 = vpop.f32.mrf.mxu0
    %v3946 = vadd.f32 %v3753, %v3945
    %v3947 = vpop.f32.mrf.mxu0
    %v3948 = vadd.f32 %v3755, %v3947
    %v3949 = vpop.f32.mrf.mxu0
    %v3950 = vadd.f32 %v3757, %v3949
    %v3951 = vpop.f32.mrf.mxu0
    %v3952 = vadd.f32 %v3759, %v3951
    %3953 = vmatprep.mubr.bf16.mxu0 %v337
    %3954 = vmatmul.mubr.bf16.gmra.mxu0 %v336
    %v3955 = vpop.f32.mrf.mxu0
    %v3956 = vadd.f32 %v3763, %v3955
    %v3957 = vpop.f32.mrf.mxu0
    %v3958 = vadd.f32 %v3765, %v3957
    %v3959 = vpop.f32.mrf.mxu0
    %v3960 = vadd.f32 %v3767, %v3959
    %v3961 = vpop.f32.mrf.mxu0
    %v3962 = vadd.f32 %v3769, %v3961
    %3963 = vmatprep.mubr.bf16.mxu0 %v344
    %3964 = vmatmul.mubr.bf16.gmra.mxu0 %v343
    %v3965 = vpop.f32.mrf.mxu0
    %v3966 = vadd.f32 %v3773, %v3965
    %v3967 = vpop.f32.mrf.mxu0
    %v3968 = vadd.f32 %v3775, %v3967
    %v3969 = vpop.f32.mrf.mxu0
    %v3970 = vadd.f32 %v3777, %v3969
    %v3971 = vpop.f32.mrf.mxu0
    %v3972 = vadd.f32 %v3779, %v3971
    %3973 = vmatprep.mubr.bf16.mxu0 %v351
    %3974 = vmatmul.mubr.bf16.gmra.mxu0 %v350
    %v3975 = vpop.f32.mrf.mxu0
    %v3976 = vadd.f32 %v3783, %v3975
    %v3977 = vpop.f32.mrf.mxu0
    %v3978 = vadd.f32 %v3785, %v3977
    %v3979 = vpop.f32.mrf.mxu0
    %v3980 = vadd.f32 %v3787, %v3979
    %v3981 = vpop.f32.mrf.mxu0
    %v3982 = vadd.f32 %v3789, %v3981
    %3983 = vmatprep.mubr.bf16.mxu0 %v358
    %3984 = vmatmul.mubr.bf16.gmra.mxu0 %v357
    %v3985 = vpop.f32.mrf.mxu0
    %v3986 = vadd.f32 %v3793, %v3985
    %v3987 = vpop.f32.mrf.mxu0
    %v3988 = vadd.f32 %v3795, %v3987
    %v3989 = vpop.f32.mrf.mxu0
    %v3990 = vadd.f32 %v3797, %v3989
    %v3991 = vpop.f32.mrf.mxu0
    %v3992 = vadd.f32 %v3799, %v3991
    %3993 = vmatprep.mubr.bf16.mxu0 %v365
    %3994 = vmatmul.mubr.bf16.gmra.mxu0 %v364
    %v3995 = vpop.f32.mrf.mxu0
    %v3996 = vadd.f32 %v3803, %v3995
    %v3997 = vpop.f32.mrf.mxu0
    %v3998 = vadd.f32 %v3805, %v3997
    %v3999 = vpop.f32.mrf.mxu0
    %v4000 = vadd.f32 %v3807, %v3999
    %v4001 = vpop.f32.mrf.mxu0
    %v4002 = vadd.f32 %v3809, %v4001
    %4003 = vmatprep.mubr.bf16.mxu0 %v372
    %4004 = vmatmul.mubr.bf16.gmra.mxu0 %v371
    %v4005 = vpop.f32.mrf.mxu0
    %v4006 = vadd.f32 %v3813, %v4005
    %v4007 = vpop.f32.mrf.mxu0
    %v4008 = vadd.f32 %v3815, %v4007
    %v4009 = vpop.f32.mrf.mxu0
    %v4010 = vadd.f32 %v3817, %v4009
    %v4011 = vpop.f32.mrf.mxu0
    %v4012 = vadd.f32 %v3819, %v4011
    %4013 = vmatprep.mubr.bf16.mxu0 %v379
    %4014 = vmatmul.mubr.bf16.gmra.mxu0 %v378
    %v4015 = vpop.f32.mrf.mxu0
    %v4016 = vadd.f32 %v3823, %v4015
    %v4017 = vpop.f32.mrf.mxu0
    %v4018 = vadd.f32 %v3825, %v4017
    %v4019 = vpop.f32.mrf.mxu0
    %v4020 = vadd.f32 %v3827, %v4019
    %v4021 = vpop.f32.mrf.mxu0
    %v4022 = vadd.f32 %v3829, %v4021
    %4023 = vmatprep.mubr.bf16.mxu0 %v386
    %4024 = vmatmul.mubr.bf16.gmra.mxu0 %v385
    %v4025 = vpop.f32.mrf.mxu0
    %v4026 = vadd.f32 %v3833, %v4025
    %v4027 = vpop.f32.mrf.mxu0
    %v4028 = vadd.f32 %v3835, %v4027
    %v4029 = vpop.f32.mrf.mxu0
    %v4030 = vadd.f32 %v3837, %v4029
    %v4031 = vpop.f32.mrf.mxu0
    %v4032 = vadd.f32 %v3839, %v4031
    %4033 = vmatprep.mubr.bf16.mxu0 %v393
    %4034 = vmatmul.mubr.bf16.gmra.mxu0 %v392
    %v4035 = vpop.f32.mrf.mxu0
    %v4036 = vadd.f32 %v3843, %v4035
    %v4037 = vpop.f32.mrf.mxu0
    %v4038 = vadd.f32 %v3845, %v4037
    %v4039 = vpop.f32.mrf.mxu0
    %v4040 = vadd.f32 %v3847, %v4039
    %v4041 = vpop.f32.mrf.mxu0
    %v4042 = vadd.f32 %v3849, %v4041
    %4043 = vmatprep.mubr.bf16.mxu0 %v400
    %4044 = vmatmul.mubr.bf16.gmra.mxu0 %v399
    %v4045 = vpop.f32.mrf.mxu0
    %v4046 = vadd.f32 %v3853, %v4045
    %v4047 = vpop.f32.mrf.mxu0
    %v4048 = vadd.f32 %v3855, %v4047
    %v4049 = vpop.f32.mrf.mxu0
    %v4050 = vadd.f32 %v3857, %v4049
    %v4051 = vpop.f32.mrf.mxu0
    %v4052 = vadd.f32 %v3859, %v4051
    %4053 = vmatprep.mubr.bf16.mxu0 %v407
    %4054 = vmatmul.mubr.bf16.gmra.mxu0 %v406
    %v4055 = vpop.f32.mrf.mxu0
    %v4056 = vadd.f32 %v3863, %v4055
    %v4057 = vpop.f32.mrf.mxu0
    %v4058 = vadd.f32 %v3865, %v4057
    %v4059 = vpop.f32.mrf.mxu0
    %v4060 = vadd.f32 %v3867, %v4059
    %v4061 = vpop.f32.mrf.mxu0
    %v4062 = vadd.f32 %v3869, %v4061
    %4063 = vmatprep.mubr.bf16.mxu0 %v414
    %4064 = vmatmul.mubr.bf16.gmra.mxu0 %v413
    %v4065 = vpop.f32.mrf.mxu0
    %v4066 = vadd.f32 %v3873, %v4065
    %v4067 = vpop.f32.mrf.mxu0
    %v4068 = vadd.f32 %v3875, %v4067
    %v4069 = vpop.f32.mrf.mxu0
    %v4070 = vadd.f32 %v3877, %v4069
    %v4071 = vpop.f32.mrf.mxu0
    %v4072 = vadd.f32 %v3879, %v4071
    %4073 = vmatprep.mubr.bf16.mxu0 %v421
    %4074 = vmatmul.mubr.bf16.gmra.mxu0 %v420
    %v4075 = vpop.f32.mrf.mxu0
    %v4076 = vadd.f32 %v3883, %v4075
    %v4077 = vpop.f32.mrf.mxu0
    %v4078 = vadd.f32 %v3885, %v4077
    %v4079 = vpop.f32.mrf.mxu0
    %v4080 = vadd.f32 %v3887, %v4079
    %v4081 = vpop.f32.mrf.mxu0
    %v4082 = vadd.f32 %v3889, %v4081
    %4083 = vdwg.mxu0
    %4084 = vmatprep.subr.bf16.mxu0 %v2418
    %4085 = vmatpush1.bf16.msra.mxu0 %v2417
    %4086 = vmatprep.subr.bf16.mxu0 %v2411
    %4087 = vmatpush1.bf16.msra.mxu0 %v2410
    %4088 = vmatprep.subr.bf16.mxu0 %v2404
    %4089 = vmatpush1.bf16.msra.mxu0 %v2403
    %4090 = vmatprep.subr.bf16.mxu0 %v2397
    %4091 = vmatpush1.bf16.msra.mxu0 %v2396
    %4092 = vmatprep.subr.bf16.mxu0 %v2390
    %4093 = vmatpush1.bf16.msra.mxu0 %v2389
    %4094 = vmatprep.subr.bf16.mxu0 %v2383
    %4095 = vmatpush1.bf16.msra.mxu0 %v2382
    %4096 = vmatprep.subr.bf16.mxu0 %v2376
    %4097 = vmatpush1.bf16.msra.mxu0 %v2375
    %4098 = vmatprep.subr.bf16.mxu0 %v2369
    %4099 = vmatpush1.bf16.msra.mxu0 %v2368
    %4100 = vmatprep.subr.bf16.mxu0 %v2474
    %4101 = vmatpush2.bf16.msra.mxu0 %v2473
    %4102 = vmatprep.subr.bf16.mxu0 %v2467
    %4103 = vmatpush2.bf16.msra.mxu0 %v2466
    %4104 = vmatprep.subr.bf16.mxu0 %v2460
    %4105 = vmatpush2.bf16.msra.mxu0 %v2459
    %4106 = vmatprep.subr.bf16.mxu0 %v2453
    %4107 = vmatpush2.bf16.msra.mxu0 %v2452
    %4108 = vmatprep.subr.bf16.mxu0 %v2446
    %4109 = vmatpush2.bf16.msra.mxu0 %v2445
    %4110 = vmatprep.subr.bf16.mxu0 %v2439
    %4111 = vmatpush2.bf16.msra.mxu0 %v2438
    %4112 = vmatprep.subr.bf16.mxu0 %v2432
    %4113 = vmatpush2.bf16.msra.mxu0 %v2431
    %4114 = vmatprep.subr.bf16.mxu0 %v2425
    %4115 = vmatpush2.bf16.msra.mxu0 %v2424
    %4116 = vmatprep.mubr.bf16.mxu0 %v318
    %4117 = vmatmul.mubr.bf16.gmra.mxu0 %v317
    %v4118 = vpop.f32.mrf.mxu0
    %v4119 = vadd.f32 %v3926, %v4118
    %v4120 = vpop.f32.mrf.mxu0
    %v4121 = vadd.f32 %v3928, %v4120
    %v4122 = vpop.f32.mrf.mxu0
    %v4123 = vadd.f32 %v3930, %v4122
    %v4124 = vpop.f32.mrf.mxu0
    %v4125 = vadd.f32 %v3932, %v4124
    %4126 = vmatprep.mubr.bf16.mxu0 %v325
    %4127 = vmatmul.mubr.bf16.gmra.mxu0 %v324
    %v4128 = vpop.f32.mrf.mxu0
    %v4129 = vadd.f32 %v3936, %v4128
    %v4130 = vpop.f32.mrf.mxu0
    %v4131 = vadd.f32 %v3938, %v4130
    %v4132 = vpop.f32.mrf.mxu0
    %v4133 = vadd.f32 %v3940, %v4132
    %v4134 = vpop.f32.mrf.mxu0
    %v4135 = vadd.f32 %v3942, %v4134
    %4136 = vmatprep.mubr.bf16.mxu0 %v332
    %4137 = vmatmul.mubr.bf16.gmra.mxu0 %v331
    %v4138 = vpop.f32.mrf.mxu0
    %v4139 = vadd.f32 %v3946, %v4138
    %v4140 = vpop.f32.mrf.mxu0
    %v4141 = vadd.f32 %v3948, %v4140
    %v4142 = vpop.f32.mrf.mxu0
    %v4143 = vadd.f32 %v3950, %v4142
    %v4144 = vpop.f32.mrf.mxu0
    %v4145 = vadd.f32 %v3952, %v4144
    %4146 = vmatprep.mubr.bf16.mxu0 %v339
    %4147 = vmatmul.mubr.bf16.gmra.mxu0 %v338
    %v4148 = vpop.f32.mrf.mxu0
    %v4149 = vadd.f32 %v3956, %v4148
    %v4150 = vpop.f32.mrf.mxu0
    %v4151 = vadd.f32 %v3958, %v4150
    %v4152 = vpop.f32.mrf.mxu0
    %v4153 = vadd.f32 %v3960, %v4152
    %v4154 = vpop.f32.mrf.mxu0
    %v4155 = vadd.f32 %v3962, %v4154
    %4156 = vmatprep.mubr.bf16.mxu0 %v346
    %4157 = vmatmul.mubr.bf16.gmra.mxu0 %v345
    %v4158 = vpop.f32.mrf.mxu0
    %v4159 = vadd.f32 %v3966, %v4158
    %v4160 = vpop.f32.mrf.mxu0
    %v4161 = vadd.f32 %v3968, %v4160
    %v4162 = vpop.f32.mrf.mxu0
    %v4163 = vadd.f32 %v3970, %v4162
    %v4164 = vpop.f32.mrf.mxu0
    %v4165 = vadd.f32 %v3972, %v4164
    %4166 = vmatprep.mubr.bf16.mxu0 %v353
    %4167 = vmatmul.mubr.bf16.gmra.mxu0 %v352
    %v4168 = vpop.f32.mrf.mxu0
    %v4169 = vadd.f32 %v3976, %v4168
    %v4170 = vpop.f32.mrf.mxu0
    %v4171 = vadd.f32 %v3978, %v4170
    %v4172 = vpop.f32.mrf.mxu0
    %v4173 = vadd.f32 %v3980, %v4172
    %v4174 = vpop.f32.mrf.mxu0
    %v4175 = vadd.f32 %v3982, %v4174
    %4176 = vmatprep.mubr.bf16.mxu0 %v360
    %4177 = vmatmul.mubr.bf16.gmra.mxu0 %v359
    %v4178 = vpop.f32.mrf.mxu0
    %v4179 = vadd.f32 %v3986, %v4178
    %v4180 = vpop.f32.mrf.mxu0
    %v4181 = vadd.f32 %v3988, %v4180
    %v4182 = vpop.f32.mrf.mxu0
    %v4183 = vadd.f32 %v3990, %v4182
    %v4184 = vpop.f32.mrf.mxu0
    %v4185 = vadd.f32 %v3992, %v4184
    %4186 = vmatprep.mubr.bf16.mxu0 %v367
    %4187 = vmatmul.mubr.bf16.gmra.mxu0 %v366
    %v4188 = vpop.f32.mrf.mxu0
    %v4189 = vadd.f32 %v3996, %v4188
    %v4190 = vpop.f32.mrf.mxu0
    %v4191 = vadd.f32 %v3998, %v4190
    %v4192 = vpop.f32.mrf.mxu0
    %v4193 = vadd.f32 %v4000, %v4192
    %v4194 = vpop.f32.mrf.mxu0
    %v4195 = vadd.f32 %v4002, %v4194
    %4196 = vmatprep.mubr.bf16.mxu0 %v374
    %4197 = vmatmul.mubr.bf16.gmra.mxu0 %v373
    %v4198 = vpop.f32.mrf.mxu0
    %v4199 = vadd.f32 %v4006, %v4198
    %v4200 = vpop.f32.mrf.mxu0
    %v4201 = vadd.f32 %v4008, %v4200
    %v4202 = vpop.f32.mrf.mxu0
    %v4203 = vadd.f32 %v4010, %v4202
    %v4204 = vpop.f32.mrf.mxu0
    %v4205 = vadd.f32 %v4012, %v4204
    %4206 = vmatprep.mubr.bf16.mxu0 %v381
    %4207 = vmatmul.mubr.bf16.gmra.mxu0 %v380
    %v4208 = vpop.f32.mrf.mxu0
    %v4209 = vadd.f32 %v4016, %v4208
    %v4210 = vpop.f32.mrf.mxu0
    %v4211 = vadd.f32 %v4018, %v4210
    %v4212 = vpop.f32.mrf.mxu0
    %v4213 = vadd.f32 %v4020, %v4212
    %v4214 = vpop.f32.mrf.mxu0
    %v4215 = vadd.f32 %v4022, %v4214
    %4216 = vmatprep.mubr.bf16.mxu0 %v388
    %4217 = vmatmul.mubr.bf16.gmra.mxu0 %v387
    %v4218 = vpop.f32.mrf.mxu0
    %v4219 = vadd.f32 %v4026, %v4218
    %v4220 = vpop.f32.mrf.mxu0
    %v4221 = vadd.f32 %v4028, %v4220
    %v4222 = vpop.f32.mrf.mxu0
    %v4223 = vadd.f32 %v4030, %v4222
    %v4224 = vpop.f32.mrf.mxu0
    %v4225 = vadd.f32 %v4032, %v4224
    %4226 = vmatprep.mubr.bf16.mxu0 %v395
    %4227 = vmatmul.mubr.bf16.gmra.mxu0 %v394
    %v4228 = vpop.f32.mrf.mxu0
    %v4229 = vadd.f32 %v4036, %v4228
    %v4230 = vpop.f32.mrf.mxu0
    %v4231 = vadd.f32 %v4038, %v4230
    %v4232 = vpop.f32.mrf.mxu0
    %v4233 = vadd.f32 %v4040, %v4232
    %v4234 = vpop.f32.mrf.mxu0
    %v4235 = vadd.f32 %v4042, %v4234
    %4236 = vmatprep.mubr.bf16.mxu0 %v402
    %4237 = vmatmul.mubr.bf16.gmra.mxu0 %v401
    %v4238 = vpop.f32.mrf.mxu0
    %v4239 = vadd.f32 %v4046, %v4238
    %v4240 = vpop.f32.mrf.mxu0
    %v4241 = vadd.f32 %v4048, %v4240
    %v4242 = vpop.f32.mrf.mxu0
    %v4243 = vadd.f32 %v4050, %v4242
    %v4244 = vpop.f32.mrf.mxu0
    %v4245 = vadd.f32 %v4052, %v4244
    %4246 = vmatprep.mubr.bf16.mxu0 %v409
    %4247 = vmatmul.mubr.bf16.gmra.mxu0 %v408
    %v4248 = vpop.f32.mrf.mxu0
    %v4249 = vadd.f32 %v4056, %v4248
    %v4250 = vpop.f32.mrf.mxu0
    %v4251 = vadd.f32 %v4058, %v4250
    %v4252 = vpop.f32.mrf.mxu0
    %v4253 = vadd.f32 %v4060, %v4252
    %v4254 = vpop.f32.mrf.mxu0
    %v4255 = vadd.f32 %v4062, %v4254
    %4256 = vmatprep.mubr.bf16.mxu0 %v416
    %4257 = vmatmul.mubr.bf16.gmra.mxu0 %v415
    %v4258 = vpop.f32.mrf.mxu0
    %v4259 = vadd.f32 %v4066, %v4258
    %v4260 = vpop.f32.mrf.mxu0
    %v4261 = vadd.f32 %v4068, %v4260
    %v4262 = vpop.f32.mrf.mxu0
    %v4263 = vadd.f32 %v4070, %v4262
    %v4264 = vpop.f32.mrf.mxu0
    %v4265 = vadd.f32 %v4072, %v4264
    %4266 = vmatprep.mubr.bf16.mxu0 %v423
    %4267 = vmatmul.mubr.bf16.gmra.mxu0 %v422
    %v4268 = vpop.f32.mrf.mxu0
    %v4269 = vadd.f32 %v4076, %v4268
    %v4270 = vpop.f32.mrf.mxu0
    %v4271 = vadd.f32 %v4078, %v4270
    %v4272 = vpop.f32.mrf.mxu0
    %v4273 = vadd.f32 %v4080, %v4272
    %v4274 = vpop.f32.mrf.mxu0
    %v4275 = vadd.f32 %v4082, %v4274
    %4276 = vdwg.mxu0
    %4277 = vmatprep.subr.bf16.mxu0 %v2530
    %4278 = vmatpush1.bf16.msra.mxu0 %v2529
    %4279 = vmatprep.subr.bf16.mxu0 %v2523
    %4280 = vmatpush1.bf16.msra.mxu0 %v2522
    %4281 = vmatprep.subr.bf16.mxu0 %v2516
    %4282 = vmatpush1.bf16.msra.mxu0 %v2515
    %4283 = vmatprep.subr.bf16.mxu0 %v2509
    %4284 = vmatpush1.bf16.msra.mxu0 %v2508
    %4285 = vmatprep.subr.bf16.mxu0 %v2502
    %4286 = vmatpush1.bf16.msra.mxu0 %v2501
    %4287 = vmatprep.subr.bf16.mxu0 %v2495
    %4288 = vmatpush1.bf16.msra.mxu0 %v2494
    %4289 = vmatprep.subr.bf16.mxu0 %v2488
    %4290 = vmatpush1.bf16.msra.mxu0 %v2487
    %4291 = vmatprep.subr.bf16.mxu0 %v2481
    %4292 = vmatpush1.bf16.msra.mxu0 %v2480
    %4293 = vmatprep.subr.bf16.mxu0 0
    %4294 = vmatpush2.bf16.msra.mxu0 0
    %4295 = vmatprep.subr.bf16.mxu0 0
    %4296 = vmatpush2.bf16.msra.mxu0 0
    %4297 = vmatprep.subr.bf16.mxu0 0
    %4298 = vmatpush2.bf16.msra.mxu0 0
    %4299 = vmatprep.subr.bf16.mxu0 0
    %4300 = vmatpush2.bf16.msra.mxu0 0
    %4301 = vmatprep.subr.bf16.mxu0 0
    %4302 = vmatpush2.bf16.msra.mxu0 0
    %4303 = vmatprep.subr.bf16.mxu0 0
    %4304 = vmatpush2.bf16.msra.mxu0 0
    %4305 = vmatprep.subr.bf16.mxu0 0
    %4306 = vmatpush2.bf16.msra.mxu0 0
    %4307 = vmatprep.subr.bf16.mxu0 0
    %4308 = vmatpush2.bf16.msra.mxu0 0
    %4309 = vmatprep.mubr.bf16.mxu0 0
    %4310 = vmatmul.mubr.bf16.gmra.mxu0 %v319
    %v4311 = vpop.f32.mrf.mxu0
    %v4312 = vadd.f32 %v4119, %v4311
    %v4313 = vpop.f32.mrf.mxu0
    %v4314 = vadd.f32 %v4121, %v4313
    %v4315 = vpop.f32.mrf.mxu0
    %v4316 = vadd.f32 %v4123, %v4315
    %v4317 = vpop.f32.mrf.mxu0
    %v4318 = vadd.f32 %v4125, %v4317
    %4319 = vmatprep.mubr.bf16.mxu0 0
    %4320 = vmatmul.mubr.bf16.gmra.mxu0 %v326
    %v4321 = vpop.f32.mrf.mxu0
    %v4322 = vadd.f32 %v4129, %v4321
    %v4323 = vpop.f32.mrf.mxu0
    %v4324 = vadd.f32 %v4131, %v4323
    %v4325 = vpop.f32.mrf.mxu0
    %v4326 = vadd.f32 %v4133, %v4325
    %v4327 = vpop.f32.mrf.mxu0
    %v4328 = vadd.f32 %v4135, %v4327
    %4329 = vmatprep.mubr.bf16.mxu0 0
    %4330 = vmatmul.mubr.bf16.gmra.mxu0 %v333
    %v4331 = vpop.f32.mrf.mxu0
    %v4332 = vadd.f32 %v4139, %v4331
    %v4333 = vpop.f32.mrf.mxu0
    %v4334 = vadd.f32 %v4141, %v4333
    %v4335 = vpop.f32.mrf.mxu0
    %v4336 = vadd.f32 %v4143, %v4335
    %v4337 = vpop.f32.mrf.mxu0
    %v4338 = vadd.f32 %v4145, %v4337
    %4339 = vmatprep.mubr.bf16.mxu0 0
    %4340 = vmatmul.mubr.bf16.gmra.mxu0 %v340
    %v4341 = vpop.f32.mrf.mxu0
    %v4342 = vadd.f32 %v4149, %v4341
    %v4343 = vpop.f32.mrf.mxu0
    %v4344 = vadd.f32 %v4151, %v4343
    %v4345 = vpop.f32.mrf.mxu0
    %v4346 = vadd.f32 %v4153, %v4345
    %v4347 = vpop.f32.mrf.mxu0
    %v4348 = vadd.f32 %v4155, %v4347
    %4349 = vmatprep.mubr.bf16.mxu0 0
    %4350 = vmatmul.mubr.bf16.gmra.mxu0 %v347
    %v4351 = vpop.f32.mrf.mxu0
    %v4352 = vadd.f32 %v4159, %v4351
    %v4353 = vpop.f32.mrf.mxu0
    %v4354 = vadd.f32 %v4161, %v4353
    %v4355 = vpop.f32.mrf.mxu0
    %v4356 = vadd.f32 %v4163, %v4355
    %v4357 = vpop.f32.mrf.mxu0
    %v4358 = vadd.f32 %v4165, %v4357
    %4359 = vmatprep.mubr.bf16.mxu0 0
    %4360 = vmatmul.mubr.bf16.gmra.mxu0 %v354
    %v4361 = vpop.f32.mrf.mxu0
    %v4362 = vadd.f32 %v4169, %v4361
    %v4363 = vpop.f32.mrf.mxu0
    %v4364 = vadd.f32 %v4171, %v4363
    %v4365 = vpop.f32.mrf.mxu0
    %v4366 = vadd.f32 %v4173, %v4365
    %v4367 = vpop.f32.mrf.mxu0
    %v4368 = vadd.f32 %v4175, %v4367
    %4369 = vmatprep.mubr.bf16.mxu0 0
    %4370 = vmatmul.mubr.bf16.gmra.mxu0 %v361
    %v4371 = vpop.f32.mrf.mxu0
    %v4372 = vadd.f32 %v4179, %v4371
    %v4373 = vpop.f32.mrf.mxu0
    %v4374 = vadd.f32 %v4181, %v4373
    %v4375 = vpop.f32.mrf.mxu0
    %v4376 = vadd.f32 %v4183, %v4375
    %v4377 = vpop.f32.mrf.mxu0
    %v4378 = vadd.f32 %v4185, %v4377
    %4379 = vmatprep.mubr.bf16.mxu0 0
    %4380 = vmatmul.mubr.bf16.gmra.mxu0 %v368
    %v4381 = vpop.f32.mrf.mxu0
    %v4382 = vadd.f32 %v4189, %v4381
    %v4383 = vpop.f32.mrf.mxu0
    %v4384 = vadd.f32 %v4191, %v4383
    %v4385 = vpop.f32.mrf.mxu0
    %v4386 = vadd.f32 %v4193, %v4385
    %v4387 = vpop.f32.mrf.mxu0
    %v4388 = vadd.f32 %v4195, %v4387
    %4389 = vmatprep.mubr.bf16.mxu0 0
    %4390 = vmatmul.mubr.bf16.gmra.mxu0 %v375
    %v4391 = vpop.f32.mrf.mxu0
    %v4392 = vadd.f32 %v4199, %v4391
    %v4393 = vpop.f32.mrf.mxu0
    %v4394 = vadd.f32 %v4201, %v4393
    %v4395 = vpop.f32.mrf.mxu0
    %v4396 = vadd.f32 %v4203, %v4395
    %v4397 = vpop.f32.mrf.mxu0
    %v4398 = vadd.f32 %v4205, %v4397
    %4399 = vmatprep.mubr.bf16.mxu0 0
    %4400 = vmatmul.mubr.bf16.gmra.mxu0 %v382
    %v4401 = vpop.f32.mrf.mxu0
    %v4402 = vadd.f32 %v4209, %v4401
    %v4403 = vpop.f32.mrf.mxu0
    %v4404 = vadd.f32 %v4211, %v4403
    %v4405 = vpop.f32.mrf.mxu0
    %v4406 = vadd.f32 %v4213, %v4405
    %v4407 = vpop.f32.mrf.mxu0
    %v4408 = vadd.f32 %v4215, %v4407
    %4409 = vmatprep.mubr.bf16.mxu0 0
    %4410 = vmatmul.mubr.bf16.gmra.mxu0 %v389
    %v4411 = vpop.f32.mrf.mxu0
    %v4412 = vadd.f32 %v4219, %v4411
    %v4413 = vpop.f32.mrf.mxu0
    %v4414 = vadd.f32 %v4221, %v4413
    %v4415 = vpop.f32.mrf.mxu0
    %v4416 = vadd.f32 %v4223, %v4415
    %v4417 = vpop.f32.mrf.mxu0
    %v4418 = vadd.f32 %v4225, %v4417
    %4419 = vmatprep.mubr.bf16.mxu0 0
    %4420 = vmatmul.mubr.bf16.gmra.mxu0 %v396
    %v4421 = vpop.f32.mrf.mxu0
    %v4422 = vadd.f32 %v4229, %v4421
    %v4423 = vpop.f32.mrf.mxu0
    %v4424 = vadd.f32 %v4231, %v4423
    %v4425 = vpop.f32.mrf.mxu0
    %v4426 = vadd.f32 %v4233, %v4425
    %v4427 = vpop.f32.mrf.mxu0
    %v4428 = vadd.f32 %v4235, %v4427
    %4429 = vmatprep.mubr.bf16.mxu0 0
    %4430 = vmatmul.mubr.bf16.gmra.mxu0 %v403
    %v4431 = vpop.f32.mrf.mxu0
    %v4432 = vadd.f32 %v4239, %v4431
    %v4433 = vpop.f32.mrf.mxu0
    %v4434 = vadd.f32 %v4241, %v4433
    %v4435 = vpop.f32.mrf.mxu0
    %v4436 = vadd.f32 %v4243, %v4435
    %v4437 = vpop.f32.mrf.mxu0
    %v4438 = vadd.f32 %v4245, %v4437
    %4439 = vmatprep.mubr.bf16.mxu0 0
    %4440 = vmatmul.mubr.bf16.gmra.mxu0 %v410
    %v4441 = vpop.f32.mrf.mxu0
    %v4442 = vadd.f32 %v4249, %v4441
    %v4443 = vpop.f32.mrf.mxu0
    %v4444 = vadd.f32 %v4251, %v4443
    %v4445 = vpop.f32.mrf.mxu0
    %v4446 = vadd.f32 %v4253, %v4445
    %v4447 = vpop.f32.mrf.mxu0
    %v4448 = vadd.f32 %v4255, %v4447
    %4449 = vmatprep.mubr.bf16.mxu0 0
    %4450 = vmatmul.mubr.bf16.gmra.mxu0 %v417
    %v4451 = vpop.f32.mrf.mxu0
    %v4452 = vadd.f32 %v4259, %v4451
    %v4453 = vpop.f32.mrf.mxu0
    %v4454 = vadd.f32 %v4261, %v4453
    %v4455 = vpop.f32.mrf.mxu0
    %v4456 = vadd.f32 %v4263, %v4455
    %v4457 = vpop.f32.mrf.mxu0
    %v4458 = vadd.f32 %v4265, %v4457
    %4459 = vmatprep.mubr.bf16.mxu0 0
    %4460 = vmatmul.mubr.bf16.gmra.mxu0 %v424
    %v4461 = vpop.f32.mrf.mxu0
    %v4462 = vadd.f32 %v4269, %v4461
    %v4463 = vpop.f32.mrf.mxu0
    %v4464 = vadd.f32 %v4271, %v4463
    %v4465 = vpop.f32.mrf.mxu0
    %v4466 = vadd.f32 %v4273, %v4465
    %v4467 = vpop.f32.mrf.mxu0
    %v4468 = vadd.f32 %v4275, %v4467
    %4469 = vdwg.mxu0
    %4470 = vmatprep.subr.bf16.mxu0 %v2196
    %4471 = vmatpush1.bf16.msra.mxu0 %v2195
    %4472 = vmatprep.subr.bf16.mxu0 %v2189
    %4473 = vmatpush1.bf16.msra.mxu0 %v2188
    %4474 = vmatprep.subr.bf16.mxu0 %v2182
    %4475 = vmatpush1.bf16.msra.mxu0 %v2181
    %4476 = vmatprep.subr.bf16.mxu0 %v2175
    %4477 = vmatpush1.bf16.msra.mxu0 %v2174
    %4478 = vmatprep.subr.bf16.mxu0 %v2168
    %4479 = vmatpush1.bf16.msra.mxu0 %v2167
    %4480 = vmatprep.subr.bf16.mxu0 %v2161
    %4481 = vmatpush1.bf16.msra.mxu0 %v2160
    %4482 = vmatprep.subr.bf16.mxu0 %v2154
    %4483 = vmatpush1.bf16.msra.mxu0 %v2153
    %4484 = vmatprep.subr.bf16.mxu0 %v2147
    %4485 = vmatpush1.bf16.msra.mxu0 %v2146
    %4486 = vmatprep.subr.bf16.mxu0 %v2252
    %4487 = vmatpush2.bf16.msra.mxu0 %v2251
    %4488 = vmatprep.subr.bf16.mxu0 %v2245
    %4489 = vmatpush2.bf16.msra.mxu0 %v2244
    %4490 = vmatprep.subr.bf16.mxu0 %v2238
    %4491 = vmatpush2.bf16.msra.mxu0 %v2237
    %4492 = vmatprep.subr.bf16.mxu0 %v2231
    %4493 = vmatpush2.bf16.msra.mxu0 %v2230
    %4494 = vmatprep.subr.bf16.mxu0 %v2224
    %4495 = vmatpush2.bf16.msra.mxu0 %v2223
    %4496 = vmatprep.subr.bf16.mxu0 %v2217
    %4497 = vmatpush2.bf16.msra.mxu0 %v2216
    %4498 = vmatprep.subr.bf16.mxu0 %v2210
    %4499 = vmatpush2.bf16.msra.mxu0 %v2209
    %4500 = vmatprep.subr.bf16.mxu0 %v2203
    %4501 = vmatpush2.bf16.msra.mxu0 %v2202
    %4502 = vmatprep.mubr.bf16.mxu0 %v314
    %4503 = vmatmul.mubr.bf16.gmra.mxu0 %v313
    %v4504 = vpop.f32.mrf.mxu0
    %v4505 = vadd.f32 %v894, %v4504
    %v4506 = vpop.f32.mrf.mxu0
    %v4507 = vadd.f32 %v898, %v4506
    %v4508 = vpop.f32.mrf.mxu0
    %v4509 = vadd.f32 %v894, %v4508
    %v4510 = vpop.f32.mrf.mxu0
    %v4511 = vadd.f32 %v898, %v4510
    %4512 = vmatprep.mubr.bf16.mxu0 %v321
    %4513 = vmatmul.mubr.bf16.gmra.mxu0 %v320
    %v4514 = vpop.f32.mrf.mxu0
    %v4515 = vadd.f32 %v894, %v4514
    %v4516 = vpop.f32.mrf.mxu0
    %v4517 = vadd.f32 %v898, %v4516
    %v4518 = vpop.f32.mrf.mxu0
    %v4519 = vadd.f32 %v894, %v4518
    %v4520 = vpop.f32.mrf.mxu0
    %v4521 = vadd.f32 %v898, %v4520
    %4522 = vmatprep.mubr.bf16.mxu0 %v328
    %4523 = vmatmul.mubr.bf16.gmra.mxu0 %v327
    %v4524 = vpop.f32.mrf.mxu0
    %v4525 = vadd.f32 %v894, %v4524
    %v4526 = vpop.f32.mrf.mxu0
    %v4527 = vadd.f32 %v898, %v4526
    %v4528 = vpop.f32.mrf.mxu0
    %v4529 = vadd.f32 %v894, %v4528
    %v4530 = vpop.f32.mrf.mxu0
    %v4531 = vadd.f32 %v898, %v4530
    %4532 = vmatprep.mubr.bf16.mxu0 %v335
    %4533 = vmatmul.mubr.bf16.gmra.mxu0 %v334
    %v4534 = vpop.f32.mrf.mxu0
    %v4535 = vadd.f32 %v894, %v4534
    %v4536 = vpop.f32.mrf.mxu0
    %v4537 = vadd.f32 %v898, %v4536
    %v4538 = vpop.f32.mrf.mxu0
    %v4539 = vadd.f32 %v894, %v4538
    %v4540 = vpop.f32.mrf.mxu0
    %v4541 = vadd.f32 %v898, %v4540
    %4542 = vmatprep.mubr.bf16.mxu0 %v342
    %4543 = vmatmul.mubr.bf16.gmra.mxu0 %v341
    %v4544 = vpop.f32.mrf.mxu0
    %v4545 = vadd.f32 %v894, %v4544
    %v4546 = vpop.f32.mrf.mxu0
    %v4547 = vadd.f32 %v898, %v4546
    %v4548 = vpop.f32.mrf.mxu0
    %v4549 = vadd.f32 %v894, %v4548
    %v4550 = vpop.f32.mrf.mxu0
    %v4551 = vadd.f32 %v898, %v4550
    %4552 = vmatprep.mubr.bf16.mxu0 %v349
    %4553 = vmatmul.mubr.bf16.gmra.mxu0 %v348
    %v4554 = vpop.f32.mrf.mxu0
    %v4555 = vadd.f32 %v894, %v4554
    %v4556 = vpop.f32.mrf.mxu0
    %v4557 = vadd.f32 %v898, %v4556
    %v4558 = vpop.f32.mrf.mxu0
    %v4559 = vadd.f32 %v894, %v4558
    %v4560 = vpop.f32.mrf.mxu0
    %v4561 = vadd.f32 %v898, %v4560
    %4562 = vmatprep.mubr.bf16.mxu0 %v356
    %4563 = vmatmul.mubr.bf16.gmra.mxu0 %v355
    %v4564 = vpop.f32.mrf.mxu0
    %v4565 = vadd.f32 %v894, %v4564
    %v4566 = vpop.f32.mrf.mxu0
    %v4567 = vadd.f32 %v898, %v4566
    %v4568 = vpop.f32.mrf.mxu0
    %v4569 = vadd.f32 %v894, %v4568
    %v4570 = vpop.f32.mrf.mxu0
    %v4571 = vadd.f32 %v898, %v4570
    %4572 = vmatprep.mubr.bf16.mxu0 %v363
    %4573 = vmatmul.mubr.bf16.gmra.mxu0 %v362
    %v4574 = vpop.f32.mrf.mxu0
    %v4575 = vadd.f32 %v894, %v4574
    %v4576 = vpop.f32.mrf.mxu0
    %v4577 = vadd.f32 %v898, %v4576
    %v4578 = vpop.f32.mrf.mxu0
    %v4579 = vadd.f32 %v894, %v4578
    %v4580 = vpop.f32.mrf.mxu0
    %v4581 = vadd.f32 %v898, %v4580
    %4582 = vmatprep.mubr.bf16.mxu0 %v370
    %4583 = vmatmul.mubr.bf16.gmra.mxu0 %v369
    %v4584 = vpop.f32.mrf.mxu0
    %v4585 = vadd.f32 %v894, %v4584
    %v4586 = vpop.f32.mrf.mxu0
    %v4587 = vadd.f32 %v898, %v4586
    %v4588 = vpop.f32.mrf.mxu0
    %v4589 = vadd.f32 %v894, %v4588
    %v4590 = vpop.f32.mrf.mxu0
    %v4591 = vadd.f32 %v898, %v4590
    %4592 = vmatprep.mubr.bf16.mxu0 %v377
    %4593 = vmatmul.mubr.bf16.gmra.mxu0 %v376
    %v4594 = vpop.f32.mrf.mxu0
    %v4595 = vadd.f32 %v894, %v4594
    %v4596 = vpop.f32.mrf.mxu0
    %v4597 = vadd.f32 %v898, %v4596
    %v4598 = vpop.f32.mrf.mxu0
    %v4599 = vadd.f32 %v894, %v4598
    %v4600 = vpop.f32.mrf.mxu0
    %v4601 = vadd.f32 %v898, %v4600
    %4602 = vmatprep.mubr.bf16.mxu0 %v384
    %4603 = vmatmul.mubr.bf16.gmra.mxu0 %v383
    %v4604 = vpop.f32.mrf.mxu0
    %v4605 = vadd.f32 %v894, %v4604
    %v4606 = vpop.f32.mrf.mxu0
    %v4607 = vadd.f32 %v898, %v4606
    %v4608 = vpop.f32.mrf.mxu0
    %v4609 = vadd.f32 %v894, %v4608
    %v4610 = vpop.f32.mrf.mxu0
    %v4611 = vadd.f32 %v898, %v4610
    %4612 = vmatprep.mubr.bf16.mxu0 %v391
    %4613 = vmatmul.mubr.bf16.gmra.mxu0 %v390
    %v4614 = vpop.f32.mrf.mxu0
    %v4615 = vadd.f32 %v894, %v4614
    %v4616 = vpop.f32.mrf.mxu0
    %v4617 = vadd.f32 %v898, %v4616
    %v4618 = vpop.f32.mrf.mxu0
    %v4619 = vadd.f32 %v894, %v4618
    %v4620 = vpop.f32.mrf.mxu0
    %v4621 = vadd.f32 %v898, %v4620
    %4622 = vmatprep.mubr.bf16.mxu0 %v398
    %4623 = vmatmul.mubr.bf16.gmra.mxu0 %v397
    %v4624 = vpop.f32.mrf.mxu0
    %v4625 = vadd.f32 %v894, %v4624
    %v4626 = vpop.f32.mrf.mxu0
    %v4627 = vadd.f32 %v898, %v4626
    %v4628 = vpop.f32.mrf.mxu0
    %v4629 = vadd.f32 %v894, %v4628
    %v4630 = vpop.f32.mrf.mxu0
    %v4631 = vadd.f32 %v898, %v4630
    %4632 = vmatprep.mubr.bf16.mxu0 %v405
    %4633 = vmatmul.mubr.bf16.gmra.mxu0 %v404
    %v4634 = vpop.f32.mrf.mxu0
    %v4635 = vadd.f32 %v894, %v4634
    %v4636 = vpop.f32.mrf.mxu0
    %v4637 = vadd.f32 %v898, %v4636
    %v4638 = vpop.f32.mrf.mxu0
    %v4639 = vadd.f32 %v894, %v4638
    %v4640 = vpop.f32.mrf.mxu0
    %v4641 = vadd.f32 %v898, %v4640
    %4642 = vmatprep.mubr.bf16.mxu0 %v412
    %4643 = vmatmul.mubr.bf16.gmra.mxu0 %v411
    %v4644 = vpop.f32.mrf.mxu0
    %v4645 = vadd.f32 %v894, %v4644
    %v4646 = vpop.f32.mrf.mxu0
    %v4647 = vadd.f32 %v898, %v4646
    %v4648 = vpop.f32.mrf.mxu0
    %v4649 = vadd.f32 %v894, %v4648
    %v4650 = vpop.f32.mrf.mxu0
    %v4651 = vadd.f32 %v898, %v4650
    %4652 = vmatprep.mubr.bf16.mxu0 %v419
    %4653 = vmatmul.mubr.bf16.gmra.mxu0 %v418
    %v4654 = vpop.f32.mrf.mxu0
    %v4655 = vadd.f32 %v894, %v4654
    %v4656 = vpop.f32.mrf.mxu0
    %v4657 = vadd.f32 %v898, %v4656
    %v4658 = vpop.f32.mrf.mxu0
    %v4659 = vadd.f32 %v894, %v4658
    %v4660 = vpop.f32.mrf.mxu0
    %v4661 = vadd.f32 %v898, %v4660
    %4662 = vdwg.mxu0
    %4663 = vmatprep.subr.bf16.mxu0 %v2308
    %4664 = vmatpush1.bf16.msra.mxu0 %v2307
    %4665 = vmatprep.subr.bf16.mxu0 %v2301
    %4666 = vmatpush1.bf16.msra.mxu0 %v2300
    %4667 = vmatprep.subr.bf16.mxu0 %v2294
    %4668 = vmatpush1.bf16.msra.mxu0 %v2293
    %4669 = vmatprep.subr.bf16.mxu0 %v2287
    %4670 = vmatpush1.bf16.msra.mxu0 %v2286
    %4671 = vmatprep.subr.bf16.mxu0 %v2280
    %4672 = vmatpush1.bf16.msra.mxu0 %v2279
    %4673 = vmatprep.subr.bf16.mxu0 %v2273
    %4674 = vmatpush1.bf16.msra.mxu0 %v2272
    %4675 = vmatprep.subr.bf16.mxu0 %v2266
    %4676 = vmatpush1.bf16.msra.mxu0 %v2265
    %4677 = vmatprep.subr.bf16.mxu0 %v2259
    %4678 = vmatpush1.bf16.msra.mxu0 %v2258
    %4679 = vmatprep.subr.bf16.mxu0 %v2364
    %4680 = vmatpush2.bf16.msra.mxu0 %v2363
    %4681 = vmatprep.subr.bf16.mxu0 %v2357
    %4682 = vmatpush2.bf16.msra.mxu0 %v2356
    %4683 = vmatprep.subr.bf16.mxu0 %v2350
    %4684 = vmatpush2.bf16.msra.mxu0 %v2349
    %4685 = vmatprep.subr.bf16.mxu0 %v2343
    %4686 = vmatpush2.bf16.msra.mxu0 %v2342
    %4687 = vmatprep.subr.bf16.mxu0 %v2336
    %4688 = vmatpush2.bf16.msra.mxu0 %v2335
    %4689 = vmatprep.subr.bf16.mxu0 %v2329
    %4690 = vmatpush2.bf16.msra.mxu0 %v2328
    %4691 = vmatprep.subr.bf16.mxu0 %v2322
    %4692 = vmatpush2.bf16.msra.mxu0 %v2321
    %4693 = vmatprep.subr.bf16.mxu0 %v2315
    %4694 = vmatpush2.bf16.msra.mxu0 %v2314
    %4695 = vmatprep.mubr.bf16.mxu0 %v316
    %4696 = vmatmul.mubr.bf16.gmra.mxu0 %v315
    %v4697 = vpop.f32.mrf.mxu0
    %v4698 = vadd.f32 %v4505, %v4697
    %v4699 = vpop.f32.mrf.mxu0
    %v4700 = vadd.f32 %v4507, %v4699
    %v4701 = vpop.f32.mrf.mxu0
    %v4702 = vadd.f32 %v4509, %v4701
    %v4703 = vpop.f32.mrf.mxu0
    %v4704 = vadd.f32 %v4511, %v4703
    %4705 = vmatprep.mubr.bf16.mxu0 %v323
    %4706 = vmatmul.mubr.bf16.gmra.mxu0 %v322
    %v4707 = vpop.f32.mrf.mxu0
    %v4708 = vadd.f32 %v4515, %v4707
    %v4709 = vpop.f32.mrf.mxu0
    %v4710 = vadd.f32 %v4517, %v4709
    %v4711 = vpop.f32.mrf.mxu0
    %v4712 = vadd.f32 %v4519, %v4711
    %v4713 = vpop.f32.mrf.mxu0
    %v4714 = vadd.f32 %v4521, %v4713
    %4715 = vmatprep.mubr.bf16.mxu0 %v330
    %4716 = vmatmul.mubr.bf16.gmra.mxu0 %v329
    %v4717 = vpop.f32.mrf.mxu0
    %v4718 = vadd.f32 %v4525, %v4717
    %v4719 = vpop.f32.mrf.mxu0
    %v4720 = vadd.f32 %v4527, %v4719
    %v4721 = vpop.f32.mrf.mxu0
    %v4722 = vadd.f32 %v4529, %v4721
    %v4723 = vpop.f32.mrf.mxu0
    %v4724 = vadd.f32 %v4531, %v4723
    %4725 = vmatprep.mubr.bf16.mxu0 %v337
    %4726 = vmatmul.mubr.bf16.gmra.mxu0 %v336
    %v4727 = vpop.f32.mrf.mxu0
    %v4728 = vadd.f32 %v4535, %v4727
    %v4729 = vpop.f32.mrf.mxu0
    %v4730 = vadd.f32 %v4537, %v4729
    %v4731 = vpop.f32.mrf.mxu0
    %v4732 = vadd.f32 %v4539, %v4731
    %v4733 = vpop.f32.mrf.mxu0
    %v4734 = vadd.f32 %v4541, %v4733
    %4735 = vmatprep.mubr.bf16.mxu0 %v344
    %4736 = vmatmul.mubr.bf16.gmra.mxu0 %v343
    %v4737 = vpop.f32.mrf.mxu0
    %v4738 = vadd.f32 %v4545, %v4737
    %v4739 = vpop.f32.mrf.mxu0
    %v4740 = vadd.f32 %v4547, %v4739
    %v4741 = vpop.f32.mrf.mxu0
    %v4742 = vadd.f32 %v4549, %v4741
    %v4743 = vpop.f32.mrf.mxu0
    %v4744 = vadd.f32 %v4551, %v4743
    %4745 = vmatprep.mubr.bf16.mxu0 %v351
    %4746 = vmatmul.mubr.bf16.gmra.mxu0 %v350
    %v4747 = vpop.f32.mrf.mxu0
    %v4748 = vadd.f32 %v4555, %v4747
    %v4749 = vpop.f32.mrf.mxu0
    %v4750 = vadd.f32 %v4557, %v4749
    %v4751 = vpop.f32.mrf.mxu0
    %v4752 = vadd.f32 %v4559, %v4751
    %v4753 = vpop.f32.mrf.mxu0
    %v4754 = vadd.f32 %v4561, %v4753
    %4755 = vmatprep.mubr.bf16.mxu0 %v358
    %4756 = vmatmul.mubr.bf16.gmra.mxu0 %v357
    %v4757 = vpop.f32.mrf.mxu0
    %v4758 = vadd.f32 %v4565, %v4757
    %v4759 = vpop.f32.mrf.mxu0
    %v4760 = vadd.f32 %v4567, %v4759
    %v4761 = vpop.f32.mrf.mxu0
    %v4762 = vadd.f32 %v4569, %v4761
    %v4763 = vpop.f32.mrf.mxu0
    %v4764 = vadd.f32 %v4571, %v4763
    %4765 = vmatprep.mubr.bf16.mxu0 %v365
    %4766 = vmatmul.mubr.bf16.gmra.mxu0 %v364
    %v4767 = vpop.f32.mrf.mxu0
    %v4768 = vadd.f32 %v4575, %v4767
    %v4769 = vpop.f32.mrf.mxu0
    %v4770 = vadd.f32 %v4577, %v4769
    %v4771 = vpop.f32.mrf.mxu0
    %v4772 = vadd.f32 %v4579, %v4771
    %v4773 = vpop.f32.mrf.mxu0
    %v4774 = vadd.f32 %v4581, %v4773
    %4775 = vmatprep.mubr.bf16.mxu0 %v372
    %4776 = vmatmul.mubr.bf16.gmra.mxu0 %v371
    %v4777 = vpop.f32.mrf.mxu0
    %v4778 = vadd.f32 %v4585, %v4777
    %v4779 = vpop.f32.mrf.mxu0
    %v4780 = vadd.f32 %v4587, %v4779
    %v4781 = vpop.f32.mrf.mxu0
    %v4782 = vadd.f32 %v4589, %v4781
    %v4783 = vpop.f32.mrf.mxu0
    %v4784 = vadd.f32 %v4591, %v4783
    %4785 = vmatprep.mubr.bf16.mxu0 %v379
    %4786 = vmatmul.mubr.bf16.gmra.mxu0 %v378
    %v4787 = vpop.f32.mrf.mxu0
    %v4788 = vadd.f32 %v4595, %v4787
    %v4789 = vpop.f32.mrf.mxu0
    %v4790 = vadd.f32 %v4597, %v4789
    %v4791 = vpop.f32.mrf.mxu0
    %v4792 = vadd.f32 %v4599, %v4791
    %v4793 = vpop.f32.mrf.mxu0
    %v4794 = vadd.f32 %v4601, %v4793
    %4795 = vmatprep.mubr.bf16.mxu0 %v386
    %4796 = vmatmul.mubr.bf16.gmra.mxu0 %v385
    %v4797 = vpop.f32.mrf.mxu0
    %v4798 = vadd.f32 %v4605, %v4797
    %v4799 = vpop.f32.mrf.mxu0
    %v4800 = vadd.f32 %v4607, %v4799
    %v4801 = vpop.f32.mrf.mxu0
    %v4802 = vadd.f32 %v4609, %v4801
    %v4803 = vpop.f32.mrf.mxu0
    %v4804 = vadd.f32 %v4611, %v4803
    %4805 = vmatprep.mubr.bf16.mxu0 %v393
    %4806 = vmatmul.mubr.bf16.gmra.mxu0 %v392
    %v4807 = vpop.f32.mrf.mxu0
    %v4808 = vadd.f32 %v4615, %v4807
    %v4809 = vpop.f32.mrf.mxu0
    %v4810 = vadd.f32 %v4617, %v4809
    %v4811 = vpop.f32.mrf.mxu0
    %v4812 = vadd.f32 %v4619, %v4811
    %v4813 = vpop.f32.mrf.mxu0
    %v4814 = vadd.f32 %v4621, %v4813
    %4815 = vmatprep.mubr.bf16.mxu0 %v400
    %4816 = vmatmul.mubr.bf16.gmra.mxu0 %v399
    %v4817 = vpop.f32.mrf.mxu0
    %v4818 = vadd.f32 %v4625, %v4817
    %v4819 = vpop.f32.mrf.mxu0
    %v4820 = vadd.f32 %v4627, %v4819
    %v4821 = vpop.f32.mrf.mxu0
    %v4822 = vadd.f32 %v4629, %v4821
    %v4823 = vpop.f32.mrf.mxu0
    %v4824 = vadd.f32 %v4631, %v4823
    %4825 = vmatprep.mubr.bf16.mxu0 %v407
    %4826 = vmatmul.mubr.bf16.gmra.mxu0 %v406
    %v4827 = vpop.f32.mrf.mxu0
    %v4828 = vadd.f32 %v4635, %v4827
    %v4829 = vpop.f32.mrf.mxu0
    %v4830 = vadd.f32 %v4637, %v4829
    %v4831 = vpop.f32.mrf.mxu0
    %v4832 = vadd.f32 %v4639, %v4831
    %v4833 = vpop.f32.mrf.mxu0
    %v4834 = vadd.f32 %v4641, %v4833
    %4835 = vmatprep.mubr.bf16.mxu0 %v414
    %4836 = vmatmul.mubr.bf16.gmra.mxu0 %v413
    %v4837 = vpop.f32.mrf.mxu0
    %v4838 = vadd.f32 %v4645, %v4837
    %v4839 = vpop.f32.mrf.mxu0
    %v4840 = vadd.f32 %v4647, %v4839
    %v4841 = vpop.f32.mrf.mxu0
    %v4842 = vadd.f32 %v4649, %v4841
    %v4843 = vpop.f32.mrf.mxu0
    %v4844 = vadd.f32 %v4651, %v4843
    %4845 = vmatprep.mubr.bf16.mxu0 %v421
    %4846 = vmatmul.mubr.bf16.gmra.mxu0 %v420
    %v4847 = vpop.f32.mrf.mxu0
    %v4848 = vadd.f32 %v4655, %v4847
    %v4849 = vpop.f32.mrf.mxu0
    %v4850 = vadd.f32 %v4657, %v4849
    %v4851 = vpop.f32.mrf.mxu0
    %v4852 = vadd.f32 %v4659, %v4851
    %v4853 = vpop.f32.mrf.mxu0
    %v4854 = vadd.f32 %v4661, %v4853
    %4855 = vdwg.mxu0
    %4856 = vmatprep.subr.bf16.mxu0 %v2420
    %4857 = vmatpush1.bf16.msra.mxu0 %v2419
    %4858 = vmatprep.subr.bf16.mxu0 %v2413
    %4859 = vmatpush1.bf16.msra.mxu0 %v2412
    %4860 = vmatprep.subr.bf16.mxu0 %v2406
    %4861 = vmatpush1.bf16.msra.mxu0 %v2405
    %4862 = vmatprep.subr.bf16.mxu0 %v2399
    %4863 = vmatpush1.bf16.msra.mxu0 %v2398
    %4864 = vmatprep.subr.bf16.mxu0 %v2392
    %4865 = vmatpush1.bf16.msra.mxu0 %v2391
    %4866 = vmatprep.subr.bf16.mxu0 %v2385
    %4867 = vmatpush1.bf16.msra.mxu0 %v2384
    %4868 = vmatprep.subr.bf16.mxu0 %v2378
    %4869 = vmatpush1.bf16.msra.mxu0 %v2377
    %4870 = vmatprep.subr.bf16.mxu0 %v2371
    %4871 = vmatpush1.bf16.msra.mxu0 %v2370
    %4872 = vmatprep.subr.bf16.mxu0 %v2476
    %4873 = vmatpush2.bf16.msra.mxu0 %v2475
    %4874 = vmatprep.subr.bf16.mxu0 %v2469
    %4875 = vmatpush2.bf16.msra.mxu0 %v2468
    %4876 = vmatprep.subr.bf16.mxu0 %v2462
    %4877 = vmatpush2.bf16.msra.mxu0 %v2461
    %4878 = vmatprep.subr.bf16.mxu0 %v2455
    %4879 = vmatpush2.bf16.msra.mxu0 %v2454
    %4880 = vmatprep.subr.bf16.mxu0 %v2448
    %4881 = vmatpush2.bf16.msra.mxu0 %v2447
    %4882 = vmatprep.subr.bf16.mxu0 %v2441
    %4883 = vmatpush2.bf16.msra.mxu0 %v2440
    %4884 = vmatprep.subr.bf16.mxu0 %v2434
    %4885 = vmatpush2.bf16.msra.mxu0 %v2433
    %4886 = vmatprep.subr.bf16.mxu0 %v2427
    %4887 = vmatpush2.bf16.msra.mxu0 %v2426
    %4888 = vmatprep.mubr.bf16.mxu0 %v318
    %4889 = vmatmul.mubr.bf16.gmra.mxu0 %v317
    %v4890 = vpop.f32.mrf.mxu0
    %v4891 = vadd.f32 %v4698, %v4890
    %v4892 = vpop.f32.mrf.mxu0
    %v4893 = vadd.f32 %v4700, %v4892
    %v4894 = vpop.f32.mrf.mxu0
    %v4895 = vadd.f32 %v4702, %v4894
    %v4896 = vpop.f32.mrf.mxu0
    %v4897 = vadd.f32 %v4704, %v4896
    %4898 = vmatprep.mubr.bf16.mxu0 %v325
    %4899 = vmatmul.mubr.bf16.gmra.mxu0 %v324
    %v4900 = vpop.f32.mrf.mxu0
    %v4901 = vadd.f32 %v4708, %v4900
    %v4902 = vpop.f32.mrf.mxu0
    %v4903 = vadd.f32 %v4710, %v4902
    %v4904 = vpop.f32.mrf.mxu0
    %v4905 = vadd.f32 %v4712, %v4904
    %v4906 = vpop.f32.mrf.mxu0
    %v4907 = vadd.f32 %v4714, %v4906
    %4908 = vmatprep.mubr.bf16.mxu0 %v332
    %4909 = vmatmul.mubr.bf16.gmra.mxu0 %v331
    %v4910 = vpop.f32.mrf.mxu0
    %v4911 = vadd.f32 %v4718, %v4910
    %v4912 = vpop.f32.mrf.mxu0
    %v4913 = vadd.f32 %v4720, %v4912
    %v4914 = vpop.f32.mrf.mxu0
    %v4915 = vadd.f32 %v4722, %v4914
    %v4916 = vpop.f32.mrf.mxu0
    %v4917 = vadd.f32 %v4724, %v4916
    %4918 = vmatprep.mubr.bf16.mxu0 %v339
    %4919 = vmatmul.mubr.bf16.gmra.mxu0 %v338
    %v4920 = vpop.f32.mrf.mxu0
    %v4921 = vadd.f32 %v4728, %v4920
    %v4922 = vpop.f32.mrf.mxu0
    %v4923 = vadd.f32 %v4730, %v4922
    %v4924 = vpop.f32.mrf.mxu0
    %v4925 = vadd.f32 %v4732, %v4924
    %v4926 = vpop.f32.mrf.mxu0
    %v4927 = vadd.f32 %v4734, %v4926
    %4928 = vmatprep.mubr.bf16.mxu0 %v346
    %4929 = vmatmul.mubr.bf16.gmra.mxu0 %v345
    %v4930 = vpop.f32.mrf.mxu0
    %v4931 = vadd.f32 %v4738, %v4930
    %v4932 = vpop.f32.mrf.mxu0
    %v4933 = vadd.f32 %v4740, %v4932
    %v4934 = vpop.f32.mrf.mxu0
    %v4935 = vadd.f32 %v4742, %v4934
    %v4936 = vpop.f32.mrf.mxu0
    %v4937 = vadd.f32 %v4744, %v4936
    %4938 = vmatprep.mubr.bf16.mxu0 %v353
    %4939 = vmatmul.mubr.bf16.gmra.mxu0 %v352
    %v4940 = vpop.f32.mrf.mxu0
    %v4941 = vadd.f32 %v4748, %v4940
    %v4942 = vpop.f32.mrf.mxu0
    %v4943 = vadd.f32 %v4750, %v4942
    %v4944 = vpop.f32.mrf.mxu0
    %v4945 = vadd.f32 %v4752, %v4944
    %v4946 = vpop.f32.mrf.mxu0
    %v4947 = vadd.f32 %v4754, %v4946
    %4948 = vmatprep.mubr.bf16.mxu0 %v360
    %4949 = vmatmul.mubr.bf16.gmra.mxu0 %v359
    %v4950 = vpop.f32.mrf.mxu0
    %v4951 = vadd.f32 %v4758, %v4950
    %v4952 = vpop.f32.mrf.mxu0
    %v4953 = vadd.f32 %v4760, %v4952
    %v4954 = vpop.f32.mrf.mxu0
    %v4955 = vadd.f32 %v4762, %v4954
    %v4956 = vpop.f32.mrf.mxu0
    %v4957 = vadd.f32 %v4764, %v4956
    %4958 = vmatprep.mubr.bf16.mxu0 %v367
    %4959 = vmatmul.mubr.bf16.gmra.mxu0 %v366
    %v4960 = vpop.f32.mrf.mxu0
    %v4961 = vadd.f32 %v4768, %v4960
    %v4962 = vpop.f32.mrf.mxu0
    %v4963 = vadd.f32 %v4770, %v4962
    %v4964 = vpop.f32.mrf.mxu0
    %v4965 = vadd.f32 %v4772, %v4964
    %v4966 = vpop.f32.mrf.mxu0
    %v4967 = vadd.f32 %v4774, %v4966
    %4968 = vmatprep.mubr.bf16.mxu0 %v374
    %4969 = vmatmul.mubr.bf16.gmra.mxu0 %v373
    %v4970 = vpop.f32.mrf.mxu0
    %v4971 = vadd.f32 %v4778, %v4970
    %v4972 = vpop.f32.mrf.mxu0
    %v4973 = vadd.f32 %v4780, %v4972
    %v4974 = vpop.f32.mrf.mxu0
    %v4975 = vadd.f32 %v4782, %v4974
    %v4976 = vpop.f32.mrf.mxu0
    %v4977 = vadd.f32 %v4784, %v4976
    %4978 = vmatprep.mubr.bf16.mxu0 %v381
    %4979 = vmatmul.mubr.bf16.gmra.mxu0 %v380
    %v4980 = vpop.f32.mrf.mxu0
    %v4981 = vadd.f32 %v4788, %v4980
    %v4982 = vpop.f32.mrf.mxu0
    %v4983 = vadd.f32 %v4790, %v4982
    %v4984 = vpop.f32.mrf.mxu0
    %v4985 = vadd.f32 %v4792, %v4984
    %v4986 = vpop.f32.mrf.mxu0
    %v4987 = vadd.f32 %v4794, %v4986
    %4988 = vmatprep.mubr.bf16.mxu0 %v388
    %4989 = vmatmul.mubr.bf16.gmra.mxu0 %v387
    %v4990 = vpop.f32.mrf.mxu0
    %v4991 = vadd.f32 %v4798, %v4990
    %v4992 = vpop.f32.mrf.mxu0
    %v4993 = vadd.f32 %v4800, %v4992
    %v4994 = vpop.f32.mrf.mxu0
    %v4995 = vadd.f32 %v4802, %v4994
    %v4996 = vpop.f32.mrf.mxu0
    %v4997 = vadd.f32 %v4804, %v4996
    %4998 = vmatprep.mubr.bf16.mxu0 %v395
    %4999 = vmatmul.mubr.bf16.gmra.mxu0 %v394
    %v5000 = vpop.f32.mrf.mxu0
    %v5001 = vadd.f32 %v4808, %v5000
    %v5002 = vpop.f32.mrf.mxu0
    %v5003 = vadd.f32 %v4810, %v5002
    %v5004 = vpop.f32.mrf.mxu0
    %v5005 = vadd.f32 %v4812, %v5004
    %v5006 = vpop.f32.mrf.mxu0
    %v5007 = vadd.f32 %v4814, %v5006
    %5008 = vmatprep.mubr.bf16.mxu0 %v402
    %5009 = vmatmul.mubr.bf16.gmra.mxu0 %v401
    %v5010 = vpop.f32.mrf.mxu0
    %v5011 = vadd.f32 %v4818, %v5010
    %v5012 = vpop.f32.mrf.mxu0
    %v5013 = vadd.f32 %v4820, %v5012
    %v5014 = vpop.f32.mrf.mxu0
    %v5015 = vadd.f32 %v4822, %v5014
    %v5016 = vpop.f32.mrf.mxu0
    %v5017 = vadd.f32 %v4824, %v5016
    %5018 = vmatprep.mubr.bf16.mxu0 %v409
    %5019 = vmatmul.mubr.bf16.gmra.mxu0 %v408
    %v5020 = vpop.f32.mrf.mxu0
    %v5021 = vadd.f32 %v4828, %v5020
    %v5022 = vpop.f32.mrf.mxu0
    %v5023 = vadd.f32 %v4830, %v5022
    %v5024 = vpop.f32.mrf.mxu0
    %v5025 = vadd.f32 %v4832, %v5024
    %v5026 = vpop.f32.mrf.mxu0
    %v5027 = vadd.f32 %v4834, %v5026
    %5028 = vmatprep.mubr.bf16.mxu0 %v416
    %5029 = vmatmul.mubr.bf16.gmra.mxu0 %v415
    %v5030 = vpop.f32.mrf.mxu0
    %v5031 = vadd.f32 %v4838, %v5030
    %v5032 = vpop.f32.mrf.mxu0
    %v5033 = vadd.f32 %v4840, %v5032
    %v5034 = vpop.f32.mrf.mxu0
    %v5035 = vadd.f32 %v4842, %v5034
    %v5036 = vpop.f32.mrf.mxu0
    %v5037 = vadd.f32 %v4844, %v5036
    %5038 = vmatprep.mubr.bf16.mxu0 %v423
    %5039 = vmatmul.mubr.bf16.gmra.mxu0 %v422
    %v5040 = vpop.f32.mrf.mxu0
    %v5041 = vadd.f32 %v4848, %v5040
    %v5042 = vpop.f32.mrf.mxu0
    %v5043 = vadd.f32 %v4850, %v5042
    %v5044 = vpop.f32.mrf.mxu0
    %v5045 = vadd.f32 %v4852, %v5044
    %v5046 = vpop.f32.mrf.mxu0
    %v5047 = vadd.f32 %v4854, %v5046
    %5048 = vdwg.mxu0
    %5049 = vmatprep.subr.bf16.mxu0 %v2532
    %5050 = vmatpush1.bf16.msra.mxu0 %v2531
    %5051 = vmatprep.subr.bf16.mxu0 %v2525
    %5052 = vmatpush1.bf16.msra.mxu0 %v2524
    %5053 = vmatprep.subr.bf16.mxu0 %v2518
    %5054 = vmatpush1.bf16.msra.mxu0 %v2517
    %5055 = vmatprep.subr.bf16.mxu0 %v2511
    %5056 = vmatpush1.bf16.msra.mxu0 %v2510
    %5057 = vmatprep.subr.bf16.mxu0 %v2504
    %5058 = vmatpush1.bf16.msra.mxu0 %v2503
    %5059 = vmatprep.subr.bf16.mxu0 %v2497
    %5060 = vmatpush1.bf16.msra.mxu0 %v2496
    %5061 = vmatprep.subr.bf16.mxu0 %v2490
    %5062 = vmatpush1.bf16.msra.mxu0 %v2489
    %5063 = vmatprep.subr.bf16.mxu0 %v2483
    %5064 = vmatpush1.bf16.msra.mxu0 %v2482
    %5065 = vmatprep.subr.bf16.mxu0 0
    %5066 = vmatpush2.bf16.msra.mxu0 0
    %5067 = vmatprep.subr.bf16.mxu0 0
    %5068 = vmatpush2.bf16.msra.mxu0 0
    %5069 = vmatprep.subr.bf16.mxu0 0
    %5070 = vmatpush2.bf16.msra.mxu0 0
    %5071 = vmatprep.subr.bf16.mxu0 0
    %5072 = vmatpush2.bf16.msra.mxu0 0
    %5073 = vmatprep.subr.bf16.mxu0 0
    %5074 = vmatpush2.bf16.msra.mxu0 0
    %5075 = vmatprep.subr.bf16.mxu0 0
    %5076 = vmatpush2.bf16.msra.mxu0 0
    %5077 = vmatprep.subr.bf16.mxu0 0
    %5078 = vmatpush2.bf16.msra.mxu0 0
    %5079 = vmatprep.subr.bf16.mxu0 0
    %5080 = vmatpush2.bf16.msra.mxu0 0
    %5081 = vmatprep.mubr.bf16.mxu0 0
    %5082 = vmatmul.mubr.bf16.gmra.mxu0 %v319
    %v5083 = vpop.f32.mrf.mxu0
    %v5084 = vadd.f32 %v4891, %v5083
    %v5085 = vpop.f32.mrf.mxu0
    %v5086 = vadd.f32 %v4893, %v5085
    %v5087 = vpop.f32.mrf.mxu0
    %v5088 = vadd.f32 %v4895, %v5087
    %v5089 = vpop.f32.mrf.mxu0
    %v5090 = vadd.f32 %v4897, %v5089
    %5091 = vmatprep.mubr.bf16.mxu0 0
    %5092 = vmatmul.mubr.bf16.gmra.mxu0 %v326
    %v5093 = vpop.f32.mrf.mxu0
    %v5094 = vadd.f32 %v4901, %v5093
    %v5095 = vpop.f32.mrf.mxu0
    %v5096 = vadd.f32 %v4903, %v5095
    %v5097 = vpop.f32.mrf.mxu0
    %v5098 = vadd.f32 %v4905, %v5097
    %v5099 = vpop.f32.mrf.mxu0
    %v5100 = vadd.f32 %v4907, %v5099
    %5101 = vmatprep.mubr.bf16.mxu0 0
    %5102 = vmatmul.mubr.bf16.gmra.mxu0 %v333
    %v5103 = vpop.f32.mrf.mxu0
    %v5104 = vadd.f32 %v4911, %v5103
    %v5105 = vpop.f32.mrf.mxu0
    %v5106 = vadd.f32 %v4913, %v5105
    %v5107 = vpop.f32.mrf.mxu0
    %v5108 = vadd.f32 %v4915, %v5107
    %v5109 = vpop.f32.mrf.mxu0
    %v5110 = vadd.f32 %v4917, %v5109
    %5111 = vmatprep.mubr.bf16.mxu0 0
    %5112 = vmatmul.mubr.bf16.gmra.mxu0 %v340
    %v5113 = vpop.f32.mrf.mxu0
    %v5114 = vadd.f32 %v4921, %v5113
    %v5115 = vpop.f32.mrf.mxu0
    %v5116 = vadd.f32 %v4923, %v5115
    %v5117 = vpop.f32.mrf.mxu0
    %v5118 = vadd.f32 %v4925, %v5117
    %v5119 = vpop.f32.mrf.mxu0
    %v5120 = vadd.f32 %v4927, %v5119
    %5121 = vmatprep.mubr.bf16.mxu0 0
    %5122 = vmatmul.mubr.bf16.gmra.mxu0 %v347
    %v5123 = vpop.f32.mrf.mxu0
    %v5124 = vadd.f32 %v4931, %v5123
    %v5125 = vpop.f32.mrf.mxu0
    %v5126 = vadd.f32 %v4933, %v5125
    %v5127 = vpop.f32.mrf.mxu0
    %v5128 = vadd.f32 %v4935, %v5127
    %v5129 = vpop.f32.mrf.mxu0
    %v5130 = vadd.f32 %v4937, %v5129
    %5131 = vmatprep.mubr.bf16.mxu0 0
    %5132 = vmatmul.mubr.bf16.gmra.mxu0 %v354
    %v5133 = vpop.f32.mrf.mxu0
    %v5134 = vadd.f32 %v4941, %v5133
    %v5135 = vpop.f32.mrf.mxu0
    %v5136 = vadd.f32 %v4943, %v5135
    %v5137 = vpop.f32.mrf.mxu0
    %v5138 = vadd.f32 %v4945, %v5137
    %v5139 = vpop.f32.mrf.mxu0
    %v5140 = vadd.f32 %v4947, %v5139
    %5141 = vmatprep.mubr.bf16.mxu0 0
    %5142 = vmatmul.mubr.bf16.gmra.mxu0 %v361
    %v5143 = vpop.f32.mrf.mxu0
    %v5144 = vadd.f32 %v4951, %v5143
    %v5145 = vpop.f32.mrf.mxu0
    %v5146 = vadd.f32 %v4953, %v5145
    %v5147 = vpop.f32.mrf.mxu0
    %v5148 = vadd.f32 %v4955, %v5147
    %v5149 = vpop.f32.mrf.mxu0
    %v5150 = vadd.f32 %v4957, %v5149
    %5151 = vmatprep.mubr.bf16.mxu0 0
    %5152 = vmatmul.mubr.bf16.gmra.mxu0 %v368
    %v5153 = vpop.f32.mrf.mxu0
    %v5154 = vadd.f32 %v4961, %v5153
    %v5155 = vpop.f32.mrf.mxu0
    %v5156 = vadd.f32 %v4963, %v5155
    %v5157 = vpop.f32.mrf.mxu0
    %v5158 = vadd.f32 %v4965, %v5157
    %v5159 = vpop.f32.mrf.mxu0
    %v5160 = vadd.f32 %v4967, %v5159
    %5161 = vmatprep.mubr.bf16.mxu0 0
    %5162 = vmatmul.mubr.bf16.gmra.mxu0 %v375
    %v5163 = vpop.f32.mrf.mxu0
    %v5164 = vadd.f32 %v4971, %v5163
    %v5165 = vpop.f32.mrf.mxu0
    %v5166 = vadd.f32 %v4973, %v5165
    %v5167 = vpop.f32.mrf.mxu0
    %v5168 = vadd.f32 %v4975, %v5167
    %v5169 = vpop.f32.mrf.mxu0
    %v5170 = vadd.f32 %v4977, %v5169
    %5171 = vmatprep.mubr.bf16.mxu0 0
    %5172 = vmatmul.mubr.bf16.gmra.mxu0 %v382
    %v5173 = vpop.f32.mrf.mxu0
    %v5174 = vadd.f32 %v4981, %v5173
    %v5175 = vpop.f32.mrf.mxu0
    %v5176 = vadd.f32 %v4983, %v5175
    %v5177 = vpop.f32.mrf.mxu0
    %v5178 = vadd.f32 %v4985, %v5177
    %v5179 = vpop.f32.mrf.mxu0
    %v5180 = vadd.f32 %v4987, %v5179
    %5181 = vmatprep.mubr.bf16.mxu0 0
    %5182 = vmatmul.mubr.bf16.gmra.mxu0 %v389
    %v5183 = vpop.f32.mrf.mxu0
    %v5184 = vadd.f32 %v4991, %v5183
    %v5185 = vpop.f32.mrf.mxu0
    %v5186 = vadd.f32 %v4993, %v5185
    %v5187 = vpop.f32.mrf.mxu0
    %v5188 = vadd.f32 %v4995, %v5187
    %v5189 = vpop.f32.mrf.mxu0
    %v5190 = vadd.f32 %v4997, %v5189
    %5191 = vmatprep.mubr.bf16.mxu0 0
    %5192 = vmatmul.mubr.bf16.gmra.mxu0 %v396
    %v5193 = vpop.f32.mrf.mxu0
    %v5194 = vadd.f32 %v5001, %v5193
    %v5195 = vpop.f32.mrf.mxu0
    %v5196 = vadd.f32 %v5003, %v5195
    %v5197 = vpop.f32.mrf.mxu0
    %v5198 = vadd.f32 %v5005, %v5197
    %v5199 = vpop.f32.mrf.mxu0
    %v5200 = vadd.f32 %v5007, %v5199
    %5201 = vmatprep.mubr.bf16.mxu0 0
    %5202 = vmatmul.mubr.bf16.gmra.mxu0 %v403
    %v5203 = vpop.f32.mrf.mxu0
    %v5204 = vadd.f32 %v5011, %v5203
    %v5205 = vpop.f32.mrf.mxu0
    %v5206 = vadd.f32 %v5013, %v5205
    %v5207 = vpop.f32.mrf.mxu0
    %v5208 = vadd.f32 %v5015, %v5207
    %v5209 = vpop.f32.mrf.mxu0
    %v5210 = vadd.f32 %v5017, %v5209
    %5211 = vmatprep.mubr.bf16.mxu0 0
    %5212 = vmatmul.mubr.bf16.gmra.mxu0 %v410
    %v5213 = vpop.f32.mrf.mxu0
    %v5214 = vadd.f32 %v5021, %v5213
    %v5215 = vpop.f32.mrf.mxu0
    %v5216 = vadd.f32 %v5023, %v5215
    %v5217 = vpop.f32.mrf.mxu0
    %v5218 = vadd.f32 %v5025, %v5217
    %v5219 = vpop.f32.mrf.mxu0
    %v5220 = vadd.f32 %v5027, %v5219
    %5221 = vmatprep.mubr.bf16.mxu0 0
    %5222 = vmatmul.mubr.bf16.gmra.mxu0 %v417
    %v5223 = vpop.f32.mrf.mxu0
    %v5224 = vadd.f32 %v5031, %v5223
    %v5225 = vpop.f32.mrf.mxu0
    %v5226 = vadd.f32 %v5033, %v5225
    %v5227 = vpop.f32.mrf.mxu0
    %v5228 = vadd.f32 %v5035, %v5227
    %v5229 = vpop.f32.mrf.mxu0
    %v5230 = vadd.f32 %v5037, %v5229
    %5231 = vmatprep.mubr.bf16.mxu0 0
    %5232 = vmatmul.mubr.bf16.gmra.mxu0 %v424
    %v5233 = vpop.f32.mrf.mxu0
    %v5234 = vadd.f32 %v5041, %v5233
    %v5235 = vpop.f32.mrf.mxu0
    %v5236 = vadd.f32 %v5043, %v5235
    %v5237 = vpop.f32.mrf.mxu0
    %v5238 = vadd.f32 %v5045, %v5237
    %v5239 = vpop.f32.mrf.mxu0
    %v5240 = vadd.f32 %v5047, %v5239
    %5241 = vdwg.mxu0
    %5242 = vmatprep.subr.bf16.mxu0 0
    %5243 = vmatpush1.bf16.msra.mxu0 %v2197
    %5244 = vmatprep.subr.bf16.mxu0 0
    %5245 = vmatpush1.bf16.msra.mxu0 %v2190
    %5246 = vmatprep.subr.bf16.mxu0 0
    %5247 = vmatpush1.bf16.msra.mxu0 %v2183
    %5248 = vmatprep.subr.bf16.mxu0 0
    %5249 = vmatpush1.bf16.msra.mxu0 %v2176
    %5250 = vmatprep.subr.bf16.mxu0 0
    %5251 = vmatpush1.bf16.msra.mxu0 %v2169
    %5252 = vmatprep.subr.bf16.mxu0 0
    %5253 = vmatpush1.bf16.msra.mxu0 %v2162
    %5254 = vmatprep.subr.bf16.mxu0 0
    %5255 = vmatpush1.bf16.msra.mxu0 %v2155
    %5256 = vmatprep.subr.bf16.mxu0 0
    %5257 = vmatpush1.bf16.msra.mxu0 %v2148
    %5258 = vmatprep.subr.bf16.mxu0 0
    %5259 = vmatpush2.bf16.msra.mxu0 %v2253
    %5260 = vmatprep.subr.bf16.mxu0 0
    %5261 = vmatpush2.bf16.msra.mxu0 %v2246
    %5262 = vmatprep.subr.bf16.mxu0 0
    %5263 = vmatpush2.bf16.msra.mxu0 %v2239
    %5264 = vmatprep.subr.bf16.mxu0 0
    %5265 = vmatpush2.bf16.msra.mxu0 %v2232
    %5266 = vmatprep.subr.bf16.mxu0 0
    %5267 = vmatpush2.bf16.msra.mxu0 %v2225
    %5268 = vmatprep.subr.bf16.mxu0 0
    %5269 = vmatpush2.bf16.msra.mxu0 %v2218
    %5270 = vmatprep.subr.bf16.mxu0 0
    %5271 = vmatpush2.bf16.msra.mxu0 %v2211
    %5272 = vmatprep.subr.bf16.mxu0 0
    %5273 = vmatpush2.bf16.msra.mxu0 %v2204
    %5274 = vmatprep.mubr.bf16.mxu0 %v314
    %5275 = vmatmul.mubr.bf16.gmra.mxu0 %v313
    %v5276 = vpop.f32.mrf.mxu0
    %v5277 = vadd.f32 %v902, %v5276
    %v5278 = vpop.f32.mrf.mxu0
    %v5279 = vpop.f32.mrf.mxu0
    %v5280 = vadd.f32 %v902, %v5279
    %v5281 = vpop.f32.mrf.mxu0
    %5282 = vmatprep.mubr.bf16.mxu0 %v321
    %5283 = vmatmul.mubr.bf16.gmra.mxu0 %v320
    %v5284 = vpop.f32.mrf.mxu0
    %v5285 = vadd.f32 %v902, %v5284
    %v5286 = vpop.f32.mrf.mxu0
    %v5287 = vpop.f32.mrf.mxu0
    %v5288 = vadd.f32 %v902, %v5287
    %v5289 = vpop.f32.mrf.mxu0
    %5290 = vmatprep.mubr.bf16.mxu0 %v328
    %5291 = vmatmul.mubr.bf16.gmra.mxu0 %v327
    %v5292 = vpop.f32.mrf.mxu0
    %v5293 = vadd.f32 %v902, %v5292
    %v5294 = vpop.f32.mrf.mxu0
    %v5295 = vpop.f32.mrf.mxu0
    %v5296 = vadd.f32 %v902, %v5295
    %v5297 = vpop.f32.mrf.mxu0
    %5298 = vmatprep.mubr.bf16.mxu0 %v335
    %5299 = vmatmul.mubr.bf16.gmra.mxu0 %v334
    %v5300 = vpop.f32.mrf.mxu0
    %v5301 = vadd.f32 %v902, %v5300
    %v5302 = vpop.f32.mrf.mxu0
    %v5303 = vpop.f32.mrf.mxu0
    %v5304 = vadd.f32 %v902, %v5303
    %v5305 = vpop.f32.mrf.mxu0
    %5306 = vmatprep.mubr.bf16.mxu0 %v342
    %5307 = vmatmul.mubr.bf16.gmra.mxu0 %v341
    %v5308 = vpop.f32.mrf.mxu0
    %v5309 = vadd.f32 %v902, %v5308
    %v5310 = vpop.f32.mrf.mxu0
    %v5311 = vpop.f32.mrf.mxu0
    %v5312 = vadd.f32 %v902, %v5311
    %v5313 = vpop.f32.mrf.mxu0
    %5314 = vmatprep.mubr.bf16.mxu0 %v349
    %5315 = vmatmul.mubr.bf16.gmra.mxu0 %v348
    %v5316 = vpop.f32.mrf.mxu0
    %v5317 = vadd.f32 %v902, %v5316
    %v5318 = vpop.f32.mrf.mxu0
    %v5319 = vpop.f32.mrf.mxu0
    %v5320 = vadd.f32 %v902, %v5319
    %v5321 = vpop.f32.mrf.mxu0
    %5322 = vmatprep.mubr.bf16.mxu0 %v356
    %5323 = vmatmul.mubr.bf16.gmra.mxu0 %v355
    %v5324 = vpop.f32.mrf.mxu0
    %v5325 = vadd.f32 %v902, %v5324
    %v5326 = vpop.f32.mrf.mxu0
    %v5327 = vpop.f32.mrf.mxu0
    %v5328 = vadd.f32 %v902, %v5327
    %v5329 = vpop.f32.mrf.mxu0
    %5330 = vmatprep.mubr.bf16.mxu0 %v363
    %5331 = vmatmul.mubr.bf16.gmra.mxu0 %v362
    %v5332 = vpop.f32.mrf.mxu0
    %v5333 = vadd.f32 %v902, %v5332
    %v5334 = vpop.f32.mrf.mxu0
    %v5335 = vpop.f32.mrf.mxu0
    %v5336 = vadd.f32 %v902, %v5335
    %v5337 = vpop.f32.mrf.mxu0
    %5338 = vmatprep.mubr.bf16.mxu0 %v370
    %5339 = vmatmul.mubr.bf16.gmra.mxu0 %v369
    %v5340 = vpop.f32.mrf.mxu0
    %v5341 = vadd.f32 %v902, %v5340
    %v5342 = vpop.f32.mrf.mxu0
    %v5343 = vpop.f32.mrf.mxu0
    %v5344 = vadd.f32 %v902, %v5343
    %v5345 = vpop.f32.mrf.mxu0
    %5346 = vmatprep.mubr.bf16.mxu0 %v377
    %5347 = vmatmul.mubr.bf16.gmra.mxu0 %v376
    %v5348 = vpop.f32.mrf.mxu0
    %v5349 = vadd.f32 %v902, %v5348
    %v5350 = vpop.f32.mrf.mxu0
    %v5351 = vpop.f32.mrf.mxu0
    %v5352 = vadd.f32 %v902, %v5351
    %v5353 = vpop.f32.mrf.mxu0
    %5354 = vmatprep.mubr.bf16.mxu0 %v384
    %5355 = vmatmul.mubr.bf16.gmra.mxu0 %v383
    %v5356 = vpop.f32.mrf.mxu0
    %v5357 = vadd.f32 %v902, %v5356
    %v5358 = vpop.f32.mrf.mxu0
    %v5359 = vpop.f32.mrf.mxu0
    %v5360 = vadd.f32 %v902, %v5359
    %v5361 = vpop.f32.mrf.mxu0
    %5362 = vmatprep.mubr.bf16.mxu0 %v391
    %5363 = vmatmul.mubr.bf16.gmra.mxu0 %v390
    %v5364 = vpop.f32.mrf.mxu0
    %v5365 = vadd.f32 %v902, %v5364
    %v5366 = vpop.f32.mrf.mxu0
    %v5367 = vpop.f32.mrf.mxu0
    %v5368 = vadd.f32 %v902, %v5367
    %v5369 = vpop.f32.mrf.mxu0
    %5370 = vmatprep.mubr.bf16.mxu0 %v398
    %5371 = vmatmul.mubr.bf16.gmra.mxu0 %v397
    %v5372 = vpop.f32.mrf.mxu0
    %v5373 = vadd.f32 %v902, %v5372
    %v5374 = vpop.f32.mrf.mxu0
    %v5375 = vpop.f32.mrf.mxu0
    %v5376 = vadd.f32 %v902, %v5375
    %v5377 = vpop.f32.mrf.mxu0
    %5378 = vmatprep.mubr.bf16.mxu0 %v405
    %5379 = vmatmul.mubr.bf16.gmra.mxu0 %v404
    %v5380 = vpop.f32.mrf.mxu0
    %v5381 = vadd.f32 %v902, %v5380
    %v5382 = vpop.f32.mrf.mxu0
    %v5383 = vpop.f32.mrf.mxu0
    %v5384 = vadd.f32 %v902, %v5383
    %v5385 = vpop.f32.mrf.mxu0
    %5386 = vmatprep.mubr.bf16.mxu0 %v412
    %5387 = vmatmul.mubr.bf16.gmra.mxu0 %v411
    %v5388 = vpop.f32.mrf.mxu0
    %v5389 = vadd.f32 %v902, %v5388
    %v5390 = vpop.f32.mrf.mxu0
    %v5391 = vpop.f32.mrf.mxu0
    %v5392 = vadd.f32 %v902, %v5391
    %v5393 = vpop.f32.mrf.mxu0
    %5394 = vmatprep.mubr.bf16.mxu0 %v419
    %5395 = vmatmul.mubr.bf16.gmra.mxu0 %v418
    %v5396 = vpop.f32.mrf.mxu0
    %v5397 = vadd.f32 %v902, %v5396
    %v5398 = vpop.f32.mrf.mxu0
    %v5399 = vpop.f32.mrf.mxu0
    %v5400 = vadd.f32 %v902, %v5399
    %v5401 = vpop.f32.mrf.mxu0
    %5402 = vdwg.mxu0
    %5403 = vmatprep.subr.bf16.mxu0 0
    %5404 = vmatpush1.bf16.msra.mxu0 %v2309
    %5405 = vmatprep.subr.bf16.mxu0 0
    %5406 = vmatpush1.bf16.msra.mxu0 %v2302
    %5407 = vmatprep.subr.bf16.mxu0 0
    %5408 = vmatpush1.bf16.msra.mxu0 %v2295
    %5409 = vmatprep.subr.bf16.mxu0 0
    %5410 = vmatpush1.bf16.msra.mxu0 %v2288
    %5411 = vmatprep.subr.bf16.mxu0 0
    %5412 = vmatpush1.bf16.msra.mxu0 %v2281
    %5413 = vmatprep.subr.bf16.mxu0 0
    %5414 = vmatpush1.bf16.msra.mxu0 %v2274
    %5415 = vmatprep.subr.bf16.mxu0 0
    %5416 = vmatpush1.bf16.msra.mxu0 %v2267
    %5417 = vmatprep.subr.bf16.mxu0 0
    %5418 = vmatpush1.bf16.msra.mxu0 %v2260
    %5419 = vmatprep.subr.bf16.mxu0 0
    %5420 = vmatpush2.bf16.msra.mxu0 %v2365
    %5421 = vmatprep.subr.bf16.mxu0 0
    %5422 = vmatpush2.bf16.msra.mxu0 %v2358
    %5423 = vmatprep.subr.bf16.mxu0 0
    %5424 = vmatpush2.bf16.msra.mxu0 %v2351
    %5425 = vmatprep.subr.bf16.mxu0 0
    %5426 = vmatpush2.bf16.msra.mxu0 %v2344
    %5427 = vmatprep.subr.bf16.mxu0 0
    %5428 = vmatpush2.bf16.msra.mxu0 %v2337
    %5429 = vmatprep.subr.bf16.mxu0 0
    %5430 = vmatpush2.bf16.msra.mxu0 %v2330
    %5431 = vmatprep.subr.bf16.mxu0 0
    %5432 = vmatpush2.bf16.msra.mxu0 %v2323
    %5433 = vmatprep.subr.bf16.mxu0 0
    %5434 = vmatpush2.bf16.msra.mxu0 %v2316
    %5435 = vmatprep.mubr.bf16.mxu0 %v316
    %5436 = vmatmul.mubr.bf16.gmra.mxu0 %v315
    %v5437 = vpop.f32.mrf.mxu0
    %v5438 = vadd.f32 %v5277, %v5437
    %v5439 = vpop.f32.mrf.mxu0
    %v5440 = vpop.f32.mrf.mxu0
    %v5441 = vadd.f32 %v5280, %v5440
    %v5442 = vpop.f32.mrf.mxu0
    %5443 = vmatprep.mubr.bf16.mxu0 %v323
    %5444 = vmatmul.mubr.bf16.gmra.mxu0 %v322
    %v5445 = vpop.f32.mrf.mxu0
    %v5446 = vadd.f32 %v5285, %v5445
    %v5447 = vpop.f32.mrf.mxu0
    %v5448 = vpop.f32.mrf.mxu0
    %v5449 = vadd.f32 %v5288, %v5448
    %v5450 = vpop.f32.mrf.mxu0
    %5451 = vmatprep.mubr.bf16.mxu0 %v330
    %5452 = vmatmul.mubr.bf16.gmra.mxu0 %v329
    %v5453 = vpop.f32.mrf.mxu0
    %v5454 = vadd.f32 %v5293, %v5453
    %v5455 = vpop.f32.mrf.mxu0
    %v5456 = vpop.f32.mrf.mxu0
    %v5457 = vadd.f32 %v5296, %v5456
    %v5458 = vpop.f32.mrf.mxu0
    %5459 = vmatprep.mubr.bf16.mxu0 %v337
    %5460 = vmatmul.mubr.bf16.gmra.mxu0 %v336
    %v5461 = vpop.f32.mrf.mxu0
    %v5462 = vadd.f32 %v5301, %v5461
    %v5463 = vpop.f32.mrf.mxu0
    %v5464 = vpop.f32.mrf.mxu0
    %v5465 = vadd.f32 %v5304, %v5464
    %v5466 = vpop.f32.mrf.mxu0
    %5467 = vmatprep.mubr.bf16.mxu0 %v344
    %5468 = vmatmul.mubr.bf16.gmra.mxu0 %v343
    %v5469 = vpop.f32.mrf.mxu0
    %v5470 = vadd.f32 %v5309, %v5469
    %v5471 = vpop.f32.mrf.mxu0
    %v5472 = vpop.f32.mrf.mxu0
    %v5473 = vadd.f32 %v5312, %v5472
    %v5474 = vpop.f32.mrf.mxu0
    %5475 = vmatprep.mubr.bf16.mxu0 %v351
    %5476 = vmatmul.mubr.bf16.gmra.mxu0 %v350
    %v5477 = vpop.f32.mrf.mxu0
    %v5478 = vadd.f32 %v5317, %v5477
    %v5479 = vpop.f32.mrf.mxu0
    %v5480 = vpop.f32.mrf.mxu0
    %v5481 = vadd.f32 %v5320, %v5480
    %v5482 = vpop.f32.mrf.mxu0
    %5483 = vmatprep.mubr.bf16.mxu0 %v358
    %5484 = vmatmul.mubr.bf16.gmra.mxu0 %v357
    %v5485 = vpop.f32.mrf.mxu0
    %v5486 = vadd.f32 %v5325, %v5485
    %v5487 = vpop.f32.mrf.mxu0
    %v5488 = vpop.f32.mrf.mxu0
    %v5489 = vadd.f32 %v5328, %v5488
    %v5490 = vpop.f32.mrf.mxu0
    %5491 = vmatprep.mubr.bf16.mxu0 %v365
    %5492 = vmatmul.mubr.bf16.gmra.mxu0 %v364
    %v5493 = vpop.f32.mrf.mxu0
    %v5494 = vadd.f32 %v5333, %v5493
    %v5495 = vpop.f32.mrf.mxu0
    %v5496 = vpop.f32.mrf.mxu0
    %v5497 = vadd.f32 %v5336, %v5496
    %v5498 = vpop.f32.mrf.mxu0
    %5499 = vmatprep.mubr.bf16.mxu0 %v372
    %5500 = vmatmul.mubr.bf16.gmra.mxu0 %v371
    %v5501 = vpop.f32.mrf.mxu0
    %v5502 = vadd.f32 %v5341, %v5501
    %v5503 = vpop.f32.mrf.mxu0
    %v5504 = vpop.f32.mrf.mxu0
    %v5505 = vadd.f32 %v5344, %v5504
    %v5506 = vpop.f32.mrf.mxu0
    %5507 = vmatprep.mubr.bf16.mxu0 %v379
    %5508 = vmatmul.mubr.bf16.gmra.mxu0 %v378
    %v5509 = vpop.f32.mrf.mxu0
    %v5510 = vadd.f32 %v5349, %v5509
    %v5511 = vpop.f32.mrf.mxu0
    %v5512 = vpop.f32.mrf.mxu0
    %v5513 = vadd.f32 %v5352, %v5512
    %v5514 = vpop.f32.mrf.mxu0
    %5515 = vmatprep.mubr.bf16.mxu0 %v386
    %5516 = vmatmul.mubr.bf16.gmra.mxu0 %v385
    %v5517 = vpop.f32.mrf.mxu0
    %v5518 = vadd.f32 %v5357, %v5517
    %v5519 = vpop.f32.mrf.mxu0
    %v5520 = vpop.f32.mrf.mxu0
    %v5521 = vadd.f32 %v5360, %v5520
    %v5522 = vpop.f32.mrf.mxu0
    %5523 = vmatprep.mubr.bf16.mxu0 %v393
    %5524 = vmatmul.mubr.bf16.gmra.mxu0 %v392
    %v5525 = vpop.f32.mrf.mxu0
    %v5526 = vadd.f32 %v5365, %v5525
    %v5527 = vpop.f32.mrf.mxu0
    %v5528 = vpop.f32.mrf.mxu0
    %v5529 = vadd.f32 %v5368, %v5528
    %v5530 = vpop.f32.mrf.mxu0
    %5531 = vmatprep.mubr.bf16.mxu0 %v400
    %5532 = vmatmul.mubr.bf16.gmra.mxu0 %v399
    %v5533 = vpop.f32.mrf.mxu0
    %v5534 = vadd.f32 %v5373, %v5533
    %v5535 = vpop.f32.mrf.mxu0
    %v5536 = vpop.f32.mrf.mxu0
    %v5537 = vadd.f32 %v5376, %v5536
    %v5538 = vpop.f32.mrf.mxu0
    %5539 = vmatprep.mubr.bf16.mxu0 %v407
    %5540 = vmatmul.mubr.bf16.gmra.mxu0 %v406
    %v5541 = vpop.f32.mrf.mxu0
    %v5542 = vadd.f32 %v5381, %v5541
    %v5543 = vpop.f32.mrf.mxu0
    %v5544 = vpop.f32.mrf.mxu0
    %v5545 = vadd.f32 %v5384, %v5544
    %v5546 = vpop.f32.mrf.mxu0
    %5547 = vmatprep.mubr.bf16.mxu0 %v414
    %5548 = vmatmul.mubr.bf16.gmra.mxu0 %v413
    %v5549 = vpop.f32.mrf.mxu0
    %v5550 = vadd.f32 %v5389, %v5549
    %v5551 = vpop.f32.mrf.mxu0
    %v5552 = vpop.f32.mrf.mxu0
    %v5553 = vadd.f32 %v5392, %v5552
    %v5554 = vpop.f32.mrf.mxu0
    %5555 = vmatprep.mubr.bf16.mxu0 %v421
    %5556 = vmatmul.mubr.bf16.gmra.mxu0 %v420
    %v5557 = vpop.f32.mrf.mxu0
    %v5558 = vadd.f32 %v5397, %v5557
    %v5559 = vpop.f32.mrf.mxu0
    %v5560 = vpop.f32.mrf.mxu0
    %v5561 = vadd.f32 %v5400, %v5560
    %v5562 = vpop.f32.mrf.mxu0
    %5563 = vdwg.mxu0
    %5564 = vmatprep.subr.bf16.mxu0 0
    %5565 = vmatpush1.bf16.msra.mxu0 %v2421
    %5566 = vmatprep.subr.bf16.mxu0 0
    %5567 = vmatpush1.bf16.msra.mxu0 %v2414
    %5568 = vmatprep.subr.bf16.mxu0 0
    %5569 = vmatpush1.bf16.msra.mxu0 %v2407
    %5570 = vmatprep.subr.bf16.mxu0 0
    %5571 = vmatpush1.bf16.msra.mxu0 %v2400
    %5572 = vmatprep.subr.bf16.mxu0 0
    %5573 = vmatpush1.bf16.msra.mxu0 %v2393
    %5574 = vmatprep.subr.bf16.mxu0 0
    %5575 = vmatpush1.bf16.msra.mxu0 %v2386
    %5576 = vmatprep.subr.bf16.mxu0 0
    %5577 = vmatpush1.bf16.msra.mxu0 %v2379
    %5578 = vmatprep.subr.bf16.mxu0 0
    %5579 = vmatpush1.bf16.msra.mxu0 %v2372
    %5580 = vmatprep.subr.bf16.mxu0 0
    %5581 = vmatpush2.bf16.msra.mxu0 %v2477
    %5582 = vmatprep.subr.bf16.mxu0 0
    %5583 = vmatpush2.bf16.msra.mxu0 %v2470
    %5584 = vmatprep.subr.bf16.mxu0 0
    %5585 = vmatpush2.bf16.msra.mxu0 %v2463
    %5586 = vmatprep.subr.bf16.mxu0 0
    %5587 = vmatpush2.bf16.msra.mxu0 %v2456
    %5588 = vmatprep.subr.bf16.mxu0 0
    %5589 = vmatpush2.bf16.msra.mxu0 %v2449
    %5590 = vmatprep.subr.bf16.mxu0 0
    %5591 = vmatpush2.bf16.msra.mxu0 %v2442
    %5592 = vmatprep.subr.bf16.mxu0 0
    %5593 = vmatpush2.bf16.msra.mxu0 %v2435
    %5594 = vmatprep.subr.bf16.mxu0 0
    %5595 = vmatpush2.bf16.msra.mxu0 %v2428
    %5596 = vmatprep.mubr.bf16.mxu0 %v318
    %5597 = vmatmul.mubr.bf16.gmra.mxu0 %v317
    %v5598 = vpop.f32.mrf.mxu0
    %v5599 = vadd.f32 %v5438, %v5598
    %v5600 = vpop.f32.mrf.mxu0
    %v5601 = vpop.f32.mrf.mxu0
    %v5602 = vadd.f32 %v5441, %v5601
    %v5603 = vpop.f32.mrf.mxu0
    %5604 = vmatprep.mubr.bf16.mxu0 %v325
    %5605 = vmatmul.mubr.bf16.gmra.mxu0 %v324
    %v5606 = vpop.f32.mrf.mxu0
    %v5607 = vadd.f32 %v5446, %v5606
    %v5608 = vpop.f32.mrf.mxu0
    %v5609 = vpop.f32.mrf.mxu0
    %v5610 = vadd.f32 %v5449, %v5609
    %v5611 = vpop.f32.mrf.mxu0
    %5612 = vmatprep.mubr.bf16.mxu0 %v332
    %5613 = vmatmul.mubr.bf16.gmra.mxu0 %v331
    %v5614 = vpop.f32.mrf.mxu0
    %v5615 = vadd.f32 %v5454, %v5614
    %v5616 = vpop.f32.mrf.mxu0
    %v5617 = vpop.f32.mrf.mxu0
    %v5618 = vadd.f32 %v5457, %v5617
    %v5619 = vpop.f32.mrf.mxu0
    %5620 = vmatprep.mubr.bf16.mxu0 %v339
    %5621 = vmatmul.mubr.bf16.gmra.mxu0 %v338
    %v5622 = vpop.f32.mrf.mxu0
    %v5623 = vadd.f32 %v5462, %v5622
    %v5624 = vpop.f32.mrf.mxu0
    %v5625 = vpop.f32.mrf.mxu0
    %v5626 = vadd.f32 %v5465, %v5625
    %v5627 = vpop.f32.mrf.mxu0
    %5628 = vmatprep.mubr.bf16.mxu0 %v346
    %5629 = vmatmul.mubr.bf16.gmra.mxu0 %v345
    %v5630 = vpop.f32.mrf.mxu0
    %v5631 = vadd.f32 %v5470, %v5630
    %v5632 = vpop.f32.mrf.mxu0
    %v5633 = vpop.f32.mrf.mxu0
    %v5634 = vadd.f32 %v5473, %v5633
    %v5635 = vpop.f32.mrf.mxu0
    %5636 = vmatprep.mubr.bf16.mxu0 %v353
    %5637 = vmatmul.mubr.bf16.gmra.mxu0 %v352
    %v5638 = vpop.f32.mrf.mxu0
    %v5639 = vadd.f32 %v5478, %v5638
    %v5640 = vpop.f32.mrf.mxu0
    %v5641 = vpop.f32.mrf.mxu0
    %v5642 = vadd.f32 %v5481, %v5641
    %v5643 = vpop.f32.mrf.mxu0
    %5644 = vmatprep.mubr.bf16.mxu0 %v360
    %5645 = vmatmul.mubr.bf16.gmra.mxu0 %v359
    %v5646 = vpop.f32.mrf.mxu0
    %v5647 = vadd.f32 %v5486, %v5646
    %v5648 = vpop.f32.mrf.mxu0
    %v5649 = vpop.f32.mrf.mxu0
    %v5650 = vadd.f32 %v5489, %v5649
    %v5651 = vpop.f32.mrf.mxu0
    %5652 = vmatprep.mubr.bf16.mxu0 %v367
    %5653 = vmatmul.mubr.bf16.gmra.mxu0 %v366
    %v5654 = vpop.f32.mrf.mxu0
    %v5655 = vadd.f32 %v5494, %v5654
    %v5656 = vpop.f32.mrf.mxu0
    %v5657 = vpop.f32.mrf.mxu0
    %v5658 = vadd.f32 %v5497, %v5657
    %v5659 = vpop.f32.mrf.mxu0
    %5660 = vmatprep.mubr.bf16.mxu0 %v374
    %5661 = vmatmul.mubr.bf16.gmra.mxu0 %v373
    %v5662 = vpop.f32.mrf.mxu0
    %v5663 = vadd.f32 %v5502, %v5662
    %v5664 = vpop.f32.mrf.mxu0
    %v5665 = vpop.f32.mrf.mxu0
    %v5666 = vadd.f32 %v5505, %v5665
    %v5667 = vpop.f32.mrf.mxu0
    %5668 = vmatprep.mubr.bf16.mxu0 %v381
    %5669 = vmatmul.mubr.bf16.gmra.mxu0 %v380
    %v5670 = vpop.f32.mrf.mxu0
    %v5671 = vadd.f32 %v5510, %v5670
    %v5672 = vpop.f32.mrf.mxu0
    %v5673 = vpop.f32.mrf.mxu0
    %v5674 = vadd.f32 %v5513, %v5673
    %v5675 = vpop.f32.mrf.mxu0
    %5676 = vmatprep.mubr.bf16.mxu0 %v388
    %5677 = vmatmul.mubr.bf16.gmra.mxu0 %v387
    %v5678 = vpop.f32.mrf.mxu0
    %v5679 = vadd.f32 %v5518, %v5678
    %v5680 = vpop.f32.mrf.mxu0
    %v5681 = vpop.f32.mrf.mxu0
    %v5682 = vadd.f32 %v5521, %v5681
    %v5683 = vpop.f32.mrf.mxu0
    %5684 = vmatprep.mubr.bf16.mxu0 %v395
    %5685 = vmatmul.mubr.bf16.gmra.mxu0 %v394
    %v5686 = vpop.f32.mrf.mxu0
    %v5687 = vadd.f32 %v5526, %v5686
    %v5688 = vpop.f32.mrf.mxu0
    %v5689 = vpop.f32.mrf.mxu0
    %v5690 = vadd.f32 %v5529, %v5689
    %v5691 = vpop.f32.mrf.mxu0
    %5692 = vmatprep.mubr.bf16.mxu0 %v402
    %5693 = vmatmul.mubr.bf16.gmra.mxu0 %v401
    %v5694 = vpop.f32.mrf.mxu0
    %v5695 = vadd.f32 %v5534, %v5694
    %v5696 = vpop.f32.mrf.mxu0
    %v5697 = vpop.f32.mrf.mxu0
    %v5698 = vadd.f32 %v5537, %v5697
    %v5699 = vpop.f32.mrf.mxu0
    %5700 = vmatprep.mubr.bf16.mxu0 %v409
    %5701 = vmatmul.mubr.bf16.gmra.mxu0 %v408
    %v5702 = vpop.f32.mrf.mxu0
    %v5703 = vadd.f32 %v5542, %v5702
    %v5704 = vpop.f32.mrf.mxu0
    %v5705 = vpop.f32.mrf.mxu0
    %v5706 = vadd.f32 %v5545, %v5705
    %v5707 = vpop.f32.mrf.mxu0
    %5708 = vmatprep.mubr.bf16.mxu0 %v416
    %5709 = vmatmul.mubr.bf16.gmra.mxu0 %v415
    %v5710 = vpop.f32.mrf.mxu0
    %v5711 = vadd.f32 %v5550, %v5710
    %v5712 = vpop.f32.mrf.mxu0
    %v5713 = vpop.f32.mrf.mxu0
    %v5714 = vadd.f32 %v5553, %v5713
    %v5715 = vpop.f32.mrf.mxu0
    %5716 = vmatprep.mubr.bf16.mxu0 %v423
    %5717 = vmatmul.mubr.bf16.gmra.mxu0 %v422
    %v5718 = vpop.f32.mrf.mxu0
    %v5719 = vadd.f32 %v5558, %v5718
    %v5720 = vpop.f32.mrf.mxu0
    %v5721 = vpop.f32.mrf.mxu0
    %v5722 = vadd.f32 %v5561, %v5721
    %v5723 = vpop.f32.mrf.mxu0
    %5724 = vdwg.mxu0
    %5725 = vmatprep.subr.bf16.mxu0 0
    %5726 = vmatpush1.bf16.msra.mxu0 %v2533
    %5727 = vmatprep.subr.bf16.mxu0 0
    %5728 = vmatpush1.bf16.msra.mxu0 %v2526
    %5729 = vmatprep.subr.bf16.mxu0 0
    %5730 = vmatpush1.bf16.msra.mxu0 %v2519
    %5731 = vmatprep.subr.bf16.mxu0 0
    %5732 = vmatpush1.bf16.msra.mxu0 %v2512
    %5733 = vmatprep.subr.bf16.mxu0 0
    %5734 = vmatpush1.bf16.msra.mxu0 %v2505
    %5735 = vmatprep.subr.bf16.mxu0 0
    %5736 = vmatpush1.bf16.msra.mxu0 %v2498
    %5737 = vmatprep.subr.bf16.mxu0 0
    %5738 = vmatpush1.bf16.msra.mxu0 %v2491
    %5739 = vmatprep.subr.bf16.mxu0 0
    %5740 = vmatpush1.bf16.msra.mxu0 %v2484
    %5741 = vmatprep.subr.bf16.mxu0 0
    %5742 = vmatpush2.bf16.msra.mxu0 0
    %5743 = vmatprep.subr.bf16.mxu0 0
    %5744 = vmatpush2.bf16.msra.mxu0 0
    %5745 = vmatprep.subr.bf16.mxu0 0
    %5746 = vmatpush2.bf16.msra.mxu0 0
    %5747 = vmatprep.subr.bf16.mxu0 0
    %5748 = vmatpush2.bf16.msra.mxu0 0
    %5749 = vmatprep.subr.bf16.mxu0 0
    %5750 = vmatpush2.bf16.msra.mxu0 0
    %5751 = vmatprep.subr.bf16.mxu0 0
    %5752 = vmatpush2.bf16.msra.mxu0 0
    %5753 = vmatprep.subr.bf16.mxu0 0
    %5754 = vmatpush2.bf16.msra.mxu0 0
    %5755 = vmatprep.subr.bf16.mxu0 0
    %5756 = vmatpush2.bf16.msra.mxu0 0
    %5757 = vmatprep.mubr.bf16.mxu0 0
    %5758 = vmatmul.mubr.bf16.gmra.mxu0 %v319
    %v5759 = vpop.f32.mrf.mxu0
    %v5760 = vadd.f32 %v5599, %v5759
    %v5761 = vpop.f32.mrf.mxu0
    %v5762 = vpop.f32.mrf.mxu0
    %v5763 = vadd.f32 %v5602, %v5762
    %v5764 = vpop.f32.mrf.mxu0
    %5765 = vmatprep.mubr.bf16.mxu0 0
    %5766 = vmatmul.mubr.bf16.gmra.mxu0 %v326
    %v5767 = vpop.f32.mrf.mxu0
    %v5768 = vadd.f32 %v5607, %v5767
    %v5769 = vpop.f32.mrf.mxu0
    %v5770 = vpop.f32.mrf.mxu0
    %v5771 = vadd.f32 %v5610, %v5770
    %v5772 = vpop.f32.mrf.mxu0
    %5773 = vmatprep.mubr.bf16.mxu0 0
    %5774 = vmatmul.mubr.bf16.gmra.mxu0 %v333
    %v5775 = vpop.f32.mrf.mxu0
    %v5776 = vadd.f32 %v5615, %v5775
    %v5777 = vpop.f32.mrf.mxu0
    %v5778 = vpop.f32.mrf.mxu0
    %v5779 = vadd.f32 %v5618, %v5778
    %v5780 = vpop.f32.mrf.mxu0
    %5781 = vmatprep.mubr.bf16.mxu0 0
    %5782 = vmatmul.mubr.bf16.gmra.mxu0 %v340
    %v5783 = vpop.f32.mrf.mxu0
    %v5784 = vadd.f32 %v5623, %v5783
    %v5785 = vpop.f32.mrf.mxu0
    %v5786 = vpop.f32.mrf.mxu0
    %v5787 = vadd.f32 %v5626, %v5786
    %v5788 = vpop.f32.mrf.mxu0
    %5789 = vmatprep.mubr.bf16.mxu0 0
    %5790 = vmatmul.mubr.bf16.gmra.mxu0 %v347
    %v5791 = vpop.f32.mrf.mxu0
    %v5792 = vadd.f32 %v5631, %v5791
    %v5793 = vpop.f32.mrf.mxu0
    %v5794 = vpop.f32.mrf.mxu0
    %v5795 = vadd.f32 %v5634, %v5794
    %v5796 = vpop.f32.mrf.mxu0
    %5797 = vmatprep.mubr.bf16.mxu0 0
    %5798 = vmatmul.mubr.bf16.gmra.mxu0 %v354
    %v5799 = vpop.f32.mrf.mxu0
    %v5800 = vadd.f32 %v5639, %v5799
    %v5801 = vpop.f32.mrf.mxu0
    %v5802 = vpop.f32.mrf.mxu0
    %v5803 = vadd.f32 %v5642, %v5802
    %v5804 = vpop.f32.mrf.mxu0
    %5805 = vmatprep.mubr.bf16.mxu0 0
    %5806 = vmatmul.mubr.bf16.gmra.mxu0 %v361
    %v5807 = vpop.f32.mrf.mxu0
    %v5808 = vadd.f32 %v5647, %v5807
    %v5809 = vpop.f32.mrf.mxu0
    %v5810 = vpop.f32.mrf.mxu0
    %v5811 = vadd.f32 %v5650, %v5810
    %v5812 = vpop.f32.mrf.mxu0
    %5813 = vmatprep.mubr.bf16.mxu0 0
    %5814 = vmatmul.mubr.bf16.gmra.mxu0 %v368
    %v5815 = vpop.f32.mrf.mxu0
    %v5816 = vadd.f32 %v5655, %v5815
    %v5817 = vpop.f32.mrf.mxu0
    %v5818 = vpop.f32.mrf.mxu0
    %v5819 = vadd.f32 %v5658, %v5818
    %v5820 = vpop.f32.mrf.mxu0
    %5821 = vmatprep.mubr.bf16.mxu0 0
    %5822 = vmatmul.mubr.bf16.gmra.mxu0 %v375
    %v5823 = vpop.f32.mrf.mxu0
    %v5824 = vadd.f32 %v5663, %v5823
    %v5825 = vpop.f32.mrf.mxu0
    %v5826 = vpop.f32.mrf.mxu0
    %v5827 = vadd.f32 %v5666, %v5826
    %v5828 = vpop.f32.mrf.mxu0
    %5829 = vmatprep.mubr.bf16.mxu0 0
    %5830 = vmatmul.mubr.bf16.gmra.mxu0 %v382
    %v5831 = vpop.f32.mrf.mxu0
    %v5832 = vadd.f32 %v5671, %v5831
    %v5833 = vpop.f32.mrf.mxu0
    %v5834 = vpop.f32.mrf.mxu0
    %v5835 = vadd.f32 %v5674, %v5834
    %v5836 = vpop.f32.mrf.mxu0
    %5837 = vmatprep.mubr.bf16.mxu0 0
    %5838 = vmatmul.mubr.bf16.gmra.mxu0 %v389
    %v5839 = vpop.f32.mrf.mxu0
    %v5840 = vadd.f32 %v5679, %v5839
    %v5841 = vpop.f32.mrf.mxu0
    %v5842 = vpop.f32.mrf.mxu0
    %v5843 = vadd.f32 %v5682, %v5842
    %v5844 = vpop.f32.mrf.mxu0
    %5845 = vmatprep.mubr.bf16.mxu0 0
    %5846 = vmatmul.mubr.bf16.gmra.mxu0 %v396
    %v5847 = vpop.f32.mrf.mxu0
    %v5848 = vadd.f32 %v5687, %v5847
    %v5849 = vpop.f32.mrf.mxu0
    %v5850 = vpop.f32.mrf.mxu0
    %v5851 = vadd.f32 %v5690, %v5850
    %v5852 = vpop.f32.mrf.mxu0
    %5853 = vmatprep.mubr.bf16.mxu0 0
    %5854 = vmatmul.mubr.bf16.gmra.mxu0 %v403
    %v5855 = vpop.f32.mrf.mxu0
    %v5856 = vadd.f32 %v5695, %v5855
    %v5857 = vpop.f32.mrf.mxu0
    %v5858 = vpop.f32.mrf.mxu0
    %v5859 = vadd.f32 %v5698, %v5858
    %v5860 = vpop.f32.mrf.mxu0
    %5861 = vmatprep.mubr.bf16.mxu0 0
    %5862 = vmatmul.mubr.bf16.gmra.mxu0 %v410
    %v5863 = vpop.f32.mrf.mxu0
    %v5864 = vadd.f32 %v5703, %v5863
    %v5865 = vpop.f32.mrf.mxu0
    %v5866 = vpop.f32.mrf.mxu0
    %v5867 = vadd.f32 %v5706, %v5866
    %v5868 = vpop.f32.mrf.mxu0
    %5869 = vmatprep.mubr.bf16.mxu0 0
    %5870 = vmatmul.mubr.bf16.gmra.mxu0 %v417
    %v5871 = vpop.f32.mrf.mxu0
    %v5872 = vadd.f32 %v5711, %v5871
    %v5873 = vpop.f32.mrf.mxu0
    %v5874 = vpop.f32.mrf.mxu0
    %v5875 = vadd.f32 %v5714, %v5874
    %v5876 = vpop.f32.mrf.mxu0
    %5877 = vmatprep.mubr.bf16.mxu0 0
    %5878 = vmatmul.mubr.bf16.gmra.mxu0 %v424
    %v5879 = vpop.f32.mrf.mxu0
    %v5880 = vadd.f32 %v5719, %v5879
    %v5881 = vpop.f32.mrf.mxu0
    %v5882 = vpop.f32.mrf.mxu0
    %v5883 = vadd.f32 %v5722, %v5882
    %v5884 = vpop.f32.mrf.mxu0
    %5885 = vdwg.mxu0
    %v5886 = vld [vmem:[#allocation8] sm:$0xff]
    %v5887 = vld [vmem:[#allocation8 + $0x8] sm:$0xff]
    %v5888 = vld [vmem:[#allocation8 + $0x10] sm:$0xff]
    %v5889 = vld [vmem:[#allocation8 + $0x18] sm:$0xf]
    %v5890 = vld [vmem:[#allocation8 + $0x1c] sm:$0xff]
    %v5891 = vld [vmem:[#allocation8 + $0x24] sm:$0xff]
    %v5892 = vld [vmem:[#allocation8 + $0x2c] sm:$0xff]
    %v5893 = vld [vmem:[#allocation8 + $0x34] sm:$0xf]
    %v5894 = vld [vmem:[#allocation8 + $0x38] sm:$0xff]
    %v5895 = vld [vmem:[#allocation8 + $0x40] sm:$0xff]
    %v5896 = vld [vmem:[#allocation8 + $0x48] sm:$0xff]
    %v5897 = vld [vmem:[#allocation8 + $0x50] sm:$0xf]
    %v5898 = vld [vmem:[#allocation8 + $0x54] sm:$0xff]
    %v5899 = vld [vmem:[#allocation8 + $0x5c] sm:$0xff]
    %v5900 = vld [vmem:[#allocation8 + $0x64] sm:$0xff]
    %v5901 = vld [vmem:[#allocation8 + $0x6c] sm:$0xf]
    %v5902 = vld [vmem:[#allocation8 + $0x70] sm:$0xff]
    %v5903 = vld [vmem:[#allocation8 + $0x78] sm:$0xff]
    %v5904 = vld [vmem:[#allocation8 + $0x80] sm:$0xff]
    %v5905 = vld [vmem:[#allocation8 + $0x88] sm:$0xf]
    %v5906 = vld [vmem:[#allocation8 + $0x8c] sm:$0xff]
    %v5907 = vld [vmem:[#allocation8 + $0x94] sm:$0xff]
    %v5908 = vld [vmem:[#allocation8 + $0x9c] sm:$0xff]
    %v5909 = vld [vmem:[#allocation8 + $0xa4] sm:$0xf]
    %v5910 = vld [vmem:[#allocation8 + $0xa8] sm:$0xff]
    %v5911 = vld [vmem:[#allocation8 + $0xb0] sm:$0xff]
    %v5912 = vld [vmem:[#allocation8 + $0xb8] sm:$0xff]
    %v5913 = vld [vmem:[#allocation8 + $0xc0] sm:$0xf]
    %v5914 = vld [vmem:[#allocation8 + $0xc4] sm:$0xff]
    %v5915 = vld [vmem:[#allocation8 + $0xcc] sm:$0xff]
    %v5916 = vld [vmem:[#allocation8 + $0xd4] sm:$0xff]
    %v5917 = vld [vmem:[#allocation8 + $0xdc] sm:$0xf]
    %v5918 = vld [vmem:[#allocation8 + $0xe0] sm:$0xff]
    %v5919 = vld [vmem:[#allocation8 + $0xe8] sm:$0xff]
    %v5920 = vld [vmem:[#allocation8 + $0xf0] sm:$0xff]
    %v5921 = vld [vmem:[#allocation8 + $0xf8] sm:$0xf]
    %v5922 = vld [vmem:[#allocation8 + $0xfc] sm:$0xff]
    %v5923 = vld [vmem:[#allocation8 + $0x104] sm:$0xff]
    %v5924 = vld [vmem:[#allocation8 + $0x10c] sm:$0xff]
    %v5925 = vld [vmem:[#allocation8 + $0x114] sm:$0xf]
    %v5926 = vld [vmem:[#allocation8 + $0x118] sm:$0xff]
    %v5927 = vld [vmem:[#allocation8 + $0x120] sm:$0xff]
    %v5928 = vld [vmem:[#allocation8 + $0x128] sm:$0xff]
    %v5929 = vld [vmem:[#allocation8 + $0x130] sm:$0xf]
    %v5930 = vld [vmem:[#allocation8 + $0x134] sm:$0xff]
    %v5931 = vld [vmem:[#allocation8 + $0x13c] sm:$0xff]
    %v5932 = vld [vmem:[#allocation8 + $0x144] sm:$0xff]
    %v5933 = vld [vmem:[#allocation8 + $0x14c] sm:$0xf]
    %v5934 = vld [vmem:[#allocation8 + $0x150] sm:$0xff]
    %v5935 = vld [vmem:[#allocation8 + $0x158] sm:$0xff]
    %v5936 = vld [vmem:[#allocation8 + $0x160] sm:$0xff]
    %v5937 = vld [vmem:[#allocation8 + $0x168] sm:$0xf]
    %v5938 = vld [vmem:[#allocation8 + $0x16c] sm:$0xff]
    %v5939 = vld [vmem:[#allocation8 + $0x174] sm:$0xff]
    %v5940 = vld [vmem:[#allocation8 + $0x17c] sm:$0xff]
    %v5941 = vld [vmem:[#allocation8 + $0x184] sm:$0xf]
    %v5942 = vld [vmem:[#allocation8 + $0x188] sm:$0xff]
    %v5943 = vld [vmem:[#allocation8 + $0x190] sm:$0xff]
    %v5944 = vld [vmem:[#allocation8 + $0x198] sm:$0xff]
    %v5945 = vld [vmem:[#allocation8 + $0x1a0] sm:$0xf]
    %v5946 = vld [vmem:[#allocation8 + $0x1a4] sm:$0xff]
    %v5947 = vld [vmem:[#allocation8 + $0x1ac] sm:$0xff]
    %v5948 = vld [vmem:[#allocation8 + $0x1b4] sm:$0xff]
    %v5949 = vld [vmem:[#allocation8 + $0x1bc] sm:$0xf]
    %v5950 = vld [vmem:[#allocation8 + $0x1c0] sm:$0xff]
    %v5951 = vld [vmem:[#allocation8 + $0x1c8] sm:$0xff]
    %v5952 = vld [vmem:[#allocation8 + $0x1d0] sm:$0xff]
    %v5953 = vld [vmem:[#allocation8 + $0x1d8] sm:$0xf]
    %v5954 = vld [vmem:[#allocation8 + $0x1dc] sm:$0xff]
    %v5955 = vld [vmem:[#allocation8 + $0x1e4] sm:$0xff]
    %v5956 = vld [vmem:[#allocation8 + $0x1ec] sm:$0xff]
    %v5957 = vld [vmem:[#allocation8 + $0x1f4] sm:$0xf]
    %v5958 = vld [vmem:[#allocation8 + $0x1f8] sm:$0xff]
    %v5959 = vld [vmem:[#allocation8 + $0x200] sm:$0xff]
    %v5960 = vld [vmem:[#allocation8 + $0x208] sm:$0xff]
    %v5961 = vld [vmem:[#allocation8 + $0x210] sm:$0xf]
    %v5962 = vld [vmem:[#allocation8 + $0x214] sm:$0xff]
    %v5963 = vld [vmem:[#allocation8 + $0x21c] sm:$0xff]
    %v5964 = vld [vmem:[#allocation8 + $0x224] sm:$0xff]
    %v5965 = vld [vmem:[#allocation8 + $0x22c] sm:$0xf]
    %v5966 = vld [vmem:[#allocation8 + $0x230] sm:$0xff]
    %v5967 = vld [vmem:[#allocation8 + $0x238] sm:$0xff]
    %v5968 = vld [vmem:[#allocation8 + $0x240] sm:$0xff]
    %v5969 = vld [vmem:[#allocation8 + $0x248] sm:$0xf]
    %v5970 = vld [vmem:[#allocation8 + $0x24c] sm:$0xff]
    %v5971 = vld [vmem:[#allocation8 + $0x254] sm:$0xff]
    %v5972 = vld [vmem:[#allocation8 + $0x25c] sm:$0xff]
    %v5973 = vld [vmem:[#allocation8 + $0x264] sm:$0xf]
    %v5974 = vld [vmem:[#allocation8 + $0x268] sm:$0xff]
    %v5975 = vld [vmem:[#allocation8 + $0x270] sm:$0xff]
    %v5976 = vld [vmem:[#allocation8 + $0x278] sm:$0xff]
    %v5977 = vld [vmem:[#allocation8 + $0x280] sm:$0xf]
    %v5978 = vld [vmem:[#allocation8 + $0x284] sm:$0xff]
    %v5979 = vld [vmem:[#allocation8 + $0x28c] sm:$0xff]
    %v5980 = vld [vmem:[#allocation8 + $0x294] sm:$0xff]
    %v5981 = vld [vmem:[#allocation8 + $0x29c] sm:$0xf]
    %v5982 = vld [vmem:[#allocation8 + $0x2a0] sm:$0xff]
    %v5983 = vld [vmem:[#allocation8 + $0x2a8] sm:$0xff]
    %v5984 = vld [vmem:[#allocation8 + $0x2b0] sm:$0xff]
    %v5985 = vld [vmem:[#allocation8 + $0x2b8] sm:$0xf]
    %v5986 = vld [vmem:[#allocation8 + $0x2bc] sm:$0xff]
    %v5987 = vld [vmem:[#allocation8 + $0x2c4] sm:$0xff]
    %v5988 = vld [vmem:[#allocation8 + $0x2cc] sm:$0xff]
    %v5989 = vld [vmem:[#allocation8 + $0x2d4] sm:$0xf]
    %v5990 = vld [vmem:[#allocation8 + $0x2d8] sm:$0xff]
    %v5991 = vld [vmem:[#allocation8 + $0x2e0] sm:$0xff]
    %v5992 = vld [vmem:[#allocation8 + $0x2e8] sm:$0xff]
    %v5993 = vld [vmem:[#allocation8 + $0x2f0] sm:$0xf]
    %v5994 = vld [vmem:[#allocation8 + $0x2f4] sm:$0xff]
    %v5995 = vld [vmem:[#allocation8 + $0x2fc] sm:$0xff]
    %v5996 = vld [vmem:[#allocation8 + $0x304] sm:$0xff]
    %v5997 = vld [vmem:[#allocation8 + $0x30c] sm:$0xf]
    %v5998 = vld [vmem:[#allocation8 + $0x310] sm:$0xff]
    %v5999 = vld [vmem:[#allocation8 + $0x318] sm:$0xff]
    %v6000 = vld [vmem:[#allocation8 + $0x320] sm:$0xff]
    %v6001 = vld [vmem:[#allocation8 + $0x328] sm:$0xf]
    %v6002 = vld [vmem:[#allocation8 + $0x32c] sm:$0xff]
    %v6003 = vld [vmem:[#allocation8 + $0x334] sm:$0xff]
    %v6004 = vld [vmem:[#allocation8 + $0x33c] sm:$0xff]
    %v6005 = vld [vmem:[#allocation8 + $0x344] sm:$0xf]
    %v6006 = vld [vmem:[#allocation8 + $0x348] sm:$0xff]
    %v6007 = vld [vmem:[#allocation8 + $0x350] sm:$0xff]
    %v6008 = vld [vmem:[#allocation8 + $0x358] sm:$0xff]
    %v6009 = vld [vmem:[#allocation8 + $0x360] sm:$0xf]
    %v6010 = vld [vmem:[#allocation8 + $0x364] sm:$0xff]
    %v6011 = vld [vmem:[#allocation8 + $0x36c] sm:$0xff]
    %v6012 = vld [vmem:[#allocation8 + $0x374] sm:$0xff]
    %v6013 = vld [vmem:[#allocation8 + $0x37c] sm:$0xf]
    %v6014 = vld [vmem:[#allocation8 + $0x380] sm:$0xff]
    %v6015 = vld [vmem:[#allocation8 + $0x388] sm:$0xff]
    %v6016 = vld [vmem:[#allocation8 + $0x390] sm:$0xff]
    %v6017 = vld [vmem:[#allocation8 + $0x398] sm:$0xf]
    %v6018 = vld [vmem:[#allocation8 + $0x39c] sm:$0xff]
    %v6019 = vld [vmem:[#allocation8 + $0x3a4] sm:$0xff]
    %v6020 = vld [vmem:[#allocation8 + $0x3ac] sm:$0xff]
    %v6021 = vld [vmem:[#allocation8 + $0x3b4] sm:$0xf]
    %v6022 = vld [vmem:[#allocation8 + $0x3b8] sm:$0xff]
    %v6023 = vld [vmem:[#allocation8 + $0x3c0] sm:$0xff]
    %v6024 = vld [vmem:[#allocation8 + $0x3c8] sm:$0xff]
    %v6025 = vld [vmem:[#allocation8 + $0x3d0] sm:$0xf]
    %v6026 = vld [vmem:[#allocation8 + $0x3d4] sm:$0xff]
    %v6027 = vld [vmem:[#allocation8 + $0x3dc] sm:$0xff]
    %v6028 = vld [vmem:[#allocation8 + $0x3e4] sm:$0xff]
    %v6029 = vld [vmem:[#allocation8 + $0x3ec] sm:$0xf]
    %v6030 = vld [vmem:[#allocation8 + $0x3f0] sm:$0xff]
    %v6031 = vld [vmem:[#allocation8 + $0x3f8] sm:$0xff]
    %v6032 = vld [vmem:[#allocation8 + $0x400] sm:$0xff]
    %v6033 = vld [vmem:[#allocation8 + $0x408] sm:$0xf]
    %v6034 = vld [vmem:[#allocation8 + $0x40c] sm:$0xff]
    %v6035 = vld [vmem:[#allocation8 + $0x414] sm:$0xff]
    %v6036 = vld [vmem:[#allocation8 + $0x41c] sm:$0xff]
    %v6037 = vld [vmem:[#allocation8 + $0x424] sm:$0xf]
    %v6038 = vld [vmem:[#allocation8 + $0x428] sm:$0xff]
    %v6039 = vld [vmem:[#allocation8 + $0x430] sm:$0xff]
    %v6040 = vld [vmem:[#allocation8 + $0x438] sm:$0xff]
    %v6041 = vld [vmem:[#allocation8 + $0x440] sm:$0xf]
    %v6042 = vld [vmem:[#allocation8 + $0x444] sm:$0xff]
    %v6043 = vld [vmem:[#allocation8 + $0x44c] sm:$0xff]
    %v6044 = vld [vmem:[#allocation8 + $0x454] sm:$0xff]
    %v6045 = vld [vmem:[#allocation8 + $0x45c] sm:$0xf]
    %v6046 = vld [vmem:[#allocation8 + $0x460] sm:$0xff]
    %v6047 = vld [vmem:[#allocation8 + $0x468] sm:$0xff]
    %v6048 = vld [vmem:[#allocation8 + $0x470] sm:$0xff]
    %v6049 = vld [vmem:[#allocation8 + $0x478] sm:$0xf]
    %v6050 = vld [vmem:[#allocation8 + $0x47c] sm:$0xff]
    %v6051 = vld [vmem:[#allocation8 + $0x484] sm:$0xff]
    %v6052 = vld [vmem:[#allocation8 + $0x48c] sm:$0xff]
    %v6053 = vld [vmem:[#allocation8 + $0x494] sm:$0xf]
    %v6054 = vld [vmem:[#allocation8 + $0x498] sm:$0xff]
    %v6055 = vld [vmem:[#allocation8 + $0x4a0] sm:$0xff]
    %v6056 = vld [vmem:[#allocation8 + $0x4a8] sm:$0xff]
    %v6057 = vld [vmem:[#allocation8 + $0x4b0] sm:$0xf]
    %v6058 = vld [vmem:[#allocation8 + $0x4b4] sm:$0xff]
    %v6059 = vld [vmem:[#allocation8 + $0x4bc] sm:$0xff]
    %v6060 = vld [vmem:[#allocation8 + $0x4c4] sm:$0xff]
    %v6061 = vld [vmem:[#allocation8 + $0x4cc] sm:$0xf]
    %v6062 = vld [vmem:[#allocation8 + $0x4d0] sm:$0xff]
    %v6063 = vld [vmem:[#allocation8 + $0x4d8] sm:$0xff]
    %v6064 = vld [vmem:[#allocation8 + $0x4e0] sm:$0xff]
    %v6065 = vld [vmem:[#allocation8 + $0x4e8] sm:$0xf]
    %v6066 = vld [vmem:[#allocation8 + $0x4ec] sm:$0xff]
    %v6067 = vld [vmem:[#allocation8 + $0x4f4] sm:$0xff]
    %v6068 = vld [vmem:[#allocation8 + $0x4fc] sm:$0xff]
    %v6069 = vld [vmem:[#allocation8 + $0x504] sm:$0xf]
    %v6070 = vld [vmem:[#allocation8 + $0x508] sm:$0xff]
    %v6071 = vld [vmem:[#allocation8 + $0x510] sm:$0xff]
    %v6072 = vld [vmem:[#allocation8 + $0x518] sm:$0xff]
    %v6073 = vld [vmem:[#allocation8 + $0x520] sm:$0xf]
    %v6074 = vld [vmem:[#allocation8 + $0x524] sm:$0xff]
    %v6075 = vld [vmem:[#allocation8 + $0x52c] sm:$0xff]
    %v6076 = vld [vmem:[#allocation8 + $0x534] sm:$0xff]
    %v6077 = vld [vmem:[#allocation8 + $0x53c] sm:$0xf]
    %v6078 = vld [vmem:[#allocation8 + $0x540] sm:$0xff]
    %v6079 = vld [vmem:[#allocation8 + $0x548] sm:$0xff]
    %v6080 = vld [vmem:[#allocation8 + $0x550] sm:$0xff]
    %v6081 = vld [vmem:[#allocation8 + $0x558] sm:$0xf]
    %v6082 = vld [vmem:[#allocation8 + $0x55c] sm:$0xff]
    %v6083 = vld [vmem:[#allocation8 + $0x564] sm:$0xff]
    %v6084 = vld [vmem:[#allocation8 + $0x56c] sm:$0xff]
    %v6085 = vld [vmem:[#allocation8 + $0x574] sm:$0xf]
    %v6086 = vld [vmem:[#allocation8 + $0x578] sm:$0xff]
    %v6087 = vld [vmem:[#allocation8 + $0x580] sm:$0xff]
    %v6088 = vld [vmem:[#allocation8 + $0x588] sm:$0xff]
    %v6089 = vld [vmem:[#allocation8 + $0x590] sm:$0xf]
    %v6090 = vld [vmem:[#allocation8 + $0x594] sm:$0xff]
    %v6091 = vld [vmem:[#allocation8 + $0x59c] sm:$0xff]
    %v6092 = vld [vmem:[#allocation8 + $0x5a4] sm:$0xff]
    %v6093 = vld [vmem:[#allocation8 + $0x5ac] sm:$0xf]
    %v6094 = vld [vmem:[#allocation8 + $0x5b0] sm:$0xff]
    %v6095 = vld [vmem:[#allocation8 + $0x5b8] sm:$0xff]
    %v6096 = vld [vmem:[#allocation8 + $0x5c0] sm:$0xff]
    %v6097 = vld [vmem:[#allocation8 + $0x5c8] sm:$0xf]
    %v6098 = vld [vmem:[#allocation8 + $0x5cc] sm:$0xff]
    %v6099 = vld [vmem:[#allocation8 + $0x5d4] sm:$0xff]
    %v6100 = vld [vmem:[#allocation8 + $0x5dc] sm:$0xff]
    %v6101 = vld [vmem:[#allocation8 + $0x5e4] sm:$0xf]
    %v6102 = vld [vmem:[#allocation8 + $0x5e8] sm:$0xff]
    %v6103 = vld [vmem:[#allocation8 + $0x5f0] sm:$0xff]
    %v6104 = vld [vmem:[#allocation8 + $0x5f8] sm:$0xff]
    %v6105 = vld [vmem:[#allocation8 + $0x600] sm:$0xf]
    %v6106 = vld [vmem:[#allocation8 + $0x604] sm:$0xff]
    %v6107 = vld [vmem:[#allocation8 + $0x60c] sm:$0xff]
    %v6108 = vld [vmem:[#allocation8 + $0x614] sm:$0xff]
    %v6109 = vld [vmem:[#allocation8 + $0x61c] sm:$0xf]
    %v6110 = vld [vmem:[#allocation8 + $0x620] sm:$0xff]
    %v6111 = vld [vmem:[#allocation8 + $0x628] sm:$0xff]
    %v6112 = vld [vmem:[#allocation8 + $0x630] sm:$0xff]
    %v6113 = vld [vmem:[#allocation8 + $0x638] sm:$0xf]
    %v6114 = vld [vmem:[#allocation8 + $0x63c] sm:$0xff]
    %v6115 = vld [vmem:[#allocation8 + $0x644] sm:$0xff]
    %v6116 = vld [vmem:[#allocation8 + $0x64c] sm:$0xff]
    %v6117 = vld [vmem:[#allocation8 + $0x654] sm:$0xf]
    %v6118 = vld [vmem:[#allocation8 + $0x658] sm:$0xff]
    %v6119 = vld [vmem:[#allocation8 + $0x660] sm:$0xff]
    %v6120 = vld [vmem:[#allocation8 + $0x668] sm:$0xff]
    %v6121 = vld [vmem:[#allocation8 + $0x670] sm:$0xf]
    %v6122 = vld [vmem:[#allocation8 + $0x674] sm:$0xff]
    %v6123 = vld [vmem:[#allocation8 + $0x67c] sm:$0xff]
    %v6124 = vld [vmem:[#allocation8 + $0x684] sm:$0xff]
    %v6125 = vld [vmem:[#allocation8 + $0x68c] sm:$0xf]
    %v6126 = vld [vmem:[#allocation8 + $0x690] sm:$0xff]
    %v6127 = vld [vmem:[#allocation8 + $0x698] sm:$0xff]
    %v6128 = vld [vmem:[#allocation8 + $0x6a0] sm:$0xff]
    %v6129 = vld [vmem:[#allocation8 + $0x6a8] sm:$0xf]
    %v6130 = vld [vmem:[#allocation8 + $0x6ac] sm:$0xff]
    %v6131 = vld [vmem:[#allocation8 + $0x6b4] sm:$0xff]
    %v6132 = vld [vmem:[#allocation8 + $0x6bc] sm:$0xff]
    %v6133 = vld [vmem:[#allocation8 + $0x6c4] sm:$0xf]
    %v6134 = vld [vmem:[#allocation8 + $0x6c8] sm:$0xff]
    %v6135 = vld [vmem:[#allocation8 + $0x6d0] sm:$0xff]
    %v6136 = vld [vmem:[#allocation8 + $0x6d8] sm:$0xff]
    %v6137 = vld [vmem:[#allocation8 + $0x6e0] sm:$0xf]
    %v6138 = vld [vmem:[#allocation8 + $0x6e4] sm:$0xff]
    %v6139 = vld [vmem:[#allocation8 + $0x6ec] sm:$0xff]
    %v6140 = vld [vmem:[#allocation8 + $0x6f4] sm:$0xff]
    %v6141 = vld [vmem:[#allocation8 + $0x6fc] sm:$0xf]
    %v6142 = vld [vmem:[#allocation8 + $0x700] sm:$0xff]
    %v6143 = vld [vmem:[#allocation8 + $0x708] sm:$0xff]
    %v6144 = vld [vmem:[#allocation8 + $0x710] sm:$0xff]
    %v6145 = vld [vmem:[#allocation8 + $0x718] sm:$0xf]
    %v6146 = vld [vmem:[#allocation8 + $0x71c] sm:$0xff]
    %v6147 = vld [vmem:[#allocation8 + $0x724] sm:$0xff]
    %v6148 = vld [vmem:[#allocation8 + $0x72c] sm:$0xff]
    %v6149 = vld [vmem:[#allocation8 + $0x734] sm:$0xf]
    %v6150 = vld [vmem:[#allocation8 + $0x738] sm:$0xff]
    %v6151 = vld [vmem:[#allocation8 + $0x740] sm:$0xff]
    %v6152 = vld [vmem:[#allocation8 + $0x748] sm:$0xff]
    %v6153 = vld [vmem:[#allocation8 + $0x750] sm:$0xf]
    %v6154 = vld [vmem:[#allocation8 + $0x754] sm:$0xff]
    %v6155 = vld [vmem:[#allocation8 + $0x75c] sm:$0xff]
    %v6156 = vld [vmem:[#allocation8 + $0x764] sm:$0xff]
    %v6157 = vld [vmem:[#allocation8 + $0x76c] sm:$0xf]
    %v6158 = vld [vmem:[#allocation8 + $0x770] sm:$0xff]
    %v6159 = vld [vmem:[#allocation8 + $0x778] sm:$0xff]
    %v6160 = vld [vmem:[#allocation8 + $0x780] sm:$0xff]
    %v6161 = vld [vmem:[#allocation8 + $0x788] sm:$0xf]
    %v6162 = vld [vmem:[#allocation8 + $0x78c] sm:$0xff]
    %v6163 = vld [vmem:[#allocation8 + $0x794] sm:$0xff]
    %v6164 = vld [vmem:[#allocation8 + $0x79c] sm:$0xff]
    %v6165 = vld [vmem:[#allocation8 + $0x7a4] sm:$0xf]
    %v6166 = vld [vmem:[#allocation8 + $0x7a8] sm:$0xff]
    %v6167 = vld [vmem:[#allocation8 + $0x7b0] sm:$0xff]
    %v6168 = vld [vmem:[#allocation8 + $0x7b8] sm:$0xff]
    %v6169 = vld [vmem:[#allocation8 + $0x7c0] sm:$0xf]
    %v6170 = vld [vmem:[#allocation8 + $0x7c4] sm:$0xff]
    %v6171 = vld [vmem:[#allocation8 + $0x7cc] sm:$0xff]
    %v6172 = vld [vmem:[#allocation8 + $0x7d4] sm:$0xff]
    %v6173 = vld [vmem:[#allocation8 + $0x7dc] sm:$0xf]
    %v6174 = vld [vmem:[#allocation8 + $0x7e0] sm:$0xff]
    %v6175 = vld [vmem:[#allocation8 + $0x7e8] sm:$0xff]
    %v6176 = vld [vmem:[#allocation8 + $0x7f0] sm:$0xff]
    %v6177 = vld [vmem:[#allocation8 + $0x7f8] sm:$0xf]
    %v6178 = vld [vmem:[#allocation8 + $0x7fc] sm:$0xff]
    %v6179 = vld [vmem:[#allocation8 + $0x804] sm:$0xff]
    %v6180 = vld [vmem:[#allocation8 + $0x80c] sm:$0xff]
    %v6181 = vld [vmem:[#allocation8 + $0x814] sm:$0xf]
    %v6182 = vld [vmem:[#allocation8 + $0x818] sm:$0xff]
    %v6183 = vld [vmem:[#allocation8 + $0x820] sm:$0xff]
    %v6184 = vld [vmem:[#allocation8 + $0x828] sm:$0xff]
    %v6185 = vld [vmem:[#allocation8 + $0x830] sm:$0xf]
    %v6186 = vld [vmem:[#allocation8 + $0x834] sm:$0xff]
    %v6187 = vld [vmem:[#allocation8 + $0x83c] sm:$0xff]
    %v6188 = vld [vmem:[#allocation8 + $0x844] sm:$0xff]
    %v6189 = vld [vmem:[#allocation8 + $0x84c] sm:$0xf]
    %v6190 = vld [vmem:[#allocation8 + $0x850] sm:$0xff]
    %v6191 = vld [vmem:[#allocation8 + $0x858] sm:$0xff]
    %v6192 = vld [vmem:[#allocation8 + $0x860] sm:$0xff]
    %v6193 = vld [vmem:[#allocation8 + $0x868] sm:$0xf]
    %v6194 = vld [vmem:[#allocation8 + $0x86c] sm:$0xff]
    %v6195 = vld [vmem:[#allocation8 + $0x874] sm:$0xff]
    %v6196 = vld [vmem:[#allocation8 + $0x87c] sm:$0xff]
    %v6197 = vld [vmem:[#allocation8 + $0x884] sm:$0xf]
    %v6198 = vld [vmem:[#allocation8 + $0x888] sm:$0xff]
    %v6199 = vld [vmem:[#allocation8 + $0x890] sm:$0xff]
    %v6200 = vld [vmem:[#allocation8 + $0x898] sm:$0xff]
    %v6201 = vld [vmem:[#allocation8 + $0x8a0] sm:$0xf]
    %v6202 = vld [vmem:[#allocation8 + $0x8a4] sm:$0xff]
    %v6203 = vld [vmem:[#allocation8 + $0x8ac] sm:$0xff]
    %v6204 = vld [vmem:[#allocation8 + $0x8b4] sm:$0xff]
    %v6205 = vld [vmem:[#allocation8 + $0x8bc] sm:$0xf]
    %v6206 = vld [vmem:[#allocation8 + $0x8c0] sm:$0xff]
    %v6207 = vld [vmem:[#allocation8 + $0x8c8] sm:$0xff]
    %v6208 = vld [vmem:[#allocation8 + $0x8d0] sm:$0xff]
    %v6209 = vld [vmem:[#allocation8 + $0x8d8] sm:$0xf]
    %v6210 = vld [vmem:[#allocation8 + $0x8dc] sm:$0xff]
    %v6211 = vld [vmem:[#allocation8 + $0x8e4] sm:$0xff]
    %v6212 = vld [vmem:[#allocation8 + $0x8ec] sm:$0xff]
    %v6213 = vld [vmem:[#allocation8 + $0x8f4] sm:$0xf]
    %v6214 = vld [vmem:[#allocation8 + $0x8f8] sm:$0xff]
    %v6215 = vld [vmem:[#allocation8 + $0x900] sm:$0xff]
    %v6216 = vld [vmem:[#allocation8 + $0x908] sm:$0xff]
    %v6217 = vld [vmem:[#allocation8 + $0x910] sm:$0xf]
    %v6218 = vld [vmem:[#allocation8 + $0x914] sm:$0xff]
    %v6219 = vld [vmem:[#allocation8 + $0x91c] sm:$0xff]
    %v6220 = vld [vmem:[#allocation8 + $0x924] sm:$0xff]
    %v6221 = vld [vmem:[#allocation8 + $0x92c] sm:$0xf]
    %v6222 = vld [vmem:[#allocation8 + $0x930] sm:$0xff]
    %v6223 = vld [vmem:[#allocation8 + $0x938] sm:$0xff]
    %v6224 = vld [vmem:[#allocation8 + $0x940] sm:$0xff]
    %v6225 = vld [vmem:[#allocation8 + $0x948] sm:$0xf]
    %v6226 = vld [vmem:[#allocation8 + $0x94c] sm:$0xff]
    %v6227 = vld [vmem:[#allocation8 + $0x954] sm:$0xff]
    %v6228 = vld [vmem:[#allocation8 + $0x95c] sm:$0xff]
    %v6229 = vld [vmem:[#allocation8 + $0x964] sm:$0xf]
    %v6230 = vld [vmem:[#allocation8 + $0x968] sm:$0xff]
    %v6231 = vld [vmem:[#allocation8 + $0x970] sm:$0xff]
    %v6232 = vld [vmem:[#allocation8 + $0x978] sm:$0xff]
    %v6233 = vld [vmem:[#allocation8 + $0x980] sm:$0xf]
    %v6234 = vld [vmem:[#allocation8 + $0x984] sm:$0xff]
    %v6235 = vld [vmem:[#allocation8 + $0x98c] sm:$0xff]
    %v6236 = vld [vmem:[#allocation8 + $0x994] sm:$0xff]
    %v6237 = vld [vmem:[#allocation8 + $0x99c] sm:$0xf]
    %v6238 = vld [vmem:[#allocation8 + $0x9a0] sm:$0xff]
    %v6239 = vld [vmem:[#allocation8 + $0x9a8] sm:$0xff]
    %v6240 = vld [vmem:[#allocation8 + $0x9b0] sm:$0xff]
    %v6241 = vld [vmem:[#allocation8 + $0x9b8] sm:$0xf]
    %v6242 = vld [vmem:[#allocation8 + $0x9bc] sm:$0xff]
    %v6243 = vld [vmem:[#allocation8 + $0x9c4] sm:$0xff]
    %v6244 = vld [vmem:[#allocation8 + $0x9cc] sm:$0xff]
    %v6245 = vld [vmem:[#allocation8 + $0x9d4] sm:$0xf]
    %v6246 = vld [vmem:[#allocation8 + $0x9d8] sm:$0xff]
    %v6247 = vld [vmem:[#allocation8 + $0x9e0] sm:$0xff]
    %v6248 = vld [vmem:[#allocation8 + $0x9e8] sm:$0xff]
    %v6249 = vld [vmem:[#allocation8 + $0x9f0] sm:$0xf]
    %v6250 = vld [vmem:[#allocation8 + $0x9f4] sm:$0xff]
    %v6251 = vld [vmem:[#allocation8 + $0x9fc] sm:$0xff]
    %v6252 = vld [vmem:[#allocation8 + $0xa04] sm:$0xff]
    %v6253 = vld [vmem:[#allocation8 + $0xa0c] sm:$0xf]
    %v6254 = vld [vmem:[#allocation8 + $0xa10] sm:$0xff]
    %v6255 = vld [vmem:[#allocation8 + $0xa18] sm:$0xff]
    %v6256 = vld [vmem:[#allocation8 + $0xa20] sm:$0xff]
    %v6257 = vld [vmem:[#allocation8 + $0xa28] sm:$0xf]
    %v6258 = vld [vmem:[#allocation8 + $0xa2c] sm:$0xff]
    %v6259 = vld [vmem:[#allocation8 + $0xa34] sm:$0xff]
    %v6260 = vld [vmem:[#allocation8 + $0xa3c] sm:$0xff]
    %v6261 = vld [vmem:[#allocation8 + $0xa44] sm:$0xf]
    %v6262 = vld [vmem:[#allocation8 + $0xa48] sm:$0xff]
    %v6263 = vld [vmem:[#allocation8 + $0xa50] sm:$0xff]
    %v6264 = vld [vmem:[#allocation8 + $0xa58] sm:$0xff]
    %v6265 = vld [vmem:[#allocation8 + $0xa60] sm:$0xf]
    %v6266 = vld [vmem:[#allocation8 + $0xa64] sm:$0xff]
    %v6267 = vld [vmem:[#allocation8 + $0xa6c] sm:$0xff]
    %v6268 = vld [vmem:[#allocation8 + $0xa74] sm:$0xff]
    %v6269 = vld [vmem:[#allocation8 + $0xa7c] sm:$0xf]
    %v6270 = vld [vmem:[#allocation8 + $0xa80] sm:$0xff]
    %v6271 = vld [vmem:[#allocation8 + $0xa88] sm:$0xff]
    %v6272 = vld [vmem:[#allocation8 + $0xa90] sm:$0xff]
    %v6273 = vld [vmem:[#allocation8 + $0xa98] sm:$0xf]
    %v6274 = vld [vmem:[#allocation8 + $0xa9c] sm:$0xff]
    %v6275 = vld [vmem:[#allocation8 + $0xaa4] sm:$0xff]
    %v6276 = vld [vmem:[#allocation8 + $0xaac] sm:$0xff]
    %v6277 = vld [vmem:[#allocation8 + $0xab4] sm:$0xf]
    %v6278 = vld [vmem:[#allocation8 + $0xab8] sm:$0xff]
    %v6279 = vld [vmem:[#allocation8 + $0xac0] sm:$0xff]
    %v6280 = vld [vmem:[#allocation8 + $0xac8] sm:$0xff]
    %v6281 = vld [vmem:[#allocation8 + $0xad0] sm:$0xf]
    %v6282 = vld [vmem:[#allocation8 + $0xad4] sm:$0xff]
    %v6283 = vld [vmem:[#allocation8 + $0xadc] sm:$0xff]
    %v6284 = vld [vmem:[#allocation8 + $0xae4] sm:$0xff]
    %v6285 = vld [vmem:[#allocation8 + $0xaec] sm:$0xf]
    %v6286 = vld [vmem:[#allocation8 + $0xaf0] sm:$0xff]
    %v6287 = vld [vmem:[#allocation8 + $0xaf8] sm:$0xff]
    %v6288 = vld [vmem:[#allocation8 + $0xb00] sm:$0xff]
    %v6289 = vld [vmem:[#allocation8 + $0xb08] sm:$0xf]
    %v6290 = vld [vmem:[#allocation8 + $0xb0c] sm:$0xff]
    %v6291 = vld [vmem:[#allocation8 + $0xb14] sm:$0xff]
    %v6292 = vld [vmem:[#allocation8 + $0xb1c] sm:$0xff]
    %v6293 = vld [vmem:[#allocation8 + $0xb24] sm:$0xf]
    %v6294 = vld [vmem:[#allocation8 + $0xb28] sm:$0xff]
    %v6295 = vld [vmem:[#allocation8 + $0xb30] sm:$0xff]
    %v6296 = vld [vmem:[#allocation8 + $0xb38] sm:$0xff]
    %v6297 = vld [vmem:[#allocation8 + $0xb40] sm:$0xf]
    %v6298 = vld [vmem:[#allocation8 + $0xb44] sm:$0xff]
    %v6299 = vld [vmem:[#allocation8 + $0xb4c] sm:$0xff]
    %v6300 = vld [vmem:[#allocation8 + $0xb54] sm:$0xff]
    %v6301 = vld [vmem:[#allocation8 + $0xb5c] sm:$0xf]
    %v6302 = vld [vmem:[#allocation8 + $0xb60] sm:$0xff]
    %v6303 = vld [vmem:[#allocation8 + $0xb68] sm:$0xff]
    %v6304 = vld [vmem:[#allocation8 + $0xb70] sm:$0xff]
    %v6305 = vld [vmem:[#allocation8 + $0xb78] sm:$0xf]
    %v6306 = vld [vmem:[#allocation8 + $0xb7c] sm:$0xff]
    %v6307 = vld [vmem:[#allocation8 + $0xb84] sm:$0xff]
    %v6308 = vld [vmem:[#allocation8 + $0xb8c] sm:$0xff]
    %v6309 = vld [vmem:[#allocation8 + $0xb94] sm:$0xf]
    %v6310 = vld [vmem:[#allocation8 + $0xb98] sm:$0xff]
    %v6311 = vld [vmem:[#allocation8 + $0xba0] sm:$0xff]
    %v6312 = vld [vmem:[#allocation8 + $0xba8] sm:$0xff]
    %v6313 = vld [vmem:[#allocation8 + $0xbb0] sm:$0xf]
    %v6314 = vld [vmem:[#allocation8 + $0xbb4] sm:$0xff]
    %v6315 = vld [vmem:[#allocation8 + $0xbbc] sm:$0xff]
    %v6316 = vld [vmem:[#allocation8 + $0xbc4] sm:$0xff]
    %v6317 = vld [vmem:[#allocation8 + $0xbcc] sm:$0xf]
    %v6318 = vld [vmem:[#allocation8 + $0xbd0] sm:$0xff]
    %v6319 = vld [vmem:[#allocation8 + $0xbd8] sm:$0xff]
    %v6320 = vld [vmem:[#allocation8 + $0xbe0] sm:$0xff]
    %v6321 = vld [vmem:[#allocation8 + $0xbe8] sm:$0xf]
    %v6322 = vld [vmem:[#allocation8 + $0xbec] sm:$0xff]
    %v6323 = vld [vmem:[#allocation8 + $0xbf4] sm:$0xff]
    %v6324 = vld [vmem:[#allocation8 + $0xbfc] sm:$0xff]
    %v6325 = vld [vmem:[#allocation8 + $0xc04] sm:$0xf]
    %v6326 = vld [vmem:[#allocation8 + $0xc08] sm:$0xff]
    %v6327 = vld [vmem:[#allocation8 + $0xc10] sm:$0xff]
    %v6328 = vld [vmem:[#allocation8 + $0xc18] sm:$0xff]
    %v6329 = vld [vmem:[#allocation8 + $0xc20] sm:$0xf]
    %v6330 = vld [vmem:[#allocation8 + $0xc24] sm:$0xff]
    %v6331 = vld [vmem:[#allocation8 + $0xc2c] sm:$0xff]
    %v6332 = vld [vmem:[#allocation8 + $0xc34] sm:$0xff]
    %v6333 = vld [vmem:[#allocation8 + $0xc3c] sm:$0xf]
    %v6334 = vld [vmem:[#allocation10] sm:$0xff]
    %v6336 = vlaneseq
    %v6337 = vshrl.u32 %v6336, 7
    %v6338 = vsub.s32 0, %v6337
    %v6339 = vrot.slane %v6334, %v6338
    %v6340 = vlaneseq
    %v6341 = vshrl.u32 %v6340, 7
    %v6342 = vsub.s32 1, %v6341
    %v6343 = vrot.slane %v6334, %v6342
    %v6344 = vlaneseq
    %v6345 = vshrl.u32 %v6344, 7
    %v6346 = vsub.s32 2, %v6345
    %v6347 = vrot.slane %v6334, %v6346
    %v6348 = vlaneseq
    %v6349 = vshrl.u32 %v6348, 7
    %v6350 = vsub.s32 3, %v6349
    %v6351 = vrot.slane %v6334, %v6350
    %v6352 = vlaneseq
    %v6353 = vshrl.u32 %v6352, 7
    %v6354 = vsub.s32 4, %v6353
    %v6355 = vrot.slane %v6334, %v6354
    %v6356 = vlaneseq
    %v6357 = vshrl.u32 %v6356, 7
    %v6358 = vsub.s32 5, %v6357
    %v6359 = vrot.slane %v6334, %v6358
    %v6360 = vlaneseq
    %v6361 = vshrl.u32 %v6360, 7
    %v6362 = vsub.s32 6, %v6361
    %v6363 = vrot.slane %v6334, %v6362
    %v6819 = vunpack.c.l.b16 %v5886
    %v6820 = vunpack.c.h.b16 %v5886
    %v6821 = vunpack.c.l.b16 %v5887
    %v6822 = vunpack.c.h.b16 %v5887
    %v6823 = vunpack.c.l.b16 %v5888
    %v6824 = vunpack.c.h.b16 %v5888
    %v6825 = vunpack.c.l.b16 %v5889
    %v6826 = vunpack.c.l.b16 %v5890
    %v6827 = vunpack.c.h.b16 %v5890
    %v6828 = vunpack.c.l.b16 %v5891
    %v6829 = vunpack.c.h.b16 %v5891
    %v6830 = vunpack.c.l.b16 %v5892
    %v6831 = vunpack.c.h.b16 %v5892
    %v6832 = vunpack.c.l.b16 %v5893
    %v6833 = vunpack.c.l.b16 %v5894
    %v6834 = vunpack.c.h.b16 %v5894
    %v6835 = vunpack.c.l.b16 %v5895
    %v6836 = vunpack.c.h.b16 %v5895
    %v6837 = vunpack.c.l.b16 %v5896
    %v6838 = vunpack.c.h.b16 %v5896
    %v6839 = vunpack.c.l.b16 %v5897
    %v6840 = vunpack.c.l.b16 %v5898
    %v6841 = vunpack.c.h.b16 %v5898
    %v6842 = vunpack.c.l.b16 %v5899
    %v6843 = vunpack.c.h.b16 %v5899
    %v6844 = vunpack.c.l.b16 %v5900
    %v6845 = vunpack.c.h.b16 %v5900
    %v6846 = vunpack.c.l.b16 %v5901
    %v6847 = vunpack.c.l.b16 %v5902
    %v6848 = vunpack.c.h.b16 %v5902
    %v6849 = vunpack.c.l.b16 %v5903
    %v6850 = vunpack.c.h.b16 %v5903
    %v6851 = vunpack.c.l.b16 %v5904
    %v6852 = vunpack.c.h.b16 %v5904
    %v6853 = vunpack.c.l.b16 %v5905
    %v6854 = vunpack.c.l.b16 %v5906
    %v6855 = vunpack.c.h.b16 %v5906
    %v6856 = vunpack.c.l.b16 %v5907
    %v6857 = vunpack.c.h.b16 %v5907
    %v6858 = vunpack.c.l.b16 %v5908
    %v6859 = vunpack.c.h.b16 %v5908
    %v6860 = vunpack.c.l.b16 %v5909
    %v6861 = vunpack.c.l.b16 %v5910
    %v6862 = vunpack.c.h.b16 %v5910
    %v6863 = vunpack.c.l.b16 %v5911
    %v6864 = vunpack.c.h.b16 %v5911
    %v6865 = vunpack.c.l.b16 %v5912
    %v6866 = vunpack.c.h.b16 %v5912
    %v6867 = vunpack.c.l.b16 %v5913
    %v6868 = vunpack.c.l.b16 %v5914
    %v6869 = vunpack.c.h.b16 %v5914
    %v6870 = vunpack.c.l.b16 %v5915
    %v6871 = vunpack.c.h.b16 %v5915
    %v6872 = vunpack.c.l.b16 %v5916
    %v6873 = vunpack.c.h.b16 %v5916
    %v6874 = vunpack.c.l.b16 %v5917
    %v6875 = vunpack.c.l.b16 %v5918
    %v6876 = vunpack.c.h.b16 %v5918
    %v6877 = vunpack.c.l.b16 %v5919
    %v6878 = vunpack.c.h.b16 %v5919
    %v6879 = vunpack.c.l.b16 %v5920
    %v6880 = vunpack.c.h.b16 %v5920
    %v6881 = vunpack.c.l.b16 %v5921
    %v6882 = vunpack.c.l.b16 %v5922
    %v6883 = vunpack.c.h.b16 %v5922
    %v6884 = vunpack.c.l.b16 %v5923
    %v6885 = vunpack.c.h.b16 %v5923
    %v6886 = vunpack.c.l.b16 %v5924
    %v6887 = vunpack.c.h.b16 %v5924
    %v6888 = vunpack.c.l.b16 %v5925
    %v6889 = vunpack.c.l.b16 %v5926
    %v6890 = vunpack.c.h.b16 %v5926
    %v6891 = vunpack.c.l.b16 %v5927
    %v6892 = vunpack.c.h.b16 %v5927
    %v6893 = vunpack.c.l.b16 %v5928
    %v6894 = vunpack.c.h.b16 %v5928
    %v6895 = vunpack.c.l.b16 %v5929
    %v6896 = vunpack.c.l.b16 %v5930
    %v6897 = vunpack.c.h.b16 %v5930
    %v6898 = vunpack.c.l.b16 %v5931
    %v6899 = vunpack.c.h.b16 %v5931
    %v6900 = vunpack.c.l.b16 %v5932
    %v6901 = vunpack.c.h.b16 %v5932
    %v6902 = vunpack.c.l.b16 %v5933
    %v6903 = vunpack.c.l.b16 %v5934
    %v6904 = vunpack.c.h.b16 %v5934
    %v6905 = vunpack.c.l.b16 %v5935
    %v6906 = vunpack.c.h.b16 %v5935
    %v6907 = vunpack.c.l.b16 %v5936
    %v6908 = vunpack.c.h.b16 %v5936
    %v6909 = vunpack.c.l.b16 %v5937
    %v6910 = vunpack.c.l.b16 %v5938
    %v6911 = vunpack.c.h.b16 %v5938
    %v6912 = vunpack.c.l.b16 %v5939
    %v6913 = vunpack.c.h.b16 %v5939
    %v6914 = vunpack.c.l.b16 %v5940
    %v6915 = vunpack.c.h.b16 %v5940
    %v6916 = vunpack.c.l.b16 %v5941
    %v6917 = vunpack.c.l.b16 %v5942
    %v6918 = vunpack.c.h.b16 %v5942
    %v6919 = vunpack.c.l.b16 %v5943
    %v6920 = vunpack.c.h.b16 %v5943
    %v6921 = vunpack.c.l.b16 %v5944
    %v6922 = vunpack.c.h.b16 %v5944
    %v6923 = vunpack.c.l.b16 %v5945
    %v6924 = vunpack.c.l.b16 %v5946
    %v6925 = vunpack.c.h.b16 %v5946
    %v6926 = vunpack.c.l.b16 %v5947
    %v6927 = vunpack.c.h.b16 %v5947
    %v6928 = vunpack.c.l.b16 %v5948
    %v6929 = vunpack.c.h.b16 %v5948
    %v6930 = vunpack.c.l.b16 %v5949
    %v6931 = vunpack.c.l.b16 %v5950
    %v6932 = vunpack.c.h.b16 %v5950
    %v6933 = vunpack.c.l.b16 %v5951
    %v6934 = vunpack.c.h.b16 %v5951
    %v6935 = vunpack.c.l.b16 %v5952
    %v6936 = vunpack.c.h.b16 %v5952
    %v6937 = vunpack.c.l.b16 %v5953
    %v6938 = vunpack.c.l.b16 %v5954
    %v6939 = vunpack.c.h.b16 %v5954
    %v6940 = vunpack.c.l.b16 %v5955
    %v6941 = vunpack.c.h.b16 %v5955
    %v6942 = vunpack.c.l.b16 %v5956
    %v6943 = vunpack.c.h.b16 %v5956
    %v6944 = vunpack.c.l.b16 %v5957
    %v6945 = vunpack.c.l.b16 %v5958
    %v6946 = vunpack.c.h.b16 %v5958
    %v6947 = vunpack.c.l.b16 %v5959
    %v6948 = vunpack.c.h.b16 %v5959
    %v6949 = vunpack.c.l.b16 %v5960
    %v6950 = vunpack.c.h.b16 %v5960
    %v6951 = vunpack.c.l.b16 %v5961
    %v6952 = vunpack.c.l.b16 %v5962
    %v6953 = vunpack.c.h.b16 %v5962
    %v6954 = vunpack.c.l.b16 %v5963
    %v6955 = vunpack.c.h.b16 %v5963
    %v6956 = vunpack.c.l.b16 %v5964
    %v6957 = vunpack.c.h.b16 %v5964
    %v6958 = vunpack.c.l.b16 %v5965
    %v6959 = vunpack.c.l.b16 %v5966
    %v6960 = vunpack.c.h.b16 %v5966
    %v6961 = vunpack.c.l.b16 %v5967
    %v6962 = vunpack.c.h.b16 %v5967
    %v6963 = vunpack.c.l.b16 %v5968
    %v6964 = vunpack.c.h.b16 %v5968
    %v6965 = vunpack.c.l.b16 %v5969
    %v6966 = vunpack.c.l.b16 %v5970
    %v6967 = vunpack.c.h.b16 %v5970
    %v6968 = vunpack.c.l.b16 %v5971
    %v6969 = vunpack.c.h.b16 %v5971
    %v6970 = vunpack.c.l.b16 %v5972
    %v6971 = vunpack.c.h.b16 %v5972
    %v6972 = vunpack.c.l.b16 %v5973
    %v6973 = vunpack.c.l.b16 %v5974
    %v6974 = vunpack.c.h.b16 %v5974
    %v6975 = vunpack.c.l.b16 %v5975
    %v6976 = vunpack.c.h.b16 %v5975
    %v6977 = vunpack.c.l.b16 %v5976
    %v6978 = vunpack.c.h.b16 %v5976
    %v6979 = vunpack.c.l.b16 %v5977
    %v6980 = vunpack.c.l.b16 %v5978
    %v6981 = vunpack.c.h.b16 %v5978
    %v6982 = vunpack.c.l.b16 %v5979
    %v6983 = vunpack.c.h.b16 %v5979
    %v6984 = vunpack.c.l.b16 %v5980
    %v6985 = vunpack.c.h.b16 %v5980
    %v6986 = vunpack.c.l.b16 %v5981
    %v6987 = vunpack.c.l.b16 %v5982
    %v6988 = vunpack.c.h.b16 %v5982
    %v6989 = vunpack.c.l.b16 %v5983
    %v6990 = vunpack.c.h.b16 %v5983
    %v6991 = vunpack.c.l.b16 %v5984
    %v6992 = vunpack.c.h.b16 %v5984
    %v6993 = vunpack.c.l.b16 %v5985
    %v6994 = vunpack.c.l.b16 %v5986
    %v6995 = vunpack.c.h.b16 %v5986
    %v6996 = vunpack.c.l.b16 %v5987
    %v6997 = vunpack.c.h.b16 %v5987
    %v6998 = vunpack.c.l.b16 %v5988
    %v6999 = vunpack.c.h.b16 %v5988
    %v7000 = vunpack.c.l.b16 %v5989
    %v7001 = vunpack.c.l.b16 %v5990
    %v7002 = vunpack.c.h.b16 %v5990
    %v7003 = vunpack.c.l.b16 %v5991
    %v7004 = vunpack.c.h.b16 %v5991
    %v7005 = vunpack.c.l.b16 %v5992
    %v7006 = vunpack.c.h.b16 %v5992
    %v7007 = vunpack.c.l.b16 %v5993
    %v7008 = vunpack.c.l.b16 %v5994
    %v7009 = vunpack.c.h.b16 %v5994
    %v7010 = vunpack.c.l.b16 %v5995
    %v7011 = vunpack.c.h.b16 %v5995
    %v7012 = vunpack.c.l.b16 %v5996
    %v7013 = vunpack.c.h.b16 %v5996
    %v7014 = vunpack.c.l.b16 %v5997
    %v7015 = vunpack.c.l.b16 %v5998
    %v7016 = vunpack.c.h.b16 %v5998
    %v7017 = vunpack.c.l.b16 %v5999
    %v7018 = vunpack.c.h.b16 %v5999
    %v7019 = vunpack.c.l.b16 %v6000
    %v7020 = vunpack.c.h.b16 %v6000
    %v7021 = vunpack.c.l.b16 %v6001
    %v7022 = vunpack.c.l.b16 %v6002
    %v7023 = vunpack.c.h.b16 %v6002
    %v7024 = vunpack.c.l.b16 %v6003
    %v7025 = vunpack.c.h.b16 %v6003
    %v7026 = vunpack.c.l.b16 %v6004
    %v7027 = vunpack.c.h.b16 %v6004
    %v7028 = vunpack.c.l.b16 %v6005
    %v7029 = vunpack.c.l.b16 %v6006
    %v7030 = vunpack.c.h.b16 %v6006
    %v7031 = vunpack.c.l.b16 %v6007
    %v7032 = vunpack.c.h.b16 %v6007
    %v7033 = vunpack.c.l.b16 %v6008
    %v7034 = vunpack.c.h.b16 %v6008
    %v7035 = vunpack.c.l.b16 %v6009
    %v7036 = vunpack.c.l.b16 %v6010
    %v7037 = vunpack.c.h.b16 %v6010
    %v7038 = vunpack.c.l.b16 %v6011
    %v7039 = vunpack.c.h.b16 %v6011
    %v7040 = vunpack.c.l.b16 %v6012
    %v7041 = vunpack.c.h.b16 %v6012
    %v7042 = vunpack.c.l.b16 %v6013
    %v7043 = vunpack.c.l.b16 %v6014
    %v7044 = vunpack.c.h.b16 %v6014
    %v7045 = vunpack.c.l.b16 %v6015
    %v7046 = vunpack.c.h.b16 %v6015
    %v7047 = vunpack.c.l.b16 %v6016
    %v7048 = vunpack.c.h.b16 %v6016
    %v7049 = vunpack.c.l.b16 %v6017
    %v7050 = vunpack.c.l.b16 %v6018
    %v7051 = vunpack.c.h.b16 %v6018
    %v7052 = vunpack.c.l.b16 %v6019
    %v7053 = vunpack.c.h.b16 %v6019
    %v7054 = vunpack.c.l.b16 %v6020
    %v7055 = vunpack.c.h.b16 %v6020
    %v7056 = vunpack.c.l.b16 %v6021
    %v7057 = vunpack.c.l.b16 %v6022
    %v7058 = vunpack.c.h.b16 %v6022
    %v7059 = vunpack.c.l.b16 %v6023
    %v7060 = vunpack.c.h.b16 %v6023
    %v7061 = vunpack.c.l.b16 %v6024
    %v7062 = vunpack.c.h.b16 %v6024
    %v7063 = vunpack.c.l.b16 %v6025
    %v7064 = vunpack.c.l.b16 %v6026
    %v7065 = vunpack.c.h.b16 %v6026
    %v7066 = vunpack.c.l.b16 %v6027
    %v7067 = vunpack.c.h.b16 %v6027
    %v7068 = vunpack.c.l.b16 %v6028
    %v7069 = vunpack.c.h.b16 %v6028
    %v7070 = vunpack.c.l.b16 %v6029
    %v7071 = vunpack.c.l.b16 %v6030
    %v7072 = vunpack.c.h.b16 %v6030
    %v7073 = vunpack.c.l.b16 %v6031
    %v7074 = vunpack.c.h.b16 %v6031
    %v7075 = vunpack.c.l.b16 %v6032
    %v7076 = vunpack.c.h.b16 %v6032
    %v7077 = vunpack.c.l.b16 %v6033
    %v7078 = vunpack.c.l.b16 %v6034
    %v7079 = vunpack.c.h.b16 %v6034
    %v7080 = vunpack.c.l.b16 %v6035
    %v7081 = vunpack.c.h.b16 %v6035
    %v7082 = vunpack.c.l.b16 %v6036
    %v7083 = vunpack.c.h.b16 %v6036
    %v7084 = vunpack.c.l.b16 %v6037
    %v7085 = vunpack.c.l.b16 %v6038
    %v7086 = vunpack.c.h.b16 %v6038
    %v7087 = vunpack.c.l.b16 %v6039
    %v7088 = vunpack.c.h.b16 %v6039
    %v7089 = vunpack.c.l.b16 %v6040
    %v7090 = vunpack.c.h.b16 %v6040
    %v7091 = vunpack.c.l.b16 %v6041
    %v7092 = vunpack.c.l.b16 %v6042
    %v7093 = vunpack.c.h.b16 %v6042
    %v7094 = vunpack.c.l.b16 %v6043
    %v7095 = vunpack.c.h.b16 %v6043
    %v7096 = vunpack.c.l.b16 %v6044
    %v7097 = vunpack.c.h.b16 %v6044
    %v7098 = vunpack.c.l.b16 %v6045
    %v7099 = vunpack.c.l.b16 %v6046
    %v7100 = vunpack.c.h.b16 %v6046
    %v7101 = vunpack.c.l.b16 %v6047
    %v7102 = vunpack.c.h.b16 %v6047
    %v7103 = vunpack.c.l.b16 %v6048
    %v7104 = vunpack.c.h.b16 %v6048
    %v7105 = vunpack.c.l.b16 %v6049
    %v7106 = vunpack.c.l.b16 %v6050
    %v7107 = vunpack.c.h.b16 %v6050
    %v7108 = vunpack.c.l.b16 %v6051
    %v7109 = vunpack.c.h.b16 %v6051
    %v7110 = vunpack.c.l.b16 %v6052
    %v7111 = vunpack.c.h.b16 %v6052
    %v7112 = vunpack.c.l.b16 %v6053
    %v7113 = vunpack.c.l.b16 %v6054
    %v7114 = vunpack.c.h.b16 %v6054
    %v7115 = vunpack.c.l.b16 %v6055
    %v7116 = vunpack.c.h.b16 %v6055
    %v7117 = vunpack.c.l.b16 %v6056
    %v7118 = vunpack.c.h.b16 %v6056
    %v7119 = vunpack.c.l.b16 %v6057
    %v7120 = vunpack.c.l.b16 %v6058
    %v7121 = vunpack.c.h.b16 %v6058
    %v7122 = vunpack.c.l.b16 %v6059
    %v7123 = vunpack.c.h.b16 %v6059
    %v7124 = vunpack.c.l.b16 %v6060
    %v7125 = vunpack.c.h.b16 %v6060
    %v7126 = vunpack.c.l.b16 %v6061
    %v7127 = vunpack.c.l.b16 %v6062
    %v7128 = vunpack.c.h.b16 %v6062
    %v7129 = vunpack.c.l.b16 %v6063
    %v7130 = vunpack.c.h.b16 %v6063
    %v7131 = vunpack.c.l.b16 %v6064
    %v7132 = vunpack.c.h.b16 %v6064
    %v7133 = vunpack.c.l.b16 %v6065
    %v7134 = vunpack.c.l.b16 %v6066
    %v7135 = vunpack.c.h.b16 %v6066
    %v7136 = vunpack.c.l.b16 %v6067
    %v7137 = vunpack.c.h.b16 %v6067
    %v7138 = vunpack.c.l.b16 %v6068
    %v7139 = vunpack.c.h.b16 %v6068
    %v7140 = vunpack.c.l.b16 %v6069
    %v7141 = vunpack.c.l.b16 %v6070
    %v7142 = vunpack.c.h.b16 %v6070
    %v7143 = vunpack.c.l.b16 %v6071
    %v7144 = vunpack.c.h.b16 %v6071
    %v7145 = vunpack.c.l.b16 %v6072
    %v7146 = vunpack.c.h.b16 %v6072
    %v7147 = vunpack.c.l.b16 %v6073
    %v7148 = vunpack.c.l.b16 %v6074
    %v7149 = vunpack.c.h.b16 %v6074
    %v7150 = vunpack.c.l.b16 %v6075
    %v7151 = vunpack.c.h.b16 %v6075
    %v7152 = vunpack.c.l.b16 %v6076
    %v7153 = vunpack.c.h.b16 %v6076
    %v7154 = vunpack.c.l.b16 %v6077
    %v7155 = vunpack.c.l.b16 %v6078
    %v7156 = vunpack.c.h.b16 %v6078
    %v7157 = vunpack.c.l.b16 %v6079
    %v7158 = vunpack.c.h.b16 %v6079
    %v7159 = vunpack.c.l.b16 %v6080
    %v7160 = vunpack.c.h.b16 %v6080
    %v7161 = vunpack.c.l.b16 %v6081
    %v7162 = vunpack.c.l.b16 %v6082
    %v7163 = vunpack.c.h.b16 %v6082
    %v7164 = vunpack.c.l.b16 %v6083
    %v7165 = vunpack.c.h.b16 %v6083
    %v7166 = vunpack.c.l.b16 %v6084
    %v7167 = vunpack.c.h.b16 %v6084
    %v7168 = vunpack.c.l.b16 %v6085
    %v7169 = vunpack.c.l.b16 %v6086
    %v7170 = vunpack.c.h.b16 %v6086
    %v7171 = vunpack.c.l.b16 %v6087
    %v7172 = vunpack.c.h.b16 %v6087
    %v7173 = vunpack.c.l.b16 %v6088
    %v7174 = vunpack.c.h.b16 %v6088
    %v7175 = vunpack.c.l.b16 %v6089
    %v7176 = vunpack.c.l.b16 %v6090
    %v7177 = vunpack.c.h.b16 %v6090
    %v7178 = vunpack.c.l.b16 %v6091
    %v7179 = vunpack.c.h.b16 %v6091
    %v7180 = vunpack.c.l.b16 %v6092
    %v7181 = vunpack.c.h.b16 %v6092
    %v7182 = vunpack.c.l.b16 %v6093
    %v7183 = vunpack.c.l.b16 %v6094
    %v7184 = vunpack.c.h.b16 %v6094
    %v7185 = vunpack.c.l.b16 %v6095
    %v7186 = vunpack.c.h.b16 %v6095
    %v7187 = vunpack.c.l.b16 %v6096
    %v7188 = vunpack.c.h.b16 %v6096
    %v7189 = vunpack.c.l.b16 %v6097
    %v7190 = vunpack.c.l.b16 %v6098
    %v7191 = vunpack.c.h.b16 %v6098
    %v7192 = vunpack.c.l.b16 %v6099
    %v7193 = vunpack.c.h.b16 %v6099
    %v7194 = vunpack.c.l.b16 %v6100
    %v7195 = vunpack.c.h.b16 %v6100
    %v7196 = vunpack.c.l.b16 %v6101
    %v7197 = vunpack.c.l.b16 %v6102
    %v7198 = vunpack.c.h.b16 %v6102
    %v7199 = vunpack.c.l.b16 %v6103
    %v7200 = vunpack.c.h.b16 %v6103
    %v7201 = vunpack.c.l.b16 %v6104
    %v7202 = vunpack.c.h.b16 %v6104
    %v7203 = vunpack.c.l.b16 %v6105
    %v7204 = vunpack.c.l.b16 %v6106
    %v7205 = vunpack.c.h.b16 %v6106
    %v7206 = vunpack.c.l.b16 %v6107
    %v7207 = vunpack.c.h.b16 %v6107
    %v7208 = vunpack.c.l.b16 %v6108
    %v7209 = vunpack.c.h.b16 %v6108
    %v7210 = vunpack.c.l.b16 %v6109
    %v7211 = vunpack.c.l.b16 %v6110
    %v7212 = vunpack.c.h.b16 %v6110
    %v7213 = vunpack.c.l.b16 %v6111
    %v7214 = vunpack.c.h.b16 %v6111
    %v7215 = vunpack.c.l.b16 %v6112
    %v7216 = vunpack.c.h.b16 %v6112
    %v7217 = vunpack.c.l.b16 %v6113
    %v7218 = vunpack.c.l.b16 %v6114
    %v7219 = vunpack.c.h.b16 %v6114
    %v7220 = vunpack.c.l.b16 %v6115
    %v7221 = vunpack.c.h.b16 %v6115
    %v7222 = vunpack.c.l.b16 %v6116
    %v7223 = vunpack.c.h.b16 %v6116
    %v7224 = vunpack.c.l.b16 %v6117
    %v7225 = vunpack.c.l.b16 %v6118
    %v7226 = vunpack.c.h.b16 %v6118
    %v7227 = vunpack.c.l.b16 %v6119
    %v7228 = vunpack.c.h.b16 %v6119
    %v7229 = vunpack.c.l.b16 %v6120
    %v7230 = vunpack.c.h.b16 %v6120
    %v7231 = vunpack.c.l.b16 %v6121
    %v7232 = vunpack.c.l.b16 %v6122
    %v7233 = vunpack.c.h.b16 %v6122
    %v7234 = vunpack.c.l.b16 %v6123
    %v7235 = vunpack.c.h.b16 %v6123
    %v7236 = vunpack.c.l.b16 %v6124
    %v7237 = vunpack.c.h.b16 %v6124
    %v7238 = vunpack.c.l.b16 %v6125
    %v7239 = vunpack.c.l.b16 %v6126
    %v7240 = vunpack.c.h.b16 %v6126
    %v7241 = vunpack.c.l.b16 %v6127
    %v7242 = vunpack.c.h.b16 %v6127
    %v7243 = vunpack.c.l.b16 %v6128
    %v7244 = vunpack.c.h.b16 %v6128
    %v7245 = vunpack.c.l.b16 %v6129
    %v7246 = vunpack.c.l.b16 %v6130
    %v7247 = vunpack.c.h.b16 %v6130
    %v7248 = vunpack.c.l.b16 %v6131
    %v7249 = vunpack.c.h.b16 %v6131
    %v7250 = vunpack.c.l.b16 %v6132
    %v7251 = vunpack.c.h.b16 %v6132
    %v7252 = vunpack.c.l.b16 %v6133
    %v7253 = vunpack.c.l.b16 %v6134
    %v7254 = vunpack.c.h.b16 %v6134
    %v7255 = vunpack.c.l.b16 %v6135
    %v7256 = vunpack.c.h.b16 %v6135
    %v7257 = vunpack.c.l.b16 %v6136
    %v7258 = vunpack.c.h.b16 %v6136
    %v7259 = vunpack.c.l.b16 %v6137
    %v7260 = vunpack.c.l.b16 %v6138
    %v7261 = vunpack.c.h.b16 %v6138
    %v7262 = vunpack.c.l.b16 %v6139
    %v7263 = vunpack.c.h.b16 %v6139
    %v7264 = vunpack.c.l.b16 %v6140
    %v7265 = vunpack.c.h.b16 %v6140
    %v7266 = vunpack.c.l.b16 %v6141
    %v7267 = vunpack.c.l.b16 %v6142
    %v7268 = vunpack.c.h.b16 %v6142
    %v7269 = vunpack.c.l.b16 %v6143
    %v7270 = vunpack.c.h.b16 %v6143
    %v7271 = vunpack.c.l.b16 %v6144
    %v7272 = vunpack.c.h.b16 %v6144
    %v7273 = vunpack.c.l.b16 %v6145
    %v7274 = vunpack.c.l.b16 %v6146
    %v7275 = vunpack.c.h.b16 %v6146
    %v7276 = vunpack.c.l.b16 %v6147
    %v7277 = vunpack.c.h.b16 %v6147
    %v7278 = vunpack.c.l.b16 %v6148
    %v7279 = vunpack.c.h.b16 %v6148
    %v7280 = vunpack.c.l.b16 %v6149
    %v7281 = vunpack.c.l.b16 %v6150
    %v7282 = vunpack.c.h.b16 %v6150
    %v7283 = vunpack.c.l.b16 %v6151
    %v7284 = vunpack.c.h.b16 %v6151
    %v7285 = vunpack.c.l.b16 %v6152
    %v7286 = vunpack.c.h.b16 %v6152
    %v7287 = vunpack.c.l.b16 %v6153
    %v7288 = vunpack.c.l.b16 %v6154
    %v7289 = vunpack.c.h.b16 %v6154
    %v7290 = vunpack.c.l.b16 %v6155
    %v7291 = vunpack.c.h.b16 %v6155
    %v7292 = vunpack.c.l.b16 %v6156
    %v7293 = vunpack.c.h.b16 %v6156
    %v7294 = vunpack.c.l.b16 %v6157
    %v7295 = vunpack.c.l.b16 %v6158
    %v7296 = vunpack.c.h.b16 %v6158
    %v7297 = vunpack.c.l.b16 %v6159
    %v7298 = vunpack.c.h.b16 %v6159
    %v7299 = vunpack.c.l.b16 %v6160
    %v7300 = vunpack.c.h.b16 %v6160
    %v7301 = vunpack.c.l.b16 %v6161
    %v7302 = vunpack.c.l.b16 %v6162
    %v7303 = vunpack.c.h.b16 %v6162
    %v7304 = vunpack.c.l.b16 %v6163
    %v7305 = vunpack.c.h.b16 %v6163
    %v7306 = vunpack.c.l.b16 %v6164
    %v7307 = vunpack.c.h.b16 %v6164
    %v7308 = vunpack.c.l.b16 %v6165
    %v7309 = vunpack.c.l.b16 %v6166
    %v7310 = vunpack.c.h.b16 %v6166
    %v7311 = vunpack.c.l.b16 %v6167
    %v7312 = vunpack.c.h.b16 %v6167
    %v7313 = vunpack.c.l.b16 %v6168
    %v7314 = vunpack.c.h.b16 %v6168
    %v7315 = vunpack.c.l.b16 %v6169
    %v7316 = vunpack.c.l.b16 %v6170
    %v7317 = vunpack.c.h.b16 %v6170
    %v7318 = vunpack.c.l.b16 %v6171
    %v7319 = vunpack.c.h.b16 %v6171
    %v7320 = vunpack.c.l.b16 %v6172
    %v7321 = vunpack.c.h.b16 %v6172
    %v7322 = vunpack.c.l.b16 %v6173
    %v7323 = vunpack.c.l.b16 %v6174
    %v7324 = vunpack.c.h.b16 %v6174
    %v7325 = vunpack.c.l.b16 %v6175
    %v7326 = vunpack.c.h.b16 %v6175
    %v7327 = vunpack.c.l.b16 %v6176
    %v7328 = vunpack.c.h.b16 %v6176
    %v7329 = vunpack.c.l.b16 %v6177
    %v7330 = vunpack.c.l.b16 %v6178
    %v7331 = vunpack.c.h.b16 %v6178
    %v7332 = vunpack.c.l.b16 %v6179
    %v7333 = vunpack.c.h.b16 %v6179
    %v7334 = vunpack.c.l.b16 %v6180
    %v7335 = vunpack.c.h.b16 %v6180
    %v7336 = vunpack.c.l.b16 %v6181
    %v7337 = vunpack.c.l.b16 %v6182
    %v7338 = vunpack.c.h.b16 %v6182
    %v7339 = vunpack.c.l.b16 %v6183
    %v7340 = vunpack.c.h.b16 %v6183
    %v7341 = vunpack.c.l.b16 %v6184
    %v7342 = vunpack.c.h.b16 %v6184
    %v7343 = vunpack.c.l.b16 %v6185
    %v7344 = vunpack.c.l.b16 %v6186
    %v7345 = vunpack.c.h.b16 %v6186
    %v7346 = vunpack.c.l.b16 %v6187
    %v7347 = vunpack.c.h.b16 %v6187
    %v7348 = vunpack.c.l.b16 %v6188
    %v7349 = vunpack.c.h.b16 %v6188
    %v7350 = vunpack.c.l.b16 %v6189
    %v7351 = vunpack.c.l.b16 %v6190
    %v7352 = vunpack.c.h.b16 %v6190
    %v7353 = vunpack.c.l.b16 %v6191
    %v7354 = vunpack.c.h.b16 %v6191
    %v7355 = vunpack.c.l.b16 %v6192
    %v7356 = vunpack.c.h.b16 %v6192
    %v7357 = vunpack.c.l.b16 %v6193
    %v7358 = vunpack.c.l.b16 %v6194
    %v7359 = vunpack.c.h.b16 %v6194
    %v7360 = vunpack.c.l.b16 %v6195
    %v7361 = vunpack.c.h.b16 %v6195
    %v7362 = vunpack.c.l.b16 %v6196
    %v7363 = vunpack.c.h.b16 %v6196
    %v7364 = vunpack.c.l.b16 %v6197
    %v7365 = vunpack.c.l.b16 %v6198
    %v7366 = vunpack.c.h.b16 %v6198
    %v7367 = vunpack.c.l.b16 %v6199
    %v7368 = vunpack.c.h.b16 %v6199
    %v7369 = vunpack.c.l.b16 %v6200
    %v7370 = vunpack.c.h.b16 %v6200
    %v7371 = vunpack.c.l.b16 %v6201
    %v7372 = vunpack.c.l.b16 %v6202
    %v7373 = vunpack.c.h.b16 %v6202
    %v7374 = vunpack.c.l.b16 %v6203
    %v7375 = vunpack.c.h.b16 %v6203
    %v7376 = vunpack.c.l.b16 %v6204
    %v7377 = vunpack.c.h.b16 %v6204
    %v7378 = vunpack.c.l.b16 %v6205
    %v7379 = vunpack.c.l.b16 %v6206
    %v7380 = vunpack.c.h.b16 %v6206
    %v7381 = vunpack.c.l.b16 %v6207
    %v7382 = vunpack.c.h.b16 %v6207
    %v7383 = vunpack.c.l.b16 %v6208
    %v7384 = vunpack.c.h.b16 %v6208
    %v7385 = vunpack.c.l.b16 %v6209
    %v7386 = vunpack.c.l.b16 %v6210
    %v7387 = vunpack.c.h.b16 %v6210
    %v7388 = vunpack.c.l.b16 %v6211
    %v7389 = vunpack.c.h.b16 %v6211
    %v7390 = vunpack.c.l.b16 %v6212
    %v7391 = vunpack.c.h.b16 %v6212
    %v7392 = vunpack.c.l.b16 %v6213
    %v7393 = vunpack.c.l.b16 %v6214
    %v7394 = vunpack.c.h.b16 %v6214
    %v7395 = vunpack.c.l.b16 %v6215
    %v7396 = vunpack.c.h.b16 %v6215
    %v7397 = vunpack.c.l.b16 %v6216
    %v7398 = vunpack.c.h.b16 %v6216
    %v7399 = vunpack.c.l.b16 %v6217
    %v7400 = vunpack.c.l.b16 %v6218
    %v7401 = vunpack.c.h.b16 %v6218
    %v7402 = vunpack.c.l.b16 %v6219
    %v7403 = vunpack.c.h.b16 %v6219
    %v7404 = vunpack.c.l.b16 %v6220
    %v7405 = vunpack.c.h.b16 %v6220
    %v7406 = vunpack.c.l.b16 %v6221
    %v7407 = vunpack.c.l.b16 %v6222
    %v7408 = vunpack.c.h.b16 %v6222
    %v7409 = vunpack.c.l.b16 %v6223
    %v7410 = vunpack.c.h.b16 %v6223
    %v7411 = vunpack.c.l.b16 %v6224
    %v7412 = vunpack.c.h.b16 %v6224
    %v7413 = vunpack.c.l.b16 %v6225
    %v7414 = vunpack.c.l.b16 %v6226
    %v7415 = vunpack.c.h.b16 %v6226
    %v7416 = vunpack.c.l.b16 %v6227
    %v7417 = vunpack.c.h.b16 %v6227
    %v7418 = vunpack.c.l.b16 %v6228
    %v7419 = vunpack.c.h.b16 %v6228
    %v7420 = vunpack.c.l.b16 %v6229
    %v7421 = vunpack.c.l.b16 %v6230
    %v7422 = vunpack.c.h.b16 %v6230
    %v7423 = vunpack.c.l.b16 %v6231
    %v7424 = vunpack.c.h.b16 %v6231
    %v7425 = vunpack.c.l.b16 %v6232
    %v7426 = vunpack.c.h.b16 %v6232
    %v7427 = vunpack.c.l.b16 %v6233
    %v7428 = vunpack.c.l.b16 %v6234
    %v7429 = vunpack.c.h.b16 %v6234
    %v7430 = vunpack.c.l.b16 %v6235
    %v7431 = vunpack.c.h.b16 %v6235
    %v7432 = vunpack.c.l.b16 %v6236
    %v7433 = vunpack.c.h.b16 %v6236
    %v7434 = vunpack.c.l.b16 %v6237
    %v7435 = vunpack.c.l.b16 %v6238
    %v7436 = vunpack.c.h.b16 %v6238
    %v7437 = vunpack.c.l.b16 %v6239
    %v7438 = vunpack.c.h.b16 %v6239
    %v7439 = vunpack.c.l.b16 %v6240
    %v7440 = vunpack.c.h.b16 %v6240
    %v7441 = vunpack.c.l.b16 %v6241
    %v7442 = vunpack.c.l.b16 %v6242
    %v7443 = vunpack.c.h.b16 %v6242
    %v7444 = vunpack.c.l.b16 %v6243
    %v7445 = vunpack.c.h.b16 %v6243
    %v7446 = vunpack.c.l.b16 %v6244
    %v7447 = vunpack.c.h.b16 %v6244
    %v7448 = vunpack.c.l.b16 %v6245
    %v7449 = vunpack.c.l.b16 %v6246
    %v7450 = vunpack.c.h.b16 %v6246
    %v7451 = vunpack.c.l.b16 %v6247
    %v7452 = vunpack.c.h.b16 %v6247
    %v7453 = vunpack.c.l.b16 %v6248
    %v7454 = vunpack.c.h.b16 %v6248
    %v7455 = vunpack.c.l.b16 %v6249
    %v7456 = vunpack.c.l.b16 %v6250
    %v7457 = vunpack.c.h.b16 %v6250
    %v7458 = vunpack.c.l.b16 %v6251
    %v7459 = vunpack.c.h.b16 %v6251
    %v7460 = vunpack.c.l.b16 %v6252
    %v7461 = vunpack.c.h.b16 %v6252
    %v7462 = vunpack.c.l.b16 %v6253
    %v7463 = vunpack.c.l.b16 %v6254
    %v7464 = vunpack.c.h.b16 %v6254
    %v7465 = vunpack.c.l.b16 %v6255
    %v7466 = vunpack.c.h.b16 %v6255
    %v7467 = vunpack.c.l.b16 %v6256
    %v7468 = vunpack.c.h.b16 %v6256
    %v7469 = vunpack.c.l.b16 %v6257
    %v7470 = vunpack.c.l.b16 %v6258
    %v7471 = vunpack.c.h.b16 %v6258
    %v7472 = vunpack.c.l.b16 %v6259
    %v7473 = vunpack.c.h.b16 %v6259
    %v7474 = vunpack.c.l.b16 %v6260
    %v7475 = vunpack.c.h.b16 %v6260
    %v7476 = vunpack.c.l.b16 %v6261
    %v7477 = vunpack.c.l.b16 %v6262
    %v7478 = vunpack.c.h.b16 %v6262
    %v7479 = vunpack.c.l.b16 %v6263
    %v7480 = vunpack.c.h.b16 %v6263
    %v7481 = vunpack.c.l.b16 %v6264
    %v7482 = vunpack.c.h.b16 %v6264
    %v7483 = vunpack.c.l.b16 %v6265
    %v7484 = vunpack.c.l.b16 %v6266
    %v7485 = vunpack.c.h.b16 %v6266
    %v7486 = vunpack.c.l.b16 %v6267
    %v7487 = vunpack.c.h.b16 %v6267
    %v7488 = vunpack.c.l.b16 %v6268
    %v7489 = vunpack.c.h.b16 %v6268
    %v7490 = vunpack.c.l.b16 %v6269
    %v7491 = vunpack.c.l.b16 %v6270
    %v7492 = vunpack.c.h.b16 %v6270
    %v7493 = vunpack.c.l.b16 %v6271
    %v7494 = vunpack.c.h.b16 %v6271
    %v7495 = vunpack.c.l.b16 %v6272
    %v7496 = vunpack.c.h.b16 %v6272
    %v7497 = vunpack.c.l.b16 %v6273
    %v7498 = vunpack.c.l.b16 %v6274
    %v7499 = vunpack.c.h.b16 %v6274
    %v7500 = vunpack.c.l.b16 %v6275
    %v7501 = vunpack.c.h.b16 %v6275
    %v7502 = vunpack.c.l.b16 %v6276
    %v7503 = vunpack.c.h.b16 %v6276
    %v7504 = vunpack.c.l.b16 %v6277
    %v7505 = vunpack.c.l.b16 %v6278
    %v7506 = vunpack.c.h.b16 %v6278
    %v7507 = vunpack.c.l.b16 %v6279
    %v7508 = vunpack.c.h.b16 %v6279
    %v7509 = vunpack.c.l.b16 %v6280
    %v7510 = vunpack.c.h.b16 %v6280
    %v7511 = vunpack.c.l.b16 %v6281
    %v7512 = vunpack.c.l.b16 %v6282
    %v7513 = vunpack.c.h.b16 %v6282
    %v7514 = vunpack.c.l.b16 %v6283
    %v7515 = vunpack.c.h.b16 %v6283
    %v7516 = vunpack.c.l.b16 %v6284
    %v7517 = vunpack.c.h.b16 %v6284
    %v7518 = vunpack.c.l.b16 %v6285
    %v7519 = vunpack.c.l.b16 %v6286
    %v7520 = vunpack.c.h.b16 %v6286
    %v7521 = vunpack.c.l.b16 %v6287
    %v7522 = vunpack.c.h.b16 %v6287
    %v7523 = vunpack.c.l.b16 %v6288
    %v7524 = vunpack.c.h.b16 %v6288
    %v7525 = vunpack.c.l.b16 %v6289
    %v7526 = vunpack.c.l.b16 %v6290
    %v7527 = vunpack.c.h.b16 %v6290
    %v7528 = vunpack.c.l.b16 %v6291
    %v7529 = vunpack.c.h.b16 %v6291
    %v7530 = vunpack.c.l.b16 %v6292
    %v7531 = vunpack.c.h.b16 %v6292
    %v7532 = vunpack.c.l.b16 %v6293
    %v7533 = vunpack.c.l.b16 %v6294
    %v7534 = vunpack.c.h.b16 %v6294
    %v7535 = vunpack.c.l.b16 %v6295
    %v7536 = vunpack.c.h.b16 %v6295
    %v7537 = vunpack.c.l.b16 %v6296
    %v7538 = vunpack.c.h.b16 %v6296
    %v7539 = vunpack.c.l.b16 %v6297
    %v7540 = vunpack.c.l.b16 %v6298
    %v7541 = vunpack.c.h.b16 %v6298
    %v7542 = vunpack.c.l.b16 %v6299
    %v7543 = vunpack.c.h.b16 %v6299
    %v7544 = vunpack.c.l.b16 %v6300
    %v7545 = vunpack.c.h.b16 %v6300
    %v7546 = vunpack.c.l.b16 %v6301
    %v7547 = vunpack.c.l.b16 %v6302
    %v7548 = vunpack.c.h.b16 %v6302
    %v7549 = vunpack.c.l.b16 %v6303
    %v7550 = vunpack.c.h.b16 %v6303
    %v7551 = vunpack.c.l.b16 %v6304
    %v7552 = vunpack.c.h.b16 %v6304
    %v7553 = vunpack.c.l.b16 %v6305
    %v7554 = vunpack.c.l.b16 %v6306
    %v7555 = vunpack.c.h.b16 %v6306
    %v7556 = vunpack.c.l.b16 %v6307
    %v7557 = vunpack.c.h.b16 %v6307
    %v7558 = vunpack.c.l.b16 %v6308
    %v7559 = vunpack.c.h.b16 %v6308
    %v7560 = vunpack.c.l.b16 %v6309
    %v7561 = vunpack.c.l.b16 %v6310
    %v7562 = vunpack.c.h.b16 %v6310
    %v7563 = vunpack.c.l.b16 %v6311
    %v7564 = vunpack.c.h.b16 %v6311
    %v7565 = vunpack.c.l.b16 %v6312
    %v7566 = vunpack.c.h.b16 %v6312
    %v7567 = vunpack.c.l.b16 %v6313
    %v7568 = vunpack.c.l.b16 %v6314
    %v7569 = vunpack.c.h.b16 %v6314
    %v7570 = vunpack.c.l.b16 %v6315
    %v7571 = vunpack.c.h.b16 %v6315
    %v7572 = vunpack.c.l.b16 %v6316
    %v7573 = vunpack.c.h.b16 %v6316
    %v7574 = vunpack.c.l.b16 %v6317
    %v7575 = vunpack.c.l.b16 %v6318
    %v7576 = vunpack.c.h.b16 %v6318
    %v7577 = vunpack.c.l.b16 %v6319
    %v7578 = vunpack.c.h.b16 %v6319
    %v7579 = vunpack.c.l.b16 %v6320
    %v7580 = vunpack.c.h.b16 %v6320
    %v7581 = vunpack.c.l.b16 %v6321
    %v7582 = vunpack.c.l.b16 %v6322
    %v7583 = vunpack.c.h.b16 %v6322
    %v7584 = vunpack.c.l.b16 %v6323
    %v7585 = vunpack.c.h.b16 %v6323
    %v7586 = vunpack.c.l.b16 %v6324
    %v7587 = vunpack.c.h.b16 %v6324
    %v7588 = vunpack.c.l.b16 %v6325
    %v7589 = vunpack.c.l.b16 %v6326
    %v7590 = vunpack.c.h.b16 %v6326
    %v7591 = vunpack.c.l.b16 %v6327
    %v7592 = vunpack.c.h.b16 %v6327
    %v7593 = vunpack.c.l.b16 %v6328
    %v7594 = vunpack.c.h.b16 %v6328
    %v7595 = vunpack.c.l.b16 %v6329
    %v7596 = vunpack.c.l.b16 %v6330
    %v7597 = vunpack.c.h.b16 %v6330
    %v7598 = vunpack.c.l.b16 %v6331
    %v7599 = vunpack.c.h.b16 %v6331
    %v7600 = vunpack.c.l.b16 %v6332
    %v7601 = vunpack.c.h.b16 %v6332
    %v7602 = vunpack.c.l.b16 %v6333
    %v7603 = vpack.c.b16 %v6826, %v6819
    %v7604 = vpack.c.b16 %v6827, %v6820
    %v7605 = vpack.c.b16 %v6828, %v6821
    %v7606 = vpack.c.b16 %v6829, %v6822
    %v7607 = vpack.c.b16 %v6830, %v6823
    %v7608 = vpack.c.b16 %v6831, %v6824
    %v7609 = vpack.c.b16 %v6832, %v6825
    %v7610 = vpack.c.b16 %v6840, %v6833
    %v7611 = vpack.c.b16 %v6841, %v6834
    %v7612 = vpack.c.b16 %v6842, %v6835
    %v7613 = vpack.c.b16 %v6843, %v6836
    %v7614 = vpack.c.b16 %v6844, %v6837
    %v7615 = vpack.c.b16 %v6845, %v6838
    %v7616 = vpack.c.b16 %v6846, %v6839
    %v7617 = vpack.c.b16 %v6854, %v6847
    %v7618 = vpack.c.b16 %v6855, %v6848
    %v7619 = vpack.c.b16 %v6856, %v6849
    %v7620 = vpack.c.b16 %v6857, %v6850
    %v7621 = vpack.c.b16 %v6858, %v6851
    %v7622 = vpack.c.b16 %v6859, %v6852
    %v7623 = vpack.c.b16 %v6860, %v6853
    %v7624 = vpack.c.b16 %v6868, %v6861
    %v7625 = vpack.c.b16 %v6869, %v6862
    %v7626 = vpack.c.b16 %v6870, %v6863
    %v7627 = vpack.c.b16 %v6871, %v6864
    %v7628 = vpack.c.b16 %v6872, %v6865
    %v7629 = vpack.c.b16 %v6873, %v6866
    %v7630 = vpack.c.b16 %v6874, %v6867
    %v7631 = vpack.c.b16 %v6882, %v6875
    %v7632 = vpack.c.b16 %v6883, %v6876
    %v7633 = vpack.c.b16 %v6884, %v6877
    %v7634 = vpack.c.b16 %v6885, %v6878
    %v7635 = vpack.c.b16 %v6886, %v6879
    %v7636 = vpack.c.b16 %v6887, %v6880
    %v7637 = vpack.c.b16 %v6888, %v6881
    %v7638 = vpack.c.b16 %v6896, %v6889
    %v7639 = vpack.c.b16 %v6897, %v6890
    %v7640 = vpack.c.b16 %v6898, %v6891
    %v7641 = vpack.c.b16 %v6899, %v6892
    %v7642 = vpack.c.b16 %v6900, %v6893
    %v7643 = vpack.c.b16 %v6901, %v6894
    %v7644 = vpack.c.b16 %v6902, %v6895
    %v7645 = vpack.c.b16 %v6910, %v6903
    %v7646 = vpack.c.b16 %v6911, %v6904
    %v7647 = vpack.c.b16 %v6912, %v6905
    %v7648 = vpack.c.b16 %v6913, %v6906
    %v7649 = vpack.c.b16 %v6914, %v6907
    %v7650 = vpack.c.b16 %v6915, %v6908
    %v7651 = vpack.c.b16 %v6916, %v6909
    %v7652 = vpack.c.b16 %v6924, %v6917
    %v7653 = vpack.c.b16 %v6925, %v6918
    %v7654 = vpack.c.b16 %v6926, %v6919
    %v7655 = vpack.c.b16 %v6927, %v6920
    %v7656 = vpack.c.b16 %v6928, %v6921
    %v7657 = vpack.c.b16 %v6929, %v6922
    %v7658 = vpack.c.b16 %v6930, %v6923
    %v7659 = vpack.c.b16 %v6938, %v6931
    %v7660 = vpack.c.b16 %v6939, %v6932
    %v7661 = vpack.c.b16 %v6940, %v6933
    %v7662 = vpack.c.b16 %v6941, %v6934
    %v7663 = vpack.c.b16 %v6942, %v6935
    %v7664 = vpack.c.b16 %v6943, %v6936
    %v7665 = vpack.c.b16 %v6944, %v6937
    %v7666 = vpack.c.b16 %v6952, %v6945
    %v7667 = vpack.c.b16 %v6953, %v6946
    %v7668 = vpack.c.b16 %v6954, %v6947
    %v7669 = vpack.c.b16 %v6955, %v6948
    %v7670 = vpack.c.b16 %v6956, %v6949
    %v7671 = vpack.c.b16 %v6957, %v6950
    %v7672 = vpack.c.b16 %v6958, %v6951
    %v7673 = vpack.c.b16 %v6966, %v6959
    %v7674 = vpack.c.b16 %v6967, %v6960
    %v7675 = vpack.c.b16 %v6968, %v6961
    %v7676 = vpack.c.b16 %v6969, %v6962
    %v7677 = vpack.c.b16 %v6970, %v6963
    %v7678 = vpack.c.b16 %v6971, %v6964
    %v7679 = vpack.c.b16 %v6972, %v6965
    %v7680 = vpack.c.b16 %v6980, %v6973
    %v7681 = vpack.c.b16 %v6981, %v6974
    %v7682 = vpack.c.b16 %v6982, %v6975
    %v7683 = vpack.c.b16 %v6983, %v6976
    %v7684 = vpack.c.b16 %v6984, %v6977
    %v7685 = vpack.c.b16 %v6985, %v6978
    %v7686 = vpack.c.b16 %v6986, %v6979
    %v7687 = vpack.c.b16 %v6994, %v6987
    %v7688 = vpack.c.b16 %v6995, %v6988
    %v7689 = vpack.c.b16 %v6996, %v6989
    %v7690 = vpack.c.b16 %v6997, %v6990
    %v7691 = vpack.c.b16 %v6998, %v6991
    %v7692 = vpack.c.b16 %v6999, %v6992
    %v7693 = vpack.c.b16 %v7000, %v6993
    %v7694 = vpack.c.b16 %v7008, %v7001
    %v7695 = vpack.c.b16 %v7009, %v7002
    %v7696 = vpack.c.b16 %v7010, %v7003
    %v7697 = vpack.c.b16 %v7011, %v7004
    %v7698 = vpack.c.b16 %v7012, %v7005
    %v7699 = vpack.c.b16 %v7013, %v7006
    %v7700 = vpack.c.b16 %v7014, %v7007
    %v7701 = vpack.c.b16 %v7022, %v7015
    %v7702 = vpack.c.b16 %v7023, %v7016
    %v7703 = vpack.c.b16 %v7024, %v7017
    %v7704 = vpack.c.b16 %v7025, %v7018
    %v7705 = vpack.c.b16 %v7026, %v7019
    %v7706 = vpack.c.b16 %v7027, %v7020
    %v7707 = vpack.c.b16 %v7028, %v7021
    %v7708 = vpack.c.b16 %v7036, %v7029
    %v7709 = vpack.c.b16 %v7037, %v7030
    %v7710 = vpack.c.b16 %v7038, %v7031
    %v7711 = vpack.c.b16 %v7039, %v7032
    %v7712 = vpack.c.b16 %v7040, %v7033
    %v7713 = vpack.c.b16 %v7041, %v7034
    %v7714 = vpack.c.b16 %v7042, %v7035
    %v7715 = vpack.c.b16 %v7050, %v7043
    %v7716 = vpack.c.b16 %v7051, %v7044
    %v7717 = vpack.c.b16 %v7052, %v7045
    %v7718 = vpack.c.b16 %v7053, %v7046
    %v7719 = vpack.c.b16 %v7054, %v7047
    %v7720 = vpack.c.b16 %v7055, %v7048
    %v7721 = vpack.c.b16 %v7056, %v7049
    %v7722 = vpack.c.b16 %v7064, %v7057
    %v7723 = vpack.c.b16 %v7065, %v7058
    %v7724 = vpack.c.b16 %v7066, %v7059
    %v7725 = vpack.c.b16 %v7067, %v7060
    %v7726 = vpack.c.b16 %v7068, %v7061
    %v7727 = vpack.c.b16 %v7069, %v7062
    %v7728 = vpack.c.b16 %v7070, %v7063
    %v7729 = vpack.c.b16 %v7078, %v7071
    %v7730 = vpack.c.b16 %v7079, %v7072
    %v7731 = vpack.c.b16 %v7080, %v7073
    %v7732 = vpack.c.b16 %v7081, %v7074
    %v7733 = vpack.c.b16 %v7082, %v7075
    %v7734 = vpack.c.b16 %v7083, %v7076
    %v7735 = vpack.c.b16 %v7084, %v7077
    %v7736 = vpack.c.b16 %v7092, %v7085
    %v7737 = vpack.c.b16 %v7093, %v7086
    %v7738 = vpack.c.b16 %v7094, %v7087
    %v7739 = vpack.c.b16 %v7095, %v7088
    %v7740 = vpack.c.b16 %v7096, %v7089
    %v7741 = vpack.c.b16 %v7097, %v7090
    %v7742 = vpack.c.b16 %v7098, %v7091
    %v7743 = vpack.c.b16 %v7106, %v7099
    %v7744 = vpack.c.b16 %v7107, %v7100
    %v7745 = vpack.c.b16 %v7108, %v7101
    %v7746 = vpack.c.b16 %v7109, %v7102
    %v7747 = vpack.c.b16 %v7110, %v7103
    %v7748 = vpack.c.b16 %v7111, %v7104
    %v7749 = vpack.c.b16 %v7112, %v7105
    %v7750 = vpack.c.b16 %v7120, %v7113
    %v7751 = vpack.c.b16 %v7121, %v7114
    %v7752 = vpack.c.b16 %v7122, %v7115
    %v7753 = vpack.c.b16 %v7123, %v7116
    %v7754 = vpack.c.b16 %v7124, %v7117
    %v7755 = vpack.c.b16 %v7125, %v7118
    %v7756 = vpack.c.b16 %v7126, %v7119
    %v7757 = vpack.c.b16 %v7134, %v7127
    %v7758 = vpack.c.b16 %v7135, %v7128
    %v7759 = vpack.c.b16 %v7136, %v7129
    %v7760 = vpack.c.b16 %v7137, %v7130
    %v7761 = vpack.c.b16 %v7138, %v7131
    %v7762 = vpack.c.b16 %v7139, %v7132
    %v7763 = vpack.c.b16 %v7140, %v7133
    %v7764 = vpack.c.b16 %v7148, %v7141
    %v7765 = vpack.c.b16 %v7149, %v7142
    %v7766 = vpack.c.b16 %v7150, %v7143
    %v7767 = vpack.c.b16 %v7151, %v7144
    %v7768 = vpack.c.b16 %v7152, %v7145
    %v7769 = vpack.c.b16 %v7153, %v7146
    %v7770 = vpack.c.b16 %v7154, %v7147
    %v7771 = vpack.c.b16 %v7162, %v7155
    %v7772 = vpack.c.b16 %v7163, %v7156
    %v7773 = vpack.c.b16 %v7164, %v7157
    %v7774 = vpack.c.b16 %v7165, %v7158
    %v7775 = vpack.c.b16 %v7166, %v7159
    %v7776 = vpack.c.b16 %v7167, %v7160
    %v7777 = vpack.c.b16 %v7168, %v7161
    %v7778 = vpack.c.b16 %v7176, %v7169
    %v7779 = vpack.c.b16 %v7177, %v7170
    %v7780 = vpack.c.b16 %v7178, %v7171
    %v7781 = vpack.c.b16 %v7179, %v7172
    %v7782 = vpack.c.b16 %v7180, %v7173
    %v7783 = vpack.c.b16 %v7181, %v7174
    %v7784 = vpack.c.b16 %v7182, %v7175
    %v7785 = vpack.c.b16 %v7190, %v7183
    %v7786 = vpack.c.b16 %v7191, %v7184
    %v7787 = vpack.c.b16 %v7192, %v7185
    %v7788 = vpack.c.b16 %v7193, %v7186
    %v7789 = vpack.c.b16 %v7194, %v7187
    %v7790 = vpack.c.b16 %v7195, %v7188
    %v7791 = vpack.c.b16 %v7196, %v7189
    %v7792 = vpack.c.b16 %v7204, %v7197
    %v7793 = vpack.c.b16 %v7205, %v7198
    %v7794 = vpack.c.b16 %v7206, %v7199
    %v7795 = vpack.c.b16 %v7207, %v7200
    %v7796 = vpack.c.b16 %v7208, %v7201
    %v7797 = vpack.c.b16 %v7209, %v7202
    %v7798 = vpack.c.b16 %v7210, %v7203
    %v7799 = vpack.c.b16 %v7218, %v7211
    %v7800 = vpack.c.b16 %v7219, %v7212
    %v7801 = vpack.c.b16 %v7220, %v7213
    %v7802 = vpack.c.b16 %v7221, %v7214
    %v7803 = vpack.c.b16 %v7222, %v7215
    %v7804 = vpack.c.b16 %v7223, %v7216
    %v7805 = vpack.c.b16 %v7224, %v7217
    %v7806 = vpack.c.b16 %v7232, %v7225
    %v7807 = vpack.c.b16 %v7233, %v7226
    %v7808 = vpack.c.b16 %v7234, %v7227
    %v7809 = vpack.c.b16 %v7235, %v7228
    %v7810 = vpack.c.b16 %v7236, %v7229
    %v7811 = vpack.c.b16 %v7237, %v7230
    %v7812 = vpack.c.b16 %v7238, %v7231
    %v7813 = vpack.c.b16 %v7246, %v7239
    %v7814 = vpack.c.b16 %v7247, %v7240
    %v7815 = vpack.c.b16 %v7248, %v7241
    %v7816 = vpack.c.b16 %v7249, %v7242
    %v7817 = vpack.c.b16 %v7250, %v7243
    %v7818 = vpack.c.b16 %v7251, %v7244
    %v7819 = vpack.c.b16 %v7252, %v7245
    %v7820 = vpack.c.b16 %v7260, %v7253
    %v7821 = vpack.c.b16 %v7261, %v7254
    %v7822 = vpack.c.b16 %v7262, %v7255
    %v7823 = vpack.c.b16 %v7263, %v7256
    %v7824 = vpack.c.b16 %v7264, %v7257
    %v7825 = vpack.c.b16 %v7265, %v7258
    %v7826 = vpack.c.b16 %v7266, %v7259
    %v7827 = vpack.c.b16 %v7274, %v7267
    %v7828 = vpack.c.b16 %v7275, %v7268
    %v7829 = vpack.c.b16 %v7276, %v7269
    %v7830 = vpack.c.b16 %v7277, %v7270
    %v7831 = vpack.c.b16 %v7278, %v7271
    %v7832 = vpack.c.b16 %v7279, %v7272
    %v7833 = vpack.c.b16 %v7280, %v7273
    %v7834 = vpack.c.b16 %v7288, %v7281
    %v7835 = vpack.c.b16 %v7289, %v7282
    %v7836 = vpack.c.b16 %v7290, %v7283
    %v7837 = vpack.c.b16 %v7291, %v7284
    %v7838 = vpack.c.b16 %v7292, %v7285
    %v7839 = vpack.c.b16 %v7293, %v7286
    %v7840 = vpack.c.b16 %v7294, %v7287
    %v7841 = vpack.c.b16 %v7302, %v7295
    %v7842 = vpack.c.b16 %v7303, %v7296
    %v7843 = vpack.c.b16 %v7304, %v7297
    %v7844 = vpack.c.b16 %v7305, %v7298
    %v7845 = vpack.c.b16 %v7306, %v7299
    %v7846 = vpack.c.b16 %v7307, %v7300
    %v7847 = vpack.c.b16 %v7308, %v7301
    %v7848 = vpack.c.b16 %v7316, %v7309
    %v7849 = vpack.c.b16 %v7317, %v7310
    %v7850 = vpack.c.b16 %v7318, %v7311
    %v7851 = vpack.c.b16 %v7319, %v7312
    %v7852 = vpack.c.b16 %v7320, %v7313
    %v7853 = vpack.c.b16 %v7321, %v7314
    %v7854 = vpack.c.b16 %v7322, %v7315
    %v7855 = vpack.c.b16 %v7330, %v7323
    %v7856 = vpack.c.b16 %v7331, %v7324
    %v7857 = vpack.c.b16 %v7332, %v7325
    %v7858 = vpack.c.b16 %v7333, %v7326
    %v7859 = vpack.c.b16 %v7334, %v7327
    %v7860 = vpack.c.b16 %v7335, %v7328
    %v7861 = vpack.c.b16 %v7336, %v7329
    %v7862 = vpack.c.b16 %v7344, %v7337
    %v7863 = vpack.c.b16 %v7345, %v7338
    %v7864 = vpack.c.b16 %v7346, %v7339
    %v7865 = vpack.c.b16 %v7347, %v7340
    %v7866 = vpack.c.b16 %v7348, %v7341
    %v7867 = vpack.c.b16 %v7349, %v7342
    %v7868 = vpack.c.b16 %v7350, %v7343
    %v7869 = vpack.c.b16 %v7358, %v7351
    %v7870 = vpack.c.b16 %v7359, %v7352
    %v7871 = vpack.c.b16 %v7360, %v7353
    %v7872 = vpack.c.b16 %v7361, %v7354
    %v7873 = vpack.c.b16 %v7362, %v7355
    %v7874 = vpack.c.b16 %v7363, %v7356
    %v7875 = vpack.c.b16 %v7364, %v7357
    %v7876 = vpack.c.b16 %v7372, %v7365
    %v7877 = vpack.c.b16 %v7373, %v7366
    %v7878 = vpack.c.b16 %v7374, %v7367
    %v7879 = vpack.c.b16 %v7375, %v7368
    %v7880 = vpack.c.b16 %v7376, %v7369
    %v7881 = vpack.c.b16 %v7377, %v7370
    %v7882 = vpack.c.b16 %v7378, %v7371
    %v7883 = vpack.c.b16 %v7386, %v7379
    %v7884 = vpack.c.b16 %v7387, %v7380
    %v7885 = vpack.c.b16 %v7388, %v7381
    %v7886 = vpack.c.b16 %v7389, %v7382
    %v7887 = vpack.c.b16 %v7390, %v7383
    %v7888 = vpack.c.b16 %v7391, %v7384
    %v7889 = vpack.c.b16 %v7392, %v7385
    %v7890 = vpack.c.b16 %v7400, %v7393
    %v7891 = vpack.c.b16 %v7401, %v7394
    %v7892 = vpack.c.b16 %v7402, %v7395
    %v7893 = vpack.c.b16 %v7403, %v7396
    %v7894 = vpack.c.b16 %v7404, %v7397
    %v7895 = vpack.c.b16 %v7405, %v7398
    %v7896 = vpack.c.b16 %v7406, %v7399
    %v7897 = vpack.c.b16 %v7414, %v7407
    %v7898 = vpack.c.b16 %v7415, %v7408
    %v7899 = vpack.c.b16 %v7416, %v7409
    %v7900 = vpack.c.b16 %v7417, %v7410
    %v7901 = vpack.c.b16 %v7418, %v7411
    %v7902 = vpack.c.b16 %v7419, %v7412
    %v7903 = vpack.c.b16 %v7420, %v7413
    %v7904 = vpack.c.b16 %v7428, %v7421
    %v7905 = vpack.c.b16 %v7429, %v7422
    %v7906 = vpack.c.b16 %v7430, %v7423
    %v7907 = vpack.c.b16 %v7431, %v7424
    %v7908 = vpack.c.b16 %v7432, %v7425
    %v7909 = vpack.c.b16 %v7433, %v7426
    %v7910 = vpack.c.b16 %v7434, %v7427
    %v7911 = vpack.c.b16 %v7442, %v7435
    %v7912 = vpack.c.b16 %v7443, %v7436
    %v7913 = vpack.c.b16 %v7444, %v7437
    %v7914 = vpack.c.b16 %v7445, %v7438
    %v7915 = vpack.c.b16 %v7446, %v7439
    %v7916 = vpack.c.b16 %v7447, %v7440
    %v7917 = vpack.c.b16 %v7448, %v7441
    %v7918 = vpack.c.b16 %v7456, %v7449
    %v7919 = vpack.c.b16 %v7457, %v7450
    %v7920 = vpack.c.b16 %v7458, %v7451
    %v7921 = vpack.c.b16 %v7459, %v7452
    %v7922 = vpack.c.b16 %v7460, %v7453
    %v7923 = vpack.c.b16 %v7461, %v7454
    %v7924 = vpack.c.b16 %v7462, %v7455
    %v7925 = vpack.c.b16 %v7470, %v7463
    %v7926 = vpack.c.b16 %v7471, %v7464
    %v7927 = vpack.c.b16 %v7472, %v7465
    %v7928 = vpack.c.b16 %v7473, %v7466
    %v7929 = vpack.c.b16 %v7474, %v7467
    %v7930 = vpack.c.b16 %v7475, %v7468
    %v7931 = vpack.c.b16 %v7476, %v7469
    %v7932 = vpack.c.b16 %v7484, %v7477
    %v7933 = vpack.c.b16 %v7485, %v7478
    %v7934 = vpack.c.b16 %v7486, %v7479
    %v7935 = vpack.c.b16 %v7487, %v7480
    %v7936 = vpack.c.b16 %v7488, %v7481
    %v7937 = vpack.c.b16 %v7489, %v7482
    %v7938 = vpack.c.b16 %v7490, %v7483
    %v7939 = vpack.c.b16 %v7498, %v7491
    %v7940 = vpack.c.b16 %v7499, %v7492
    %v7941 = vpack.c.b16 %v7500, %v7493
    %v7942 = vpack.c.b16 %v7501, %v7494
    %v7943 = vpack.c.b16 %v7502, %v7495
    %v7944 = vpack.c.b16 %v7503, %v7496
    %v7945 = vpack.c.b16 %v7504, %v7497
    %v7946 = vpack.c.b16 %v7512, %v7505
    %v7947 = vpack.c.b16 %v7513, %v7506
    %v7948 = vpack.c.b16 %v7514, %v7507
    %v7949 = vpack.c.b16 %v7515, %v7508
    %v7950 = vpack.c.b16 %v7516, %v7509
    %v7951 = vpack.c.b16 %v7517, %v7510
    %v7952 = vpack.c.b16 %v7518, %v7511
    %v7953 = vpack.c.b16 %v7526, %v7519
    %v7954 = vpack.c.b16 %v7527, %v7520
    %v7955 = vpack.c.b16 %v7528, %v7521
    %v7956 = vpack.c.b16 %v7529, %v7522
    %v7957 = vpack.c.b16 %v7530, %v7523
    %v7958 = vpack.c.b16 %v7531, %v7524
    %v7959 = vpack.c.b16 %v7532, %v7525
    %v7960 = vpack.c.b16 %v7540, %v7533
    %v7961 = vpack.c.b16 %v7541, %v7534
    %v7962 = vpack.c.b16 %v7542, %v7535
    %v7963 = vpack.c.b16 %v7543, %v7536
    %v7964 = vpack.c.b16 %v7544, %v7537
    %v7965 = vpack.c.b16 %v7545, %v7538
    %v7966 = vpack.c.b16 %v7546, %v7539
    %v7967 = vpack.c.b16 %v7554, %v7547
    %v7968 = vpack.c.b16 %v7555, %v7548
    %v7969 = vpack.c.b16 %v7556, %v7549
    %v7970 = vpack.c.b16 %v7557, %v7550
    %v7971 = vpack.c.b16 %v7558, %v7551
    %v7972 = vpack.c.b16 %v7559, %v7552
    %v7973 = vpack.c.b16 %v7560, %v7553
    %v7974 = vpack.c.b16 %v7568, %v7561
    %v7975 = vpack.c.b16 %v7569, %v7562
    %v7976 = vpack.c.b16 %v7570, %v7563
    %v7977 = vpack.c.b16 %v7571, %v7564
    %v7978 = vpack.c.b16 %v7572, %v7565
    %v7979 = vpack.c.b16 %v7573, %v7566
    %v7980 = vpack.c.b16 %v7574, %v7567
    %v7981 = vpack.c.b16 %v7582, %v7575
    %v7982 = vpack.c.b16 %v7583, %v7576
    %v7983 = vpack.c.b16 %v7584, %v7577
    %v7984 = vpack.c.b16 %v7585, %v7578
    %v7985 = vpack.c.b16 %v7586, %v7579
    %v7986 = vpack.c.b16 %v7587, %v7580
    %v7987 = vpack.c.b16 %v7588, %v7581
    %v7988 = vpack.c.b16 %v7596, %v7589
    %v7989 = vpack.c.b16 %v7597, %v7590
    %v7990 = vpack.c.b16 %v7598, %v7591
    %v7991 = vpack.c.b16 %v7599, %v7592
    %v7992 = vpack.c.b16 %v7600, %v7593
    %v7993 = vpack.c.b16 %v7601, %v7594
    %v7994 = vpack.c.b16 %v7602, %v7595
    %8387 = vmatprep.subr.bf16.mxu0 %v7653
    %8388 = vmatpush1.bf16.msra.mxu0 %v7652
    %8389 = vmatprep.subr.bf16.mxu0 %v7646
    %8390 = vmatpush1.bf16.msra.mxu0 %v7645
    %8391 = vmatprep.subr.bf16.mxu0 %v7639
    %8392 = vmatpush1.bf16.msra.mxu0 %v7638
    %8393 = vmatprep.subr.bf16.mxu0 %v7632
    %8394 = vmatpush1.bf16.msra.mxu0 %v7631
    %8395 = vmatprep.subr.bf16.mxu0 %v7625
    %8396 = vmatpush1.bf16.msra.mxu0 %v7624
    %8397 = vmatprep.subr.bf16.mxu0 %v7618
    %8398 = vmatpush1.bf16.msra.mxu0 %v7617
    %8399 = vmatprep.subr.bf16.mxu0 %v7611
    %8400 = vmatpush1.bf16.msra.mxu0 %v7610
    %8401 = vmatprep.subr.bf16.mxu0 %v7604
    %8402 = vmatpush1.bf16.msra.mxu0 %v7603
    %8403 = vmatprep.subr.bf16.mxu0 %v7709
    %8404 = vmatpush2.bf16.msra.mxu0 %v7708
    %8405 = vmatprep.subr.bf16.mxu0 %v7702
    %8406 = vmatpush2.bf16.msra.mxu0 %v7701
    %8407 = vmatprep.subr.bf16.mxu0 %v7695
    %8408 = vmatpush2.bf16.msra.mxu0 %v7694
    %8409 = vmatprep.subr.bf16.mxu0 %v7688
    %8410 = vmatpush2.bf16.msra.mxu0 %v7687
    %8411 = vmatprep.subr.bf16.mxu0 %v7681
    %8412 = vmatpush2.bf16.msra.mxu0 %v7680
    %8413 = vmatprep.subr.bf16.mxu0 %v7674
    %8414 = vmatpush2.bf16.msra.mxu0 %v7673
    %8415 = vmatprep.subr.bf16.mxu0 %v7667
    %8416 = vmatpush2.bf16.msra.mxu0 %v7666
    %8417 = vmatprep.subr.bf16.mxu0 %v7660
    %8418 = vmatpush2.bf16.msra.mxu0 %v7659
    %8419 = vmatprep.mubr.bf16.mxu0 %v314
    %8420 = vmatmul.mubr.bf16.gmra.mxu0 %v313
    %v8421 = vpop.f32.mrf.mxu0
    %v8422 = vadd.f32 %v6339, %v8421
    %v8423 = vpop.f32.mrf.mxu0
    %v8424 = vadd.f32 %v6343, %v8423
    %v8425 = vpop.f32.mrf.mxu0
    %v8426 = vadd.f32 %v6339, %v8425
    %v8427 = vpop.f32.mrf.mxu0
    %v8428 = vadd.f32 %v6343, %v8427
    %8429 = vmatprep.mubr.bf16.mxu0 %v321
    %8430 = vmatmul.mubr.bf16.gmra.mxu0 %v320
    %v8431 = vpop.f32.mrf.mxu0
    %v8432 = vadd.f32 %v6339, %v8431
    %v8433 = vpop.f32.mrf.mxu0
    %v8434 = vadd.f32 %v6343, %v8433
    %v8435 = vpop.f32.mrf.mxu0
    %v8436 = vadd.f32 %v6339, %v8435
    %v8437 = vpop.f32.mrf.mxu0
    %v8438 = vadd.f32 %v6343, %v8437
    %8439 = vmatprep.mubr.bf16.mxu0 %v328
    %8440 = vmatmul.mubr.bf16.gmra.mxu0 %v327
    %v8441 = vpop.f32.mrf.mxu0
    %v8442 = vadd.f32 %v6339, %v8441
    %v8443 = vpop.f32.mrf.mxu0
    %v8444 = vadd.f32 %v6343, %v8443
    %v8445 = vpop.f32.mrf.mxu0
    %v8446 = vadd.f32 %v6339, %v8445
    %v8447 = vpop.f32.mrf.mxu0
    %v8448 = vadd.f32 %v6343, %v8447
    %8449 = vmatprep.mubr.bf16.mxu0 %v335
    %8450 = vmatmul.mubr.bf16.gmra.mxu0 %v334
    %v8451 = vpop.f32.mrf.mxu0
    %v8452 = vadd.f32 %v6339, %v8451
    %v8453 = vpop.f32.mrf.mxu0
    %v8454 = vadd.f32 %v6343, %v8453
    %v8455 = vpop.f32.mrf.mxu0
    %v8456 = vadd.f32 %v6339, %v8455
    %v8457 = vpop.f32.mrf.mxu0
    %v8458 = vadd.f32 %v6343, %v8457
    %8459 = vmatprep.mubr.bf16.mxu0 %v342
    %8460 = vmatmul.mubr.bf16.gmra.mxu0 %v341
    %v8461 = vpop.f32.mrf.mxu0
    %v8462 = vadd.f32 %v6339, %v8461
    %v8463 = vpop.f32.mrf.mxu0
    %v8464 = vadd.f32 %v6343, %v8463
    %v8465 = vpop.f32.mrf.mxu0
    %v8466 = vadd.f32 %v6339, %v8465
    %v8467 = vpop.f32.mrf.mxu0
    %v8468 = vadd.f32 %v6343, %v8467
    %8469 = vmatprep.mubr.bf16.mxu0 %v349
    %8470 = vmatmul.mubr.bf16.gmra.mxu0 %v348
    %v8471 = vpop.f32.mrf.mxu0
    %v8472 = vadd.f32 %v6339, %v8471
    %v8473 = vpop.f32.mrf.mxu0
    %v8474 = vadd.f32 %v6343, %v8473
    %v8475 = vpop.f32.mrf.mxu0
    %v8476 = vadd.f32 %v6339, %v8475
    %v8477 = vpop.f32.mrf.mxu0
    %v8478 = vadd.f32 %v6343, %v8477
    %8479 = vmatprep.mubr.bf16.mxu0 %v356
    %8480 = vmatmul.mubr.bf16.gmra.mxu0 %v355
    %v8481 = vpop.f32.mrf.mxu0
    %v8482 = vadd.f32 %v6339, %v8481
    %v8483 = vpop.f32.mrf.mxu0
    %v8484 = vadd.f32 %v6343, %v8483
    %v8485 = vpop.f32.mrf.mxu0
    %v8486 = vadd.f32 %v6339, %v8485
    %v8487 = vpop.f32.mrf.mxu0
    %v8488 = vadd.f32 %v6343, %v8487
    %8489 = vmatprep.mubr.bf16.mxu0 %v363
    %8490 = vmatmul.mubr.bf16.gmra.mxu0 %v362
    %v8491 = vpop.f32.mrf.mxu0
    %v8492 = vadd.f32 %v6339, %v8491
    %v8493 = vpop.f32.mrf.mxu0
    %v8494 = vadd.f32 %v6343, %v8493
    %v8495 = vpop.f32.mrf.mxu0
    %v8496 = vadd.f32 %v6339, %v8495
    %v8497 = vpop.f32.mrf.mxu0
    %v8498 = vadd.f32 %v6343, %v8497
    %8499 = vmatprep.mubr.bf16.mxu0 %v370
    %8500 = vmatmul.mubr.bf16.gmra.mxu0 %v369
    %v8501 = vpop.f32.mrf.mxu0
    %v8502 = vadd.f32 %v6339, %v8501
    %v8503 = vpop.f32.mrf.mxu0
    %v8504 = vadd.f32 %v6343, %v8503
    %v8505 = vpop.f32.mrf.mxu0
    %v8506 = vadd.f32 %v6339, %v8505
    %v8507 = vpop.f32.mrf.mxu0
    %v8508 = vadd.f32 %v6343, %v8507
    %8509 = vmatprep.mubr.bf16.mxu0 %v377
    %8510 = vmatmul.mubr.bf16.gmra.mxu0 %v376
    %v8511 = vpop.f32.mrf.mxu0
    %v8512 = vadd.f32 %v6339, %v8511
    %v8513 = vpop.f32.mrf.mxu0
    %v8514 = vadd.f32 %v6343, %v8513
    %v8515 = vpop.f32.mrf.mxu0
    %v8516 = vadd.f32 %v6339, %v8515
    %v8517 = vpop.f32.mrf.mxu0
    %v8518 = vadd.f32 %v6343, %v8517
    %8519 = vmatprep.mubr.bf16.mxu0 %v384
    %8520 = vmatmul.mubr.bf16.gmra.mxu0 %v383
    %v8521 = vpop.f32.mrf.mxu0
    %v8522 = vadd.f32 %v6339, %v8521
    %v8523 = vpop.f32.mrf.mxu0
    %v8524 = vadd.f32 %v6343, %v8523
    %v8525 = vpop.f32.mrf.mxu0
    %v8526 = vadd.f32 %v6339, %v8525
    %v8527 = vpop.f32.mrf.mxu0
    %v8528 = vadd.f32 %v6343, %v8527
    %8529 = vmatprep.mubr.bf16.mxu0 %v391
    %8530 = vmatmul.mubr.bf16.gmra.mxu0 %v390
    %v8531 = vpop.f32.mrf.mxu0
    %v8532 = vadd.f32 %v6339, %v8531
    %v8533 = vpop.f32.mrf.mxu0
    %v8534 = vadd.f32 %v6343, %v8533
    %v8535 = vpop.f32.mrf.mxu0
    %v8536 = vadd.f32 %v6339, %v8535
    %v8537 = vpop.f32.mrf.mxu0
    %v8538 = vadd.f32 %v6343, %v8537
    %8539 = vmatprep.mubr.bf16.mxu0 %v398
    %8540 = vmatmul.mubr.bf16.gmra.mxu0 %v397
    %v8541 = vpop.f32.mrf.mxu0
    %v8542 = vadd.f32 %v6339, %v8541
    %v8543 = vpop.f32.mrf.mxu0
    %v8544 = vadd.f32 %v6343, %v8543
    %v8545 = vpop.f32.mrf.mxu0
    %v8546 = vadd.f32 %v6339, %v8545
    %v8547 = vpop.f32.mrf.mxu0
    %v8548 = vadd.f32 %v6343, %v8547
    %8549 = vmatprep.mubr.bf16.mxu0 %v405
    %8550 = vmatmul.mubr.bf16.gmra.mxu0 %v404
    %v8551 = vpop.f32.mrf.mxu0
    %v8552 = vadd.f32 %v6339, %v8551
    %v8553 = vpop.f32.mrf.mxu0
    %v8554 = vadd.f32 %v6343, %v8553
    %v8555 = vpop.f32.mrf.mxu0
    %v8556 = vadd.f32 %v6339, %v8555
    %v8557 = vpop.f32.mrf.mxu0
    %v8558 = vadd.f32 %v6343, %v8557
    %8559 = vmatprep.mubr.bf16.mxu0 %v412
    %8560 = vmatmul.mubr.bf16.gmra.mxu0 %v411
    %v8561 = vpop.f32.mrf.mxu0
    %v8562 = vadd.f32 %v6339, %v8561
    %v8563 = vpop.f32.mrf.mxu0
    %v8564 = vadd.f32 %v6343, %v8563
    %v8565 = vpop.f32.mrf.mxu0
    %v8566 = vadd.f32 %v6339, %v8565
    %v8567 = vpop.f32.mrf.mxu0
    %v8568 = vadd.f32 %v6343, %v8567
    %8569 = vmatprep.mubr.bf16.mxu0 %v419
    %8570 = vmatmul.mubr.bf16.gmra.mxu0 %v418
    %v8571 = vpop.f32.mrf.mxu0
    %v8572 = vadd.f32 %v6339, %v8571
    %v8573 = vpop.f32.mrf.mxu0
    %v8574 = vadd.f32 %v6343, %v8573
    %v8575 = vpop.f32.mrf.mxu0
    %v8576 = vadd.f32 %v6339, %v8575
    %v8577 = vpop.f32.mrf.mxu0
    %v8578 = vadd.f32 %v6343, %v8577
    %8579 = vdwg.mxu0
    %8580 = vmatprep.subr.bf16.mxu0 %v7765
    %8581 = vmatpush1.bf16.msra.mxu0 %v7764
    %8582 = vmatprep.subr.bf16.mxu0 %v7758
    %8583 = vmatpush1.bf16.msra.mxu0 %v7757
    %8584 = vmatprep.subr.bf16.mxu0 %v7751
    %8585 = vmatpush1.bf16.msra.mxu0 %v7750
    %8586 = vmatprep.subr.bf16.mxu0 %v7744
    %8587 = vmatpush1.bf16.msra.mxu0 %v7743
    %8588 = vmatprep.subr.bf16.mxu0 %v7737
    %8589 = vmatpush1.bf16.msra.mxu0 %v7736
    %8590 = vmatprep.subr.bf16.mxu0 %v7730
    %8591 = vmatpush1.bf16.msra.mxu0 %v7729
    %8592 = vmatprep.subr.bf16.mxu0 %v7723
    %8593 = vmatpush1.bf16.msra.mxu0 %v7722
    %8594 = vmatprep.subr.bf16.mxu0 %v7716
    %8595 = vmatpush1.bf16.msra.mxu0 %v7715
    %8596 = vmatprep.subr.bf16.mxu0 %v7821
    %8597 = vmatpush2.bf16.msra.mxu0 %v7820
    %8598 = vmatprep.subr.bf16.mxu0 %v7814
    %8599 = vmatpush2.bf16.msra.mxu0 %v7813
    %8600 = vmatprep.subr.bf16.mxu0 %v7807
    %8601 = vmatpush2.bf16.msra.mxu0 %v7806
    %8602 = vmatprep.subr.bf16.mxu0 %v7800
    %8603 = vmatpush2.bf16.msra.mxu0 %v7799
    %8604 = vmatprep.subr.bf16.mxu0 %v7793
    %8605 = vmatpush2.bf16.msra.mxu0 %v7792
    %8606 = vmatprep.subr.bf16.mxu0 %v7786
    %8607 = vmatpush2.bf16.msra.mxu0 %v7785
    %8608 = vmatprep.subr.bf16.mxu0 %v7779
    %8609 = vmatpush2.bf16.msra.mxu0 %v7778
    %8610 = vmatprep.subr.bf16.mxu0 %v7772
    %8611 = vmatpush2.bf16.msra.mxu0 %v7771
    %8612 = vmatprep.mubr.bf16.mxu0 %v316
    %8613 = vmatmul.mubr.bf16.gmra.mxu0 %v315
    %v8614 = vpop.f32.mrf.mxu0
    %v8615 = vadd.f32 %v8422, %v8614
    %v8616 = vpop.f32.mrf.mxu0
    %v8617 = vadd.f32 %v8424, %v8616
    %v8618 = vpop.f32.mrf.mxu0
    %v8619 = vadd.f32 %v8426, %v8618
    %v8620 = vpop.f32.mrf.mxu0
    %v8621 = vadd.f32 %v8428, %v8620
    %8622 = vmatprep.mubr.bf16.mxu0 %v323
    %8623 = vmatmul.mubr.bf16.gmra.mxu0 %v322
    %v8624 = vpop.f32.mrf.mxu0
    %v8625 = vadd.f32 %v8432, %v8624
    %v8626 = vpop.f32.mrf.mxu0
    %v8627 = vadd.f32 %v8434, %v8626
    %v8628 = vpop.f32.mrf.mxu0
    %v8629 = vadd.f32 %v8436, %v8628
    %v8630 = vpop.f32.mrf.mxu0
    %v8631 = vadd.f32 %v8438, %v8630
    %8632 = vmatprep.mubr.bf16.mxu0 %v330
    %8633 = vmatmul.mubr.bf16.gmra.mxu0 %v329
    %v8634 = vpop.f32.mrf.mxu0
    %v8635 = vadd.f32 %v8442, %v8634
    %v8636 = vpop.f32.mrf.mxu0
    %v8637 = vadd.f32 %v8444, %v8636
    %v8638 = vpop.f32.mrf.mxu0
    %v8639 = vadd.f32 %v8446, %v8638
    %v8640 = vpop.f32.mrf.mxu0
    %v8641 = vadd.f32 %v8448, %v8640
    %8642 = vmatprep.mubr.bf16.mxu0 %v337
    %8643 = vmatmul.mubr.bf16.gmra.mxu0 %v336
    %v8644 = vpop.f32.mrf.mxu0
    %v8645 = vadd.f32 %v8452, %v8644
    %v8646 = vpop.f32.mrf.mxu0
    %v8647 = vadd.f32 %v8454, %v8646
    %v8648 = vpop.f32.mrf.mxu0
    %v8649 = vadd.f32 %v8456, %v8648
    %v8650 = vpop.f32.mrf.mxu0
    %v8651 = vadd.f32 %v8458, %v8650
    %8652 = vmatprep.mubr.bf16.mxu0 %v344
    %8653 = vmatmul.mubr.bf16.gmra.mxu0 %v343
    %v8654 = vpop.f32.mrf.mxu0
    %v8655 = vadd.f32 %v8462, %v8654
    %v8656 = vpop.f32.mrf.mxu0
    %v8657 = vadd.f32 %v8464, %v8656
    %v8658 = vpop.f32.mrf.mxu0
    %v8659 = vadd.f32 %v8466, %v8658
    %v8660 = vpop.f32.mrf.mxu0
    %v8661 = vadd.f32 %v8468, %v8660
    %8662 = vmatprep.mubr.bf16.mxu0 %v351
    %8663 = vmatmul.mubr.bf16.gmra.mxu0 %v350
    %v8664 = vpop.f32.mrf.mxu0
    %v8665 = vadd.f32 %v8472, %v8664
    %v8666 = vpop.f32.mrf.mxu0
    %v8667 = vadd.f32 %v8474, %v8666
    %v8668 = vpop.f32.mrf.mxu0
    %v8669 = vadd.f32 %v8476, %v8668
    %v8670 = vpop.f32.mrf.mxu0
    %v8671 = vadd.f32 %v8478, %v8670
    %8672 = vmatprep.mubr.bf16.mxu0 %v358
    %8673 = vmatmul.mubr.bf16.gmra.mxu0 %v357
    %v8674 = vpop.f32.mrf.mxu0
    %v8675 = vadd.f32 %v8482, %v8674
    %v8676 = vpop.f32.mrf.mxu0
    %v8677 = vadd.f32 %v8484, %v8676
    %v8678 = vpop.f32.mrf.mxu0
    %v8679 = vadd.f32 %v8486, %v8678
    %v8680 = vpop.f32.mrf.mxu0
    %v8681 = vadd.f32 %v8488, %v8680
    %8682 = vmatprep.mubr.bf16.mxu0 %v365
    %8683 = vmatmul.mubr.bf16.gmra.mxu0 %v364
    %v8684 = vpop.f32.mrf.mxu0
    %v8685 = vadd.f32 %v8492, %v8684
    %v8686 = vpop.f32.mrf.mxu0
    %v8687 = vadd.f32 %v8494, %v8686
    %v8688 = vpop.f32.mrf.mxu0
    %v8689 = vadd.f32 %v8496, %v8688
    %v8690 = vpop.f32.mrf.mxu0
    %v8691 = vadd.f32 %v8498, %v8690
    %8692 = vmatprep.mubr.bf16.mxu0 %v372
    %8693 = vmatmul.mubr.bf16.gmra.mxu0 %v371
    %v8694 = vpop.f32.mrf.mxu0
    %v8695 = vadd.f32 %v8502, %v8694
    %v8696 = vpop.f32.mrf.mxu0
    %v8697 = vadd.f32 %v8504, %v8696
    %v8698 = vpop.f32.mrf.mxu0
    %v8699 = vadd.f32 %v8506, %v8698
    %v8700 = vpop.f32.mrf.mxu0
    %v8701 = vadd.f32 %v8508, %v8700
    %8702 = vmatprep.mubr.bf16.mxu0 %v379
    %8703 = vmatmul.mubr.bf16.gmra.mxu0 %v378
    %v8704 = vpop.f32.mrf.mxu0
    %v8705 = vadd.f32 %v8512, %v8704
    %v8706 = vpop.f32.mrf.mxu0
    %v8707 = vadd.f32 %v8514, %v8706
    %v8708 = vpop.f32.mrf.mxu0
    %v8709 = vadd.f32 %v8516, %v8708
    %v8710 = vpop.f32.mrf.mxu0
    %v8711 = vadd.f32 %v8518, %v8710
    %8712 = vmatprep.mubr.bf16.mxu0 %v386
    %8713 = vmatmul.mubr.bf16.gmra.mxu0 %v385
    %v8714 = vpop.f32.mrf.mxu0
    %v8715 = vadd.f32 %v8522, %v8714
    %v8716 = vpop.f32.mrf.mxu0
    %v8717 = vadd.f32 %v8524, %v8716
    %v8718 = vpop.f32.mrf.mxu0
    %v8719 = vadd.f32 %v8526, %v8718
    %v8720 = vpop.f32.mrf.mxu0
    %v8721 = vadd.f32 %v8528, %v8720
    %8722 = vmatprep.mubr.bf16.mxu0 %v393
    %8723 = vmatmul.mubr.bf16.gmra.mxu0 %v392
    %v8724 = vpop.f32.mrf.mxu0
    %v8725 = vadd.f32 %v8532, %v8724
    %v8726 = vpop.f32.mrf.mxu0
    %v8727 = vadd.f32 %v8534, %v8726
    %v8728 = vpop.f32.mrf.mxu0
    %v8729 = vadd.f32 %v8536, %v8728
    %v8730 = vpop.f32.mrf.mxu0
    %v8731 = vadd.f32 %v8538, %v8730
    %8732 = vmatprep.mubr.bf16.mxu0 %v400
    %8733 = vmatmul.mubr.bf16.gmra.mxu0 %v399
    %v8734 = vpop.f32.mrf.mxu0
    %v8735 = vadd.f32 %v8542, %v8734
    %v8736 = vpop.f32.mrf.mxu0
    %v8737 = vadd.f32 %v8544, %v8736
    %v8738 = vpop.f32.mrf.mxu0
    %v8739 = vadd.f32 %v8546, %v8738
    %v8740 = vpop.f32.mrf.mxu0
    %v8741 = vadd.f32 %v8548, %v8740
    %8742 = vmatprep.mubr.bf16.mxu0 %v407
    %8743 = vmatmul.mubr.bf16.gmra.mxu0 %v406
    %v8744 = vpop.f32.mrf.mxu0
    %v8745 = vadd.f32 %v8552, %v8744
    %v8746 = vpop.f32.mrf.mxu0
    %v8747 = vadd.f32 %v8554, %v8746
    %v8748 = vpop.f32.mrf.mxu0
    %v8749 = vadd.f32 %v8556, %v8748
    %v8750 = vpop.f32.mrf.mxu0
    %v8751 = vadd.f32 %v8558, %v8750
    %8752 = vmatprep.mubr.bf16.mxu0 %v414
    %8753 = vmatmul.mubr.bf16.gmra.mxu0 %v413
    %v8754 = vpop.f32.mrf.mxu0
    %v8755 = vadd.f32 %v8562, %v8754
    %v8756 = vpop.f32.mrf.mxu0
    %v8757 = vadd.f32 %v8564, %v8756
    %v8758 = vpop.f32.mrf.mxu0
    %v8759 = vadd.f32 %v8566, %v8758
    %v8760 = vpop.f32.mrf.mxu0
    %v8761 = vadd.f32 %v8568, %v8760
    %8762 = vmatprep.mubr.bf16.mxu0 %v421
    %8763 = vmatmul.mubr.bf16.gmra.mxu0 %v420
    %v8764 = vpop.f32.mrf.mxu0
    %v8765 = vadd.f32 %v8572, %v8764
    %v8766 = vpop.f32.mrf.mxu0
    %v8767 = vadd.f32 %v8574, %v8766
    %v8768 = vpop.f32.mrf.mxu0
    %v8769 = vadd.f32 %v8576, %v8768
    %v8770 = vpop.f32.mrf.mxu0
    %v8771 = vadd.f32 %v8578, %v8770
    %8772 = vdwg.mxu0
    %8773 = vmatprep.subr.bf16.mxu0 %v7877
    %8774 = vmatpush1.bf16.msra.mxu0 %v7876
    %8775 = vmatprep.subr.bf16.mxu0 %v7870
    %8776 = vmatpush1.bf16.msra.mxu0 %v7869
    %8777 = vmatprep.subr.bf16.mxu0 %v7863
    %8778 = vmatpush1.bf16.msra.mxu0 %v7862
    %8779 = vmatprep.subr.bf16.mxu0 %v7856
    %8780 = vmatpush1.bf16.msra.mxu0 %v7855
    %8781 = vmatprep.subr.bf16.mxu0 %v7849
    %8782 = vmatpush1.bf16.msra.mxu0 %v7848
    %8783 = vmatprep.subr.bf16.mxu0 %v7842
    %8784 = vmatpush1.bf16.msra.mxu0 %v7841
    %8785 = vmatprep.subr.bf16.mxu0 %v7835
    %8786 = vmatpush1.bf16.msra.mxu0 %v7834
    %8787 = vmatprep.subr.bf16.mxu0 %v7828
    %8788 = vmatpush1.bf16.msra.mxu0 %v7827
    %8789 = vmatprep.subr.bf16.mxu0 %v7933
    %8790 = vmatpush2.bf16.msra.mxu0 %v7932
    %8791 = vmatprep.subr.bf16.mxu0 %v7926
    %8792 = vmatpush2.bf16.msra.mxu0 %v7925
    %8793 = vmatprep.subr.bf16.mxu0 %v7919
    %8794 = vmatpush2.bf16.msra.mxu0 %v7918
    %8795 = vmatprep.subr.bf16.mxu0 %v7912
    %8796 = vmatpush2.bf16.msra.mxu0 %v7911
    %8797 = vmatprep.subr.bf16.mxu0 %v7905
    %8798 = vmatpush2.bf16.msra.mxu0 %v7904
    %8799 = vmatprep.subr.bf16.mxu0 %v7898
    %8800 = vmatpush2.bf16.msra.mxu0 %v7897
    %8801 = vmatprep.subr.bf16.mxu0 %v7891
    %8802 = vmatpush2.bf16.msra.mxu0 %v7890
    %8803 = vmatprep.subr.bf16.mxu0 %v7884
    %8804 = vmatpush2.bf16.msra.mxu0 %v7883
    %8805 = vmatprep.mubr.bf16.mxu0 %v318
    %8806 = vmatmul.mubr.bf16.gmra.mxu0 %v317
    %v8807 = vpop.f32.mrf.mxu0
    %v8808 = vadd.f32 %v8615, %v8807
    %v8809 = vpop.f32.mrf.mxu0
    %v8810 = vadd.f32 %v8617, %v8809
    %v8811 = vpop.f32.mrf.mxu0
    %v8812 = vadd.f32 %v8619, %v8811
    %v8813 = vpop.f32.mrf.mxu0
    %v8814 = vadd.f32 %v8621, %v8813
    %8815 = vmatprep.mubr.bf16.mxu0 %v325
    %8816 = vmatmul.mubr.bf16.gmra.mxu0 %v324
    %v8817 = vpop.f32.mrf.mxu0
    %v8818 = vadd.f32 %v8625, %v8817
    %v8819 = vpop.f32.mrf.mxu0
    %v8820 = vadd.f32 %v8627, %v8819
    %v8821 = vpop.f32.mrf.mxu0
    %v8822 = vadd.f32 %v8629, %v8821
    %v8823 = vpop.f32.mrf.mxu0
    %v8824 = vadd.f32 %v8631, %v8823
    %8825 = vmatprep.mubr.bf16.mxu0 %v332
    %8826 = vmatmul.mubr.bf16.gmra.mxu0 %v331
    %v8827 = vpop.f32.mrf.mxu0
    %v8828 = vadd.f32 %v8635, %v8827
    %v8829 = vpop.f32.mrf.mxu0
    %v8830 = vadd.f32 %v8637, %v8829
    %v8831 = vpop.f32.mrf.mxu0
    %v8832 = vadd.f32 %v8639, %v8831
    %v8833 = vpop.f32.mrf.mxu0
    %v8834 = vadd.f32 %v8641, %v8833
    %8835 = vmatprep.mubr.bf16.mxu0 %v339
    %8836 = vmatmul.mubr.bf16.gmra.mxu0 %v338
    %v8837 = vpop.f32.mrf.mxu0
    %v8838 = vadd.f32 %v8645, %v8837
    %v8839 = vpop.f32.mrf.mxu0
    %v8840 = vadd.f32 %v8647, %v8839
    %v8841 = vpop.f32.mrf.mxu0
    %v8842 = vadd.f32 %v8649, %v8841
    %v8843 = vpop.f32.mrf.mxu0
    %v8844 = vadd.f32 %v8651, %v8843
    %8845 = vmatprep.mubr.bf16.mxu0 %v346
    %8846 = vmatmul.mubr.bf16.gmra.mxu0 %v345
    %v8847 = vpop.f32.mrf.mxu0
    %v8848 = vadd.f32 %v8655, %v8847
    %v8849 = vpop.f32.mrf.mxu0
    %v8850 = vadd.f32 %v8657, %v8849
    %v8851 = vpop.f32.mrf.mxu0
    %v8852 = vadd.f32 %v8659, %v8851
    %v8853 = vpop.f32.mrf.mxu0
    %v8854 = vadd.f32 %v8661, %v8853
    %8855 = vmatprep.mubr.bf16.mxu0 %v353
    %8856 = vmatmul.mubr.bf16.gmra.mxu0 %v352
    %v8857 = vpop.f32.mrf.mxu0
    %v8858 = vadd.f32 %v8665, %v8857
    %v8859 = vpop.f32.mrf.mxu0
    %v8860 = vadd.f32 %v8667, %v8859
    %v8861 = vpop.f32.mrf.mxu0
    %v8862 = vadd.f32 %v8669, %v8861
    %v8863 = vpop.f32.mrf.mxu0
    %v8864 = vadd.f32 %v8671, %v8863
    %8865 = vmatprep.mubr.bf16.mxu0 %v360
    %8866 = vmatmul.mubr.bf16.gmra.mxu0 %v359
    %v8867 = vpop.f32.mrf.mxu0
    %v8868 = vadd.f32 %v8675, %v8867
    %v8869 = vpop.f32.mrf.mxu0
    %v8870 = vadd.f32 %v8677, %v8869
    %v8871 = vpop.f32.mrf.mxu0
    %v8872 = vadd.f32 %v8679, %v8871
    %v8873 = vpop.f32.mrf.mxu0
    %v8874 = vadd.f32 %v8681, %v8873
    %8875 = vmatprep.mubr.bf16.mxu0 %v367
    %8876 = vmatmul.mubr.bf16.gmra.mxu0 %v366
    %v8877 = vpop.f32.mrf.mxu0
    %v8878 = vadd.f32 %v8685, %v8877
    %v8879 = vpop.f32.mrf.mxu0
    %v8880 = vadd.f32 %v8687, %v8879
    %v8881 = vpop.f32.mrf.mxu0
    %v8882 = vadd.f32 %v8689, %v8881
    %v8883 = vpop.f32.mrf.mxu0
    %v8884 = vadd.f32 %v8691, %v8883
    %8885 = vmatprep.mubr.bf16.mxu0 %v374
    %8886 = vmatmul.mubr.bf16.gmra.mxu0 %v373
    %v8887 = vpop.f32.mrf.mxu0
    %v8888 = vadd.f32 %v8695, %v8887
    %v8889 = vpop.f32.mrf.mxu0
    %v8890 = vadd.f32 %v8697, %v8889
    %v8891 = vpop.f32.mrf.mxu0
    %v8892 = vadd.f32 %v8699, %v8891
    %v8893 = vpop.f32.mrf.mxu0
    %v8894 = vadd.f32 %v8701, %v8893
    %8895 = vmatprep.mubr.bf16.mxu0 %v381
    %8896 = vmatmul.mubr.bf16.gmra.mxu0 %v380
    %v8897 = vpop.f32.mrf.mxu0
    %v8898 = vadd.f32 %v8705, %v8897
    %v8899 = vpop.f32.mrf.mxu0
    %v8900 = vadd.f32 %v8707, %v8899
    %v8901 = vpop.f32.mrf.mxu0
    %v8902 = vadd.f32 %v8709, %v8901
    %v8903 = vpop.f32.mrf.mxu0
    %v8904 = vadd.f32 %v8711, %v8903
    %8905 = vmatprep.mubr.bf16.mxu0 %v388
    %8906 = vmatmul.mubr.bf16.gmra.mxu0 %v387
    %v8907 = vpop.f32.mrf.mxu0
    %v8908 = vadd.f32 %v8715, %v8907
    %v8909 = vpop.f32.mrf.mxu0
    %v8910 = vadd.f32 %v8717, %v8909
    %v8911 = vpop.f32.mrf.mxu0
    %v8912 = vadd.f32 %v8719, %v8911
    %v8913 = vpop.f32.mrf.mxu0
    %v8914 = vadd.f32 %v8721, %v8913
    %8915 = vmatprep.mubr.bf16.mxu0 %v395
    %8916 = vmatmul.mubr.bf16.gmra.mxu0 %v394
    %v8917 = vpop.f32.mrf.mxu0
    %v8918 = vadd.f32 %v8725, %v8917
    %v8919 = vpop.f32.mrf.mxu0
    %v8920 = vadd.f32 %v8727, %v8919
    %v8921 = vpop.f32.mrf.mxu0
    %v8922 = vadd.f32 %v8729, %v8921
    %v8923 = vpop.f32.mrf.mxu0
    %v8924 = vadd.f32 %v8731, %v8923
    %8925 = vmatprep.mubr.bf16.mxu0 %v402
    %8926 = vmatmul.mubr.bf16.gmra.mxu0 %v401
    %v8927 = vpop.f32.mrf.mxu0
    %v8928 = vadd.f32 %v8735, %v8927
    %v8929 = vpop.f32.mrf.mxu0
    %v8930 = vadd.f32 %v8737, %v8929
    %v8931 = vpop.f32.mrf.mxu0
    %v8932 = vadd.f32 %v8739, %v8931
    %v8933 = vpop.f32.mrf.mxu0
    %v8934 = vadd.f32 %v8741, %v8933
    %8935 = vmatprep.mubr.bf16.mxu0 %v409
    %8936 = vmatmul.mubr.bf16.gmra.mxu0 %v408
    %v8937 = vpop.f32.mrf.mxu0
    %v8938 = vadd.f32 %v8745, %v8937
    %v8939 = vpop.f32.mrf.mxu0
    %v8940 = vadd.f32 %v8747, %v8939
    %v8941 = vpop.f32.mrf.mxu0
    %v8942 = vadd.f32 %v8749, %v8941
    %v8943 = vpop.f32.mrf.mxu0
    %v8944 = vadd.f32 %v8751, %v8943
    %8945 = vmatprep.mubr.bf16.mxu0 %v416
    %8946 = vmatmul.mubr.bf16.gmra.mxu0 %v415
    %v8947 = vpop.f32.mrf.mxu0
    %v8948 = vadd.f32 %v8755, %v8947
    %v8949 = vpop.f32.mrf.mxu0
    %v8950 = vadd.f32 %v8757, %v8949
    %v8951 = vpop.f32.mrf.mxu0
    %v8952 = vadd.f32 %v8759, %v8951
    %v8953 = vpop.f32.mrf.mxu0
    %v8954 = vadd.f32 %v8761, %v8953
    %8955 = vmatprep.mubr.bf16.mxu0 %v423
    %8956 = vmatmul.mubr.bf16.gmra.mxu0 %v422
    %v8957 = vpop.f32.mrf.mxu0
    %v8958 = vadd.f32 %v8765, %v8957
    %v8959 = vpop.f32.mrf.mxu0
    %v8960 = vadd.f32 %v8767, %v8959
    %v8961 = vpop.f32.mrf.mxu0
    %v8962 = vadd.f32 %v8769, %v8961
    %v8963 = vpop.f32.mrf.mxu0
    %v8964 = vadd.f32 %v8771, %v8963
    %8965 = vdwg.mxu0
    %8966 = vmatprep.subr.bf16.mxu0 %v7989
    %8967 = vmatpush1.bf16.msra.mxu0 %v7988
    %8968 = vmatprep.subr.bf16.mxu0 %v7982
    %8969 = vmatpush1.bf16.msra.mxu0 %v7981
    %8970 = vmatprep.subr.bf16.mxu0 %v7975
    %8971 = vmatpush1.bf16.msra.mxu0 %v7974
    %8972 = vmatprep.subr.bf16.mxu0 %v7968
    %8973 = vmatpush1.bf16.msra.mxu0 %v7967
    %8974 = vmatprep.subr.bf16.mxu0 %v7961
    %8975 = vmatpush1.bf16.msra.mxu0 %v7960
    %8976 = vmatprep.subr.bf16.mxu0 %v7954
    %8977 = vmatpush1.bf16.msra.mxu0 %v7953
    %8978 = vmatprep.subr.bf16.mxu0 %v7947
    %8979 = vmatpush1.bf16.msra.mxu0 %v7946
    %8980 = vmatprep.subr.bf16.mxu0 %v7940
    %8981 = vmatpush1.bf16.msra.mxu0 %v7939
    %8982 = vmatprep.subr.bf16.mxu0 0
    %8983 = vmatpush2.bf16.msra.mxu0 0
    %8984 = vmatprep.subr.bf16.mxu0 0
    %8985 = vmatpush2.bf16.msra.mxu0 0
    %8986 = vmatprep.subr.bf16.mxu0 0
    %8987 = vmatpush2.bf16.msra.mxu0 0
    %8988 = vmatprep.subr.bf16.mxu0 0
    %8989 = vmatpush2.bf16.msra.mxu0 0
    %8990 = vmatprep.subr.bf16.mxu0 0
    %8991 = vmatpush2.bf16.msra.mxu0 0
    %8992 = vmatprep.subr.bf16.mxu0 0
    %8993 = vmatpush2.bf16.msra.mxu0 0
    %8994 = vmatprep.subr.bf16.mxu0 0
    %8995 = vmatpush2.bf16.msra.mxu0 0
    %8996 = vmatprep.subr.bf16.mxu0 0
    %8997 = vmatpush2.bf16.msra.mxu0 0
    %8998 = vmatprep.mubr.bf16.mxu0 0
    %8999 = vmatmul.mubr.bf16.gmra.mxu0 %v319
    %v9000 = vpop.f32.mrf.mxu0
    %v9001 = vadd.f32 %v8808, %v9000
    %v9002 = vpop.f32.mrf.mxu0
    %v9003 = vadd.f32 %v8810, %v9002
    %v9004 = vpop.f32.mrf.mxu0
    %v9005 = vadd.f32 %v8812, %v9004
    %v9006 = vpop.f32.mrf.mxu0
    %v9007 = vadd.f32 %v8814, %v9006
    %9008 = vmatprep.mubr.bf16.mxu0 0
    %9009 = vmatmul.mubr.bf16.gmra.mxu0 %v326
    %v9010 = vpop.f32.mrf.mxu0
    %v9011 = vadd.f32 %v8818, %v9010
    %v9012 = vpop.f32.mrf.mxu0
    %v9013 = vadd.f32 %v8820, %v9012
    %v9014 = vpop.f32.mrf.mxu0
    %v9015 = vadd.f32 %v8822, %v9014
    %v9016 = vpop.f32.mrf.mxu0
    %v9017 = vadd.f32 %v8824, %v9016
    %9018 = vmatprep.mubr.bf16.mxu0 0
    %9019 = vmatmul.mubr.bf16.gmra.mxu0 %v333
    %v9020 = vpop.f32.mrf.mxu0
    %v9021 = vadd.f32 %v8828, %v9020
    %v9022 = vpop.f32.mrf.mxu0
    %v9023 = vadd.f32 %v8830, %v9022
    %v9024 = vpop.f32.mrf.mxu0
    %v9025 = vadd.f32 %v8832, %v9024
    %v9026 = vpop.f32.mrf.mxu0
    %v9027 = vadd.f32 %v8834, %v9026
    %9028 = vmatprep.mubr.bf16.mxu0 0
    %9029 = vmatmul.mubr.bf16.gmra.mxu0 %v340
    %v9030 = vpop.f32.mrf.mxu0
    %v9031 = vadd.f32 %v8838, %v9030
    %v9032 = vpop.f32.mrf.mxu0
    %v9033 = vadd.f32 %v8840, %v9032
    %v9034 = vpop.f32.mrf.mxu0
    %v9035 = vadd.f32 %v8842, %v9034
    %v9036 = vpop.f32.mrf.mxu0
    %v9037 = vadd.f32 %v8844, %v9036
    %9038 = vmatprep.mubr.bf16.mxu0 0
    %9039 = vmatmul.mubr.bf16.gmra.mxu0 %v347
    %v9040 = vpop.f32.mrf.mxu0
    %v9041 = vadd.f32 %v8848, %v9040
    %v9042 = vpop.f32.mrf.mxu0
    %v9043 = vadd.f32 %v8850, %v9042
    %v9044 = vpop.f32.mrf.mxu0
    %v9045 = vadd.f32 %v8852, %v9044
    %v9046 = vpop.f32.mrf.mxu0
    %v9047 = vadd.f32 %v8854, %v9046
    %9048 = vmatprep.mubr.bf16.mxu0 0
    %9049 = vmatmul.mubr.bf16.gmra.mxu0 %v354
    %v9050 = vpop.f32.mrf.mxu0
    %v9051 = vadd.f32 %v8858, %v9050
    %v9052 = vpop.f32.mrf.mxu0
    %v9053 = vadd.f32 %v8860, %v9052
    %v9054 = vpop.f32.mrf.mxu0
    %v9055 = vadd.f32 %v8862, %v9054
    %v9056 = vpop.f32.mrf.mxu0
    %v9057 = vadd.f32 %v8864, %v9056
    %9058 = vmatprep.mubr.bf16.mxu0 0
    %9059 = vmatmul.mubr.bf16.gmra.mxu0 %v361
    %v9060 = vpop.f32.mrf.mxu0
    %v9061 = vadd.f32 %v8868, %v9060
    %v9062 = vpop.f32.mrf.mxu0
    %v9063 = vadd.f32 %v8870, %v9062
    %v9064 = vpop.f32.mrf.mxu0
    %v9065 = vadd.f32 %v8872, %v9064
    %v9066 = vpop.f32.mrf.mxu0
    %v9067 = vadd.f32 %v8874, %v9066
    %9068 = vmatprep.mubr.bf16.mxu0 0
    %9069 = vmatmul.mubr.bf16.gmra.mxu0 %v368
    %v9070 = vpop.f32.mrf.mxu0
    %v9071 = vadd.f32 %v8878, %v9070
    %v9072 = vpop.f32.mrf.mxu0
    %v9073 = vadd.f32 %v8880, %v9072
    %v9074 = vpop.f32.mrf.mxu0
    %v9075 = vadd.f32 %v8882, %v9074
    %v9076 = vpop.f32.mrf.mxu0
    %v9077 = vadd.f32 %v8884, %v9076
    %9078 = vmatprep.mubr.bf16.mxu0 0
    %9079 = vmatmul.mubr.bf16.gmra.mxu0 %v375
    %v9080 = vpop.f32.mrf.mxu0
    %v9081 = vadd.f32 %v8888, %v9080
    %v9082 = vpop.f32.mrf.mxu0
    %v9083 = vadd.f32 %v8890, %v9082
    %v9084 = vpop.f32.mrf.mxu0
    %v9085 = vadd.f32 %v8892, %v9084
    %v9086 = vpop.f32.mrf.mxu0
    %v9087 = vadd.f32 %v8894, %v9086
    %9088 = vmatprep.mubr.bf16.mxu0 0
    %9089 = vmatmul.mubr.bf16.gmra.mxu0 %v382
    %v9090 = vpop.f32.mrf.mxu0
    %v9091 = vadd.f32 %v8898, %v9090
    %v9092 = vpop.f32.mrf.mxu0
    %v9093 = vadd.f32 %v8900, %v9092
    %v9094 = vpop.f32.mrf.mxu0
    %v9095 = vadd.f32 %v8902, %v9094
    %v9096 = vpop.f32.mrf.mxu0
    %v9097 = vadd.f32 %v8904, %v9096
    %9098 = vmatprep.mubr.bf16.mxu0 0
    %9099 = vmatmul.mubr.bf16.gmra.mxu0 %v389
    %v9100 = vpop.f32.mrf.mxu0
    %v9101 = vadd.f32 %v8908, %v9100
    %v9102 = vpop.f32.mrf.mxu0
    %v9103 = vadd.f32 %v8910, %v9102
    %v9104 = vpop.f32.mrf.mxu0
    %v9105 = vadd.f32 %v8912, %v9104
    %v9106 = vpop.f32.mrf.mxu0
    %v9107 = vadd.f32 %v8914, %v9106
    %9108 = vmatprep.mubr.bf16.mxu0 0
    %9109 = vmatmul.mubr.bf16.gmra.mxu0 %v396
    %v9110 = vpop.f32.mrf.mxu0
    %v9111 = vadd.f32 %v8918, %v9110
    %v9112 = vpop.f32.mrf.mxu0
    %v9113 = vadd.f32 %v8920, %v9112
    %v9114 = vpop.f32.mrf.mxu0
    %v9115 = vadd.f32 %v8922, %v9114
    %v9116 = vpop.f32.mrf.mxu0
    %v9117 = vadd.f32 %v8924, %v9116
    %9118 = vmatprep.mubr.bf16.mxu0 0
    %9119 = vmatmul.mubr.bf16.gmra.mxu0 %v403
    %v9120 = vpop.f32.mrf.mxu0
    %v9121 = vadd.f32 %v8928, %v9120
    %v9122 = vpop.f32.mrf.mxu0
    %v9123 = vadd.f32 %v8930, %v9122
    %v9124 = vpop.f32.mrf.mxu0
    %v9125 = vadd.f32 %v8932, %v9124
    %v9126 = vpop.f32.mrf.mxu0
    %v9127 = vadd.f32 %v8934, %v9126
    %9128 = vmatprep.mubr.bf16.mxu0 0
    %9129 = vmatmul.mubr.bf16.gmra.mxu0 %v410
    %v9130 = vpop.f32.mrf.mxu0
    %v9131 = vadd.f32 %v8938, %v9130
    %v9132 = vpop.f32.mrf.mxu0
    %v9133 = vadd.f32 %v8940, %v9132
    %v9134 = vpop.f32.mrf.mxu0
    %v9135 = vadd.f32 %v8942, %v9134
    %v9136 = vpop.f32.mrf.mxu0
    %v9137 = vadd.f32 %v8944, %v9136
    %9138 = vmatprep.mubr.bf16.mxu0 0
    %9139 = vmatmul.mubr.bf16.gmra.mxu0 %v417
    %v9140 = vpop.f32.mrf.mxu0
    %v9141 = vadd.f32 %v8948, %v9140
    %v9142 = vpop.f32.mrf.mxu0
    %v9143 = vadd.f32 %v8950, %v9142
    %v9144 = vpop.f32.mrf.mxu0
    %v9145 = vadd.f32 %v8952, %v9144
    %v9146 = vpop.f32.mrf.mxu0
    %v9147 = vadd.f32 %v8954, %v9146
    %9148 = vmatprep.mubr.bf16.mxu0 0
    %9149 = vmatmul.mubr.bf16.gmra.mxu0 %v424
    %v9150 = vpop.f32.mrf.mxu0
    %v9151 = vadd.f32 %v8958, %v9150
    %v9152 = vpop.f32.mrf.mxu0
    %v9153 = vadd.f32 %v8960, %v9152
    %v9154 = vpop.f32.mrf.mxu0
    %v9155 = vadd.f32 %v8962, %v9154
    %v9156 = vpop.f32.mrf.mxu0
    %v9157 = vadd.f32 %v8964, %v9156
    %9158 = vdwg.mxu0
    %9159 = vmatprep.subr.bf16.mxu0 %v7655
    %9160 = vmatpush1.bf16.msra.mxu0 %v7654
    %9161 = vmatprep.subr.bf16.mxu0 %v7648
    %9162 = vmatpush1.bf16.msra.mxu0 %v7647
    %9163 = vmatprep.subr.bf16.mxu0 %v7641
    %9164 = vmatpush1.bf16.msra.mxu0 %v7640
    %9165 = vmatprep.subr.bf16.mxu0 %v7634
    %9166 = vmatpush1.bf16.msra.mxu0 %v7633
    %9167 = vmatprep.subr.bf16.mxu0 %v7627
    %9168 = vmatpush1.bf16.msra.mxu0 %v7626
    %9169 = vmatprep.subr.bf16.mxu0 %v7620
    %9170 = vmatpush1.bf16.msra.mxu0 %v7619
    %9171 = vmatprep.subr.bf16.mxu0 %v7613
    %9172 = vmatpush1.bf16.msra.mxu0 %v7612
    %9173 = vmatprep.subr.bf16.mxu0 %v7606
    %9174 = vmatpush1.bf16.msra.mxu0 %v7605
    %9175 = vmatprep.subr.bf16.mxu0 %v7711
    %9176 = vmatpush2.bf16.msra.mxu0 %v7710
    %9177 = vmatprep.subr.bf16.mxu0 %v7704
    %9178 = vmatpush2.bf16.msra.mxu0 %v7703
    %9179 = vmatprep.subr.bf16.mxu0 %v7697
    %9180 = vmatpush2.bf16.msra.mxu0 %v7696
    %9181 = vmatprep.subr.bf16.mxu0 %v7690
    %9182 = vmatpush2.bf16.msra.mxu0 %v7689
    %9183 = vmatprep.subr.bf16.mxu0 %v7683
    %9184 = vmatpush2.bf16.msra.mxu0 %v7682
    %9185 = vmatprep.subr.bf16.mxu0 %v7676
    %9186 = vmatpush2.bf16.msra.mxu0 %v7675
    %9187 = vmatprep.subr.bf16.mxu0 %v7669
    %9188 = vmatpush2.bf16.msra.mxu0 %v7668
    %9189 = vmatprep.subr.bf16.mxu0 %v7662
    %9190 = vmatpush2.bf16.msra.mxu0 %v7661
    %9191 = vmatprep.mubr.bf16.mxu0 %v314
    %9192 = vmatmul.mubr.bf16.gmra.mxu0 %v313
    %v9193 = vpop.f32.mrf.mxu0
    %v9194 = vadd.f32 %v6347, %v9193
    %v9195 = vpop.f32.mrf.mxu0
    %v9196 = vadd.f32 %v6351, %v9195
    %v9197 = vpop.f32.mrf.mxu0
    %v9198 = vadd.f32 %v6347, %v9197
    %v9199 = vpop.f32.mrf.mxu0
    %v9200 = vadd.f32 %v6351, %v9199
    %9201 = vmatprep.mubr.bf16.mxu0 %v321
    %9202 = vmatmul.mubr.bf16.gmra.mxu0 %v320
    %v9203 = vpop.f32.mrf.mxu0
    %v9204 = vadd.f32 %v6347, %v9203
    %v9205 = vpop.f32.mrf.mxu0
    %v9206 = vadd.f32 %v6351, %v9205
    %v9207 = vpop.f32.mrf.mxu0
    %v9208 = vadd.f32 %v6347, %v9207
    %v9209 = vpop.f32.mrf.mxu0
    %v9210 = vadd.f32 %v6351, %v9209
    %9211 = vmatprep.mubr.bf16.mxu0 %v328
    %9212 = vmatmul.mubr.bf16.gmra.mxu0 %v327
    %v9213 = vpop.f32.mrf.mxu0
    %v9214 = vadd.f32 %v6347, %v9213
    %v9215 = vpop.f32.mrf.mxu0
    %v9216 = vadd.f32 %v6351, %v9215
    %v9217 = vpop.f32.mrf.mxu0
    %v9218 = vadd.f32 %v6347, %v9217
    %v9219 = vpop.f32.mrf.mxu0
    %v9220 = vadd.f32 %v6351, %v9219
    %9221 = vmatprep.mubr.bf16.mxu0 %v335
    %9222 = vmatmul.mubr.bf16.gmra.mxu0 %v334
    %v9223 = vpop.f32.mrf.mxu0
    %v9224 = vadd.f32 %v6347, %v9223
    %v9225 = vpop.f32.mrf.mxu0
    %v9226 = vadd.f32 %v6351, %v9225
    %v9227 = vpop.f32.mrf.mxu0
    %v9228 = vadd.f32 %v6347, %v9227
    %v9229 = vpop.f32.mrf.mxu0
    %v9230 = vadd.f32 %v6351, %v9229
    %9231 = vmatprep.mubr.bf16.mxu0 %v342
    %9232 = vmatmul.mubr.bf16.gmra.mxu0 %v341
    %v9233 = vpop.f32.mrf.mxu0
    %v9234 = vadd.f32 %v6347, %v9233
    %v9235 = vpop.f32.mrf.mxu0
    %v9236 = vadd.f32 %v6351, %v9235
    %v9237 = vpop.f32.mrf.mxu0
    %v9238 = vadd.f32 %v6347, %v9237
    %v9239 = vpop.f32.mrf.mxu0
    %v9240 = vadd.f32 %v6351, %v9239
    %9241 = vmatprep.mubr.bf16.mxu0 %v349
    %9242 = vmatmul.mubr.bf16.gmra.mxu0 %v348
    %v9243 = vpop.f32.mrf.mxu0
    %v9244 = vadd.f32 %v6347, %v9243
    %v9245 = vpop.f32.mrf.mxu0
    %v9246 = vadd.f32 %v6351, %v9245
    %v9247 = vpop.f32.mrf.mxu0
    %v9248 = vadd.f32 %v6347, %v9247
    %v9249 = vpop.f32.mrf.mxu0
    %v9250 = vadd.f32 %v6351, %v9249
    %9251 = vmatprep.mubr.bf16.mxu0 %v356
    %9252 = vmatmul.mubr.bf16.gmra.mxu0 %v355
    %v9253 = vpop.f32.mrf.mxu0
    %v9254 = vadd.f32 %v6347, %v9253
    %v9255 = vpop.f32.mrf.mxu0
    %v9256 = vadd.f32 %v6351, %v9255
    %v9257 = vpop.f32.mrf.mxu0
    %v9258 = vadd.f32 %v6347, %v9257
    %v9259 = vpop.f32.mrf.mxu0
    %v9260 = vadd.f32 %v6351, %v9259
    %9261 = vmatprep.mubr.bf16.mxu0 %v363
    %9262 = vmatmul.mubr.bf16.gmra.mxu0 %v362
    %v9263 = vpop.f32.mrf.mxu0
    %v9264 = vadd.f32 %v6347, %v9263
    %v9265 = vpop.f32.mrf.mxu0
    %v9266 = vadd.f32 %v6351, %v9265
    %v9267 = vpop.f32.mrf.mxu0
    %v9268 = vadd.f32 %v6347, %v9267
    %v9269 = vpop.f32.mrf.mxu0
    %v9270 = vadd.f32 %v6351, %v9269
    %9271 = vmatprep.mubr.bf16.mxu0 %v370
    %9272 = vmatmul.mubr.bf16.gmra.mxu0 %v369
    %v9273 = vpop.f32.mrf.mxu0
    %v9274 = vadd.f32 %v6347, %v9273
    %v9275 = vpop.f32.mrf.mxu0
    %v9276 = vadd.f32 %v6351, %v9275
    %v9277 = vpop.f32.mrf.mxu0
    %v9278 = vadd.f32 %v6347, %v9277
    %v9279 = vpop.f32.mrf.mxu0
    %v9280 = vadd.f32 %v6351, %v9279
    %9281 = vmatprep.mubr.bf16.mxu0 %v377
    %9282 = vmatmul.mubr.bf16.gmra.mxu0 %v376
    %v9283 = vpop.f32.mrf.mxu0
    %v9284 = vadd.f32 %v6347, %v9283
    %v9285 = vpop.f32.mrf.mxu0
    %v9286 = vadd.f32 %v6351, %v9285
    %v9287 = vpop.f32.mrf.mxu0
    %v9288 = vadd.f32 %v6347, %v9287
    %v9289 = vpop.f32.mrf.mxu0
    %v9290 = vadd.f32 %v6351, %v9289
    %9291 = vmatprep.mubr.bf16.mxu0 %v384
    %9292 = vmatmul.mubr.bf16.gmra.mxu0 %v383
    %v9293 = vpop.f32.mrf.mxu0
    %v9294 = vadd.f32 %v6347, %v9293
    %v9295 = vpop.f32.mrf.mxu0
    %v9296 = vadd.f32 %v6351, %v9295
    %v9297 = vpop.f32.mrf.mxu0
    %v9298 = vadd.f32 %v6347, %v9297
    %v9299 = vpop.f32.mrf.mxu0
    %v9300 = vadd.f32 %v6351, %v9299
    %9301 = vmatprep.mubr.bf16.mxu0 %v391
    %9302 = vmatmul.mubr.bf16.gmra.mxu0 %v390
    %v9303 = vpop.f32.mrf.mxu0
    %v9304 = vadd.f32 %v6347, %v9303
    %v9305 = vpop.f32.mrf.mxu0
    %v9306 = vadd.f32 %v6351, %v9305
    %v9307 = vpop.f32.mrf.mxu0
    %v9308 = vadd.f32 %v6347, %v9307
    %v9309 = vpop.f32.mrf.mxu0
    %v9310 = vadd.f32 %v6351, %v9309
    %9311 = vmatprep.mubr.bf16.mxu0 %v398
    %9312 = vmatmul.mubr.bf16.gmra.mxu0 %v397
    %v9313 = vpop.f32.mrf.mxu0
    %v9314 = vadd.f32 %v6347, %v9313
    %v9315 = vpop.f32.mrf.mxu0
    %v9316 = vadd.f32 %v6351, %v9315
    %v9317 = vpop.f32.mrf.mxu0
    %v9318 = vadd.f32 %v6347, %v9317
    %v9319 = vpop.f32.mrf.mxu0
    %v9320 = vadd.f32 %v6351, %v9319
    %9321 = vmatprep.mubr.bf16.mxu0 %v405
    %9322 = vmatmul.mubr.bf16.gmra.mxu0 %v404
    %v9323 = vpop.f32.mrf.mxu0
    %v9324 = vadd.f32 %v6347, %v9323
    %v9325 = vpop.f32.mrf.mxu0
    %v9326 = vadd.f32 %v6351, %v9325
    %v9327 = vpop.f32.mrf.mxu0
    %v9328 = vadd.f32 %v6347, %v9327
    %v9329 = vpop.f32.mrf.mxu0
    %v9330 = vadd.f32 %v6351, %v9329
    %9331 = vmatprep.mubr.bf16.mxu0 %v412
    %9332 = vmatmul.mubr.bf16.gmra.mxu0 %v411
    %v9333 = vpop.f32.mrf.mxu0
    %v9334 = vadd.f32 %v6347, %v9333
    %v9335 = vpop.f32.mrf.mxu0
    %v9336 = vadd.f32 %v6351, %v9335
    %v9337 = vpop.f32.mrf.mxu0
    %v9338 = vadd.f32 %v6347, %v9337
    %v9339 = vpop.f32.mrf.mxu0
    %v9340 = vadd.f32 %v6351, %v9339
    %9341 = vmatprep.mubr.bf16.mxu0 %v419
    %9342 = vmatmul.mubr.bf16.gmra.mxu0 %v418
    %v9343 = vpop.f32.mrf.mxu0
    %v9344 = vadd.f32 %v6347, %v9343
    %v9345 = vpop.f32.mrf.mxu0
    %v9346 = vadd.f32 %v6351, %v9345
    %v9347 = vpop.f32.mrf.mxu0
    %v9348 = vadd.f32 %v6347, %v9347
    %v9349 = vpop.f32.mrf.mxu0
    %v9350 = vadd.f32 %v6351, %v9349
    %9351 = vdwg.mxu0
    %9352 = vmatprep.subr.bf16.mxu0 %v7767
    %9353 = vmatpush1.bf16.msra.mxu0 %v7766
    %9354 = vmatprep.subr.bf16.mxu0 %v7760
    %9355 = vmatpush1.bf16.msra.mxu0 %v7759
    %9356 = vmatprep.subr.bf16.mxu0 %v7753
    %9357 = vmatpush1.bf16.msra.mxu0 %v7752
    %9358 = vmatprep.subr.bf16.mxu0 %v7746
    %9359 = vmatpush1.bf16.msra.mxu0 %v7745
    %9360 = vmatprep.subr.bf16.mxu0 %v7739
    %9361 = vmatpush1.bf16.msra.mxu0 %v7738
    %9362 = vmatprep.subr.bf16.mxu0 %v7732
    %9363 = vmatpush1.bf16.msra.mxu0 %v7731
    %9364 = vmatprep.subr.bf16.mxu0 %v7725
    %9365 = vmatpush1.bf16.msra.mxu0 %v7724
    %9366 = vmatprep.subr.bf16.mxu0 %v7718
    %9367 = vmatpush1.bf16.msra.mxu0 %v7717
    %9368 = vmatprep.subr.bf16.mxu0 %v7823
    %9369 = vmatpush2.bf16.msra.mxu0 %v7822
    %9370 = vmatprep.subr.bf16.mxu0 %v7816
    %9371 = vmatpush2.bf16.msra.mxu0 %v7815
    %9372 = vmatprep.subr.bf16.mxu0 %v7809
    %9373 = vmatpush2.bf16.msra.mxu0 %v7808
    %9374 = vmatprep.subr.bf16.mxu0 %v7802
    %9375 = vmatpush2.bf16.msra.mxu0 %v7801
    %9376 = vmatprep.subr.bf16.mxu0 %v7795
    %9377 = vmatpush2.bf16.msra.mxu0 %v7794
    %9378 = vmatprep.subr.bf16.mxu0 %v7788
    %9379 = vmatpush2.bf16.msra.mxu0 %v7787
    %9380 = vmatprep.subr.bf16.mxu0 %v7781
    %9381 = vmatpush2.bf16.msra.mxu0 %v7780
    %9382 = vmatprep.subr.bf16.mxu0 %v7774
    %9383 = vmatpush2.bf16.msra.mxu0 %v7773
    %9384 = vmatprep.mubr.bf16.mxu0 %v316
    %9385 = vmatmul.mubr.bf16.gmra.mxu0 %v315
    %v9386 = vpop.f32.mrf.mxu0
    %v9387 = vadd.f32 %v9194, %v9386
    %v9388 = vpop.f32.mrf.mxu0
    %v9389 = vadd.f32 %v9196, %v9388
    %v9390 = vpop.f32.mrf.mxu0
    %v9391 = vadd.f32 %v9198, %v9390
    %v9392 = vpop.f32.mrf.mxu0
    %v9393 = vadd.f32 %v9200, %v9392
    %9394 = vmatprep.mubr.bf16.mxu0 %v323
    %9395 = vmatmul.mubr.bf16.gmra.mxu0 %v322
    %v9396 = vpop.f32.mrf.mxu0
    %v9397 = vadd.f32 %v9204, %v9396
    %v9398 = vpop.f32.mrf.mxu0
    %v9399 = vadd.f32 %v9206, %v9398
    %v9400 = vpop.f32.mrf.mxu0
    %v9401 = vadd.f32 %v9208, %v9400
    %v9402 = vpop.f32.mrf.mxu0
    %v9403 = vadd.f32 %v9210, %v9402
    %9404 = vmatprep.mubr.bf16.mxu0 %v330
    %9405 = vmatmul.mubr.bf16.gmra.mxu0 %v329
    %v9406 = vpop.f32.mrf.mxu0
    %v9407 = vadd.f32 %v9214, %v9406
    %v9408 = vpop.f32.mrf.mxu0
    %v9409 = vadd.f32 %v9216, %v9408
    %v9410 = vpop.f32.mrf.mxu0
    %v9411 = vadd.f32 %v9218, %v9410
    %v9412 = vpop.f32.mrf.mxu0
    %v9413 = vadd.f32 %v9220, %v9412
    %9414 = vmatprep.mubr.bf16.mxu0 %v337
    %9415 = vmatmul.mubr.bf16.gmra.mxu0 %v336
    %v9416 = vpop.f32.mrf.mxu0
    %v9417 = vadd.f32 %v9224, %v9416
    %v9418 = vpop.f32.mrf.mxu0
    %v9419 = vadd.f32 %v9226, %v9418
    %v9420 = vpop.f32.mrf.mxu0
    %v9421 = vadd.f32 %v9228, %v9420
    %v9422 = vpop.f32.mrf.mxu0
    %v9423 = vadd.f32 %v9230, %v9422
    %9424 = vmatprep.mubr.bf16.mxu0 %v344
    %9425 = vmatmul.mubr.bf16.gmra.mxu0 %v343
    %v9426 = vpop.f32.mrf.mxu0
    %v9427 = vadd.f32 %v9234, %v9426
    %v9428 = vpop.f32.mrf.mxu0
    %v9429 = vadd.f32 %v9236, %v9428
    %v9430 = vpop.f32.mrf.mxu0
    %v9431 = vadd.f32 %v9238, %v9430
    %v9432 = vpop.f32.mrf.mxu0
    %v9433 = vadd.f32 %v9240, %v9432
    %9434 = vmatprep.mubr.bf16.mxu0 %v351
    %9435 = vmatmul.mubr.bf16.gmra.mxu0 %v350
    %v9436 = vpop.f32.mrf.mxu0
    %v9437 = vadd.f32 %v9244, %v9436
    %v9438 = vpop.f32.mrf.mxu0
    %v9439 = vadd.f32 %v9246, %v9438
    %v9440 = vpop.f32.mrf.mxu0
    %v9441 = vadd.f32 %v9248, %v9440
    %v9442 = vpop.f32.mrf.mxu0
    %v9443 = vadd.f32 %v9250, %v9442
    %9444 = vmatprep.mubr.bf16.mxu0 %v358
    %9445 = vmatmul.mubr.bf16.gmra.mxu0 %v357
    %v9446 = vpop.f32.mrf.mxu0
    %v9447 = vadd.f32 %v9254, %v9446
    %v9448 = vpop.f32.mrf.mxu0
    %v9449 = vadd.f32 %v9256, %v9448
    %v9450 = vpop.f32.mrf.mxu0
    %v9451 = vadd.f32 %v9258, %v9450
    %v9452 = vpop.f32.mrf.mxu0
    %v9453 = vadd.f32 %v9260, %v9452
    %9454 = vmatprep.mubr.bf16.mxu0 %v365
    %9455 = vmatmul.mubr.bf16.gmra.mxu0 %v364
    %v9456 = vpop.f32.mrf.mxu0
    %v9457 = vadd.f32 %v9264, %v9456
    %v9458 = vpop.f32.mrf.mxu0
    %v9459 = vadd.f32 %v9266, %v9458
    %v9460 = vpop.f32.mrf.mxu0
    %v9461 = vadd.f32 %v9268, %v9460
    %v9462 = vpop.f32.mrf.mxu0
    %v9463 = vadd.f32 %v9270, %v9462
    %9464 = vmatprep.mubr.bf16.mxu0 %v372
    %9465 = vmatmul.mubr.bf16.gmra.mxu0 %v371
    %v9466 = vpop.f32.mrf.mxu0
    %v9467 = vadd.f32 %v9274, %v9466
    %v9468 = vpop.f32.mrf.mxu0
    %v9469 = vadd.f32 %v9276, %v9468
    %v9470 = vpop.f32.mrf.mxu0
    %v9471 = vadd.f32 %v9278, %v9470
    %v9472 = vpop.f32.mrf.mxu0
    %v9473 = vadd.f32 %v9280, %v9472
    %9474 = vmatprep.mubr.bf16.mxu0 %v379
    %9475 = vmatmul.mubr.bf16.gmra.mxu0 %v378
    %v9476 = vpop.f32.mrf.mxu0
    %v9477 = vadd.f32 %v9284, %v9476
    %v9478 = vpop.f32.mrf.mxu0
    %v9479 = vadd.f32 %v9286, %v9478
    %v9480 = vpop.f32.mrf.mxu0
    %v9481 = vadd.f32 %v9288, %v9480
    %v9482 = vpop.f32.mrf.mxu0
    %v9483 = vadd.f32 %v9290, %v9482
    %9484 = vmatprep.mubr.bf16.mxu0 %v386
    %9485 = vmatmul.mubr.bf16.gmra.mxu0 %v385
    %v9486 = vpop.f32.mrf.mxu0
    %v9487 = vadd.f32 %v9294, %v9486
    %v9488 = vpop.f32.mrf.mxu0
    %v9489 = vadd.f32 %v9296, %v9488
    %v9490 = vpop.f32.mrf.mxu0
    %v9491 = vadd.f32 %v9298, %v9490
    %v9492 = vpop.f32.mrf.mxu0
    %v9493 = vadd.f32 %v9300, %v9492
    %9494 = vmatprep.mubr.bf16.mxu0 %v393
    %9495 = vmatmul.mubr.bf16.gmra.mxu0 %v392
    %v9496 = vpop.f32.mrf.mxu0
    %v9497 = vadd.f32 %v9304, %v9496
    %v9498 = vpop.f32.mrf.mxu0
    %v9499 = vadd.f32 %v9306, %v9498
    %v9500 = vpop.f32.mrf.mxu0
    %v9501 = vadd.f32 %v9308, %v9500
    %v9502 = vpop.f32.mrf.mxu0
    %v9503 = vadd.f32 %v9310, %v9502
    %9504 = vmatprep.mubr.bf16.mxu0 %v400
    %9505 = vmatmul.mubr.bf16.gmra.mxu0 %v399
    %v9506 = vpop.f32.mrf.mxu0
    %v9507 = vadd.f32 %v9314, %v9506
    %v9508 = vpop.f32.mrf.mxu0
    %v9509 = vadd.f32 %v9316, %v9508
    %v9510 = vpop.f32.mrf.mxu0
    %v9511 = vadd.f32 %v9318, %v9510
    %v9512 = vpop.f32.mrf.mxu0
    %v9513 = vadd.f32 %v9320, %v9512
    %9514 = vmatprep.mubr.bf16.mxu0 %v407
    %9515 = vmatmul.mubr.bf16.gmra.mxu0 %v406
    %v9516 = vpop.f32.mrf.mxu0
    %v9517 = vadd.f32 %v9324, %v9516
    %v9518 = vpop.f32.mrf.mxu0
    %v9519 = vadd.f32 %v9326, %v9518
    %v9520 = vpop.f32.mrf.mxu0
    %v9521 = vadd.f32 %v9328, %v9520
    %v9522 = vpop.f32.mrf.mxu0
    %v9523 = vadd.f32 %v9330, %v9522
    %9524 = vmatprep.mubr.bf16.mxu0 %v414
    %9525 = vmatmul.mubr.bf16.gmra.mxu0 %v413
    %v9526 = vpop.f32.mrf.mxu0
    %v9527 = vadd.f32 %v9334, %v9526
    %v9528 = vpop.f32.mrf.mxu0
    %v9529 = vadd.f32 %v9336, %v9528
    %v9530 = vpop.f32.mrf.mxu0
    %v9531 = vadd.f32 %v9338, %v9530
    %v9532 = vpop.f32.mrf.mxu0
    %v9533 = vadd.f32 %v9340, %v9532
    %9534 = vmatprep.mubr.bf16.mxu0 %v421
    %9535 = vmatmul.mubr.bf16.gmra.mxu0 %v420
    %v9536 = vpop.f32.mrf.mxu0
    %v9537 = vadd.f32 %v9344, %v9536
    %v9538 = vpop.f32.mrf.mxu0
    %v9539 = vadd.f32 %v9346, %v9538
    %v9540 = vpop.f32.mrf.mxu0
    %v9541 = vadd.f32 %v9348, %v9540
    %v9542 = vpop.f32.mrf.mxu0
    %v9543 = vadd.f32 %v9350, %v9542
    %9544 = vdwg.mxu0
    %9545 = vmatprep.subr.bf16.mxu0 %v7879
    %9546 = vmatpush1.bf16.msra.mxu0 %v7878
    %9547 = vmatprep.subr.bf16.mxu0 %v7872
    %9548 = vmatpush1.bf16.msra.mxu0 %v7871
    %9549 = vmatprep.subr.bf16.mxu0 %v7865
    %9550 = vmatpush1.bf16.msra.mxu0 %v7864
    %9551 = vmatprep.subr.bf16.mxu0 %v7858
    %9552 = vmatpush1.bf16.msra.mxu0 %v7857
    %9553 = vmatprep.subr.bf16.mxu0 %v7851
    %9554 = vmatpush1.bf16.msra.mxu0 %v7850
    %9555 = vmatprep.subr.bf16.mxu0 %v7844
    %9556 = vmatpush1.bf16.msra.mxu0 %v7843
    %9557 = vmatprep.subr.bf16.mxu0 %v7837
    %9558 = vmatpush1.bf16.msra.mxu0 %v7836
    %9559 = vmatprep.subr.bf16.mxu0 %v7830
    %9560 = vmatpush1.bf16.msra.mxu0 %v7829
    %9561 = vmatprep.subr.bf16.mxu0 %v7935
    %9562 = vmatpush2.bf16.msra.mxu0 %v7934
    %9563 = vmatprep.subr.bf16.mxu0 %v7928
    %9564 = vmatpush2.bf16.msra.mxu0 %v7927
    %9565 = vmatprep.subr.bf16.mxu0 %v7921
    %9566 = vmatpush2.bf16.msra.mxu0 %v7920
    %9567 = vmatprep.subr.bf16.mxu0 %v7914
    %9568 = vmatpush2.bf16.msra.mxu0 %v7913
    %9569 = vmatprep.subr.bf16.mxu0 %v7907
    %9570 = vmatpush2.bf16.msra.mxu0 %v7906
    %9571 = vmatprep.subr.bf16.mxu0 %v7900
    %9572 = vmatpush2.bf16.msra.mxu0 %v7899
    %9573 = vmatprep.subr.bf16.mxu0 %v7893
    %9574 = vmatpush2.bf16.msra.mxu0 %v7892
    %9575 = vmatprep.subr.bf16.mxu0 %v7886
    %9576 = vmatpush2.bf16.msra.mxu0 %v7885
    %9577 = vmatprep.mubr.bf16.mxu0 %v318
    %9578 = vmatmul.mubr.bf16.gmra.mxu0 %v317
    %v9579 = vpop.f32.mrf.mxu0
    %v9580 = vadd.f32 %v9387, %v9579
    %v9581 = vpop.f32.mrf.mxu0
    %v9582 = vadd.f32 %v9389, %v9581
    %v9583 = vpop.f32.mrf.mxu0
    %v9584 = vadd.f32 %v9391, %v9583
    %v9585 = vpop.f32.mrf.mxu0
    %v9586 = vadd.f32 %v9393, %v9585
    %9587 = vmatprep.mubr.bf16.mxu0 %v325
    %9588 = vmatmul.mubr.bf16.gmra.mxu0 %v324
    %v9589 = vpop.f32.mrf.mxu0
    %v9590 = vadd.f32 %v9397, %v9589
    %v9591 = vpop.f32.mrf.mxu0
    %v9592 = vadd.f32 %v9399, %v9591
    %v9593 = vpop.f32.mrf.mxu0
    %v9594 = vadd.f32 %v9401, %v9593
    %v9595 = vpop.f32.mrf.mxu0
    %v9596 = vadd.f32 %v9403, %v9595
    %9597 = vmatprep.mubr.bf16.mxu0 %v332
    %9598 = vmatmul.mubr.bf16.gmra.mxu0 %v331
    %v9599 = vpop.f32.mrf.mxu0
    %v9600 = vadd.f32 %v9407, %v9599
    %v9601 = vpop.f32.mrf.mxu0
    %v9602 = vadd.f32 %v9409, %v9601
    %v9603 = vpop.f32.mrf.mxu0
    %v9604 = vadd.f32 %v9411, %v9603
    %v9605 = vpop.f32.mrf.mxu0
    %v9606 = vadd.f32 %v9413, %v9605
    %9607 = vmatprep.mubr.bf16.mxu0 %v339
    %9608 = vmatmul.mubr.bf16.gmra.mxu0 %v338
    %v9609 = vpop.f32.mrf.mxu0
    %v9610 = vadd.f32 %v9417, %v9609
    %v9611 = vpop.f32.mrf.mxu0
    %v9612 = vadd.f32 %v9419, %v9611
    %v9613 = vpop.f32.mrf.mxu0
    %v9614 = vadd.f32 %v9421, %v9613
    %v9615 = vpop.f32.mrf.mxu0
    %v9616 = vadd.f32 %v9423, %v9615
    %9617 = vmatprep.mubr.bf16.mxu0 %v346
    %9618 = vmatmul.mubr.bf16.gmra.mxu0 %v345
    %v9619 = vpop.f32.mrf.mxu0
    %v9620 = vadd.f32 %v9427, %v9619
    %v9621 = vpop.f32.mrf.mxu0
    %v9622 = vadd.f32 %v9429, %v9621
    %v9623 = vpop.f32.mrf.mxu0
    %v9624 = vadd.f32 %v9431, %v9623
    %v9625 = vpop.f32.mrf.mxu0
    %v9626 = vadd.f32 %v9433, %v9625
    %9627 = vmatprep.mubr.bf16.mxu0 %v353
    %9628 = vmatmul.mubr.bf16.gmra.mxu0 %v352
    %v9629 = vpop.f32.mrf.mxu0
    %v9630 = vadd.f32 %v9437, %v9629
    %v9631 = vpop.f32.mrf.mxu0
    %v9632 = vadd.f32 %v9439, %v9631
    %v9633 = vpop.f32.mrf.mxu0
    %v9634 = vadd.f32 %v9441, %v9633
    %v9635 = vpop.f32.mrf.mxu0
    %v9636 = vadd.f32 %v9443, %v9635
    %9637 = vmatprep.mubr.bf16.mxu0 %v360
    %9638 = vmatmul.mubr.bf16.gmra.mxu0 %v359
    %v9639 = vpop.f32.mrf.mxu0
    %v9640 = vadd.f32 %v9447, %v9639
    %v9641 = vpop.f32.mrf.mxu0
    %v9642 = vadd.f32 %v9449, %v9641
    %v9643 = vpop.f32.mrf.mxu0
    %v9644 = vadd.f32 %v9451, %v9643
    %v9645 = vpop.f32.mrf.mxu0
    %v9646 = vadd.f32 %v9453, %v9645
    %9647 = vmatprep.mubr.bf16.mxu0 %v367
    %9648 = vmatmul.mubr.bf16.gmra.mxu0 %v366
    %v9649 = vpop.f32.mrf.mxu0
    %v9650 = vadd.f32 %v9457, %v9649
    %v9651 = vpop.f32.mrf.mxu0
    %v9652 = vadd.f32 %v9459, %v9651
    %v9653 = vpop.f32.mrf.mxu0
    %v9654 = vadd.f32 %v9461, %v9653
    %v9655 = vpop.f32.mrf.mxu0
    %v9656 = vadd.f32 %v9463, %v9655
    %9657 = vmatprep.mubr.bf16.mxu0 %v374
    %9658 = vmatmul.mubr.bf16.gmra.mxu0 %v373
    %v9659 = vpop.f32.mrf.mxu0
    %v9660 = vadd.f32 %v9467, %v9659
    %v9661 = vpop.f32.mrf.mxu0
    %v9662 = vadd.f32 %v9469, %v9661
    %v9663 = vpop.f32.mrf.mxu0
    %v9664 = vadd.f32 %v9471, %v9663
    %v9665 = vpop.f32.mrf.mxu0
    %v9666 = vadd.f32 %v9473, %v9665
    %9667 = vmatprep.mubr.bf16.mxu0 %v381
    %9668 = vmatmul.mubr.bf16.gmra.mxu0 %v380
    %v9669 = vpop.f32.mrf.mxu0
    %v9670 = vadd.f32 %v9477, %v9669
    %v9671 = vpop.f32.mrf.mxu0
    %v9672 = vadd.f32 %v9479, %v9671
    %v9673 = vpop.f32.mrf.mxu0
    %v9674 = vadd.f32 %v9481, %v9673
    %v9675 = vpop.f32.mrf.mxu0
    %v9676 = vadd.f32 %v9483, %v9675
    %9677 = vmatprep.mubr.bf16.mxu0 %v388
    %9678 = vmatmul.mubr.bf16.gmra.mxu0 %v387
    %v9679 = vpop.f32.mrf.mxu0
    %v9680 = vadd.f32 %v9487, %v9679
    %v9681 = vpop.f32.mrf.mxu0
    %v9682 = vadd.f32 %v9489, %v9681
    %v9683 = vpop.f32.mrf.mxu0
    %v9684 = vadd.f32 %v9491, %v9683
    %v9685 = vpop.f32.mrf.mxu0
    %v9686 = vadd.f32 %v9493, %v9685
    %9687 = vmatprep.mubr.bf16.mxu0 %v395
    %9688 = vmatmul.mubr.bf16.gmra.mxu0 %v394
    %v9689 = vpop.f32.mrf.mxu0
    %v9690 = vadd.f32 %v9497, %v9689
    %v9691 = vpop.f32.mrf.mxu0
    %v9692 = vadd.f32 %v9499, %v9691
    %v9693 = vpop.f32.mrf.mxu0
    %v9694 = vadd.f32 %v9501, %v9693
    %v9695 = vpop.f32.mrf.mxu0
    %v9696 = vadd.f32 %v9503, %v9695
    %9697 = vmatprep.mubr.bf16.mxu0 %v402
    %9698 = vmatmul.mubr.bf16.gmra.mxu0 %v401
    %v9699 = vpop.f32.mrf.mxu0
    %v9700 = vadd.f32 %v9507, %v9699
    %v9701 = vpop.f32.mrf.mxu0
    %v9702 = vadd.f32 %v9509, %v9701
    %v9703 = vpop.f32.mrf.mxu0
    %v9704 = vadd.f32 %v9511, %v9703
    %v9705 = vpop.f32.mrf.mxu0
    %v9706 = vadd.f32 %v9513, %v9705
    %9707 = vmatprep.mubr.bf16.mxu0 %v409
    %9708 = vmatmul.mubr.bf16.gmra.mxu0 %v408
    %v9709 = vpop.f32.mrf.mxu0
    %v9710 = vadd.f32 %v9517, %v9709
    %v9711 = vpop.f32.mrf.mxu0
    %v9712 = vadd.f32 %v9519, %v9711
    %v9713 = vpop.f32.mrf.mxu0
    %v9714 = vadd.f32 %v9521, %v9713
    %v9715 = vpop.f32.mrf.mxu0
    %v9716 = vadd.f32 %v9523, %v9715
    %9717 = vmatprep.mubr.bf16.mxu0 %v416
    %9718 = vmatmul.mubr.bf16.gmra.mxu0 %v415
    %v9719 = vpop.f32.mrf.mxu0
    %v9720 = vadd.f32 %v9527, %v9719
    %v9721 = vpop.f32.mrf.mxu0
    %v9722 = vadd.f32 %v9529, %v9721
    %v9723 = vpop.f32.mrf.mxu0
    %v9724 = vadd.f32 %v9531, %v9723
    %v9725 = vpop.f32.mrf.mxu0
    %v9726 = vadd.f32 %v9533, %v9725
    %9727 = vmatprep.mubr.bf16.mxu0 %v423
    %9728 = vmatmul.mubr.bf16.gmra.mxu0 %v422
    %v9729 = vpop.f32.mrf.mxu0
    %v9730 = vadd.f32 %v9537, %v9729
    %v9731 = vpop.f32.mrf.mxu0
    %v9732 = vadd.f32 %v9539, %v9731
    %v9733 = vpop.f32.mrf.mxu0
    %v9734 = vadd.f32 %v9541, %v9733
    %v9735 = vpop.f32.mrf.mxu0
    %v9736 = vadd.f32 %v9543, %v9735
    %9737 = vdwg.mxu0
    %9738 = vmatprep.subr.bf16.mxu0 %v7991
    %9739 = vmatpush1.bf16.msra.mxu0 %v7990
    %9740 = vmatprep.subr.bf16.mxu0 %v7984
    %9741 = vmatpush1.bf16.msra.mxu0 %v7983
    %9742 = vmatprep.subr.bf16.mxu0 %v7977
    %9743 = vmatpush1.bf16.msra.mxu0 %v7976
    %9744 = vmatprep.subr.bf16.mxu0 %v7970
    %9745 = vmatpush1.bf16.msra.mxu0 %v7969
    %9746 = vmatprep.subr.bf16.mxu0 %v7963
    %9747 = vmatpush1.bf16.msra.mxu0 %v7962
    %9748 = vmatprep.subr.bf16.mxu0 %v7956
    %9749 = vmatpush1.bf16.msra.mxu0 %v7955
    %9750 = vmatprep.subr.bf16.mxu0 %v7949
    %9751 = vmatpush1.bf16.msra.mxu0 %v7948
    %9752 = vmatprep.subr.bf16.mxu0 %v7942
    %9753 = vmatpush1.bf16.msra.mxu0 %v7941
    %9754 = vmatprep.subr.bf16.mxu0 0
    %9755 = vmatpush2.bf16.msra.mxu0 0
    %9756 = vmatprep.subr.bf16.mxu0 0
    %9757 = vmatpush2.bf16.msra.mxu0 0
    %9758 = vmatprep.subr.bf16.mxu0 0
    %9759 = vmatpush2.bf16.msra.mxu0 0
    %9760 = vmatprep.subr.bf16.mxu0 0
    %9761 = vmatpush2.bf16.msra.mxu0 0
    %9762 = vmatprep.subr.bf16.mxu0 0
    %9763 = vmatpush2.bf16.msra.mxu0 0
    %9764 = vmatprep.subr.bf16.mxu0 0
    %9765 = vmatpush2.bf16.msra.mxu0 0
    %9766 = vmatprep.subr.bf16.mxu0 0
    %9767 = vmatpush2.bf16.msra.mxu0 0
    %9768 = vmatprep.subr.bf16.mxu0 0
    %9769 = vmatpush2.bf16.msra.mxu0 0
    %9770 = vmatprep.mubr.bf16.mxu0 0
    %9771 = vmatmul.mubr.bf16.gmra.mxu0 %v319
    %v9772 = vpop.f32.mrf.mxu0
    %v9773 = vadd.f32 %v9580, %v9772
    %v9774 = vpop.f32.mrf.mxu0
    %v9775 = vadd.f32 %v9582, %v9774
    %v9776 = vpop.f32.mrf.mxu0
    %v9777 = vadd.f32 %v9584, %v9776
    %v9778 = vpop.f32.mrf.mxu0
    %v9779 = vadd.f32 %v9586, %v9778
    %9780 = vmatprep.mubr.bf16.mxu0 0
    %9781 = vmatmul.mubr.bf16.gmra.mxu0 %v326
    %v9782 = vpop.f32.mrf.mxu0
    %v9783 = vadd.f32 %v9590, %v9782
    %v9784 = vpop.f32.mrf.mxu0
    %v9785 = vadd.f32 %v9592, %v9784
    %v9786 = vpop.f32.mrf.mxu0
    %v9787 = vadd.f32 %v9594, %v9786
    %v9788 = vpop.f32.mrf.mxu0
    %v9789 = vadd.f32 %v9596, %v9788
    %9790 = vmatprep.mubr.bf16.mxu0 0
    %9791 = vmatmul.mubr.bf16.gmra.mxu0 %v333
    %v9792 = vpop.f32.mrf.mxu0
    %v9793 = vadd.f32 %v9600, %v9792
    %v9794 = vpop.f32.mrf.mxu0
    %v9795 = vadd.f32 %v9602, %v9794
    %v9796 = vpop.f32.mrf.mxu0
    %v9797 = vadd.f32 %v9604, %v9796
    %v9798 = vpop.f32.mrf.mxu0
    %v9799 = vadd.f32 %v9606, %v9798
    %9800 = vmatprep.mubr.bf16.mxu0 0
    %9801 = vmatmul.mubr.bf16.gmra.mxu0 %v340
    %v9802 = vpop.f32.mrf.mxu0
    %v9803 = vadd.f32 %v9610, %v9802
    %v9804 = vpop.f32.mrf.mxu0
    %v9805 = vadd.f32 %v9612, %v9804
    %v9806 = vpop.f32.mrf.mxu0
    %v9807 = vadd.f32 %v9614, %v9806
    %v9808 = vpop.f32.mrf.mxu0
    %v9809 = vadd.f32 %v9616, %v9808
    %9810 = vmatprep.mubr.bf16.mxu0 0
    %9811 = vmatmul.mubr.bf16.gmra.mxu0 %v347
    %v9812 = vpop.f32.mrf.mxu0
    %v9813 = vadd.f32 %v9620, %v9812
    %v9814 = vpop.f32.mrf.mxu0
    %v9815 = vadd.f32 %v9622, %v9814
    %v9816 = vpop.f32.mrf.mxu0
    %v9817 = vadd.f32 %v9624, %v9816
    %v9818 = vpop.f32.mrf.mxu0
    %v9819 = vadd.f32 %v9626, %v9818
    %9820 = vmatprep.mubr.bf16.mxu0 0
    %9821 = vmatmul.mubr.bf16.gmra.mxu0 %v354
    %v9822 = vpop.f32.mrf.mxu0
    %v9823 = vadd.f32 %v9630, %v9822
    %v9824 = vpop.f32.mrf.mxu0
    %v9825 = vadd.f32 %v9632, %v9824
    %v9826 = vpop.f32.mrf.mxu0
    %v9827 = vadd.f32 %v9634, %v9826
    %v9828 = vpop.f32.mrf.mxu0
    %v9829 = vadd.f32 %v9636, %v9828
    %9830 = vmatprep.mubr.bf16.mxu0 0
    %9831 = vmatmul.mubr.bf16.gmra.mxu0 %v361
    %v9832 = vpop.f32.mrf.mxu0
    %v9833 = vadd.f32 %v9640, %v9832
    %v9834 = vpop.f32.mrf.mxu0
    %v9835 = vadd.f32 %v9642, %v9834
    %v9836 = vpop.f32.mrf.mxu0
    %v9837 = vadd.f32 %v9644, %v9836
    %v9838 = vpop.f32.mrf.mxu0
    %v9839 = vadd.f32 %v9646, %v9838
    %9840 = vmatprep.mubr.bf16.mxu0 0
    %9841 = vmatmul.mubr.bf16.gmra.mxu0 %v368
    %v9842 = vpop.f32.mrf.mxu0
    %v9843 = vadd.f32 %v9650, %v9842
    %v9844 = vpop.f32.mrf.mxu0
    %v9845 = vadd.f32 %v9652, %v9844
    %v9846 = vpop.f32.mrf.mxu0
    %v9847 = vadd.f32 %v9654, %v9846
    %v9848 = vpop.f32.mrf.mxu0
    %v9849 = vadd.f32 %v9656, %v9848
    %9850 = vmatprep.mubr.bf16.mxu0 0
    %9851 = vmatmul.mubr.bf16.gmra.mxu0 %v375
    %v9852 = vpop.f32.mrf.mxu0
    %v9853 = vadd.f32 %v9660, %v9852
    %v9854 = vpop.f32.mrf.mxu0
    %v9855 = vadd.f32 %v9662, %v9854
    %v9856 = vpop.f32.mrf.mxu0
    %v9857 = vadd.f32 %v9664, %v9856
    %v9858 = vpop.f32.mrf.mxu0
    %v9859 = vadd.f32 %v9666, %v9858
    %9860 = vmatprep.mubr.bf16.mxu0 0
    %9861 = vmatmul.mubr.bf16.gmra.mxu0 %v382
    %v9862 = vpop.f32.mrf.mxu0
    %v9863 = vadd.f32 %v9670, %v9862
    %v9864 = vpop.f32.mrf.mxu0
    %v9865 = vadd.f32 %v9672, %v9864
    %v9866 = vpop.f32.mrf.mxu0
    %v9867 = vadd.f32 %v9674, %v9866
    %v9868 = vpop.f32.mrf.mxu0
    %v9869 = vadd.f32 %v9676, %v9868
    %9870 = vmatprep.mubr.bf16.mxu0 0
    %9871 = vmatmul.mubr.bf16.gmra.mxu0 %v389
    %v9872 = vpop.f32.mrf.mxu0
    %v9873 = vadd.f32 %v9680, %v9872
    %v9874 = vpop.f32.mrf.mxu0
    %v9875 = vadd.f32 %v9682, %v9874
    %v9876 = vpop.f32.mrf.mxu0
    %v9877 = vadd.f32 %v9684, %v9876
    %v9878 = vpop.f32.mrf.mxu0
    %v9879 = vadd.f32 %v9686, %v9878
    %9880 = vmatprep.mubr.bf16.mxu0 0
    %9881 = vmatmul.mubr.bf16.gmra.mxu0 %v396
    %v9882 = vpop.f32.mrf.mxu0
    %v9883 = vadd.f32 %v9690, %v9882
    %v9884 = vpop.f32.mrf.mxu0
    %v9885 = vadd.f32 %v9692, %v9884
    %v9886 = vpop.f32.mrf.mxu0
    %v9887 = vadd.f32 %v9694, %v9886
    %v9888 = vpop.f32.mrf.mxu0
    %v9889 = vadd.f32 %v9696, %v9888
    %9890 = vmatprep.mubr.bf16.mxu0 0
    %9891 = vmatmul.mubr.bf16.gmra.mxu0 %v403
    %v9892 = vpop.f32.mrf.mxu0
    %v9893 = vadd.f32 %v9700, %v9892
    %v9894 = vpop.f32.mrf.mxu0
    %v9895 = vadd.f32 %v9702, %v9894
    %v9896 = vpop.f32.mrf.mxu0
    %v9897 = vadd.f32 %v9704, %v9896
    %v9898 = vpop.f32.mrf.mxu0
    %v9899 = vadd.f32 %v9706, %v9898
    %9900 = vmatprep.mubr.bf16.mxu0 0
    %9901 = vmatmul.mubr.bf16.gmra.mxu0 %v410
    %v9902 = vpop.f32.mrf.mxu0
    %v9903 = vadd.f32 %v9710, %v9902
    %v9904 = vpop.f32.mrf.mxu0
    %v9905 = vadd.f32 %v9712, %v9904
    %v9906 = vpop.f32.mrf.mxu0
    %v9907 = vadd.f32 %v9714, %v9906
    %v9908 = vpop.f32.mrf.mxu0
    %v9909 = vadd.f32 %v9716, %v9908
    %9910 = vmatprep.mubr.bf16.mxu0 0
    %9911 = vmatmul.mubr.bf16.gmra.mxu0 %v417
    %v9912 = vpop.f32.mrf.mxu0
    %v9913 = vadd.f32 %v9720, %v9912
    %v9914 = vpop.f32.mrf.mxu0
    %v9915 = vadd.f32 %v9722, %v9914
    %v9916 = vpop.f32.mrf.mxu0
    %v9917 = vadd.f32 %v9724, %v9916
    %v9918 = vpop.f32.mrf.mxu0
    %v9919 = vadd.f32 %v9726, %v9918
    %9920 = vmatprep.mubr.bf16.mxu0 0
    %9921 = vmatmul.mubr.bf16.gmra.mxu0 %v424
    %v9922 = vpop.f32.mrf.mxu0
    %v9923 = vadd.f32 %v9730, %v9922
    %v9924 = vpop.f32.mrf.mxu0
    %v9925 = vadd.f32 %v9732, %v9924
    %v9926 = vpop.f32.mrf.mxu0
    %v9927 = vadd.f32 %v9734, %v9926
    %v9928 = vpop.f32.mrf.mxu0
    %v9929 = vadd.f32 %v9736, %v9928
    %9930 = vdwg.mxu0
    %9931 = vmatprep.subr.bf16.mxu0 %v7657
    %9932 = vmatpush1.bf16.msra.mxu0 %v7656
    %9933 = vmatprep.subr.bf16.mxu0 %v7650
    %9934 = vmatpush1.bf16.msra.mxu0 %v7649
    %9935 = vmatprep.subr.bf16.mxu0 %v7643
    %9936 = vmatpush1.bf16.msra.mxu0 %v7642
    %9937 = vmatprep.subr.bf16.mxu0 %v7636
    %9938 = vmatpush1.bf16.msra.mxu0 %v7635
    %9939 = vmatprep.subr.bf16.mxu0 %v7629
    %9940 = vmatpush1.bf16.msra.mxu0 %v7628
    %9941 = vmatprep.subr.bf16.mxu0 %v7622
    %9942 = vmatpush1.bf16.msra.mxu0 %v7621
    %9943 = vmatprep.subr.bf16.mxu0 %v7615
    %9944 = vmatpush1.bf16.msra.mxu0 %v7614
    %9945 = vmatprep.subr.bf16.mxu0 %v7608
    %9946 = vmatpush1.bf16.msra.mxu0 %v7607
    %9947 = vmatprep.subr.bf16.mxu0 %v7713
    %9948 = vmatpush2.bf16.msra.mxu0 %v7712
    %9949 = vmatprep.subr.bf16.mxu0 %v7706
    %9950 = vmatpush2.bf16.msra.mxu0 %v7705
    %9951 = vmatprep.subr.bf16.mxu0 %v7699
    %9952 = vmatpush2.bf16.msra.mxu0 %v7698
    %9953 = vmatprep.subr.bf16.mxu0 %v7692
    %9954 = vmatpush2.bf16.msra.mxu0 %v7691
    %9955 = vmatprep.subr.bf16.mxu0 %v7685
    %9956 = vmatpush2.bf16.msra.mxu0 %v7684
    %9957 = vmatprep.subr.bf16.mxu0 %v7678
    %9958 = vmatpush2.bf16.msra.mxu0 %v7677
    %9959 = vmatprep.subr.bf16.mxu0 %v7671
    %9960 = vmatpush2.bf16.msra.mxu0 %v7670
    %9961 = vmatprep.subr.bf16.mxu0 %v7664
    %9962 = vmatpush2.bf16.msra.mxu0 %v7663
    %9963 = vmatprep.mubr.bf16.mxu0 %v314
    %9964 = vmatmul.mubr.bf16.gmra.mxu0 %v313
    %v9965 = vpop.f32.mrf.mxu0
    %v9966 = vadd.f32 %v6355, %v9965
    %v9967 = vpop.f32.mrf.mxu0
    %v9968 = vadd.f32 %v6359, %v9967
    %v9969 = vpop.f32.mrf.mxu0
    %v9970 = vadd.f32 %v6355, %v9969
    %v9971 = vpop.f32.mrf.mxu0
    %v9972 = vadd.f32 %v6359, %v9971
    %9973 = vmatprep.mubr.bf16.mxu0 %v321
    %9974 = vmatmul.mubr.bf16.gmra.mxu0 %v320
    %v9975 = vpop.f32.mrf.mxu0
    %v9976 = vadd.f32 %v6355, %v9975
    %v9977 = vpop.f32.mrf.mxu0
    %v9978 = vadd.f32 %v6359, %v9977
    %v9979 = vpop.f32.mrf.mxu0
    %v9980 = vadd.f32 %v6355, %v9979
    %v9981 = vpop.f32.mrf.mxu0
    %v9982 = vadd.f32 %v6359, %v9981
    %9983 = vmatprep.mubr.bf16.mxu0 %v328
    %9984 = vmatmul.mubr.bf16.gmra.mxu0 %v327
    %v9985 = vpop.f32.mrf.mxu0
    %v9986 = vadd.f32 %v6355, %v9985
    %v9987 = vpop.f32.mrf.mxu0
    %v9988 = vadd.f32 %v6359, %v9987
    %v9989 = vpop.f32.mrf.mxu0
    %v9990 = vadd.f32 %v6355, %v9989
    %v9991 = vpop.f32.mrf.mxu0
    %v9992 = vadd.f32 %v6359, %v9991
    %9993 = vmatprep.mubr.bf16.mxu0 %v335
    %9994 = vmatmul.mubr.bf16.gmra.mxu0 %v334
    %v9995 = vpop.f32.mrf.mxu0
    %v9996 = vadd.f32 %v6355, %v9995
    %v9997 = vpop.f32.mrf.mxu0
    %v9998 = vadd.f32 %v6359, %v9997
    %v9999 = vpop.f32.mrf.mxu0
    %v10000 = vadd.f32 %v6355, %v9999
    %v10001 = vpop.f32.mrf.mxu0
    %v10002 = vadd.f32 %v6359, %v10001
    %10003 = vmatprep.mubr.bf16.mxu0 %v342
    %10004 = vmatmul.mubr.bf16.gmra.mxu0 %v341
    %v10005 = vpop.f32.mrf.mxu0
    %v10006 = vadd.f32 %v6355, %v10005
    %v10007 = vpop.f32.mrf.mxu0
    %v10008 = vadd.f32 %v6359, %v10007
    %v10009 = vpop.f32.mrf.mxu0
    %v10010 = vadd.f32 %v6355, %v10009
    %v10011 = vpop.f32.mrf.mxu0
    %v10012 = vadd.f32 %v6359, %v10011
    %10013 = vmatprep.mubr.bf16.mxu0 %v349
    %10014 = vmatmul.mubr.bf16.gmra.mxu0 %v348
    %v10015 = vpop.f32.mrf.mxu0
    %v10016 = vadd.f32 %v6355, %v10015
    %v10017 = vpop.f32.mrf.mxu0
    %v10018 = vadd.f32 %v6359, %v10017
    %v10019 = vpop.f32.mrf.mxu0
    %v10020 = vadd.f32 %v6355, %v10019
    %v10021 = vpop.f32.mrf.mxu0
    %v10022 = vadd.f32 %v6359, %v10021
    %10023 = vmatprep.mubr.bf16.mxu0 %v356
    %10024 = vmatmul.mubr.bf16.gmra.mxu0 %v355
    %v10025 = vpop.f32.mrf.mxu0
    %v10026 = vadd.f32 %v6355, %v10025
    %v10027 = vpop.f32.mrf.mxu0
    %v10028 = vadd.f32 %v6359, %v10027
    %v10029 = vpop.f32.mrf.mxu0
    %v10030 = vadd.f32 %v6355, %v10029
    %v10031 = vpop.f32.mrf.mxu0
    %v10032 = vadd.f32 %v6359, %v10031
    %10033 = vmatprep.mubr.bf16.mxu0 %v363
    %10034 = vmatmul.mubr.bf16.gmra.mxu0 %v362
    %v10035 = vpop.f32.mrf.mxu0
    %v10036 = vadd.f32 %v6355, %v10035
    %v10037 = vpop.f32.mrf.mxu0
    %v10038 = vadd.f32 %v6359, %v10037
    %v10039 = vpop.f32.mrf.mxu0
    %v10040 = vadd.f32 %v6355, %v10039
    %v10041 = vpop.f32.mrf.mxu0
    %v10042 = vadd.f32 %v6359, %v10041
    %10043 = vmatprep.mubr.bf16.mxu0 %v370
    %10044 = vmatmul.mubr.bf16.gmra.mxu0 %v369
    %v10045 = vpop.f32.mrf.mxu0
    %v10046 = vadd.f32 %v6355, %v10045
    %v10047 = vpop.f32.mrf.mxu0
    %v10048 = vadd.f32 %v6359, %v10047
    %v10049 = vpop.f32.mrf.mxu0
    %v10050 = vadd.f32 %v6355, %v10049
    %v10051 = vpop.f32.mrf.mxu0
    %v10052 = vadd.f32 %v6359, %v10051
    %10053 = vmatprep.mubr.bf16.mxu0 %v377
    %10054 = vmatmul.mubr.bf16.gmra.mxu0 %v376
    %v10055 = vpop.f32.mrf.mxu0
    %v10056 = vadd.f32 %v6355, %v10055
    %v10057 = vpop.f32.mrf.mxu0
    %v10058 = vadd.f32 %v6359, %v10057
    %v10059 = vpop.f32.mrf.mxu0
    %v10060 = vadd.f32 %v6355, %v10059
    %v10061 = vpop.f32.mrf.mxu0
    %v10062 = vadd.f32 %v6359, %v10061
    %10063 = vmatprep.mubr.bf16.mxu0 %v384
    %10064 = vmatmul.mubr.bf16.gmra.mxu0 %v383
    %v10065 = vpop.f32.mrf.mxu0
    %v10066 = vadd.f32 %v6355, %v10065
    %v10067 = vpop.f32.mrf.mxu0
    %v10068 = vadd.f32 %v6359, %v10067
    %v10069 = vpop.f32.mrf.mxu0
    %v10070 = vadd.f32 %v6355, %v10069
    %v10071 = vpop.f32.mrf.mxu0
    %v10072 = vadd.f32 %v6359, %v10071
    %10073 = vmatprep.mubr.bf16.mxu0 %v391
    %10074 = vmatmul.mubr.bf16.gmra.mxu0 %v390
    %v10075 = vpop.f32.mrf.mxu0
    %v10076 = vadd.f32 %v6355, %v10075
    %v10077 = vpop.f32.mrf.mxu0
    %v10078 = vadd.f32 %v6359, %v10077
    %v10079 = vpop.f32.mrf.mxu0
    %v10080 = vadd.f32 %v6355, %v10079
    %v10081 = vpop.f32.mrf.mxu0
    %v10082 = vadd.f32 %v6359, %v10081
    %10083 = vmatprep.mubr.bf16.mxu0 %v398
    %10084 = vmatmul.mubr.bf16.gmra.mxu0 %v397
    %v10085 = vpop.f32.mrf.mxu0
    %v10086 = vadd.f32 %v6355, %v10085
    %v10087 = vpop.f32.mrf.mxu0
    %v10088 = vadd.f32 %v6359, %v10087
    %v10089 = vpop.f32.mrf.mxu0
    %v10090 = vadd.f32 %v6355, %v10089
    %v10091 = vpop.f32.mrf.mxu0
    %v10092 = vadd.f32 %v6359, %v10091
    %10093 = vmatprep.mubr.bf16.mxu0 %v405
    %10094 = vmatmul.mubr.bf16.gmra.mxu0 %v404
    %v10095 = vpop.f32.mrf.mxu0
    %v10096 = vadd.f32 %v6355, %v10095
    %v10097 = vpop.f32.mrf.mxu0
    %v10098 = vadd.f32 %v6359, %v10097
    %v10099 = vpop.f32.mrf.mxu0
    %v10100 = vadd.f32 %v6355, %v10099
    %v10101 = vpop.f32.mrf.mxu0
    %v10102 = vadd.f32 %v6359, %v10101
    %10103 = vmatprep.mubr.bf16.mxu0 %v412
    %10104 = vmatmul.mubr.bf16.gmra.mxu0 %v411
    %v10105 = vpop.f32.mrf.mxu0
    %v10106 = vadd.f32 %v6355, %v10105
    %v10107 = vpop.f32.mrf.mxu0
    %v10108 = vadd.f32 %v6359, %v10107
    %v10109 = vpop.f32.mrf.mxu0
    %v10110 = vadd.f32 %v6355, %v10109
    %v10111 = vpop.f32.mrf.mxu0
    %v10112 = vadd.f32 %v6359, %v10111
    %10113 = vmatprep.mubr.bf16.mxu0 %v419
    %10114 = vmatmul.mubr.bf16.gmra.mxu0 %v418
    %v10115 = vpop.f32.mrf.mxu0
    %v10116 = vadd.f32 %v6355, %v10115
    %v10117 = vpop.f32.mrf.mxu0
    %v10118 = vadd.f32 %v6359, %v10117
    %v10119 = vpop.f32.mrf.mxu0
    %v10120 = vadd.f32 %v6355, %v10119
    %v10121 = vpop.f32.mrf.mxu0
    %v10122 = vadd.f32 %v6359, %v10121
    %10123 = vdwg.mxu0
    %10124 = vmatprep.subr.bf16.mxu0 %v7769
    %10125 = vmatpush1.bf16.msra.mxu0 %v7768
    %10126 = vmatprep.subr.bf16.mxu0 %v7762
    %10127 = vmatpush1.bf16.msra.mxu0 %v7761
    %10128 = vmatprep.subr.bf16.mxu0 %v7755
    %10129 = vmatpush1.bf16.msra.mxu0 %v7754
    %10130 = vmatprep.subr.bf16.mxu0 %v7748
    %10131 = vmatpush1.bf16.msra.mxu0 %v7747
    %10132 = vmatprep.subr.bf16.mxu0 %v7741
    %10133 = vmatpush1.bf16.msra.mxu0 %v7740
    %10134 = vmatprep.subr.bf16.mxu0 %v7734
    %10135 = vmatpush1.bf16.msra.mxu0 %v7733
    %10136 = vmatprep.subr.bf16.mxu0 %v7727
    %10137 = vmatpush1.bf16.msra.mxu0 %v7726
    %10138 = vmatprep.subr.bf16.mxu0 %v7720
    %10139 = vmatpush1.bf16.msra.mxu0 %v7719
    %10140 = vmatprep.subr.bf16.mxu0 %v7825
    %10141 = vmatpush2.bf16.msra.mxu0 %v7824
    %10142 = vmatprep.subr.bf16.mxu0 %v7818
    %10143 = vmatpush2.bf16.msra.mxu0 %v7817
    %10144 = vmatprep.subr.bf16.mxu0 %v7811
    %10145 = vmatpush2.bf16.msra.mxu0 %v7810
    %10146 = vmatprep.subr.bf16.mxu0 %v7804
    %10147 = vmatpush2.bf16.msra.mxu0 %v7803
    %10148 = vmatprep.subr.bf16.mxu0 %v7797
    %10149 = vmatpush2.bf16.msra.mxu0 %v7796
    %10150 = vmatprep.subr.bf16.mxu0 %v7790
    %10151 = vmatpush2.bf16.msra.mxu0 %v7789
    %10152 = vmatprep.subr.bf16.mxu0 %v7783
    %10153 = vmatpush2.bf16.msra.mxu0 %v7782
    %10154 = vmatprep.subr.bf16.mxu0 %v7776
    %10155 = vmatpush2.bf16.msra.mxu0 %v7775
    %10156 = vmatprep.mubr.bf16.mxu0 %v316
    %10157 = vmatmul.mubr.bf16.gmra.mxu0 %v315
    %v10158 = vpop.f32.mrf.mxu0
    %v10159 = vadd.f32 %v9966, %v10158
    %v10160 = vpop.f32.mrf.mxu0
    %v10161 = vadd.f32 %v9968, %v10160
    %v10162 = vpop.f32.mrf.mxu0
    %v10163 = vadd.f32 %v9970, %v10162
    %v10164 = vpop.f32.mrf.mxu0
    %v10165 = vadd.f32 %v9972, %v10164
    %10166 = vmatprep.mubr.bf16.mxu0 %v323
    %10167 = vmatmul.mubr.bf16.gmra.mxu0 %v322
    %v10168 = vpop.f32.mrf.mxu0
    %v10169 = vadd.f32 %v9976, %v10168
    %v10170 = vpop.f32.mrf.mxu0
    %v10171 = vadd.f32 %v9978, %v10170
    %v10172 = vpop.f32.mrf.mxu0
    %v10173 = vadd.f32 %v9980, %v10172
    %v10174 = vpop.f32.mrf.mxu0
    %v10175 = vadd.f32 %v9982, %v10174
    %10176 = vmatprep.mubr.bf16.mxu0 %v330
    %10177 = vmatmul.mubr.bf16.gmra.mxu0 %v329
    %v10178 = vpop.f32.mrf.mxu0
    %v10179 = vadd.f32 %v9986, %v10178
    %v10180 = vpop.f32.mrf.mxu0
    %v10181 = vadd.f32 %v9988, %v10180
    %v10182 = vpop.f32.mrf.mxu0
    %v10183 = vadd.f32 %v9990, %v10182
    %v10184 = vpop.f32.mrf.mxu0
    %v10185 = vadd.f32 %v9992, %v10184
    %10186 = vmatprep.mubr.bf16.mxu0 %v337
    %10187 = vmatmul.mubr.bf16.gmra.mxu0 %v336
    %v10188 = vpop.f32.mrf.mxu0
    %v10189 = vadd.f32 %v9996, %v10188
    %v10190 = vpop.f32.mrf.mxu0
    %v10191 = vadd.f32 %v9998, %v10190
    %v10192 = vpop.f32.mrf.mxu0
    %v10193 = vadd.f32 %v10000, %v10192
    %v10194 = vpop.f32.mrf.mxu0
    %v10195 = vadd.f32 %v10002, %v10194
    %10196 = vmatprep.mubr.bf16.mxu0 %v344
    %10197 = vmatmul.mubr.bf16.gmra.mxu0 %v343
    %v10198 = vpop.f32.mrf.mxu0
    %v10199 = vadd.f32 %v10006, %v10198
    %v10200 = vpop.f32.mrf.mxu0
    %v10201 = vadd.f32 %v10008, %v10200
    %v10202 = vpop.f32.mrf.mxu0
    %v10203 = vadd.f32 %v10010, %v10202
    %v10204 = vpop.f32.mrf.mxu0
    %v10205 = vadd.f32 %v10012, %v10204
    %10206 = vmatprep.mubr.bf16.mxu0 %v351
    %10207 = vmatmul.mubr.bf16.gmra.mxu0 %v350
    %v10208 = vpop.f32.mrf.mxu0
    %v10209 = vadd.f32 %v10016, %v10208
    %v10210 = vpop.f32.mrf.mxu0
    %v10211 = vadd.f32 %v10018, %v10210
    %v10212 = vpop.f32.mrf.mxu0
    %v10213 = vadd.f32 %v10020, %v10212
    %v10214 = vpop.f32.mrf.mxu0
    %v10215 = vadd.f32 %v10022, %v10214
    %10216 = vmatprep.mubr.bf16.mxu0 %v358
    %10217 = vmatmul.mubr.bf16.gmra.mxu0 %v357
    %v10218 = vpop.f32.mrf.mxu0
    %v10219 = vadd.f32 %v10026, %v10218
    %v10220 = vpop.f32.mrf.mxu0
    %v10221 = vadd.f32 %v10028, %v10220
    %v10222 = vpop.f32.mrf.mxu0
    %v10223 = vadd.f32 %v10030, %v10222
    %v10224 = vpop.f32.mrf.mxu0
    %v10225 = vadd.f32 %v10032, %v10224
    %10226 = vmatprep.mubr.bf16.mxu0 %v365
    %10227 = vmatmul.mubr.bf16.gmra.mxu0 %v364
    %v10228 = vpop.f32.mrf.mxu0
    %v10229 = vadd.f32 %v10036, %v10228
    %v10230 = vpop.f32.mrf.mxu0
    %v10231 = vadd.f32 %v10038, %v10230
    %v10232 = vpop.f32.mrf.mxu0
    %v10233 = vadd.f32 %v10040, %v10232
    %v10234 = vpop.f32.mrf.mxu0
    %v10235 = vadd.f32 %v10042, %v10234
    %10236 = vmatprep.mubr.bf16.mxu0 %v372
    %10237 = vmatmul.mubr.bf16.gmra.mxu0 %v371
    %v10238 = vpop.f32.mrf.mxu0
    %v10239 = vadd.f32 %v10046, %v10238
    %v10240 = vpop.f32.mrf.mxu0
    %v10241 = vadd.f32 %v10048, %v10240
    %v10242 = vpop.f32.mrf.mxu0
    %v10243 = vadd.f32 %v10050, %v10242
    %v10244 = vpop.f32.mrf.mxu0
    %v10245 = vadd.f32 %v10052, %v10244
    %10246 = vmatprep.mubr.bf16.mxu0 %v379
    %10247 = vmatmul.mubr.bf16.gmra.mxu0 %v378
    %v10248 = vpop.f32.mrf.mxu0
    %v10249 = vadd.f32 %v10056, %v10248
    %v10250 = vpop.f32.mrf.mxu0
    %v10251 = vadd.f32 %v10058, %v10250
    %v10252 = vpop.f32.mrf.mxu0
    %v10253 = vadd.f32 %v10060, %v10252
    %v10254 = vpop.f32.mrf.mxu0
    %v10255 = vadd.f32 %v10062, %v10254
    %10256 = vmatprep.mubr.bf16.mxu0 %v386
    %10257 = vmatmul.mubr.bf16.gmra.mxu0 %v385
    %v10258 = vpop.f32.mrf.mxu0
    %v10259 = vadd.f32 %v10066, %v10258
    %v10260 = vpop.f32.mrf.mxu0
    %v10261 = vadd.f32 %v10068, %v10260
    %v10262 = vpop.f32.mrf.mxu0
    %v10263 = vadd.f32 %v10070, %v10262
    %v10264 = vpop.f32.mrf.mxu0
    %v10265 = vadd.f32 %v10072, %v10264
    %10266 = vmatprep.mubr.bf16.mxu0 %v393
    %10267 = vmatmul.mubr.bf16.gmra.mxu0 %v392
    %v10268 = vpop.f32.mrf.mxu0
    %v10269 = vadd.f32 %v10076, %v10268
    %v10270 = vpop.f32.mrf.mxu0
    %v10271 = vadd.f32 %v10078, %v10270
    %v10272 = vpop.f32.mrf.mxu0
    %v10273 = vadd.f32 %v10080, %v10272
    %v10274 = vpop.f32.mrf.mxu0
    %v10275 = vadd.f32 %v10082, %v10274
    %10276 = vmatprep.mubr.bf16.mxu0 %v400
    %10277 = vmatmul.mubr.bf16.gmra.mxu0 %v399
    %v10278 = vpop.f32.mrf.mxu0
    %v10279 = vadd.f32 %v10086, %v10278
    %v10280 = vpop.f32.mrf.mxu0
    %v10281 = vadd.f32 %v10088, %v10280
    %v10282 = vpop.f32.mrf.mxu0
    %v10283 = vadd.f32 %v10090, %v10282
    %v10284 = vpop.f32.mrf.mxu0
    %v10285 = vadd.f32 %v10092, %v10284
    %10286 = vmatprep.mubr.bf16.mxu0 %v407
    %10287 = vmatmul.mubr.bf16.gmra.mxu0 %v406
    %v10288 = vpop.f32.mrf.mxu0
    %v10289 = vadd.f32 %v10096, %v10288
    %v10290 = vpop.f32.mrf.mxu0
    %v10291 = vadd.f32 %v10098, %v10290
    %v10292 = vpop.f32.mrf.mxu0
    %v10293 = vadd.f32 %v10100, %v10292
    %v10294 = vpop.f32.mrf.mxu0
    %v10295 = vadd.f32 %v10102, %v10294
    %10296 = vmatprep.mubr.bf16.mxu0 %v414
    %10297 = vmatmul.mubr.bf16.gmra.mxu0 %v413
    %v10298 = vpop.f32.mrf.mxu0
    %v10299 = vadd.f32 %v10106, %v10298
    %v10300 = vpop.f32.mrf.mxu0
    %v10301 = vadd.f32 %v10108, %v10300
    %v10302 = vpop.f32.mrf.mxu0
    %v10303 = vadd.f32 %v10110, %v10302
    %v10304 = vpop.f32.mrf.mxu0
    %v10305 = vadd.f32 %v10112, %v10304
    %10306 = vmatprep.mubr.bf16.mxu0 %v421
    %10307 = vmatmul.mubr.bf16.gmra.mxu0 %v420
    %v10308 = vpop.f32.mrf.mxu0
    %v10309 = vadd.f32 %v10116, %v10308
    %v10310 = vpop.f32.mrf.mxu0
    %v10311 = vadd.f32 %v10118, %v10310
    %v10312 = vpop.f32.mrf.mxu0
    %v10313 = vadd.f32 %v10120, %v10312
    %v10314 = vpop.f32.mrf.mxu0
    %v10315 = vadd.f32 %v10122, %v10314
    %10316 = vdwg.mxu0
    %10317 = vmatprep.subr.bf16.mxu0 %v7881
    %10318 = vmatpush1.bf16.msra.mxu0 %v7880
    %10319 = vmatprep.subr.bf16.mxu0 %v7874
    %10320 = vmatpush1.bf16.msra.mxu0 %v7873
    %10321 = vmatprep.subr.bf16.mxu0 %v7867
    %10322 = vmatpush1.bf16.msra.mxu0 %v7866
    %10323 = vmatprep.subr.bf16.mxu0 %v7860
    %10324 = vmatpush1.bf16.msra.mxu0 %v7859
    %10325 = vmatprep.subr.bf16.mxu0 %v7853
    %10326 = vmatpush1.bf16.msra.mxu0 %v7852
    %10327 = vmatprep.subr.bf16.mxu0 %v7846
    %10328 = vmatpush1.bf16.msra.mxu0 %v7845
    %10329 = vmatprep.subr.bf16.mxu0 %v7839
    %10330 = vmatpush1.bf16.msra.mxu0 %v7838
    %10331 = vmatprep.subr.bf16.mxu0 %v7832
    %10332 = vmatpush1.bf16.msra.mxu0 %v7831
    %10333 = vmatprep.subr.bf16.mxu0 %v7937
    %10334 = vmatpush2.bf16.msra.mxu0 %v7936
    %10335 = vmatprep.subr.bf16.mxu0 %v7930
    %10336 = vmatpush2.bf16.msra.mxu0 %v7929
    %10337 = vmatprep.subr.bf16.mxu0 %v7923
    %10338 = vmatpush2.bf16.msra.mxu0 %v7922
    %10339 = vmatprep.subr.bf16.mxu0 %v7916
    %10340 = vmatpush2.bf16.msra.mxu0 %v7915
    %10341 = vmatprep.subr.bf16.mxu0 %v7909
    %10342 = vmatpush2.bf16.msra.mxu0 %v7908
    %10343 = vmatprep.subr.bf16.mxu0 %v7902
    %10344 = vmatpush2.bf16.msra.mxu0 %v7901
    %10345 = vmatprep.subr.bf16.mxu0 %v7895
    %10346 = vmatpush2.bf16.msra.mxu0 %v7894
    %10347 = vmatprep.subr.bf16.mxu0 %v7888
    %10348 = vmatpush2.bf16.msra.mxu0 %v7887
    %10349 = vmatprep.mubr.bf16.mxu0 %v318
    %10350 = vmatmul.mubr.bf16.gmra.mxu0 %v317
    %v10351 = vpop.f32.mrf.mxu0
    %v10352 = vadd.f32 %v10159, %v10351
    %v10353 = vpop.f32.mrf.mxu0
    %v10354 = vadd.f32 %v10161, %v10353
    %v10355 = vpop.f32.mrf.mxu0
    %v10356 = vadd.f32 %v10163, %v10355
    %v10357 = vpop.f32.mrf.mxu0
    %v10358 = vadd.f32 %v10165, %v10357
    %10359 = vmatprep.mubr.bf16.mxu0 %v325
    %10360 = vmatmul.mubr.bf16.gmra.mxu0 %v324
    %v10361 = vpop.f32.mrf.mxu0
    %v10362 = vadd.f32 %v10169, %v10361
    %v10363 = vpop.f32.mrf.mxu0
    %v10364 = vadd.f32 %v10171, %v10363
    %v10365 = vpop.f32.mrf.mxu0
    %v10366 = vadd.f32 %v10173, %v10365
    %v10367 = vpop.f32.mrf.mxu0
    %v10368 = vadd.f32 %v10175, %v10367
    %10369 = vmatprep.mubr.bf16.mxu0 %v332
    %10370 = vmatmul.mubr.bf16.gmra.mxu0 %v331
    %v10371 = vpop.f32.mrf.mxu0
    %v10372 = vadd.f32 %v10179, %v10371
    %v10373 = vpop.f32.mrf.mxu0
    %v10374 = vadd.f32 %v10181, %v10373
    %v10375 = vpop.f32.mrf.mxu0
    %v10376 = vadd.f32 %v10183, %v10375
    %v10377 = vpop.f32.mrf.mxu0
    %v10378 = vadd.f32 %v10185, %v10377
    %10379 = vmatprep.mubr.bf16.mxu0 %v339
    %10380 = vmatmul.mubr.bf16.gmra.mxu0 %v338
    %v10381 = vpop.f32.mrf.mxu0
    %v10382 = vadd.f32 %v10189, %v10381
    %v10383 = vpop.f32.mrf.mxu0
    %v10384 = vadd.f32 %v10191, %v10383
    %v10385 = vpop.f32.mrf.mxu0
    %v10386 = vadd.f32 %v10193, %v10385
    %v10387 = vpop.f32.mrf.mxu0
    %v10388 = vadd.f32 %v10195, %v10387
    %10389 = vmatprep.mubr.bf16.mxu0 %v346
    %10390 = vmatmul.mubr.bf16.gmra.mxu0 %v345
    %v10391 = vpop.f32.mrf.mxu0
    %v10392 = vadd.f32 %v10199, %v10391
    %v10393 = vpop.f32.mrf.mxu0
    %v10394 = vadd.f32 %v10201, %v10393
    %v10395 = vpop.f32.mrf.mxu0
    %v10396 = vadd.f32 %v10203, %v10395
    %v10397 = vpop.f32.mrf.mxu0
    %v10398 = vadd.f32 %v10205, %v10397
    %10399 = vmatprep.mubr.bf16.mxu0 %v353
    %10400 = vmatmul.mubr.bf16.gmra.mxu0 %v352
    %v10401 = vpop.f32.mrf.mxu0
    %v10402 = vadd.f32 %v10209, %v10401
    %v10403 = vpop.f32.mrf.mxu0
    %v10404 = vadd.f32 %v10211, %v10403
    %v10405 = vpop.f32.mrf.mxu0
    %v10406 = vadd.f32 %v10213, %v10405
    %v10407 = vpop.f32.mrf.mxu0
    %v10408 = vadd.f32 %v10215, %v10407
    %10409 = vmatprep.mubr.bf16.mxu0 %v360
    %10410 = vmatmul.mubr.bf16.gmra.mxu0 %v359
    %v10411 = vpop.f32.mrf.mxu0
    %v10412 = vadd.f32 %v10219, %v10411
    %v10413 = vpop.f32.mrf.mxu0
    %v10414 = vadd.f32 %v10221, %v10413
    %v10415 = vpop.f32.mrf.mxu0
    %v10416 = vadd.f32 %v10223, %v10415
    %v10417 = vpop.f32.mrf.mxu0
    %v10418 = vadd.f32 %v10225, %v10417
    %10419 = vmatprep.mubr.bf16.mxu0 %v367
    %10420 = vmatmul.mubr.bf16.gmra.mxu0 %v366
    %v10421 = vpop.f32.mrf.mxu0
    %v10422 = vadd.f32 %v10229, %v10421
    %v10423 = vpop.f32.mrf.mxu0
    %v10424 = vadd.f32 %v10231, %v10423
    %v10425 = vpop.f32.mrf.mxu0
    %v10426 = vadd.f32 %v10233, %v10425
    %v10427 = vpop.f32.mrf.mxu0
    %v10428 = vadd.f32 %v10235, %v10427
    %10429 = vmatprep.mubr.bf16.mxu0 %v374
    %10430 = vmatmul.mubr.bf16.gmra.mxu0 %v373
    %v10431 = vpop.f32.mrf.mxu0
    %v10432 = vadd.f32 %v10239, %v10431
    %v10433 = vpop.f32.mrf.mxu0
    %v10434 = vadd.f32 %v10241, %v10433
    %v10435 = vpop.f32.mrf.mxu0
    %v10436 = vadd.f32 %v10243, %v10435
    %v10437 = vpop.f32.mrf.mxu0
    %v10438 = vadd.f32 %v10245, %v10437
    %10439 = vmatprep.mubr.bf16.mxu0 %v381
    %10440 = vmatmul.mubr.bf16.gmra.mxu0 %v380
    %v10441 = vpop.f32.mrf.mxu0
    %v10442 = vadd.f32 %v10249, %v10441
    %v10443 = vpop.f32.mrf.mxu0
    %v10444 = vadd.f32 %v10251, %v10443
    %v10445 = vpop.f32.mrf.mxu0
    %v10446 = vadd.f32 %v10253, %v10445
    %v10447 = vpop.f32.mrf.mxu0
    %v10448 = vadd.f32 %v10255, %v10447
    %10449 = vmatprep.mubr.bf16.mxu0 %v388
    %10450 = vmatmul.mubr.bf16.gmra.mxu0 %v387
    %v10451 = vpop.f32.mrf.mxu0
    %v10452 = vadd.f32 %v10259, %v10451
    %v10453 = vpop.f32.mrf.mxu0
    %v10454 = vadd.f32 %v10261, %v10453
    %v10455 = vpop.f32.mrf.mxu0
    %v10456 = vadd.f32 %v10263, %v10455
    %v10457 = vpop.f32.mrf.mxu0
    %v10458 = vadd.f32 %v10265, %v10457
    %10459 = vmatprep.mubr.bf16.mxu0 %v395
    %10460 = vmatmul.mubr.bf16.gmra.mxu0 %v394
    %v10461 = vpop.f32.mrf.mxu0
    %v10462 = vadd.f32 %v10269, %v10461
    %v10463 = vpop.f32.mrf.mxu0
    %v10464 = vadd.f32 %v10271, %v10463
    %v10465 = vpop.f32.mrf.mxu0
    %v10466 = vadd.f32 %v10273, %v10465
    %v10467 = vpop.f32.mrf.mxu0
    %v10468 = vadd.f32 %v10275, %v10467
    %10469 = vmatprep.mubr.bf16.mxu0 %v402
    %10470 = vmatmul.mubr.bf16.gmra.mxu0 %v401
    %v10471 = vpop.f32.mrf.mxu0
    %v10472 = vadd.f32 %v10279, %v10471
    %v10473 = vpop.f32.mrf.mxu0
    %v10474 = vadd.f32 %v10281, %v10473
    %v10475 = vpop.f32.mrf.mxu0
    %v10476 = vadd.f32 %v10283, %v10475
    %v10477 = vpop.f32.mrf.mxu0
    %v10478 = vadd.f32 %v10285, %v10477
    %10479 = vmatprep.mubr.bf16.mxu0 %v409
    %10480 = vmatmul.mubr.bf16.gmra.mxu0 %v408
    %v10481 = vpop.f32.mrf.mxu0
    %v10482 = vadd.f32 %v10289, %v10481
    %v10483 = vpop.f32.mrf.mxu0
    %v10484 = vadd.f32 %v10291, %v10483
    %v10485 = vpop.f32.mrf.mxu0
    %v10486 = vadd.f32 %v10293, %v10485
    %v10487 = vpop.f32.mrf.mxu0
    %v10488 = vadd.f32 %v10295, %v10487
    %10489 = vmatprep.mubr.bf16.mxu0 %v416
    %10490 = vmatmul.mubr.bf16.gmra.mxu0 %v415
    %v10491 = vpop.f32.mrf.mxu0
    %v10492 = vadd.f32 %v10299, %v10491
    %v10493 = vpop.f32.mrf.mxu0
    %v10494 = vadd.f32 %v10301, %v10493
    %v10495 = vpop.f32.mrf.mxu0
    %v10496 = vadd.f32 %v10303, %v10495
    %v10497 = vpop.f32.mrf.mxu0
    %v10498 = vadd.f32 %v10305, %v10497
    %10499 = vmatprep.mubr.bf16.mxu0 %v423
    %10500 = vmatmul.mubr.bf16.gmra.mxu0 %v422
    %v10501 = vpop.f32.mrf.mxu0
    %v10502 = vadd.f32 %v10309, %v10501
    %v10503 = vpop.f32.mrf.mxu0
    %v10504 = vadd.f32 %v10311, %v10503
    %v10505 = vpop.f32.mrf.mxu0
    %v10506 = vadd.f32 %v10313, %v10505
    %v10507 = vpop.f32.mrf.mxu0
    %v10508 = vadd.f32 %v10315, %v10507
    %10509 = vdwg.mxu0
    %10510 = vmatprep.subr.bf16.mxu0 %v7993
    %10511 = vmatpush1.bf16.msra.mxu0 %v7992
    %10512 = vmatprep.subr.bf16.mxu0 %v7986
    %10513 = vmatpush1.bf16.msra.mxu0 %v7985
    %10514 = vmatprep.subr.bf16.mxu0 %v7979
    %10515 = vmatpush1.bf16.msra.mxu0 %v7978
    %10516 = vmatprep.subr.bf16.mxu0 %v7972
    %10517 = vmatpush1.bf16.msra.mxu0 %v7971
    %10518 = vmatprep.subr.bf16.mxu0 %v7965
    %10519 = vmatpush1.bf16.msra.mxu0 %v7964
    %10520 = vmatprep.subr.bf16.mxu0 %v7958
    %10521 = vmatpush1.bf16.msra.mxu0 %v7957
    %10522 = vmatprep.subr.bf16.mxu0 %v7951
    %10523 = vmatpush1.bf16.msra.mxu0 %v7950
    %10524 = vmatprep.subr.bf16.mxu0 %v7944
    %10525 = vmatpush1.bf16.msra.mxu0 %v7943
    %10526 = vmatprep.subr.bf16.mxu0 0
    %10527 = vmatpush2.bf16.msra.mxu0 0
    %10528 = vmatprep.subr.bf16.mxu0 0
    %10529 = vmatpush2.bf16.msra.mxu0 0
    %10530 = vmatprep.subr.bf16.mxu0 0
    %10531 = vmatpush2.bf16.msra.mxu0 0
    %10532 = vmatprep.subr.bf16.mxu0 0
    %10533 = vmatpush2.bf16.msra.mxu0 0
    %10534 = vmatprep.subr.bf16.mxu0 0
    %10535 = vmatpush2.bf16.msra.mxu0 0
    %10536 = vmatprep.subr.bf16.mxu0 0
    %10537 = vmatpush2.bf16.msra.mxu0 0
    %10538 = vmatprep.subr.bf16.mxu0 0
    %10539 = vmatpush2.bf16.msra.mxu0 0
    %10540 = vmatprep.subr.bf16.mxu0 0
    %10541 = vmatpush2.bf16.msra.mxu0 0
    %10542 = vmatprep.mubr.bf16.mxu0 0
    %10543 = vmatmul.mubr.bf16.gmra.mxu0 %v319
    %v10544 = vpop.f32.mrf.mxu0
    %v10545 = vadd.f32 %v10352, %v10544
    %v10546 = vpop.f32.mrf.mxu0
    %v10547 = vadd.f32 %v10354, %v10546
    %v10548 = vpop.f32.mrf.mxu0
    %v10549 = vadd.f32 %v10356, %v10548
    %v10550 = vpop.f32.mrf.mxu0
    %v10551 = vadd.f32 %v10358, %v10550
    %10552 = vmatprep.mubr.bf16.mxu0 0
    %10553 = vmatmul.mubr.bf16.gmra.mxu0 %v326
    %v10554 = vpop.f32.mrf.mxu0
    %v10555 = vadd.f32 %v10362, %v10554
    %v10556 = vpop.f32.mrf.mxu0
    %v10557 = vadd.f32 %v10364, %v10556
    %v10558 = vpop.f32.mrf.mxu0
    %v10559 = vadd.f32 %v10366, %v10558
    %v10560 = vpop.f32.mrf.mxu0
    %v10561 = vadd.f32 %v10368, %v10560
    %10562 = vmatprep.mubr.bf16.mxu0 0
    %10563 = vmatmul.mubr.bf16.gmra.mxu0 %v333
    %v10564 = vpop.f32.mrf.mxu0
    %v10565 = vadd.f32 %v10372, %v10564
    %v10566 = vpop.f32.mrf.mxu0
    %v10567 = vadd.f32 %v10374, %v10566
    %v10568 = vpop.f32.mrf.mxu0
    %v10569 = vadd.f32 %v10376, %v10568
    %v10570 = vpop.f32.mrf.mxu0
    %v10571 = vadd.f32 %v10378, %v10570
    %10572 = vmatprep.mubr.bf16.mxu0 0
    %10573 = vmatmul.mubr.bf16.gmra.mxu0 %v340
    %v10574 = vpop.f32.mrf.mxu0
    %v10575 = vadd.f32 %v10382, %v10574
    %v10576 = vpop.f32.mrf.mxu0
    %v10577 = vadd.f32 %v10384, %v10576
    %v10578 = vpop.f32.mrf.mxu0
    %v10579 = vadd.f32 %v10386, %v10578
    %v10580 = vpop.f32.mrf.mxu0
    %v10581 = vadd.f32 %v10388, %v10580
    %10582 = vmatprep.mubr.bf16.mxu0 0
    %10583 = vmatmul.mubr.bf16.gmra.mxu0 %v347
    %v10584 = vpop.f32.mrf.mxu0
    %v10585 = vadd.f32 %v10392, %v10584
    %v10586 = vpop.f32.mrf.mxu0
    %v10587 = vadd.f32 %v10394, %v10586
    %v10588 = vpop.f32.mrf.mxu0
    %v10589 = vadd.f32 %v10396, %v10588
    %v10590 = vpop.f32.mrf.mxu0
    %v10591 = vadd.f32 %v10398, %v10590
    %10592 = vmatprep.mubr.bf16.mxu0 0
    %10593 = vmatmul.mubr.bf16.gmra.mxu0 %v354
    %v10594 = vpop.f32.mrf.mxu0
    %v10595 = vadd.f32 %v10402, %v10594
    %v10596 = vpop.f32.mrf.mxu0
    %v10597 = vadd.f32 %v10404, %v10596
    %v10598 = vpop.f32.mrf.mxu0
    %v10599 = vadd.f32 %v10406, %v10598
    %v10600 = vpop.f32.mrf.mxu0
    %v10601 = vadd.f32 %v10408, %v10600
    %10602 = vmatprep.mubr.bf16.mxu0 0
    %10603 = vmatmul.mubr.bf16.gmra.mxu0 %v361
    %v10604 = vpop.f32.mrf.mxu0
    %v10605 = vadd.f32 %v10412, %v10604
    %v10606 = vpop.f32.mrf.mxu0
    %v10607 = vadd.f32 %v10414, %v10606
    %v10608 = vpop.f32.mrf.mxu0
    %v10609 = vadd.f32 %v10416, %v10608
    %v10610 = vpop.f32.mrf.mxu0
    %v10611 = vadd.f32 %v10418, %v10610
    %10612 = vmatprep.mubr.bf16.mxu0 0
    %10613 = vmatmul.mubr.bf16.gmra.mxu0 %v368
    %v10614 = vpop.f32.mrf.mxu0
    %v10615 = vadd.f32 %v10422, %v10614
    %v10616 = vpop.f32.mrf.mxu0
    %v10617 = vadd.f32 %v10424, %v10616
    %v10618 = vpop.f32.mrf.mxu0
    %v10619 = vadd.f32 %v10426, %v10618
    %v10620 = vpop.f32.mrf.mxu0
    %v10621 = vadd.f32 %v10428, %v10620
    %10622 = vmatprep.mubr.bf16.mxu0 0
    %10623 = vmatmul.mubr.bf16.gmra.mxu0 %v375
    %v10624 = vpop.f32.mrf.mxu0
    %v10625 = vadd.f32 %v10432, %v10624
    %v10626 = vpop.f32.mrf.mxu0
    %v10627 = vadd.f32 %v10434, %v10626
    %v10628 = vpop.f32.mrf.mxu0
    %v10629 = vadd.f32 %v10436, %v10628
    %v10630 = vpop.f32.mrf.mxu0
    %v10631 = vadd.f32 %v10438, %v10630
    %10632 = vmatprep.mubr.bf16.mxu0 0
    %10633 = vmatmul.mubr.bf16.gmra.mxu0 %v382
    %v10634 = vpop.f32.mrf.mxu0
    %v10635 = vadd.f32 %v10442, %v10634
    %v10636 = vpop.f32.mrf.mxu0
    %v10637 = vadd.f32 %v10444, %v10636
    %v10638 = vpop.f32.mrf.mxu0
    %v10639 = vadd.f32 %v10446, %v10638
    %v10640 = vpop.f32.mrf.mxu0
    %v10641 = vadd.f32 %v10448, %v10640
    %10642 = vmatprep.mubr.bf16.mxu0 0
    %10643 = vmatmul.mubr.bf16.gmra.mxu0 %v389
    %v10644 = vpop.f32.mrf.mxu0
    %v10645 = vadd.f32 %v10452, %v10644
    %v10646 = vpop.f32.mrf.mxu0
    %v10647 = vadd.f32 %v10454, %v10646
    %v10648 = vpop.f32.mrf.mxu0
    %v10649 = vadd.f32 %v10456, %v10648
    %v10650 = vpop.f32.mrf.mxu0
    %v10651 = vadd.f32 %v10458, %v10650
    %10652 = vmatprep.mubr.bf16.mxu0 0
    %10653 = vmatmul.mubr.bf16.gmra.mxu0 %v396
    %v10654 = vpop.f32.mrf.mxu0
    %v10655 = vadd.f32 %v10462, %v10654
    %v10656 = vpop.f32.mrf.mxu0
    %v10657 = vadd.f32 %v10464, %v10656
    %v10658 = vpop.f32.mrf.mxu0
    %v10659 = vadd.f32 %v10466, %v10658
    %v10660 = vpop.f32.mrf.mxu0
    %v10661 = vadd.f32 %v10468, %v10660
    %10662 = vmatprep.mubr.bf16.mxu0 0
    %10663 = vmatmul.mubr.bf16.gmra.mxu0 %v403
    %v10664 = vpop.f32.mrf.mxu0
    %v10665 = vadd.f32 %v10472, %v10664
    %v10666 = vpop.f32.mrf.mxu0
    %v10667 = vadd.f32 %v10474, %v10666
    %v10668 = vpop.f32.mrf.mxu0
    %v10669 = vadd.f32 %v10476, %v10668
    %v10670 = vpop.f32.mrf.mxu0
    %v10671 = vadd.f32 %v10478, %v10670
    %10672 = vmatprep.mubr.bf16.mxu0 0
    %10673 = vmatmul.mubr.bf16.gmra.mxu0 %v410
    %v10674 = vpop.f32.mrf.mxu0
    %v10675 = vadd.f32 %v10482, %v10674
    %v10676 = vpop.f32.mrf.mxu0
    %v10677 = vadd.f32 %v10484, %v10676
    %v10678 = vpop.f32.mrf.mxu0
    %v10679 = vadd.f32 %v10486, %v10678
    %v10680 = vpop.f32.mrf.mxu0
    %v10681 = vadd.f32 %v10488, %v10680
    %10682 = vmatprep.mubr.bf16.mxu0 0
    %10683 = vmatmul.mubr.bf16.gmra.mxu0 %v417
    %v10684 = vpop.f32.mrf.mxu0
    %v10685 = vadd.f32 %v10492, %v10684
    %v10686 = vpop.f32.mrf.mxu0
    %v10687 = vadd.f32 %v10494, %v10686
    %v10688 = vpop.f32.mrf.mxu0
    %v10689 = vadd.f32 %v10496, %v10688
    %v10690 = vpop.f32.mrf.mxu0
    %v10691 = vadd.f32 %v10498, %v10690
    %10692 = vmatprep.mubr.bf16.mxu0 0
    %10693 = vmatmul.mubr.bf16.gmra.mxu0 %v424
    %v10694 = vpop.f32.mrf.mxu0
    %v10695 = vadd.f32 %v10502, %v10694
    %v10696 = vpop.f32.mrf.mxu0
    %v10697 = vadd.f32 %v10504, %v10696
    %v10698 = vpop.f32.mrf.mxu0
    %v10699 = vadd.f32 %v10506, %v10698
    %v10700 = vpop.f32.mrf.mxu0
    %v10701 = vadd.f32 %v10508, %v10700
    %10702 = vdwg.mxu0
    %10703 = vmatprep.subr.bf16.mxu0 0
    %10704 = vmatpush1.bf16.msra.mxu0 %v7658
    %10705 = vmatprep.subr.bf16.mxu0 0
    %10706 = vmatpush1.bf16.msra.mxu0 %v7651
    %10707 = vmatprep.subr.bf16.mxu0 0
    %10708 = vmatpush1.bf16.msra.mxu0 %v7644
    %10709 = vmatprep.subr.bf16.mxu0 0
    %10710 = vmatpush1.bf16.msra.mxu0 %v7637
    %10711 = vmatprep.subr.bf16.mxu0 0
    %10712 = vmatpush1.bf16.msra.mxu0 %v7630
    %10713 = vmatprep.subr.bf16.mxu0 0
    %10714 = vmatpush1.bf16.msra.mxu0 %v7623
    %10715 = vmatprep.subr.bf16.mxu0 0
    %10716 = vmatpush1.bf16.msra.mxu0 %v7616
    %10717 = vmatprep.subr.bf16.mxu0 0
    %10718 = vmatpush1.bf16.msra.mxu0 %v7609
    %10719 = vmatprep.subr.bf16.mxu0 0
    %10720 = vmatpush2.bf16.msra.mxu0 %v7714
    %10721 = vmatprep.subr.bf16.mxu0 0
    %10722 = vmatpush2.bf16.msra.mxu0 %v7707
    %10723 = vmatprep.subr.bf16.mxu0 0
    %10724 = vmatpush2.bf16.msra.mxu0 %v7700
    %10725 = vmatprep.subr.bf16.mxu0 0
    %10726 = vmatpush2.bf16.msra.mxu0 %v7693
    %10727 = vmatprep.subr.bf16.mxu0 0
    %10728 = vmatpush2.bf16.msra.mxu0 %v7686
    %10729 = vmatprep.subr.bf16.mxu0 0
    %10730 = vmatpush2.bf16.msra.mxu0 %v7679
    %10731 = vmatprep.subr.bf16.mxu0 0
    %10732 = vmatpush2.bf16.msra.mxu0 %v7672
    %10733 = vmatprep.subr.bf16.mxu0 0
    %10734 = vmatpush2.bf16.msra.mxu0 %v7665
    %10735 = vmatprep.mubr.bf16.mxu0 %v314
    %10736 = vmatmul.mubr.bf16.gmra.mxu0 %v313
    %v10737 = vpop.f32.mrf.mxu0
    %v10738 = vadd.f32 %v6363, %v10737
    %v10739 = vpop.f32.mrf.mxu0
    %v10740 = vpop.f32.mrf.mxu0
    %v10741 = vadd.f32 %v6363, %v10740
    %v10742 = vpop.f32.mrf.mxu0
    %10743 = vmatprep.mubr.bf16.mxu0 %v321
    %10744 = vmatmul.mubr.bf16.gmra.mxu0 %v320
    %v10745 = vpop.f32.mrf.mxu0
    %v10746 = vadd.f32 %v6363, %v10745
    %v10747 = vpop.f32.mrf.mxu0
    %v10748 = vpop.f32.mrf.mxu0
    %v10749 = vadd.f32 %v6363, %v10748
    %v10750 = vpop.f32.mrf.mxu0
    %10751 = vmatprep.mubr.bf16.mxu0 %v328
    %10752 = vmatmul.mubr.bf16.gmra.mxu0 %v327
    %v10753 = vpop.f32.mrf.mxu0
    %v10754 = vadd.f32 %v6363, %v10753
    %v10755 = vpop.f32.mrf.mxu0
    %v10756 = vpop.f32.mrf.mxu0
    %v10757 = vadd.f32 %v6363, %v10756
    %v10758 = vpop.f32.mrf.mxu0
    %10759 = vmatprep.mubr.bf16.mxu0 %v335
    %10760 = vmatmul.mubr.bf16.gmra.mxu0 %v334
    %v10761 = vpop.f32.mrf.mxu0
    %v10762 = vadd.f32 %v6363, %v10761
    %v10763 = vpop.f32.mrf.mxu0
    %v10764 = vpop.f32.mrf.mxu0
    %v10765 = vadd.f32 %v6363, %v10764
    %v10766 = vpop.f32.mrf.mxu0
    %10767 = vmatprep.mubr.bf16.mxu0 %v342
    %10768 = vmatmul.mubr.bf16.gmra.mxu0 %v341
    %v10769 = vpop.f32.mrf.mxu0
    %v10770 = vadd.f32 %v6363, %v10769
    %v10771 = vpop.f32.mrf.mxu0
    %v10772 = vpop.f32.mrf.mxu0
    %v10773 = vadd.f32 %v6363, %v10772
    %v10774 = vpop.f32.mrf.mxu0
    %10775 = vmatprep.mubr.bf16.mxu0 %v349
    %10776 = vmatmul.mubr.bf16.gmra.mxu0 %v348
    %v10777 = vpop.f32.mrf.mxu0
    %v10778 = vadd.f32 %v6363, %v10777
    %v10779 = vpop.f32.mrf.mxu0
    %v10780 = vpop.f32.mrf.mxu0
    %v10781 = vadd.f32 %v6363, %v10780
    %v10782 = vpop.f32.mrf.mxu0
    %10783 = vmatprep.mubr.bf16.mxu0 %v356
    %10784 = vmatmul.mubr.bf16.gmra.mxu0 %v355
    %v10785 = vpop.f32.mrf.mxu0
    %v10786 = vadd.f32 %v6363, %v10785
    %v10787 = vpop.f32.mrf.mxu0
    %v10788 = vpop.f32.mrf.mxu0
    %v10789 = vadd.f32 %v6363, %v10788
    %v10790 = vpop.f32.mrf.mxu0
    %10791 = vmatprep.mubr.bf16.mxu0 %v363
    %10792 = vmatmul.mubr.bf16.gmra.mxu0 %v362
    %v10793 = vpop.f32.mrf.mxu0
    %v10794 = vadd.f32 %v6363, %v10793
    %v10795 = vpop.f32.mrf.mxu0
    %v10796 = vpop.f32.mrf.mxu0
    %v10797 = vadd.f32 %v6363, %v10796
    %v10798 = vpop.f32.mrf.mxu0
    %10799 = vmatprep.mubr.bf16.mxu0 %v370
    %10800 = vmatmul.mubr.bf16.gmra.mxu0 %v369
    %v10801 = vpop.f32.mrf.mxu0
    %v10802 = vadd.f32 %v6363, %v10801
    %v10803 = vpop.f32.mrf.mxu0
    %v10804 = vpop.f32.mrf.mxu0
    %v10805 = vadd.f32 %v6363, %v10804
    %v10806 = vpop.f32.mrf.mxu0
    %10807 = vmatprep.mubr.bf16.mxu0 %v377
    %10808 = vmatmul.mubr.bf16.gmra.mxu0 %v376
    %v10809 = vpop.f32.mrf.mxu0
    %v10810 = vadd.f32 %v6363, %v10809
    %v10811 = vpop.f32.mrf.mxu0
    %v10812 = vpop.f32.mrf.mxu0
    %v10813 = vadd.f32 %v6363, %v10812
    %v10814 = vpop.f32.mrf.mxu0
    %10815 = vmatprep.mubr.bf16.mxu0 %v384
    %10816 = vmatmul.mubr.bf16.gmra.mxu0 %v383
    %v10817 = vpop.f32.mrf.mxu0
    %v10818 = vadd.f32 %v6363, %v10817
    %v10819 = vpop.f32.mrf.mxu0
    %v10820 = vpop.f32.mrf.mxu0
    %v10821 = vadd.f32 %v6363, %v10820
    %v10822 = vpop.f32.mrf.mxu0
    %10823 = vmatprep.mubr.bf16.mxu0 %v391
    %10824 = vmatmul.mubr.bf16.gmra.mxu0 %v390
    %v10825 = vpop.f32.mrf.mxu0
    %v10826 = vadd.f32 %v6363, %v10825
    %v10827 = vpop.f32.mrf.mxu0
    %v10828 = vpop.f32.mrf.mxu0
    %v10829 = vadd.f32 %v6363, %v10828
    %v10830 = vpop.f32.mrf.mxu0
    %10831 = vmatprep.mubr.bf16.mxu0 %v398
    %10832 = vmatmul.mubr.bf16.gmra.mxu0 %v397
    %v10833 = vpop.f32.mrf.mxu0
    %v10834 = vadd.f32 %v6363, %v10833
    %v10835 = vpop.f32.mrf.mxu0
    %v10836 = vpop.f32.mrf.mxu0
    %v10837 = vadd.f32 %v6363, %v10836
    %v10838 = vpop.f32.mrf.mxu0
    %10839 = vmatprep.mubr.bf16.mxu0 %v405
    %10840 = vmatmul.mubr.bf16.gmra.mxu0 %v404
    %v10841 = vpop.f32.mrf.mxu0
    %v10842 = vadd.f32 %v6363, %v10841
    %v10843 = vpop.f32.mrf.mxu0
    %v10844 = vpop.f32.mrf.mxu0
    %v10845 = vadd.f32 %v6363, %v10844
    %v10846 = vpop.f32.mrf.mxu0
    %10847 = vmatprep.mubr.bf16.mxu0 %v412
    %10848 = vmatmul.mubr.bf16.gmra.mxu0 %v411
    %v10849 = vpop.f32.mrf.mxu0
    %v10850 = vadd.f32 %v6363, %v10849
    %v10851 = vpop.f32.mrf.mxu0
    %v10852 = vpop.f32.mrf.mxu0
    %v10853 = vadd.f32 %v6363, %v10852
    %v10854 = vpop.f32.mrf.mxu0
    %10855 = vmatprep.mubr.bf16.mxu0 %v419
    %10856 = vmatmul.mubr.bf16.gmra.mxu0 %v418
    %v10857 = vpop.f32.mrf.mxu0
    %v10858 = vadd.f32 %v6363, %v10857
    %v10859 = vpop.f32.mrf.mxu0
    %v10860 = vpop.f32.mrf.mxu0
    %v10861 = vadd.f32 %v6363, %v10860
    %v10862 = vpop.f32.mrf.mxu0
    %10863 = vdwg.mxu0
    %10864 = vmatprep.subr.bf16.mxu0 0
    %10865 = vmatpush1.bf16.msra.mxu0 %v7770
    %10866 = vmatprep.subr.bf16.mxu0 0
    %10867 = vmatpush1.bf16.msra.mxu0 %v7763
    %10868 = vmatprep.subr.bf16.mxu0 0
    %10869 = vmatpush1.bf16.msra.mxu0 %v7756
    %10870 = vmatprep.subr.bf16.mxu0 0
    %10871 = vmatpush1.bf16.msra.mxu0 %v7749
    %10872 = vmatprep.subr.bf16.mxu0 0
    %10873 = vmatpush1.bf16.msra.mxu0 %v7742
    %10874 = vmatprep.subr.bf16.mxu0 0
    %10875 = vmatpush1.bf16.msra.mxu0 %v7735
    %10876 = vmatprep.subr.bf16.mxu0 0
    %10877 = vmatpush1.bf16.msra.mxu0 %v7728
    %10878 = vmatprep.subr.bf16.mxu0 0
    %10879 = vmatpush1.bf16.msra.mxu0 %v7721
    %10880 = vmatprep.subr.bf16.mxu0 0
    %10881 = vmatpush2.bf16.msra.mxu0 %v7826
    %10882 = vmatprep.subr.bf16.mxu0 0
    %10883 = vmatpush2.bf16.msra.mxu0 %v7819
    %10884 = vmatprep.subr.bf16.mxu0 0
    %10885 = vmatpush2.bf16.msra.mxu0 %v7812
    %10886 = vmatprep.subr.bf16.mxu0 0
    %10887 = vmatpush2.bf16.msra.mxu0 %v7805
    %10888 = vmatprep.subr.bf16.mxu0 0
    %10889 = vmatpush2.bf16.msra.mxu0 %v7798
    %10890 = vmatprep.subr.bf16.mxu0 0
    %10891 = vmatpush2.bf16.msra.mxu0 %v7791
    %10892 = vmatprep.subr.bf16.mxu0 0
    %10893 = vmatpush2.bf16.msra.mxu0 %v7784
    %10894 = vmatprep.subr.bf16.mxu0 0
    %10895 = vmatpush2.bf16.msra.mxu0 %v7777
    %10896 = vmatprep.mubr.bf16.mxu0 %v316
    %10897 = vmatmul.mubr.bf16.gmra.mxu0 %v315
    %v10898 = vpop.f32.mrf.mxu0
    %v10899 = vadd.f32 %v10738, %v10898
    %v10900 = vpop.f32.mrf.mxu0
    %v10901 = vpop.f32.mrf.mxu0
    %v10902 = vadd.f32 %v10741, %v10901
    %v10903 = vpop.f32.mrf.mxu0
    %10904 = vmatprep.mubr.bf16.mxu0 %v323
    %10905 = vmatmul.mubr.bf16.gmra.mxu0 %v322
    %v10906 = vpop.f32.mrf.mxu0
    %v10907 = vadd.f32 %v10746, %v10906
    %v10908 = vpop.f32.mrf.mxu0
    %v10909 = vpop.f32.mrf.mxu0
    %v10910 = vadd.f32 %v10749, %v10909
    %v10911 = vpop.f32.mrf.mxu0
    %10912 = vmatprep.mubr.bf16.mxu0 %v330
    %10913 = vmatmul.mubr.bf16.gmra.mxu0 %v329
    %v10914 = vpop.f32.mrf.mxu0
    %v10915 = vadd.f32 %v10754, %v10914
    %v10916 = vpop.f32.mrf.mxu0
    %v10917 = vpop.f32.mrf.mxu0
    %v10918 = vadd.f32 %v10757, %v10917
    %v10919 = vpop.f32.mrf.mxu0
    %10920 = vmatprep.mubr.bf16.mxu0 %v337
    %10921 = vmatmul.mubr.bf16.gmra.mxu0 %v336
    %v10922 = vpop.f32.mrf.mxu0
    %v10923 = vadd.f32 %v10762, %v10922
    %v10924 = vpop.f32.mrf.mxu0
    %v10925 = vpop.f32.mrf.mxu0
    %v10926 = vadd.f32 %v10765, %v10925
    %v10927 = vpop.f32.mrf.mxu0
    %10928 = vmatprep.mubr.bf16.mxu0 %v344
    %10929 = vmatmul.mubr.bf16.gmra.mxu0 %v343
    %v10930 = vpop.f32.mrf.mxu0
    %v10931 = vadd.f32 %v10770, %v10930
    %v10932 = vpop.f32.mrf.mxu0
    %v10933 = vpop.f32.mrf.mxu0
    %v10934 = vadd.f32 %v10773, %v10933
    %v10935 = vpop.f32.mrf.mxu0
    %10936 = vmatprep.mubr.bf16.mxu0 %v351
    %10937 = vmatmul.mubr.bf16.gmra.mxu0 %v350
    %v10938 = vpop.f32.mrf.mxu0
    %v10939 = vadd.f32 %v10778, %v10938
    %v10940 = vpop.f32.mrf.mxu0
    %v10941 = vpop.f32.mrf.mxu0
    %v10942 = vadd.f32 %v10781, %v10941
    %v10943 = vpop.f32.mrf.mxu0
    %10944 = vmatprep.mubr.bf16.mxu0 %v358
    %10945 = vmatmul.mubr.bf16.gmra.mxu0 %v357
    %v10946 = vpop.f32.mrf.mxu0
    %v10947 = vadd.f32 %v10786, %v10946
    %v10948 = vpop.f32.mrf.mxu0
    %v10949 = vpop.f32.mrf.mxu0
    %v10950 = vadd.f32 %v10789, %v10949
    %v10951 = vpop.f32.mrf.mxu0
    %10952 = vmatprep.mubr.bf16.mxu0 %v365
    %10953 = vmatmul.mubr.bf16.gmra.mxu0 %v364
    %v10954 = vpop.f32.mrf.mxu0
    %v10955 = vadd.f32 %v10794, %v10954
    %v10956 = vpop.f32.mrf.mxu0
    %v10957 = vpop.f32.mrf.mxu0
    %v10958 = vadd.f32 %v10797, %v10957
    %v10959 = vpop.f32.mrf.mxu0
    %10960 = vmatprep.mubr.bf16.mxu0 %v372
    %10961 = vmatmul.mubr.bf16.gmra.mxu0 %v371
    %v10962 = vpop.f32.mrf.mxu0
    %v10963 = vadd.f32 %v10802, %v10962
    %v10964 = vpop.f32.mrf.mxu0
    %v10965 = vpop.f32.mrf.mxu0
    %v10966 = vadd.f32 %v10805, %v10965
    %v10967 = vpop.f32.mrf.mxu0
    %10968 = vmatprep.mubr.bf16.mxu0 %v379
    %10969 = vmatmul.mubr.bf16.gmra.mxu0 %v378
    %v10970 = vpop.f32.mrf.mxu0
    %v10971 = vadd.f32 %v10810, %v10970
    %v10972 = vpop.f32.mrf.mxu0
    %v10973 = vpop.f32.mrf.mxu0
    %v10974 = vadd.f32 %v10813, %v10973
    %v10975 = vpop.f32.mrf.mxu0
    %10976 = vmatprep.mubr.bf16.mxu0 %v386
    %10977 = vmatmul.mubr.bf16.gmra.mxu0 %v385
    %v10978 = vpop.f32.mrf.mxu0
    %v10979 = vadd.f32 %v10818, %v10978
    %v10980 = vpop.f32.mrf.mxu0
    %v10981 = vpop.f32.mrf.mxu0
    %v10982 = vadd.f32 %v10821, %v10981
    %v10983 = vpop.f32.mrf.mxu0
    %10984 = vmatprep.mubr.bf16.mxu0 %v393
    %10985 = vmatmul.mubr.bf16.gmra.mxu0 %v392
    %v10986 = vpop.f32.mrf.mxu0
    %v10987 = vadd.f32 %v10826, %v10986
    %v10988 = vpop.f32.mrf.mxu0
    %v10989 = vpop.f32.mrf.mxu0
    %v10990 = vadd.f32 %v10829, %v10989
    %v10991 = vpop.f32.mrf.mxu0
    %10992 = vmatprep.mubr.bf16.mxu0 %v400
    %10993 = vmatmul.mubr.bf16.gmra.mxu0 %v399
    %v10994 = vpop.f32.mrf.mxu0
    %v10995 = vadd.f32 %v10834, %v10994
    %v10996 = vpop.f32.mrf.mxu0
    %v10997 = vpop.f32.mrf.mxu0
    %v10998 = vadd.f32 %v10837, %v10997
    %v10999 = vpop.f32.mrf.mxu0
    %11000 = vmatprep.mubr.bf16.mxu0 %v407
    %11001 = vmatmul.mubr.bf16.gmra.mxu0 %v406
    %v11002 = vpop.f32.mrf.mxu0
    %v11003 = vadd.f32 %v10842, %v11002
    %v11004 = vpop.f32.mrf.mxu0
    %v11005 = vpop.f32.mrf.mxu0
    %v11006 = vadd.f32 %v10845, %v11005
    %v11007 = vpop.f32.mrf.mxu0
    %11008 = vmatprep.mubr.bf16.mxu0 %v414
    %11009 = vmatmul.mubr.bf16.gmra.mxu0 %v413
    %v11010 = vpop.f32.mrf.mxu0
    %v11011 = vadd.f32 %v10850, %v11010
    %v11012 = vpop.f32.mrf.mxu0
    %v11013 = vpop.f32.mrf.mxu0
    %v11014 = vadd.f32 %v10853, %v11013
    %v11015 = vpop.f32.mrf.mxu0
    %11016 = vmatprep.mubr.bf16.mxu0 %v421
    %11017 = vmatmul.mubr.bf16.gmra.mxu0 %v420
    %v11018 = vpop.f32.mrf.mxu0
    %v11019 = vadd.f32 %v10858, %v11018
    %v11020 = vpop.f32.mrf.mxu0
    %v11021 = vpop.f32.mrf.mxu0
    %v11022 = vadd.f32 %v10861, %v11021
    %v11023 = vpop.f32.mrf.mxu0
    %11024 = vdwg.mxu0
    %11025 = vmatprep.subr.bf16.mxu0 0
    %11026 = vmatpush1.bf16.msra.mxu0 %v7882
    %11027 = vmatprep.subr.bf16.mxu0 0
    %11028 = vmatpush1.bf16.msra.mxu0 %v7875
    %11029 = vmatprep.subr.bf16.mxu0 0
    %11030 = vmatpush1.bf16.msra.mxu0 %v7868
    %11031 = vmatprep.subr.bf16.mxu0 0
    %11032 = vmatpush1.bf16.msra.mxu0 %v7861
    %11033 = vmatprep.subr.bf16.mxu0 0
    %11034 = vmatpush1.bf16.msra.mxu0 %v7854
    %11035 = vmatprep.subr.bf16.mxu0 0
    %11036 = vmatpush1.bf16.msra.mxu0 %v7847
    %11037 = vmatprep.subr.bf16.mxu0 0
    %11038 = vmatpush1.bf16.msra.mxu0 %v7840
    %11039 = vmatprep.subr.bf16.mxu0 0
    %11040 = vmatpush1.bf16.msra.mxu0 %v7833
    %11041 = vmatprep.subr.bf16.mxu0 0
    %11042 = vmatpush2.bf16.msra.mxu0 %v7938
    %11043 = vmatprep.subr.bf16.mxu0 0
    %11044 = vmatpush2.bf16.msra.mxu0 %v7931
    %11045 = vmatprep.subr.bf16.mxu0 0
    %11046 = vmatpush2.bf16.msra.mxu0 %v7924
    %11047 = vmatprep.subr.bf16.mxu0 0
    %11048 = vmatpush2.bf16.msra.mxu0 %v7917
    %11049 = vmatprep.subr.bf16.mxu0 0
    %11050 = vmatpush2.bf16.msra.mxu0 %v7910
    %11051 = vmatprep.subr.bf16.mxu0 0
    %11052 = vmatpush2.bf16.msra.mxu0 %v7903
    %11053 = vmatprep.subr.bf16.mxu0 0
    %11054 = vmatpush2.bf16.msra.mxu0 %v7896
    %11055 = vmatprep.subr.bf16.mxu0 0
    %11056 = vmatpush2.bf16.msra.mxu0 %v7889
    %11057 = vmatprep.mubr.bf16.mxu0 %v318
    %11058 = vmatmul.mubr.bf16.gmra.mxu0 %v317
    %v11059 = vpop.f32.mrf.mxu0
    %v11060 = vadd.f32 %v10899, %v11059
    %v11061 = vpop.f32.mrf.mxu0
    %v11062 = vpop.f32.mrf.mxu0
    %v11063 = vadd.f32 %v10902, %v11062
    %v11064 = vpop.f32.mrf.mxu0
    %11065 = vmatprep.mubr.bf16.mxu0 %v325
    %11066 = vmatmul.mubr.bf16.gmra.mxu0 %v324
    %v11067 = vpop.f32.mrf.mxu0
    %v11068 = vadd.f32 %v10907, %v11067
    %v11069 = vpop.f32.mrf.mxu0
    %v11070 = vpop.f32.mrf.mxu0
    %v11071 = vadd.f32 %v10910, %v11070
    %v11072 = vpop.f32.mrf.mxu0
    %11073 = vmatprep.mubr.bf16.mxu0 %v332
    %11074 = vmatmul.mubr.bf16.gmra.mxu0 %v331
    %v11075 = vpop.f32.mrf.mxu0
    %v11076 = vadd.f32 %v10915, %v11075
    %v11077 = vpop.f32.mrf.mxu0
    %v11078 = vpop.f32.mrf.mxu0
    %v11079 = vadd.f32 %v10918, %v11078
    %v11080 = vpop.f32.mrf.mxu0
    %11081 = vmatprep.mubr.bf16.mxu0 %v339
    %11082 = vmatmul.mubr.bf16.gmra.mxu0 %v338
    %v11083 = vpop.f32.mrf.mxu0
    %v11084 = vadd.f32 %v10923, %v11083
    %v11085 = vpop.f32.mrf.mxu0
    %v11086 = vpop.f32.mrf.mxu0
    %v11087 = vadd.f32 %v10926, %v11086
    %v11088 = vpop.f32.mrf.mxu0
    %11089 = vmatprep.mubr.bf16.mxu0 %v346
    %11090 = vmatmul.mubr.bf16.gmra.mxu0 %v345
    %v11091 = vpop.f32.mrf.mxu0
    %v11092 = vadd.f32 %v10931, %v11091
    %v11093 = vpop.f32.mrf.mxu0
    %v11094 = vpop.f32.mrf.mxu0
    %v11095 = vadd.f32 %v10934, %v11094
    %v11096 = vpop.f32.mrf.mxu0
    %11097 = vmatprep.mubr.bf16.mxu0 %v353
    %11098 = vmatmul.mubr.bf16.gmra.mxu0 %v352
    %v11099 = vpop.f32.mrf.mxu0
    %v11100 = vadd.f32 %v10939, %v11099
    %v11101 = vpop.f32.mrf.mxu0
    %v11102 = vpop.f32.mrf.mxu0
    %v11103 = vadd.f32 %v10942, %v11102
    %v11104 = vpop.f32.mrf.mxu0
    %11105 = vmatprep.mubr.bf16.mxu0 %v360
    %11106 = vmatmul.mubr.bf16.gmra.mxu0 %v359
    %v11107 = vpop.f32.mrf.mxu0
    %v11108 = vadd.f32 %v10947, %v11107
    %v11109 = vpop.f32.mrf.mxu0
    %v11110 = vpop.f32.mrf.mxu0
    %v11111 = vadd.f32 %v10950, %v11110
    %v11112 = vpop.f32.mrf.mxu0
    %11113 = vmatprep.mubr.bf16.mxu0 %v367
    %11114 = vmatmul.mubr.bf16.gmra.mxu0 %v366
    %v11115 = vpop.f32.mrf.mxu0
    %v11116 = vadd.f32 %v10955, %v11115
    %v11117 = vpop.f32.mrf.mxu0
    %v11118 = vpop.f32.mrf.mxu0
    %v11119 = vadd.f32 %v10958, %v11118
    %v11120 = vpop.f32.mrf.mxu0
    %11121 = vmatprep.mubr.bf16.mxu0 %v374
    %11122 = vmatmul.mubr.bf16.gmra.mxu0 %v373
    %v11123 = vpop.f32.mrf.mxu0
    %v11124 = vadd.f32 %v10963, %v11123
    %v11125 = vpop.f32.mrf.mxu0
    %v11126 = vpop.f32.mrf.mxu0
    %v11127 = vadd.f32 %v10966, %v11126
    %v11128 = vpop.f32.mrf.mxu0
    %11129 = vmatprep.mubr.bf16.mxu0 %v381
    %11130 = vmatmul.mubr.bf16.gmra.mxu0 %v380
    %v11131 = vpop.f32.mrf.mxu0
    %v11132 = vadd.f32 %v10971, %v11131
    %v11133 = vpop.f32.mrf.mxu0
    %v11134 = vpop.f32.mrf.mxu0
    %v11135 = vadd.f32 %v10974, %v11134
    %v11136 = vpop.f32.mrf.mxu0
    %11137 = vmatprep.mubr.bf16.mxu0 %v388
    %11138 = vmatmul.mubr.bf16.gmra.mxu0 %v387
    %v11139 = vpop.f32.mrf.mxu0
    %v11140 = vadd.f32 %v10979, %v11139
    %v11141 = vpop.f32.mrf.mxu0
    %v11142 = vpop.f32.mrf.mxu0
    %v11143 = vadd.f32 %v10982, %v11142
    %v11144 = vpop.f32.mrf.mxu0
    %11145 = vmatprep.mubr.bf16.mxu0 %v395
    %11146 = vmatmul.mubr.bf16.gmra.mxu0 %v394
    %v11147 = vpop.f32.mrf.mxu0
    %v11148 = vadd.f32 %v10987, %v11147
    %v11149 = vpop.f32.mrf.mxu0
    %v11150 = vpop.f32.mrf.mxu0
    %v11151 = vadd.f32 %v10990, %v11150
    %v11152 = vpop.f32.mrf.mxu0
    %11153 = vmatprep.mubr.bf16.mxu0 %v402
    %11154 = vmatmul.mubr.bf16.gmra.mxu0 %v401
    %v11155 = vpop.f32.mrf.mxu0
    %v11156 = vadd.f32 %v10995, %v11155
    %v11157 = vpop.f32.mrf.mxu0
    %v11158 = vpop.f32.mrf.mxu0
    %v11159 = vadd.f32 %v10998, %v11158
    %v11160 = vpop.f32.mrf.mxu0
    %11161 = vmatprep.mubr.bf16.mxu0 %v409
    %11162 = vmatmul.mubr.bf16.gmra.mxu0 %v408
    %v11163 = vpop.f32.mrf.mxu0
    %v11164 = vadd.f32 %v11003, %v11163
    %v11165 = vpop.f32.mrf.mxu0
    %v11166 = vpop.f32.mrf.mxu0
    %v11167 = vadd.f32 %v11006, %v11166
    %v11168 = vpop.f32.mrf.mxu0
    %11169 = vmatprep.mubr.bf16.mxu0 %v416
    %11170 = vmatmul.mubr.bf16.gmra.mxu0 %v415
    %v11171 = vpop.f32.mrf.mxu0
    %v11172 = vadd.f32 %v11011, %v11171
    %v11173 = vpop.f32.mrf.mxu0
    %v11174 = vpop.f32.mrf.mxu0
    %v11175 = vadd.f32 %v11014, %v11174
    %v11176 = vpop.f32.mrf.mxu0
    %11177 = vmatprep.mubr.bf16.mxu0 %v423
    %11178 = vmatmul.mubr.bf16.gmra.mxu0 %v422
    %v11179 = vpop.f32.mrf.mxu0
    %v11180 = vadd.f32 %v11019, %v11179
    %v11181 = vpop.f32.mrf.mxu0
    %v11182 = vpop.f32.mrf.mxu0
    %v11183 = vadd.f32 %v11022, %v11182
    %v11184 = vpop.f32.mrf.mxu0
    %11185 = vdwg.mxu0
    %11186 = vmatprep.subr.bf16.mxu0 0
    %11187 = vmatpush1.bf16.msra.mxu0 %v7994
    %11188 = vmatprep.subr.bf16.mxu0 0
    %11189 = vmatpush1.bf16.msra.mxu0 %v7987
    %11190 = vmatprep.subr.bf16.mxu0 0
    %11191 = vmatpush1.bf16.msra.mxu0 %v7980
    %11192 = vmatprep.subr.bf16.mxu0 0
    %11193 = vmatpush1.bf16.msra.mxu0 %v7973
    %11194 = vmatprep.subr.bf16.mxu0 0
    %11195 = vmatpush1.bf16.msra.mxu0 %v7966
    %11196 = vmatprep.subr.bf16.mxu0 0
    %11197 = vmatpush1.bf16.msra.mxu0 %v7959
    %11198 = vmatprep.subr.bf16.mxu0 0
    %11199 = vmatpush1.bf16.msra.mxu0 %v7952
    %11200 = vmatprep.subr.bf16.mxu0 0
    %11201 = vmatpush1.bf16.msra.mxu0 %v7945
    %11202 = vmatprep.subr.bf16.mxu0 0
    %11203 = vmatpush2.bf16.msra.mxu0 0
    %11204 = vmatprep.subr.bf16.mxu0 0
    %11205 = vmatpush2.bf16.msra.mxu0 0
    %11206 = vmatprep.subr.bf16.mxu0 0
    %11207 = vmatpush2.bf16.msra.mxu0 0
    %11208 = vmatprep.subr.bf16.mxu0 0
    %11209 = vmatpush2.bf16.msra.mxu0 0
    %11210 = vmatprep.subr.bf16.mxu0 0
    %11211 = vmatpush2.bf16.msra.mxu0 0
    %11212 = vmatprep.subr.bf16.mxu0 0
    %11213 = vmatpush2.bf16.msra.mxu0 0
    %11214 = vmatprep.subr.bf16.mxu0 0
    %11215 = vmatpush2.bf16.msra.mxu0 0
    %11216 = vmatprep.subr.bf16.mxu0 0
    %11217 = vmatpush2.bf16.msra.mxu0 0
    %11218 = vmatprep.mubr.bf16.mxu0 0
    %11219 = vmatmul.mubr.bf16.gmra.mxu0 %v319
    %v11220 = vpop.f32.mrf.mxu0
    %v11221 = vadd.f32 %v11060, %v11220
    %v11222 = vpop.f32.mrf.mxu0
    %v11223 = vpop.f32.mrf.mxu0
    %v11224 = vadd.f32 %v11063, %v11223
    %v11225 = vpop.f32.mrf.mxu0
    %11226 = vmatprep.mubr.bf16.mxu0 0
    %11227 = vmatmul.mubr.bf16.gmra.mxu0 %v326
    %v11228 = vpop.f32.mrf.mxu0
    %v11229 = vadd.f32 %v11068, %v11228
    %v11230 = vpop.f32.mrf.mxu0
    %v11231 = vpop.f32.mrf.mxu0
    %v11232 = vadd.f32 %v11071, %v11231
    %v11233 = vpop.f32.mrf.mxu0
    %11234 = vmatprep.mubr.bf16.mxu0 0
    %11235 = vmatmul.mubr.bf16.gmra.mxu0 %v333
    %v11236 = vpop.f32.mrf.mxu0
    %v11237 = vadd.f32 %v11076, %v11236
    %v11238 = vpop.f32.mrf.mxu0
    %v11239 = vpop.f32.mrf.mxu0
    %v11240 = vadd.f32 %v11079, %v11239
    %v11241 = vpop.f32.mrf.mxu0
    %11242 = vmatprep.mubr.bf16.mxu0 0
    %11243 = vmatmul.mubr.bf16.gmra.mxu0 %v340
    %v11244 = vpop.f32.mrf.mxu0
    %v11245 = vadd.f32 %v11084, %v11244
    %v11246 = vpop.f32.mrf.mxu0
    %v11247 = vpop.f32.mrf.mxu0
    %v11248 = vadd.f32 %v11087, %v11247
    %v11249 = vpop.f32.mrf.mxu0
    %11250 = vmatprep.mubr.bf16.mxu0 0
    %11251 = vmatmul.mubr.bf16.gmra.mxu0 %v347
    %v11252 = vpop.f32.mrf.mxu0
    %v11253 = vadd.f32 %v11092, %v11252
    %v11254 = vpop.f32.mrf.mxu0
    %v11255 = vpop.f32.mrf.mxu0
    %v11256 = vadd.f32 %v11095, %v11255
    %v11257 = vpop.f32.mrf.mxu0
    %11258 = vmatprep.mubr.bf16.mxu0 0
    %11259 = vmatmul.mubr.bf16.gmra.mxu0 %v354
    %v11260 = vpop.f32.mrf.mxu0
    %v11261 = vadd.f32 %v11100, %v11260
    %v11262 = vpop.f32.mrf.mxu0
    %v11263 = vpop.f32.mrf.mxu0
    %v11264 = vadd.f32 %v11103, %v11263
    %v11265 = vpop.f32.mrf.mxu0
    %11266 = vmatprep.mubr.bf16.mxu0 0
    %11267 = vmatmul.mubr.bf16.gmra.mxu0 %v361
    %v11268 = vpop.f32.mrf.mxu0
    %v11269 = vadd.f32 %v11108, %v11268
    %v11270 = vpop.f32.mrf.mxu0
    %v11271 = vpop.f32.mrf.mxu0
    %v11272 = vadd.f32 %v11111, %v11271
    %v11273 = vpop.f32.mrf.mxu0
    %11274 = vmatprep.mubr.bf16.mxu0 0
    %11275 = vmatmul.mubr.bf16.gmra.mxu0 %v368
    %v11276 = vpop.f32.mrf.mxu0
    %v11277 = vadd.f32 %v11116, %v11276
    %v11278 = vpop.f32.mrf.mxu0
    %v11279 = vpop.f32.mrf.mxu0
    %v11280 = vadd.f32 %v11119, %v11279
    %v11281 = vpop.f32.mrf.mxu0
    %11282 = vmatprep.mubr.bf16.mxu0 0
    %11283 = vmatmul.mubr.bf16.gmra.mxu0 %v375
    %v11284 = vpop.f32.mrf.mxu0
    %v11285 = vadd.f32 %v11124, %v11284
    %v11286 = vpop.f32.mrf.mxu0
    %v11287 = vpop.f32.mrf.mxu0
    %v11288 = vadd.f32 %v11127, %v11287
    %v11289 = vpop.f32.mrf.mxu0
    %11290 = vmatprep.mubr.bf16.mxu0 0
    %11291 = vmatmul.mubr.bf16.gmra.mxu0 %v382
    %v11292 = vpop.f32.mrf.mxu0
    %v11293 = vadd.f32 %v11132, %v11292
    %v11294 = vpop.f32.mrf.mxu0
    %v11295 = vpop.f32.mrf.mxu0
    %v11296 = vadd.f32 %v11135, %v11295
    %v11297 = vpop.f32.mrf.mxu0
    %11298 = vmatprep.mubr.bf16.mxu0 0
    %11299 = vmatmul.mubr.bf16.gmra.mxu0 %v389
    %v11300 = vpop.f32.mrf.mxu0
    %v11301 = vadd.f32 %v11140, %v11300
    %v11302 = vpop.f32.mrf.mxu0
    %v11303 = vpop.f32.mrf.mxu0
    %v11304 = vadd.f32 %v11143, %v11303
    %v11305 = vpop.f32.mrf.mxu0
    %11306 = vmatprep.mubr.bf16.mxu0 0
    %11307 = vmatmul.mubr.bf16.gmra.mxu0 %v396
    %v11308 = vpop.f32.mrf.mxu0
    %v11309 = vadd.f32 %v11148, %v11308
    %v11310 = vpop.f32.mrf.mxu0
    %v11311 = vpop.f32.mrf.mxu0
    %v11312 = vadd.f32 %v11151, %v11311
    %v11313 = vpop.f32.mrf.mxu0
    %11314 = vmatprep.mubr.bf16.mxu0 0
    %11315 = vmatmul.mubr.bf16.gmra.mxu0 %v403
    %v11316 = vpop.f32.mrf.mxu0
    %v11317 = vadd.f32 %v11156, %v11316
    %v11318 = vpop.f32.mrf.mxu0
    %v11319 = vpop.f32.mrf.mxu0
    %v11320 = vadd.f32 %v11159, %v11319
    %v11321 = vpop.f32.mrf.mxu0
    %11322 = vmatprep.mubr.bf16.mxu0 0
    %11323 = vmatmul.mubr.bf16.gmra.mxu0 %v410
    %v11324 = vpop.f32.mrf.mxu0
    %v11325 = vadd.f32 %v11164, %v11324
    %v11326 = vpop.f32.mrf.mxu0
    %v11327 = vpop.f32.mrf.mxu0
    %v11328 = vadd.f32 %v11167, %v11327
    %v11329 = vpop.f32.mrf.mxu0
    %11330 = vmatprep.mubr.bf16.mxu0 0
    %11331 = vmatmul.mubr.bf16.gmra.mxu0 %v417
    %v11332 = vpop.f32.mrf.mxu0
    %v11333 = vadd.f32 %v11172, %v11332
    %v11334 = vpop.f32.mrf.mxu0
    %v11335 = vpop.f32.mrf.mxu0
    %v11336 = vadd.f32 %v11175, %v11335
    %v11337 = vpop.f32.mrf.mxu0
    %11338 = vmatprep.mubr.bf16.mxu0 0
    %11339 = vmatmul.mubr.bf16.gmra.mxu0 %v424
    %v11340 = vpop.f32.mrf.mxu0
    %v11341 = vadd.f32 %v11180, %v11340
    %v11342 = vpop.f32.mrf.mxu0
    %v11343 = vpop.f32.mrf.mxu0
    %v11344 = vadd.f32 %v11183, %v11343
    %v11345 = vpop.f32.mrf.mxu0
    %11346 = vdwg.mxu0
    %11347 = vxpose.xlu0.b32.start [1/16] %v3540, 128
    %11348 = vxpose.xlu0.b32.cont [2/16] %v3544, 128
    %11349 = vxpose.xlu0.b32.cont [3/16] %v3550, 128
    %11350 = vxpose.xlu0.b32.cont [4/16] %v3554, 128
    %11351 = vxpose.xlu0.b32.cont [5/16] %v3560, 128
    %11352 = vxpose.xlu0.b32.cont [6/16] %v3564, 128
    %11353 = vxpose.xlu0.b32.cont [7/16] %v3570, 128
    %11354 = vxpose.xlu0.b32.cont [8/16] %v3574, 128
    %11355 = vxpose.xlu0.b32.cont [9/16] %v3580, 128
    %11356 = vxpose.xlu0.b32.cont [10/16] %v3584, 128
    %11357 = vxpose.xlu0.b32.cont [11/16] %v3590, 128
    %11358 = vxpose.xlu0.b32.cont [12/16] %v3594, 128
    %11359 = vxpose.xlu0.b32.cont [13/16] %v3600, 128
    %11360 = vxpose.xlu0.b32.cont [14/16] %v3604, 128
    %11361 = vxpose.xlu0.b32.cont [15/16] %v3610, 128
    %11362 = vxpose.xlu0.b32.end [16/16] %v3614, 128
    %v11363 = vpop.trf.xlu0
    %v11364 = vpop.trf.xlu0
    %v11365 = vpop.trf.xlu0
    %v11366 = vpop.trf.xlu0
    %v11367 = vpop.trf.xlu0
    %v11368 = vpop.trf.xlu0
    %v11369 = vpop.trf.xlu0
    %v11370 = vpop.trf.xlu0
    %v11371 = vpop.trf.xlu0
    %v11372 = vpop.trf.xlu0
    %v11373 = vpop.trf.xlu0
    %v11374 = vpop.trf.xlu0
    %v11375 = vpop.trf.xlu0
    %v11376 = vpop.trf.xlu0
    %v11377 = vpop.trf.xlu0
    %v11378 = vpop.trf.xlu0
    %11379 = vxpose.xlu0.b32.start [1/16] %v3542, 128
    %11380 = vxpose.xlu0.b32.cont [2/16] %v3546, 128
    %11381 = vxpose.xlu0.b32.cont [3/16] %v3552, 128
    %11382 = vxpose.xlu0.b32.cont [4/16] %v3556, 128
    %11383 = vxpose.xlu0.b32.cont [5/16] %v3562, 128
    %11384 = vxpose.xlu0.b32.cont [6/16] %v3566, 128
    %11385 = vxpose.xlu0.b32.cont [7/16] %v3572, 128
    %11386 = vxpose.xlu0.b32.cont [8/16] %v3576, 128
    %11387 = vxpose.xlu0.b32.cont [9/16] %v3582, 128
    %11388 = vxpose.xlu0.b32.cont [10/16] %v3586, 128
    %11389 = vxpose.xlu0.b32.cont [11/16] %v3592, 128
    %11390 = vxpose.xlu0.b32.cont [12/16] %v3596, 128
    %11391 = vxpose.xlu0.b32.cont [13/16] %v3602, 128
    %11392 = vxpose.xlu0.b32.cont [14/16] %v3606, 128
    %11393 = vxpose.xlu0.b32.cont [15/16] %v3612, 128
    %11394 = vxpose.xlu0.b32.end [16/16] %v3616, 128
    %v11395 = vpop.trf.xlu0
    %v11396 = vpop.trf.xlu0
    %v11397 = vpop.trf.xlu0
    %v11398 = vpop.trf.xlu0
    %v11399 = vpop.trf.xlu0
    %v11400 = vpop.trf.xlu0
    %v11401 = vpop.trf.xlu0
    %v11402 = vpop.trf.xlu0
    %v11403 = vpop.trf.xlu0
    %v11404 = vpop.trf.xlu0
    %v11405 = vpop.trf.xlu0
    %v11406 = vpop.trf.xlu0
    %v11407 = vpop.trf.xlu0
    %v11408 = vpop.trf.xlu0
    %v11409 = vpop.trf.xlu0
    %v11410 = vpop.trf.xlu0
    %11411 = vxpose.xlu0.b32.start [1/16] %v4312, 128
    %11412 = vxpose.xlu0.b32.cont [2/16] %v4316, 128
    %11413 = vxpose.xlu0.b32.cont [3/16] %v4322, 128
    %11414 = vxpose.xlu0.b32.cont [4/16] %v4326, 128
    %11415 = vxpose.xlu0.b32.cont [5/16] %v4332, 128
    %11416 = vxpose.xlu0.b32.cont [6/16] %v4336, 128
    %11417 = vxpose.xlu0.b32.cont [7/16] %v4342, 128
    %11418 = vxpose.xlu0.b32.cont [8/16] %v4346, 128
    %11419 = vxpose.xlu0.b32.cont [9/16] %v4352, 128
    %11420 = vxpose.xlu0.b32.cont [10/16] %v4356, 128
    %11421 = vxpose.xlu0.b32.cont [11/16] %v4362, 128
    %11422 = vxpose.xlu0.b32.cont [12/16] %v4366, 128
    %11423 = vxpose.xlu0.b32.cont [13/16] %v4372, 128
    %11424 = vxpose.xlu0.b32.cont [14/16] %v4376, 128
    %11425 = vxpose.xlu0.b32.cont [15/16] %v4382, 128
    %11426 = vxpose.xlu0.b32.end [16/16] %v4386, 128
    %v11427 = vpop.trf.xlu0
    %v11428 = vpop.trf.xlu0
    %v11429 = vpop.trf.xlu0
    %v11430 = vpop.trf.xlu0
    %v11431 = vpop.trf.xlu0
    %v11432 = vpop.trf.xlu0
    %v11433 = vpop.trf.xlu0
    %v11434 = vpop.trf.xlu0
    %v11435 = vpop.trf.xlu0
    %v11436 = vpop.trf.xlu0
    %v11437 = vpop.trf.xlu0
    %v11438 = vpop.trf.xlu0
    %v11439 = vpop.trf.xlu0
    %v11440 = vpop.trf.xlu0
    %v11441 = vpop.trf.xlu0
    %v11442 = vpop.trf.xlu0
    %11443 = vxpose.xlu0.b32.start [1/16] %v4314, 128
    %11444 = vxpose.xlu0.b32.cont [2/16] %v4318, 128
    %11445 = vxpose.xlu0.b32.cont [3/16] %v4324, 128
    %11446 = vxpose.xlu0.b32.cont [4/16] %v4328, 128
    %11447 = vxpose.xlu0.b32.cont [5/16] %v4334, 128
    %11448 = vxpose.xlu0.b32.cont [6/16] %v4338, 128
    %11449 = vxpose.xlu0.b32.cont [7/16] %v4344, 128
    %11450 = vxpose.xlu0.b32.cont [8/16] %v4348, 128
    %11451 = vxpose.xlu0.b32.cont [9/16] %v4354, 128
    %11452 = vxpose.xlu0.b32.cont [10/16] %v4358, 128
    %11453 = vxpose.xlu0.b32.cont [11/16] %v4364, 128
    %11454 = vxpose.xlu0.b32.cont [12/16] %v4368, 128
    %11455 = vxpose.xlu0.b32.cont [13/16] %v4374, 128
    %11456 = vxpose.xlu0.b32.cont [14/16] %v4378, 128
    %11457 = vxpose.xlu0.b32.cont [15/16] %v4384, 128
    %11458 = vxpose.xlu0.b32.end [16/16] %v4388, 128
    %v11459 = vpop.trf.xlu0
    %v11460 = vpop.trf.xlu0
    %v11461 = vpop.trf.xlu0
    %v11462 = vpop.trf.xlu0
    %v11463 = vpop.trf.xlu0
    %v11464 = vpop.trf.xlu0
    %v11465 = vpop.trf.xlu0
    %v11466 = vpop.trf.xlu0
    %v11467 = vpop.trf.xlu0
    %v11468 = vpop.trf.xlu0
    %v11469 = vpop.trf.xlu0
    %v11470 = vpop.trf.xlu0
    %v11471 = vpop.trf.xlu0
    %v11472 = vpop.trf.xlu0
    %v11473 = vpop.trf.xlu0
    %v11474 = vpop.trf.xlu0
    %11475 = vxpose.xlu0.b32.start [1/16] %v5084, 128
    %11476 = vxpose.xlu0.b32.cont [2/16] %v5088, 128
    %11477 = vxpose.xlu0.b32.cont [3/16] %v5094, 128
    %11478 = vxpose.xlu0.b32.cont [4/16] %v5098, 128
    %11479 = vxpose.xlu0.b32.cont [5/16] %v5104, 128
    %11480 = vxpose.xlu0.b32.cont [6/16] %v5108, 128
    %11481 = vxpose.xlu0.b32.cont [7/16] %v5114, 128
    %11482 = vxpose.xlu0.b32.cont [8/16] %v5118, 128
    %11483 = vxpose.xlu0.b32.cont [9/16] %v5124, 128
    %11484 = vxpose.xlu0.b32.cont [10/16] %v5128, 128
    %11485 = vxpose.xlu0.b32.cont [11/16] %v5134, 128
    %11486 = vxpose.xlu0.b32.cont [12/16] %v5138, 128
    %11487 = vxpose.xlu0.b32.cont [13/16] %v5144, 128
    %11488 = vxpose.xlu0.b32.cont [14/16] %v5148, 128
    %11489 = vxpose.xlu0.b32.cont [15/16] %v5154, 128
    %11490 = vxpose.xlu0.b32.end [16/16] %v5158, 128
    %v11491 = vpop.trf.xlu0
    %v11492 = vpop.trf.xlu0
    %v11493 = vpop.trf.xlu0
    %v11494 = vpop.trf.xlu0
    %v11495 = vpop.trf.xlu0
    %v11496 = vpop.trf.xlu0
    %v11497 = vpop.trf.xlu0
    %v11498 = vpop.trf.xlu0
    %v11499 = vpop.trf.xlu0
    %v11500 = vpop.trf.xlu0
    %v11501 = vpop.trf.xlu0
    %v11502 = vpop.trf.xlu0
    %v11503 = vpop.trf.xlu0
    %v11504 = vpop.trf.xlu0
    %v11505 = vpop.trf.xlu0
    %v11506 = vpop.trf.xlu0
    %11507 = vxpose.xlu0.b32.start [1/16] %v5086, 128
    %11508 = vxpose.xlu0.b32.cont [2/16] %v5090, 128
    %11509 = vxpose.xlu0.b32.cont [3/16] %v5096, 128
    %11510 = vxpose.xlu0.b32.cont [4/16] %v5100, 128
    %11511 = vxpose.xlu0.b32.cont [5/16] %v5106, 128
    %11512 = vxpose.xlu0.b32.cont [6/16] %v5110, 128
    %11513 = vxpose.xlu0.b32.cont [7/16] %v5116, 128
    %11514 = vxpose.xlu0.b32.cont [8/16] %v5120, 128
    %11515 = vxpose.xlu0.b32.cont [9/16] %v5126, 128
    %11516 = vxpose.xlu0.b32.cont [10/16] %v5130, 128
    %11517 = vxpose.xlu0.b32.cont [11/16] %v5136, 128
    %11518 = vxpose.xlu0.b32.cont [12/16] %v5140, 128
    %11519 = vxpose.xlu0.b32.cont [13/16] %v5146, 128
    %11520 = vxpose.xlu0.b32.cont [14/16] %v5150, 128
    %11521 = vxpose.xlu0.b32.cont [15/16] %v5156, 128
    %11522 = vxpose.xlu0.b32.end [16/16] %v5160, 128
    %v11523 = vpop.trf.xlu0
    %v11524 = vpop.trf.xlu0
    %v11525 = vpop.trf.xlu0
    %v11526 = vpop.trf.xlu0
    %v11527 = vpop.trf.xlu0
    %v11528 = vpop.trf.xlu0
    %v11529 = vpop.trf.xlu0
    %v11530 = vpop.trf.xlu0
    %v11531 = vpop.trf.xlu0
    %v11532 = vpop.trf.xlu0
    %v11533 = vpop.trf.xlu0
    %v11534 = vpop.trf.xlu0
    %v11535 = vpop.trf.xlu0
    %v11536 = vpop.trf.xlu0
    %v11537 = vpop.trf.xlu0
    %v11538 = vpop.trf.xlu0
    %11539 = vxpose.xlu0.b32.start [1/16] %v5760, 128
    %11540 = vxpose.xlu0.b32.cont [2/16] %v5763, 128
    %11541 = vxpose.xlu0.b32.cont [3/16] %v5768, 128
    %11542 = vxpose.xlu0.b32.cont [4/16] %v5771, 128
    %11543 = vxpose.xlu0.b32.cont [5/16] %v5776, 128
    %11544 = vxpose.xlu0.b32.cont [6/16] %v5779, 128
    %11545 = vxpose.xlu0.b32.cont [7/16] %v5784, 128
    %11546 = vxpose.xlu0.b32.cont [8/16] %v5787, 128
    %11547 = vxpose.xlu0.b32.cont [9/16] %v5792, 128
    %11548 = vxpose.xlu0.b32.cont [10/16] %v5795, 128
    %11549 = vxpose.xlu0.b32.cont [11/16] %v5800, 128
    %11550 = vxpose.xlu0.b32.cont [12/16] %v5803, 128
    %11551 = vxpose.xlu0.b32.cont [13/16] %v5808, 128
    %11552 = vxpose.xlu0.b32.cont [14/16] %v5811, 128
    %11553 = vxpose.xlu0.b32.cont [15/16] %v5816, 128
    %11554 = vxpose.xlu0.b32.end [16/16] %v5819, 128
    %v11555 = vpop.trf.xlu0
    %v11556 = vpop.trf.xlu0
    %v11557 = vpop.trf.xlu0
    %v11558 = vpop.trf.xlu0
    %v11559 = vpop.trf.xlu0
    %v11560 = vpop.trf.xlu0
    %v11561 = vpop.trf.xlu0
    %v11562 = vpop.trf.xlu0
    %v11563 = vpop.trf.xlu0
    %v11564 = vpop.trf.xlu0
    %v11565 = vpop.trf.xlu0
    %v11566 = vpop.trf.xlu0
    %v11567 = vpop.trf.xlu0
    %v11568 = vpop.trf.xlu0
    %v11569 = vpop.trf.xlu0
    %v11570 = vpop.trf.xlu0
    %11571 = vxpose.xlu0.b32.start [1/16] %v3620, 128
    %11572 = vxpose.xlu0.b32.cont [2/16] %v3624, 128
    %11573 = vxpose.xlu0.b32.cont [3/16] %v3630, 128
    %11574 = vxpose.xlu0.b32.cont [4/16] %v3634, 128
    %11575 = vxpose.xlu0.b32.cont [5/16] %v3640, 128
    %11576 = vxpose.xlu0.b32.cont [6/16] %v3644, 128
    %11577 = vxpose.xlu0.b32.cont [7/16] %v3650, 128
    %11578 = vxpose.xlu0.b32.cont [8/16] %v3654, 128
    %11579 = vxpose.xlu0.b32.cont [9/16] %v3660, 128
    %11580 = vxpose.xlu0.b32.cont [10/16] %v3664, 128
    %11581 = vxpose.xlu0.b32.cont [11/16] %v3670, 128
    %11582 = vxpose.xlu0.b32.cont [12/16] %v3674, 128
    %11583 = vxpose.xlu0.b32.cont [13/16] %v3680, 128
    %11584 = vxpose.xlu0.b32.cont [14/16] %v3684, 128
    %11585 = vxpose.xlu0.b32.cont [15/16] %v3690, 128
    %11586 = vxpose.xlu0.b32.end [16/16] %v3694, 128
    %v11587 = vpop.trf.xlu0
    %v11588 = vpop.trf.xlu0
    %v11589 = vpop.trf.xlu0
    %v11590 = vpop.trf.xlu0
    %v11591 = vpop.trf.xlu0
    %v11592 = vpop.trf.xlu0
    %v11593 = vpop.trf.xlu0
    %v11594 = vpop.trf.xlu0
    %v11595 = vpop.trf.xlu0
    %v11596 = vpop.trf.xlu0
    %v11597 = vpop.trf.xlu0
    %v11598 = vpop.trf.xlu0
    %v11599 = vpop.trf.xlu0
    %v11600 = vpop.trf.xlu0
    %v11601 = vpop.trf.xlu0
    %v11602 = vpop.trf.xlu0
    %11603 = vxpose.xlu0.b32.start [1/16] %v3622, 128
    %11604 = vxpose.xlu0.b32.cont [2/16] %v3626, 128
    %11605 = vxpose.xlu0.b32.cont [3/16] %v3632, 128
    %11606 = vxpose.xlu0.b32.cont [4/16] %v3636, 128
    %11607 = vxpose.xlu0.b32.cont [5/16] %v3642, 128
    %11608 = vxpose.xlu0.b32.cont [6/16] %v3646, 128
    %11609 = vxpose.xlu0.b32.cont [7/16] %v3652, 128
    %11610 = vxpose.xlu0.b32.cont [8/16] %v3656, 128
    %11611 = vxpose.xlu0.b32.cont [9/16] %v3662, 128
    %11612 = vxpose.xlu0.b32.cont [10/16] %v3666, 128
    %11613 = vxpose.xlu0.b32.cont [11/16] %v3672, 128
    %11614 = vxpose.xlu0.b32.cont [12/16] %v3676, 128
    %11615 = vxpose.xlu0.b32.cont [13/16] %v3682, 128
    %11616 = vxpose.xlu0.b32.cont [14/16] %v3686, 128
    %11617 = vxpose.xlu0.b32.cont [15/16] %v3692, 128
    %11618 = vxpose.xlu0.b32.end [16/16] %v3696, 128
    %v11619 = vpop.trf.xlu0
    %v11620 = vpop.trf.xlu0
    %v11621 = vpop.trf.xlu0
    %v11622 = vpop.trf.xlu0
    %v11623 = vpop.trf.xlu0
    %v11624 = vpop.trf.xlu0
    %v11625 = vpop.trf.xlu0
    %v11626 = vpop.trf.xlu0
    %v11627 = vpop.trf.xlu0
    %v11628 = vpop.trf.xlu0
    %v11629 = vpop.trf.xlu0
    %v11630 = vpop.trf.xlu0
    %v11631 = vpop.trf.xlu0
    %v11632 = vpop.trf.xlu0
    %v11633 = vpop.trf.xlu0
    %v11634 = vpop.trf.xlu0
    %11635 = vxpose.xlu0.b32.start [1/16] %v4392, 128
    %11636 = vxpose.xlu0.b32.cont [2/16] %v4396, 128
    %11637 = vxpose.xlu0.b32.cont [3/16] %v4402, 128
    %11638 = vxpose.xlu0.b32.cont [4/16] %v4406, 128
    %11639 = vxpose.xlu0.b32.cont [5/16] %v4412, 128
    %11640 = vxpose.xlu0.b32.cont [6/16] %v4416, 128
    %11641 = vxpose.xlu0.b32.cont [7/16] %v4422, 128
    %11642 = vxpose.xlu0.b32.cont [8/16] %v4426, 128
    %11643 = vxpose.xlu0.b32.cont [9/16] %v4432, 128
    %11644 = vxpose.xlu0.b32.cont [10/16] %v4436, 128
    %11645 = vxpose.xlu0.b32.cont [11/16] %v4442, 128
    %11646 = vxpose.xlu0.b32.cont [12/16] %v4446, 128
    %11647 = vxpose.xlu0.b32.cont [13/16] %v4452, 128
    %11648 = vxpose.xlu0.b32.cont [14/16] %v4456, 128
    %11649 = vxpose.xlu0.b32.cont [15/16] %v4462, 128
    %11650 = vxpose.xlu0.b32.end [16/16] %v4466, 128
    %v11651 = vpop.trf.xlu0
    %v11652 = vpop.trf.xlu0
    %v11653 = vpop.trf.xlu0
    %v11654 = vpop.trf.xlu0
    %v11655 = vpop.trf.xlu0
    %v11656 = vpop.trf.xlu0
    %v11657 = vpop.trf.xlu0
    %v11658 = vpop.trf.xlu0
    %v11659 = vpop.trf.xlu0
    %v11660 = vpop.trf.xlu0
    %v11661 = vpop.trf.xlu0
    %v11662 = vpop.trf.xlu0
    %v11663 = vpop.trf.xlu0
    %v11664 = vpop.trf.xlu0
    %v11665 = vpop.trf.xlu0
    %v11666 = vpop.trf.xlu0
    %11667 = vxpose.xlu0.b32.start [1/16] %v4394, 128
    %11668 = vxpose.xlu0.b32.cont [2/16] %v4398, 128
    %11669 = vxpose.xlu0.b32.cont [3/16] %v4404, 128
    %11670 = vxpose.xlu0.b32.cont [4/16] %v4408, 128
    %11671 = vxpose.xlu0.b32.cont [5/16] %v4414, 128
    %11672 = vxpose.xlu0.b32.cont [6/16] %v4418, 128
    %11673 = vxpose.xlu0.b32.cont [7/16] %v4424, 128
    %11674 = vxpose.xlu0.b32.cont [8/16] %v4428, 128
    %11675 = vxpose.xlu0.b32.cont [9/16] %v4434, 128
    %11676 = vxpose.xlu0.b32.cont [10/16] %v4438, 128
    %11677 = vxpose.xlu0.b32.cont [11/16] %v4444, 128
    %11678 = vxpose.xlu0.b32.cont [12/16] %v4448, 128
    %11679 = vxpose.xlu0.b32.cont [13/16] %v4454, 128
    %11680 = vxpose.xlu0.b32.cont [14/16] %v4458, 128
    %11681 = vxpose.xlu0.b32.cont [15/16] %v4464, 128
    %11682 = vxpose.xlu0.b32.end [16/16] %v4468, 128
    %v11683 = vpop.trf.xlu0
    %v11684 = vpop.trf.xlu0
    %v11685 = vpop.trf.xlu0
    %v11686 = vpop.trf.xlu0
    %v11687 = vpop.trf.xlu0
    %v11688 = vpop.trf.xlu0
    %v11689 = vpop.trf.xlu0
    %v11690 = vpop.trf.xlu0
    %v11691 = vpop.trf.xlu0
    %v11692 = vpop.trf.xlu0
    %v11693 = vpop.trf.xlu0
    %v11694 = vpop.trf.xlu0
    %v11695 = vpop.trf.xlu0
    %v11696 = vpop.trf.xlu0
    %v11697 = vpop.trf.xlu0
    %v11698 = vpop.trf.xlu0
    %11699 = vxpose.xlu0.b32.start [1/16] %v5164, 128
    %11700 = vxpose.xlu0.b32.cont [2/16] %v5168, 128
    %11701 = vxpose.xlu0.b32.cont [3/16] %v5174, 128
    %11702 = vxpose.xlu0.b32.cont [4/16] %v5178, 128
    %11703 = vxpose.xlu0.b32.cont [5/16] %v5184, 128
    %11704 = vxpose.xlu0.b32.cont [6/16] %v5188, 128
    %11705 = vxpose.xlu0.b32.cont [7/16] %v5194, 128
    %11706 = vxpose.xlu0.b32.cont [8/16] %v5198, 128
    %11707 = vxpose.xlu0.b32.cont [9/16] %v5204, 128
    %11708 = vxpose.xlu0.b32.cont [10/16] %v5208, 128
    %11709 = vxpose.xlu0.b32.cont [11/16] %v5214, 128
    %11710 = vxpose.xlu0.b32.cont [12/16] %v5218, 128
    %11711 = vxpose.xlu0.b32.cont [13/16] %v5224, 128
    %11712 = vxpose.xlu0.b32.cont [14/16] %v5228, 128
    %11713 = vxpose.xlu0.b32.cont [15/16] %v5234, 128
    %11714 = vxpose.xlu0.b32.end [16/16] %v5238, 128
    %v11715 = vpop.trf.xlu0
    %v11716 = vpop.trf.xlu0
    %v11717 = vpop.trf.xlu0
    %v11718 = vpop.trf.xlu0
    %v11719 = vpop.trf.xlu0
    %v11720 = vpop.trf.xlu0
    %v11721 = vpop.trf.xlu0
    %v11722 = vpop.trf.xlu0
    %v11723 = vpop.trf.xlu0
    %v11724 = vpop.trf.xlu0
    %v11725 = vpop.trf.xlu0
    %v11726 = vpop.trf.xlu0
    %v11727 = vpop.trf.xlu0
    %v11728 = vpop.trf.xlu0
    %v11729 = vpop.trf.xlu0
    %v11730 = vpop.trf.xlu0
    %11731 = vxpose.xlu0.b32.start [1/16] %v5166, 128
    %11732 = vxpose.xlu0.b32.cont [2/16] %v5170, 128
    %11733 = vxpose.xlu0.b32.cont [3/16] %v5176, 128
    %11734 = vxpose.xlu0.b32.cont [4/16] %v5180, 128
    %11735 = vxpose.xlu0.b32.cont [5/16] %v5186, 128
    %11736 = vxpose.xlu0.b32.cont [6/16] %v5190, 128
    %11737 = vxpose.xlu0.b32.cont [7/16] %v5196, 128
    %11738 = vxpose.xlu0.b32.cont [8/16] %v5200, 128
    %11739 = vxpose.xlu0.b32.cont [9/16] %v5206, 128
    %11740 = vxpose.xlu0.b32.cont [10/16] %v5210, 128
    %11741 = vxpose.xlu0.b32.cont [11/16] %v5216, 128
    %11742 = vxpose.xlu0.b32.cont [12/16] %v5220, 128
    %11743 = vxpose.xlu0.b32.cont [13/16] %v5226, 128
    %11744 = vxpose.xlu0.b32.cont [14/16] %v5230, 128
    %11745 = vxpose.xlu0.b32.cont [15/16] %v5236, 128
    %11746 = vxpose.xlu0.b32.end [16/16] %v5240, 128
    %v11747 = vpop.trf.xlu0
    %v11748 = vpop.trf.xlu0
    %v11749 = vpop.trf.xlu0
    %v11750 = vpop.trf.xlu0
    %v11751 = vpop.trf.xlu0
    %v11752 = vpop.trf.xlu0
    %v11753 = vpop.trf.xlu0
    %v11754 = vpop.trf.xlu0
    %v11755 = vpop.trf.xlu0
    %v11756 = vpop.trf.xlu0
    %v11757 = vpop.trf.xlu0
    %v11758 = vpop.trf.xlu0
    %v11759 = vpop.trf.xlu0
    %v11760 = vpop.trf.xlu0
    %v11761 = vpop.trf.xlu0
    %v11762 = vpop.trf.xlu0
    %11763 = vxpose.xlu0.b32.start [1/16] %v5824, 128
    %11764 = vxpose.xlu0.b32.cont [2/16] %v5827, 128
    %11765 = vxpose.xlu0.b32.cont [3/16] %v5832, 128
    %11766 = vxpose.xlu0.b32.cont [4/16] %v5835, 128
    %11767 = vxpose.xlu0.b32.cont [5/16] %v5840, 128
    %11768 = vxpose.xlu0.b32.cont [6/16] %v5843, 128
    %11769 = vxpose.xlu0.b32.cont [7/16] %v5848, 128
    %11770 = vxpose.xlu0.b32.cont [8/16] %v5851, 128
    %11771 = vxpose.xlu0.b32.cont [9/16] %v5856, 128
    %11772 = vxpose.xlu0.b32.cont [10/16] %v5859, 128
    %11773 = vxpose.xlu0.b32.cont [11/16] %v5864, 128
    %11774 = vxpose.xlu0.b32.cont [12/16] %v5867, 128
    %11775 = vxpose.xlu0.b32.cont [13/16] %v5872, 128
    %11776 = vxpose.xlu0.b32.cont [14/16] %v5875, 128
    %11777 = vxpose.xlu0.b32.cont [15/16] %v5880, 128
    %11778 = vxpose.xlu0.b32.end [16/16] %v5883, 128
    %v11779 = vpop.trf.xlu0
    %v11780 = vpop.trf.xlu0
    %v11781 = vpop.trf.xlu0
    %v11782 = vpop.trf.xlu0
    %v11783 = vpop.trf.xlu0
    %v11784 = vpop.trf.xlu0
    %v11785 = vpop.trf.xlu0
    %v11786 = vpop.trf.xlu0
    %v11787 = vpop.trf.xlu0
    %v11788 = vpop.trf.xlu0
    %v11789 = vpop.trf.xlu0
    %v11790 = vpop.trf.xlu0
    %v11791 = vpop.trf.xlu0
    %v11792 = vpop.trf.xlu0
    %v11793 = vpop.trf.xlu0
    %v11794 = vpop.trf.xlu0
    %v11795 = vpack.c.bf16 %v11364, %v11363
    %v11796 = vpack.c.bf16 %v11588, %v11587
    %v11797 = vpack.c.bf16 %v11366, %v11365
    %v11798 = vpack.c.bf16 %v11590, %v11589
    %v11799 = vpack.c.bf16 %v11368, %v11367
    %v11800 = vpack.c.bf16 %v11592, %v11591
    %v11801 = vpack.c.bf16 %v11370, %v11369
    %v11802 = vpack.c.bf16 %v11594, %v11593
    %v11803 = vpack.c.bf16 %v11372, %v11371
    %v11804 = vpack.c.bf16 %v11596, %v11595
    %v11805 = vpack.c.bf16 %v11374, %v11373
    %v11806 = vpack.c.bf16 %v11598, %v11597
    %v11807 = vpack.c.bf16 %v11376, %v11375
    %v11808 = vpack.c.bf16 %v11600, %v11599
    %v11809 = vpack.c.bf16 %v11378, %v11377
    %v11810 = vpack.c.bf16 %v11602, %v11601
    %v11811 = vpack.c.bf16 %v11396, %v11395
    %v11812 = vpack.c.bf16 %v11620, %v11619
    %v11813 = vpack.c.bf16 %v11398, %v11397
    %v11814 = vpack.c.bf16 %v11622, %v11621
    %v11815 = vpack.c.bf16 %v11400, %v11399
    %v11816 = vpack.c.bf16 %v11624, %v11623
    %v11817 = vpack.c.bf16 %v11402, %v11401
    %v11818 = vpack.c.bf16 %v11626, %v11625
    %v11819 = vpack.c.bf16 %v11404, %v11403
    %v11820 = vpack.c.bf16 %v11628, %v11627
    %v11821 = vpack.c.bf16 %v11406, %v11405
    %v11822 = vpack.c.bf16 %v11630, %v11629
    %v11823 = vpack.c.bf16 %v11408, %v11407
    %v11824 = vpack.c.bf16 %v11632, %v11631
    %v11825 = vpack.c.bf16 %v11410, %v11409
    %v11826 = vpack.c.bf16 %v11634, %v11633
    %v11827 = vpack.c.bf16 %v11428, %v11427
    %v11828 = vpack.c.bf16 %v11652, %v11651
    %v11829 = vpack.c.bf16 %v11430, %v11429
    %v11830 = vpack.c.bf16 %v11654, %v11653
    %v11831 = vpack.c.bf16 %v11432, %v11431
    %v11832 = vpack.c.bf16 %v11656, %v11655
    %v11833 = vpack.c.bf16 %v11434, %v11433
    %v11834 = vpack.c.bf16 %v11658, %v11657
    %v11835 = vpack.c.bf16 %v11436, %v11435
    %v11836 = vpack.c.bf16 %v11660, %v11659
    %v11837 = vpack.c.bf16 %v11438, %v11437
    %v11838 = vpack.c.bf16 %v11662, %v11661
    %v11839 = vpack.c.bf16 %v11440, %v11439
    %v11840 = vpack.c.bf16 %v11664, %v11663
    %v11841 = vpack.c.bf16 %v11442, %v11441
    %v11842 = vpack.c.bf16 %v11666, %v11665
    %v11843 = vpack.c.bf16 %v11460, %v11459
    %v11844 = vpack.c.bf16 %v11684, %v11683
    %v11845 = vpack.c.bf16 %v11462, %v11461
    %v11846 = vpack.c.bf16 %v11686, %v11685
    %v11847 = vpack.c.bf16 %v11464, %v11463
    %v11848 = vpack.c.bf16 %v11688, %v11687
    %v11849 = vpack.c.bf16 %v11466, %v11465
    %v11850 = vpack.c.bf16 %v11690, %v11689
    %v11851 = vpack.c.bf16 %v11468, %v11467
    %v11852 = vpack.c.bf16 %v11692, %v11691
    %v11853 = vpack.c.bf16 %v11470, %v11469
    %v11854 = vpack.c.bf16 %v11694, %v11693
    %v11855 = vpack.c.bf16 %v11472, %v11471
    %v11856 = vpack.c.bf16 %v11696, %v11695
    %v11857 = vpack.c.bf16 %v11474, %v11473
    %v11858 = vpack.c.bf16 %v11698, %v11697
    %v11859 = vpack.c.bf16 %v11492, %v11491
    %v11860 = vpack.c.bf16 %v11716, %v11715
    %v11861 = vpack.c.bf16 %v11494, %v11493
    %v11862 = vpack.c.bf16 %v11718, %v11717
    %v11863 = vpack.c.bf16 %v11496, %v11495
    %v11864 = vpack.c.bf16 %v11720, %v11719
    %v11865 = vpack.c.bf16 %v11498, %v11497
    %v11866 = vpack.c.bf16 %v11722, %v11721
    %v11867 = vpack.c.bf16 %v11500, %v11499
    %v11868 = vpack.c.bf16 %v11724, %v11723
    %v11869 = vpack.c.bf16 %v11502, %v11501
    %v11870 = vpack.c.bf16 %v11726, %v11725
    %v11871 = vpack.c.bf16 %v11504, %v11503
    %v11872 = vpack.c.bf16 %v11728, %v11727
    %v11873 = vpack.c.bf16 %v11506, %v11505
    %v11874 = vpack.c.bf16 %v11730, %v11729
    %v11875 = vpack.c.bf16 %v11524, %v11523
    %v11876 = vpack.c.bf16 %v11748, %v11747
    %v11877 = vpack.c.bf16 %v11526, %v11525
    %v11878 = vpack.c.bf16 %v11750, %v11749
    %v11879 = vpack.c.bf16 %v11528, %v11527
    %v11880 = vpack.c.bf16 %v11752, %v11751
    %v11881 = vpack.c.bf16 %v11530, %v11529
    %v11882 = vpack.c.bf16 %v11754, %v11753
    %v11883 = vpack.c.bf16 %v11532, %v11531
    %v11884 = vpack.c.bf16 %v11756, %v11755
    %v11885 = vpack.c.bf16 %v11534, %v11533
    %v11886 = vpack.c.bf16 %v11758, %v11757
    %v11887 = vpack.c.bf16 %v11536, %v11535
    %v11888 = vpack.c.bf16 %v11760, %v11759
    %v11889 = vpack.c.bf16 %v11538, %v11537
    %v11890 = vpack.c.bf16 %v11762, %v11761
    %v11891 = vpack.c.bf16 %v11556, %v11555
    %v11892 = vpack.c.bf16 %v11780, %v11779
    %v11893 = vpack.c.bf16 %v11558, %v11557
    %v11894 = vpack.c.bf16 %v11782, %v11781
    %v11895 = vpack.c.bf16 %v11560, %v11559
    %v11896 = vpack.c.bf16 %v11784, %v11783
    %v11897 = vpack.c.bf16 %v11562, %v11561
    %v11898 = vpack.c.bf16 %v11786, %v11785
    %v11899 = vpack.c.bf16 %v11564, %v11563
    %v11900 = vpack.c.bf16 %v11788, %v11787
    %v11901 = vpack.c.bf16 %v11566, %v11565
    %v11902 = vpack.c.bf16 %v11790, %v11789
    %v11903 = vpack.c.bf16 %v11568, %v11567
    %v11904 = vpack.c.bf16 %v11792, %v11791
    %v11905 = vpack.c.bf16 %v11570, %v11569
    %v11906 = vpack.c.bf16 %v11794, %v11793
    %v12019 = vunpack.c.l.b16 %v11795
    %v12020 = vunpack.c.l.b16 %v11796
    %v12021 = vunpack.c.h.b16 %v11795
    %v12022 = vunpack.c.h.b16 %v11796
    %v12023 = vunpack.c.l.b16 %v11797
    %v12024 = vunpack.c.l.b16 %v11798
    %v12025 = vunpack.c.h.b16 %v11797
    %v12026 = vunpack.c.h.b16 %v11798
    %v12027 = vunpack.c.l.b16 %v11799
    %v12028 = vunpack.c.l.b16 %v11800
    %v12029 = vunpack.c.h.b16 %v11799
    %v12030 = vunpack.c.h.b16 %v11800
    %v12031 = vunpack.c.l.b16 %v11801
    %v12032 = vunpack.c.l.b16 %v11802
    %v12033 = vunpack.c.h.b16 %v11801
    %v12034 = vunpack.c.h.b16 %v11802
    %v12035 = vunpack.c.l.b16 %v11803
    %v12036 = vunpack.c.l.b16 %v11804
    %v12037 = vunpack.c.h.b16 %v11803
    %v12038 = vunpack.c.h.b16 %v11804
    %v12039 = vunpack.c.l.b16 %v11805
    %v12040 = vunpack.c.l.b16 %v11806
    %v12041 = vunpack.c.h.b16 %v11805
    %v12042 = vunpack.c.h.b16 %v11806
    %v12043 = vunpack.c.l.b16 %v11807
    %v12044 = vunpack.c.l.b16 %v11808
    %v12045 = vunpack.c.h.b16 %v11807
    %v12046 = vunpack.c.h.b16 %v11808
    %v12047 = vunpack.c.l.b16 %v11809
    %v12048 = vunpack.c.l.b16 %v11810
    %v12049 = vunpack.c.h.b16 %v11809
    %v12050 = vunpack.c.h.b16 %v11810
    %v12051 = vunpack.c.l.b16 %v11811
    %v12052 = vunpack.c.l.b16 %v11812
    %v12053 = vunpack.c.h.b16 %v11811
    %v12054 = vunpack.c.h.b16 %v11812
    %v12055 = vunpack.c.l.b16 %v11813
    %v12056 = vunpack.c.l.b16 %v11814
    %v12057 = vunpack.c.h.b16 %v11813
    %v12058 = vunpack.c.h.b16 %v11814
    %v12059 = vunpack.c.l.b16 %v11815
    %v12060 = vunpack.c.l.b16 %v11816
    %v12061 = vunpack.c.h.b16 %v11815
    %v12062 = vunpack.c.h.b16 %v11816
    %v12063 = vunpack.c.l.b16 %v11817
    %v12064 = vunpack.c.l.b16 %v11818
    %v12065 = vunpack.c.h.b16 %v11817
    %v12066 = vunpack.c.h.b16 %v11818
    %v12067 = vunpack.c.l.b16 %v11819
    %v12068 = vunpack.c.l.b16 %v11820
    %v12069 = vunpack.c.h.b16 %v11819
    %v12070 = vunpack.c.h.b16 %v11820
    %v12071 = vunpack.c.l.b16 %v11821
    %v12072 = vunpack.c.l.b16 %v11822
    %v12073 = vunpack.c.h.b16 %v11821
    %v12074 = vunpack.c.h.b16 %v11822
    %v12075 = vunpack.c.l.b16 %v11823
    %v12076 = vunpack.c.l.b16 %v11824
    %v12077 = vunpack.c.h.b16 %v11823
    %v12078 = vunpack.c.h.b16 %v11824
    %v12079 = vunpack.c.l.b16 %v11825
    %v12080 = vunpack.c.l.b16 %v11826
    %v12081 = vunpack.c.h.b16 %v11825
    %v12082 = vunpack.c.h.b16 %v11826
    %v12083 = vunpack.c.l.b16 %v11827
    %v12084 = vunpack.c.l.b16 %v11828
    %v12085 = vunpack.c.h.b16 %v11827
    %v12086 = vunpack.c.h.b16 %v11828
    %v12087 = vunpack.c.l.b16 %v11829
    %v12088 = vunpack.c.l.b16 %v11830
    %v12089 = vunpack.c.h.b16 %v11829
    %v12090 = vunpack.c.h.b16 %v11830
    %v12091 = vunpack.c.l.b16 %v11831
    %v12092 = vunpack.c.l.b16 %v11832
    %v12093 = vunpack.c.h.b16 %v11831
    %v12094 = vunpack.c.h.b16 %v11832
    %v12095 = vunpack.c.l.b16 %v11833
    %v12096 = vunpack.c.l.b16 %v11834
    %v12097 = vunpack.c.h.b16 %v11833
    %v12098 = vunpack.c.h.b16 %v11834
    %v12099 = vunpack.c.l.b16 %v11835
    %v12100 = vunpack.c.l.b16 %v11836
    %v12101 = vunpack.c.h.b16 %v11835
    %v12102 = vunpack.c.h.b16 %v11836
    %v12103 = vunpack.c.l.b16 %v11837
    %v12104 = vunpack.c.l.b16 %v11838
    %v12105 = vunpack.c.h.b16 %v11837
    %v12106 = vunpack.c.h.b16 %v11838
    %v12107 = vunpack.c.l.b16 %v11839
    %v12108 = vunpack.c.l.b16 %v11840
    %v12109 = vunpack.c.h.b16 %v11839
    %v12110 = vunpack.c.h.b16 %v11840
    %v12111 = vunpack.c.l.b16 %v11841
    %v12112 = vunpack.c.l.b16 %v11842
    %v12113 = vunpack.c.h.b16 %v11841
    %v12114 = vunpack.c.h.b16 %v11842
    %v12115 = vunpack.c.l.b16 %v11843
    %v12116 = vunpack.c.l.b16 %v11844
    %v12117 = vunpack.c.h.b16 %v11843
    %v12118 = vunpack.c.h.b16 %v11844
    %v12119 = vunpack.c.l.b16 %v11845
    %v12120 = vunpack.c.l.b16 %v11846
    %v12121 = vunpack.c.h.b16 %v11845
    %v12122 = vunpack.c.h.b16 %v11846
    %v12123 = vunpack.c.l.b16 %v11847
    %v12124 = vunpack.c.l.b16 %v11848
    %v12125 = vunpack.c.h.b16 %v11847
    %v12126 = vunpack.c.h.b16 %v11848
    %v12127 = vunpack.c.l.b16 %v11849
    %v12128 = vunpack.c.l.b16 %v11850
    %v12129 = vunpack.c.h.b16 %v11849
    %v12130 = vunpack.c.h.b16 %v11850
    %v12131 = vunpack.c.l.b16 %v11851
    %v12132 = vunpack.c.l.b16 %v11852
    %v12133 = vunpack.c.h.b16 %v11851
    %v12134 = vunpack.c.h.b16 %v11852
    %v12135 = vunpack.c.l.b16 %v11853
    %v12136 = vunpack.c.l.b16 %v11854
    %v12137 = vunpack.c.h.b16 %v11853
    %v12138 = vunpack.c.h.b16 %v11854
    %v12139 = vunpack.c.l.b16 %v11855
    %v12140 = vunpack.c.l.b16 %v11856
    %v12141 = vunpack.c.h.b16 %v11855
    %v12142 = vunpack.c.h.b16 %v11856
    %v12143 = vunpack.c.l.b16 %v11857
    %v12144 = vunpack.c.l.b16 %v11858
    %v12145 = vunpack.c.h.b16 %v11857
    %v12146 = vunpack.c.h.b16 %v11858
    %v12147 = vunpack.c.l.b16 %v11859
    %v12148 = vunpack.c.l.b16 %v11860
    %v12149 = vunpack.c.h.b16 %v11859
    %v12150 = vunpack.c.h.b16 %v11860
    %v12151 = vunpack.c.l.b16 %v11861
    %v12152 = vunpack.c.l.b16 %v11862
    %v12153 = vunpack.c.h.b16 %v11861
    %v12154 = vunpack.c.h.b16 %v11862
    %v12155 = vunpack.c.l.b16 %v11863
    %v12156 = vunpack.c.l.b16 %v11864
    %v12157 = vunpack.c.h.b16 %v11863
    %v12158 = vunpack.c.h.b16 %v11864
    %v12159 = vunpack.c.l.b16 %v11865
    %v12160 = vunpack.c.l.b16 %v11866
    %v12161 = vunpack.c.h.b16 %v11865
    %v12162 = vunpack.c.h.b16 %v11866
    %v12163 = vunpack.c.l.b16 %v11867
    %v12164 = vunpack.c.l.b16 %v11868
    %v12165 = vunpack.c.h.b16 %v11867
    %v12166 = vunpack.c.h.b16 %v11868
    %v12167 = vunpack.c.l.b16 %v11869
    %v12168 = vunpack.c.l.b16 %v11870
    %v12169 = vunpack.c.h.b16 %v11869
    %v12170 = vunpack.c.h.b16 %v11870
    %v12171 = vunpack.c.l.b16 %v11871
    %v12172 = vunpack.c.l.b16 %v11872
    %v12173 = vunpack.c.h.b16 %v11871
    %v12174 = vunpack.c.h.b16 %v11872
    %v12175 = vunpack.c.l.b16 %v11873
    %v12176 = vunpack.c.l.b16 %v11874
    %v12177 = vunpack.c.h.b16 %v11873
    %v12178 = vunpack.c.h.b16 %v11874
    %v12179 = vunpack.c.l.b16 %v11875
    %v12180 = vunpack.c.l.b16 %v11876
    %v12181 = vunpack.c.h.b16 %v11875
    %v12182 = vunpack.c.h.b16 %v11876
    %v12183 = vunpack.c.l.b16 %v11877
    %v12184 = vunpack.c.l.b16 %v11878
    %v12185 = vunpack.c.h.b16 %v11877
    %v12186 = vunpack.c.h.b16 %v11878
    %v12187 = vunpack.c.l.b16 %v11879
    %v12188 = vunpack.c.l.b16 %v11880
    %v12189 = vunpack.c.h.b16 %v11879
    %v12190 = vunpack.c.h.b16 %v11880
    %v12191 = vunpack.c.l.b16 %v11881
    %v12192 = vunpack.c.l.b16 %v11882
    %v12193 = vunpack.c.h.b16 %v11881
    %v12194 = vunpack.c.h.b16 %v11882
    %v12195 = vunpack.c.l.b16 %v11883
    %v12196 = vunpack.c.l.b16 %v11884
    %v12197 = vunpack.c.h.b16 %v11883
    %v12198 = vunpack.c.h.b16 %v11884
    %v12199 = vunpack.c.l.b16 %v11885
    %v12200 = vunpack.c.l.b16 %v11886
    %v12201 = vunpack.c.h.b16 %v11885
    %v12202 = vunpack.c.h.b16 %v11886
    %v12203 = vunpack.c.l.b16 %v11887
    %v12204 = vunpack.c.l.b16 %v11888
    %v12205 = vunpack.c.h.b16 %v11887
    %v12206 = vunpack.c.h.b16 %v11888
    %v12207 = vunpack.c.l.b16 %v11889
    %v12208 = vunpack.c.l.b16 %v11890
    %v12209 = vunpack.c.h.b16 %v11889
    %v12210 = vunpack.c.h.b16 %v11890
    %v12211 = vunpack.c.l.b16 %v11891
    %v12212 = vunpack.c.l.b16 %v11892
    %v12213 = vunpack.c.h.b16 %v11891
    %v12214 = vunpack.c.h.b16 %v11892
    %v12215 = vunpack.c.l.b16 %v11893
    %v12216 = vunpack.c.l.b16 %v11894
    %v12217 = vunpack.c.h.b16 %v11893
    %v12218 = vunpack.c.h.b16 %v11894
    %v12219 = vunpack.c.l.b16 %v11895
    %v12220 = vunpack.c.l.b16 %v11896
    %v12221 = vunpack.c.h.b16 %v11895
    %v12222 = vunpack.c.h.b16 %v11896
    %v12223 = vunpack.c.l.b16 %v11897
    %v12224 = vunpack.c.l.b16 %v11898
    %v12225 = vunpack.c.h.b16 %v11897
    %v12226 = vunpack.c.h.b16 %v11898
    %v12227 = vunpack.c.l.b16 %v11899
    %v12228 = vunpack.c.l.b16 %v11900
    %v12229 = vunpack.c.h.b16 %v11899
    %v12230 = vunpack.c.h.b16 %v11900
    %v12231 = vunpack.c.l.b16 %v11901
    %v12232 = vunpack.c.l.b16 %v11902
    %v12233 = vunpack.c.h.b16 %v11901
    %v12234 = vunpack.c.h.b16 %v11902
    %v12235 = vunpack.c.l.b16 %v11903
    %v12236 = vunpack.c.l.b16 %v11904
    %v12237 = vunpack.c.h.b16 %v11903
    %v12238 = vunpack.c.h.b16 %v11904
    %v12239 = vunpack.c.l.b16 %v11905
    %v12240 = vunpack.c.l.b16 %v11906
    %v12241 = vunpack.c.h.b16 %v11905
    %v12242 = vunpack.c.h.b16 %v11906
    %v12243 = vpack.c.b16 %v12020, %v12019
    %v12244 = vpack.c.b16 %v12022, %v12021
    %v12245 = vpack.c.b16 %v12024, %v12023
    %v12246 = vpack.c.b16 %v12026, %v12025
    %v12247 = vpack.c.b16 %v12028, %v12027
    %v12248 = vpack.c.b16 %v12030, %v12029
    %v12249 = vpack.c.b16 %v12032, %v12031
    %v12250 = vpack.c.b16 %v12034, %v12033
    %v12251 = vpack.c.b16 %v12036, %v12035
    %v12252 = vpack.c.b16 %v12038, %v12037
    %v12253 = vpack.c.b16 %v12040, %v12039
    %v12254 = vpack.c.b16 %v12042, %v12041
    %v12255 = vpack.c.b16 %v12044, %v12043
    %v12256 = vpack.c.b16 %v12046, %v12045
    %v12257 = vpack.c.b16 %v12048, %v12047
    %v12258 = vpack.c.b16 %v12050, %v12049
    %v12259 = vpack.c.b16 %v12052, %v12051
    %v12260 = vpack.c.b16 %v12054, %v12053
    %v12261 = vpack.c.b16 %v12056, %v12055
    %v12262 = vpack.c.b16 %v12058, %v12057
    %v12263 = vpack.c.b16 %v12060, %v12059
    %v12264 = vpack.c.b16 %v12062, %v12061
    %v12265 = vpack.c.b16 %v12064, %v12063
    %v12266 = vpack.c.b16 %v12066, %v12065
    %v12267 = vpack.c.b16 %v12068, %v12067
    %v12268 = vpack.c.b16 %v12070, %v12069
    %v12269 = vpack.c.b16 %v12072, %v12071
    %v12270 = vpack.c.b16 %v12074, %v12073
    %v12271 = vpack.c.b16 %v12076, %v12075
    %v12272 = vpack.c.b16 %v12078, %v12077
    %v12273 = vpack.c.b16 %v12080, %v12079
    %v12274 = vpack.c.b16 %v12082, %v12081
    %v12275 = vpack.c.b16 %v12084, %v12083
    %v12276 = vpack.c.b16 %v12086, %v12085
    %v12277 = vpack.c.b16 %v12088, %v12087
    %v12278 = vpack.c.b16 %v12090, %v12089
    %v12279 = vpack.c.b16 %v12092, %v12091
    %v12280 = vpack.c.b16 %v12094, %v12093
    %v12281 = vpack.c.b16 %v12096, %v12095
    %v12282 = vpack.c.b16 %v12098, %v12097
    %v12283 = vpack.c.b16 %v12100, %v12099
    %v12284 = vpack.c.b16 %v12102, %v12101
    %v12285 = vpack.c.b16 %v12104, %v12103
    %v12286 = vpack.c.b16 %v12106, %v12105
    %v12287 = vpack.c.b16 %v12108, %v12107
    %v12288 = vpack.c.b16 %v12110, %v12109
    %v12289 = vpack.c.b16 %v12112, %v12111
    %v12290 = vpack.c.b16 %v12114, %v12113
    %v12291 = vpack.c.b16 %v12116, %v12115
    %v12292 = vpack.c.b16 %v12118, %v12117
    %v12293 = vpack.c.b16 %v12120, %v12119
    %v12294 = vpack.c.b16 %v12122, %v12121
    %v12295 = vpack.c.b16 %v12124, %v12123
    %v12296 = vpack.c.b16 %v12126, %v12125
    %v12297 = vpack.c.b16 %v12128, %v12127
    %v12298 = vpack.c.b16 %v12130, %v12129
    %v12299 = vpack.c.b16 %v12132, %v12131
    %v12300 = vpack.c.b16 %v12134, %v12133
    %v12301 = vpack.c.b16 %v12136, %v12135
    %v12302 = vpack.c.b16 %v12138, %v12137
    %v12303 = vpack.c.b16 %v12140, %v12139
    %v12304 = vpack.c.b16 %v12142, %v12141
    %v12305 = vpack.c.b16 %v12144, %v12143
    %v12306 = vpack.c.b16 %v12146, %v12145
    %v12307 = vpack.c.b16 %v12148, %v12147
    %v12308 = vpack.c.b16 %v12150, %v12149
    %v12309 = vpack.c.b16 %v12152, %v12151
    %v12310 = vpack.c.b16 %v12154, %v12153
    %v12311 = vpack.c.b16 %v12156, %v12155
    %v12312 = vpack.c.b16 %v12158, %v12157
    %v12313 = vpack.c.b16 %v12160, %v12159
    %v12314 = vpack.c.b16 %v12162, %v12161
    %v12315 = vpack.c.b16 %v12164, %v12163
    %v12316 = vpack.c.b16 %v12166, %v12165
    %v12317 = vpack.c.b16 %v12168, %v12167
    %v12318 = vpack.c.b16 %v12170, %v12169
    %v12319 = vpack.c.b16 %v12172, %v12171
    %v12320 = vpack.c.b16 %v12174, %v12173
    %v12321 = vpack.c.b16 %v12176, %v12175
    %v12322 = vpack.c.b16 %v12178, %v12177
    %v12323 = vpack.c.b16 %v12180, %v12179
    %v12324 = vpack.c.b16 %v12182, %v12181
    %v12325 = vpack.c.b16 %v12184, %v12183
    %v12326 = vpack.c.b16 %v12186, %v12185
    %v12327 = vpack.c.b16 %v12188, %v12187
    %v12328 = vpack.c.b16 %v12190, %v12189
    %v12329 = vpack.c.b16 %v12192, %v12191
    %v12330 = vpack.c.b16 %v12194, %v12193
    %v12331 = vpack.c.b16 %v12196, %v12195
    %v12332 = vpack.c.b16 %v12198, %v12197
    %v12333 = vpack.c.b16 %v12200, %v12199
    %v12334 = vpack.c.b16 %v12202, %v12201
    %v12335 = vpack.c.b16 %v12204, %v12203
    %v12336 = vpack.c.b16 %v12206, %v12205
    %v12337 = vpack.c.b16 %v12208, %v12207
    %v12338 = vpack.c.b16 %v12210, %v12209
    %v12339 = vpack.c.b16 %v12212, %v12211
    %v12340 = vpack.c.b16 %v12214, %v12213
    %v12341 = vpack.c.b16 %v12216, %v12215
    %v12342 = vpack.c.b16 %v12218, %v12217
    %v12343 = vpack.c.b16 %v12220, %v12219
    %v12344 = vpack.c.b16 %v12222, %v12221
    %v12345 = vpack.c.b16 %v12224, %v12223
    %v12346 = vpack.c.b16 %v12226, %v12225
    %v12347 = vpack.c.b16 %v12228, %v12227
    %v12348 = vpack.c.b16 %v12230, %v12229
    %v12349 = vpack.c.b16 %v12232, %v12231
    %v12350 = vpack.c.b16 %v12234, %v12233
    %v12351 = vpack.c.b16 %v12236, %v12235
    %v12352 = vpack.c.b16 %v12238, %v12237
    %v12353 = vpack.c.b16 %v12240, %v12239
    %v12354 = vpack.c.b16 %v12242, %v12241
    %12467 = vst [vmem:[#allocation11] sm:$0xff] %v12243
    %12468 = vst [vmem:[#allocation11 + $0x8] sm:$0xff] %v12244
    %12469 = vst [vmem:[#allocation11 + $0x10] sm:$0xff] %v12245
    %12470 = vst [vmem:[#allocation11 + $0x18] sm:$0xff] %v12246
    %12471 = vst [vmem:[#allocation11 + $0x20] sm:$0xff] %v12247
    %12472 = vst [vmem:[#allocation11 + $0x28] sm:$0xff] %v12248
    %12473 = vst [vmem:[#allocation11 + $0x30] sm:$0xff] %v12249
    %12474 = vst [vmem:[#allocation11 + $0x38] sm:$0xff] %v12250
    %12475 = vst [vmem:[#allocation11 + $0x40] sm:$0xff] %v12251
    %12476 = vst [vmem:[#allocation11 + $0x48] sm:$0xff] %v12252
    %12477 = vst [vmem:[#allocation11 + $0x50] sm:$0xff] %v12253
    %12478 = vst [vmem:[#allocation11 + $0x58] sm:$0xff] %v12254
    %12479 = vst [vmem:[#allocation11 + $0x60] sm:$0xff] %v12255
    %12480 = vst [vmem:[#allocation11 + $0x68] sm:$0xff] %v12256
    %12481 = vst [vmem:[#allocation11 + $0x70] sm:$0xff] %v12257
    %12482 = vst [vmem:[#allocation11 + $0x78] sm:$0xff] %v12258
    %12483 = vst [vmem:[#allocation11 + $0x80] sm:$0xff] %v12259
    %12484 = vst [vmem:[#allocation11 + $0x88] sm:$0xff] %v12260
    %12485 = vst [vmem:[#allocation11 + $0x90] sm:$0xff] %v12261
    %12486 = vst [vmem:[#allocation11 + $0x98] sm:$0xff] %v12262
    %12487 = vst [vmem:[#allocation11 + $0xa0] sm:$0xff] %v12263
    %12488 = vst [vmem:[#allocation11 + $0xa8] sm:$0xff] %v12264
    %12489 = vst [vmem:[#allocation11 + $0xb0] sm:$0xff] %v12265
    %12490 = vst [vmem:[#allocation11 + $0xb8] sm:$0xff] %v12266
    %12491 = vst [vmem:[#allocation11 + $0xc0] sm:$0xff] %v12267
    %12492 = vst [vmem:[#allocation11 + $0xc8] sm:$0xff] %v12268
    %12493 = vst [vmem:[#allocation11 + $0xd0] sm:$0xff] %v12269
    %12494 = vst [vmem:[#allocation11 + $0xd8] sm:$0xff] %v12270
    %12495 = vst [vmem:[#allocation11 + $0xe0] sm:$0xff] %v12271
    %12496 = vst [vmem:[#allocation11 + $0xe8] sm:$0xff] %v12272
    %12497 = vst [vmem:[#allocation11 + $0xf0] sm:$0xff] %v12273
    %12498 = vst [vmem:[#allocation11 + $0xf8] sm:$0xff] %v12274
    %12499 = vst [vmem:[#allocation11 + $0x100] sm:$0xff] %v12275
    %12500 = vst [vmem:[#allocation11 + $0x108] sm:$0xff] %v12276
    %12501 = vst [vmem:[#allocation11 + $0x110] sm:$0xff] %v12277
    %12502 = vst [vmem:[#allocation11 + $0x118] sm:$0xff] %v12278
    %12503 = vst [vmem:[#allocation11 + $0x120] sm:$0xff] %v12279
    %12504 = vst [vmem:[#allocation11 + $0x128] sm:$0xff] %v12280
    %12505 = vst [vmem:[#allocation11 + $0x130] sm:$0xff] %v12281
    %12506 = vst [vmem:[#allocation11 + $0x138] sm:$0xff] %v12282
    %12507 = vst [vmem:[#allocation11 + $0x140] sm:$0xff] %v12283
    %12508 = vst [vmem:[#allocation11 + $0x148] sm:$0xff] %v12284
    %12509 = vst [vmem:[#allocation11 + $0x150] sm:$0xff] %v12285
    %12510 = vst [vmem:[#allocation11 + $0x158] sm:$0xff] %v12286
    %12511 = vst [vmem:[#allocation11 + $0x160] sm:$0xff] %v12287
    %12512 = vst [vmem:[#allocation11 + $0x168] sm:$0xff] %v12288
    %12513 = vst [vmem:[#allocation11 + $0x170] sm:$0xff] %v12289
    %12514 = vst [vmem:[#allocation11 + $0x178] sm:$0xff] %v12290
    %12515 = vst [vmem:[#allocation11 + $0x180] sm:$0xff] %v12291
    %12516 = vst [vmem:[#allocation11 + $0x188] sm:$0xff] %v12292
    %12517 = vst [vmem:[#allocation11 + $0x190] sm:$0xff] %v12293
    %12518 = vst [vmem:[#allocation11 + $0x198] sm:$0xff] %v12294
    %12519 = vst [vmem:[#allocation11 + $0x1a0] sm:$0xff] %v12295
    %12520 = vst [vmem:[#allocation11 + $0x1a8] sm:$0xff] %v12296
    %12521 = vst [vmem:[#allocation11 + $0x1b0] sm:$0xff] %v12297
    %12522 = vst [vmem:[#allocation11 + $0x1b8] sm:$0xff] %v12298
    %12523 = vst [vmem:[#allocation11 + $0x1c0] sm:$0xff] %v12299
    %12524 = vst [vmem:[#allocation11 + $0x1c8] sm:$0xff] %v12300
    %12525 = vst [vmem:[#allocation11 + $0x1d0] sm:$0xff] %v12301
    %12526 = vst [vmem:[#allocation11 + $0x1d8] sm:$0xff] %v12302
    %12527 = vst [vmem:[#allocation11 + $0x1e0] sm:$0xff] %v12303
    %12528 = vst [vmem:[#allocation11 + $0x1e8] sm:$0xff] %v12304
    %12529 = vst [vmem:[#allocation11 + $0x1f0] sm:$0xff] %v12305
    %12530 = vst [vmem:[#allocation11 + $0x1f8] sm:$0xff] %v12306
    %12531 = vst [vmem:[#allocation11 + $0x200] sm:$0xff] %v12307
    %12532 = vst [vmem:[#allocation11 + $0x208] sm:$0xff] %v12308
    %12533 = vst [vmem:[#allocation11 + $0x210] sm:$0xff] %v12309
    %12534 = vst [vmem:[#allocation11 + $0x218] sm:$0xff] %v12310
    %12535 = vst [vmem:[#allocation11 + $0x220] sm:$0xff] %v12311
    %12536 = vst [vmem:[#allocation11 + $0x228] sm:$0xff] %v12312
    %12537 = vst [vmem:[#allocation11 + $0x230] sm:$0xff] %v12313
    %12538 = vst [vmem:[#allocation11 + $0x238] sm:$0xff] %v12314
    %12539 = vst [vmem:[#allocation11 + $0x240] sm:$0xff] %v12315
    %12540 = vst [vmem:[#allocation11 + $0x248] sm:$0xff] %v12316
    %12541 = vst [vmem:[#allocation11 + $0x250] sm:$0xff] %v12317
    %12542 = vst [vmem:[#allocation11 + $0x258] sm:$0xff] %v12318
    %12543 = vst [vmem:[#allocation11 + $0x260] sm:$0xff] %v12319
    %12544 = vst [vmem:[#allocation11 + $0x268] sm:$0xff] %v12320
    %12545 = vst [vmem:[#allocation11 + $0x270] sm:$0xff] %v12321
    %12546 = vst [vmem:[#allocation11 + $0x278] sm:$0xff] %v12322
    %12547 = vst [vmem:[#allocation11 + $0x280] sm:$0xff] %v12323
    %12548 = vst [vmem:[#allocation11 + $0x288] sm:$0xff] %v12324
    %12549 = vst [vmem:[#allocation11 + $0x290] sm:$0xff] %v12325
    %12550 = vst [vmem:[#allocation11 + $0x298] sm:$0xff] %v12326
    %12551 = vst [vmem:[#allocation11 + $0x2a0] sm:$0xff] %v12327
    %12552 = vst [vmem:[#allocation11 + $0x2a8] sm:$0xff] %v12328
    %12553 = vst [vmem:[#allocation11 + $0x2b0] sm:$0xff] %v12329
    %12554 = vst [vmem:[#allocation11 + $0x2b8] sm:$0xff] %v12330
    %12555 = vst [vmem:[#allocation11 + $0x2c0] sm:$0xff] %v12331
    %12556 = vst [vmem:[#allocation11 + $0x2c8] sm:$0xff] %v12332
    %12557 = vst [vmem:[#allocation11 + $0x2d0] sm:$0xff] %v12333
    %12558 = vst [vmem:[#allocation11 + $0x2d8] sm:$0xff] %v12334
    %12559 = vst [vmem:[#allocation11 + $0x2e0] sm:$0xff] %v12335
    %12560 = vst [vmem:[#allocation11 + $0x2e8] sm:$0xff] %v12336
    %12561 = vst [vmem:[#allocation11 + $0x2f0] sm:$0xff] %v12337
    %12562 = vst [vmem:[#allocation11 + $0x2f8] sm:$0xff] %v12338
    %12563 = vst [vmem:[#allocation11 + $0x300] sm:$0xff] %v12339
    %12564 = vst [vmem:[#allocation11 + $0x308] sm:$0xff] %v12340
    %12565 = vst [vmem:[#allocation11 + $0x310] sm:$0xff] %v12341
    %12566 = vst [vmem:[#allocation11 + $0x318] sm:$0xff] %v12342
    %12567 = vst [vmem:[#allocation11 + $0x320] sm:$0xff] %v12343
    %12568 = vst [vmem:[#allocation11 + $0x328] sm:$0xff] %v12344
    %12569 = vst [vmem:[#allocation11 + $0x330] sm:$0xff] %v12345
    %12570 = vst [vmem:[#allocation11 + $0x338] sm:$0xff] %v12346
    %12571 = vst [vmem:[#allocation11 + $0x340] sm:$0xff] %v12347
    %12572 = vst [vmem:[#allocation11 + $0x348] sm:$0xff] %v12348
    %12573 = vst [vmem:[#allocation11 + $0x350] sm:$0xff] %v12349
    %12574 = vst [vmem:[#allocation11 + $0x358] sm:$0xff] %v12350
    %12575 = vst [vmem:[#allocation11 + $0x360] sm:$0xff] %v12351
    %12576 = vst [vmem:[#allocation11 + $0x368] sm:$0xff] %v12352
    %12577 = vst [vmem:[#allocation11 + $0x370] sm:$0xff] %v12353
    %12578 = vst [vmem:[#allocation11 + $0x378] sm:$0xff] %v12354
    %v12579 = vpack.c.bf16 %v9005, %v9001
    %v12580 = vpack.c.bf16 %v9007, %v9003
    %v12581 = vpack.c.bf16 %v9777, %v9773
    %v12582 = vpack.c.bf16 %v9779, %v9775
    %v12583 = vpack.c.bf16 %v10549, %v10545
    %v12584 = vpack.c.bf16 %v10551, %v10547
    %v12585 = vpack.c.bf16 %v11224, %v11221
    %v12586 = vpack.c.bf16 %v9015, %v9011
    %v12587 = vpack.c.bf16 %v9017, %v9013
    %v12588 = vpack.c.bf16 %v9787, %v9783
    %v12589 = vpack.c.bf16 %v9789, %v9785
    %v12590 = vpack.c.bf16 %v10559, %v10555
    %v12591 = vpack.c.bf16 %v10561, %v10557
    %v12592 = vpack.c.bf16 %v11232, %v11229
    %v12593 = vpack.c.bf16 %v9025, %v9021
    %v12594 = vpack.c.bf16 %v9027, %v9023
    %v12595 = vpack.c.bf16 %v9797, %v9793
    %v12596 = vpack.c.bf16 %v9799, %v9795
    %v12597 = vpack.c.bf16 %v10569, %v10565
    %v12598 = vpack.c.bf16 %v10571, %v10567
    %v12599 = vpack.c.bf16 %v11240, %v11237
    %v12600 = vpack.c.bf16 %v9035, %v9031
    %v12601 = vpack.c.bf16 %v9037, %v9033
    %v12602 = vpack.c.bf16 %v9807, %v9803
    %v12603 = vpack.c.bf16 %v9809, %v9805
    %v12604 = vpack.c.bf16 %v10579, %v10575
    %v12605 = vpack.c.bf16 %v10581, %v10577
    %v12606 = vpack.c.bf16 %v11248, %v11245
    %v12607 = vpack.c.bf16 %v9045, %v9041
    %v12608 = vpack.c.bf16 %v9047, %v9043
    %v12609 = vpack.c.bf16 %v9817, %v9813
    %v12610 = vpack.c.bf16 %v9819, %v9815
    %v12611 = vpack.c.bf16 %v10589, %v10585
    %v12612 = vpack.c.bf16 %v10591, %v10587
    %v12613 = vpack.c.bf16 %v11256, %v11253
    %v12614 = vpack.c.bf16 %v9055, %v9051
    %v12615 = vpack.c.bf16 %v9057, %v9053
    %v12616 = vpack.c.bf16 %v9827, %v9823
    %v12617 = vpack.c.bf16 %v9829, %v9825
    %v12618 = vpack.c.bf16 %v10599, %v10595
    %v12619 = vpack.c.bf16 %v10601, %v10597
    %v12620 = vpack.c.bf16 %v11264, %v11261
    %v12621 = vpack.c.bf16 %v9065, %v9061
    %v12622 = vpack.c.bf16 %v9067, %v9063
    %v12623 = vpack.c.bf16 %v9837, %v9833
    %v12624 = vpack.c.bf16 %v9839, %v9835
    %v12625 = vpack.c.bf16 %v10609, %v10605
    %v12626 = vpack.c.bf16 %v10611, %v10607
    %v12627 = vpack.c.bf16 %v11272, %v11269
    %v12628 = vpack.c.bf16 %v9075, %v9071
    %v12629 = vpack.c.bf16 %v9077, %v9073
    %v12630 = vpack.c.bf16 %v9847, %v9843
    %v12631 = vpack.c.bf16 %v9849, %v9845
    %v12632 = vpack.c.bf16 %v10619, %v10615
    %v12633 = vpack.c.bf16 %v10621, %v10617
    %v12634 = vpack.c.bf16 %v11280, %v11277
    %v12635 = vpack.c.bf16 %v9085, %v9081
    %v12636 = vpack.c.bf16 %v9087, %v9083
    %v12637 = vpack.c.bf16 %v9857, %v9853
    %v12638 = vpack.c.bf16 %v9859, %v9855
    %v12639 = vpack.c.bf16 %v10629, %v10625
    %v12640 = vpack.c.bf16 %v10631, %v10627
    %v12641 = vpack.c.bf16 %v11288, %v11285
    %v12642 = vpack.c.bf16 %v9095, %v9091
    %v12643 = vpack.c.bf16 %v9097, %v9093
    %v12644 = vpack.c.bf16 %v9867, %v9863
    %v12645 = vpack.c.bf16 %v9869, %v9865
    %v12646 = vpack.c.bf16 %v10639, %v10635
    %v12647 = vpack.c.bf16 %v10641, %v10637
    %v12648 = vpack.c.bf16 %v11296, %v11293
    %v12649 = vpack.c.bf16 %v9105, %v9101
    %v12650 = vpack.c.bf16 %v9107, %v9103
    %v12651 = vpack.c.bf16 %v9877, %v9873
    %v12652 = vpack.c.bf16 %v9879, %v9875
    %v12653 = vpack.c.bf16 %v10649, %v10645
    %v12654 = vpack.c.bf16 %v10651, %v10647
    %v12655 = vpack.c.bf16 %v11304, %v11301
    %v12656 = vpack.c.bf16 %v9115, %v9111
    %v12657 = vpack.c.bf16 %v9117, %v9113
    %v12658 = vpack.c.bf16 %v9887, %v9883
    %v12659 = vpack.c.bf16 %v9889, %v9885
    %v12660 = vpack.c.bf16 %v10659, %v10655
    %v12661 = vpack.c.bf16 %v10661, %v10657
    %v12662 = vpack.c.bf16 %v11312, %v11309
    %v12663 = vpack.c.bf16 %v9125, %v9121
    %v12664 = vpack.c.bf16 %v9127, %v9123
    %v12665 = vpack.c.bf16 %v9897, %v9893
    %v12666 = vpack.c.bf16 %v9899, %v9895
    %v12667 = vpack.c.bf16 %v10669, %v10665
    %v12668 = vpack.c.bf16 %v10671, %v10667
    %v12669 = vpack.c.bf16 %v11320, %v11317
    %v12670 = vpack.c.bf16 %v9135, %v9131
    %v12671 = vpack.c.bf16 %v9137, %v9133
    %v12672 = vpack.c.bf16 %v9907, %v9903
    %v12673 = vpack.c.bf16 %v9909, %v9905
    %v12674 = vpack.c.bf16 %v10679, %v10675
    %v12675 = vpack.c.bf16 %v10681, %v10677
    %v12676 = vpack.c.bf16 %v11328, %v11325
    %v12677 = vpack.c.bf16 %v9145, %v9141
    %v12678 = vpack.c.bf16 %v9147, %v9143
    %v12679 = vpack.c.bf16 %v9917, %v9913
    %v12680 = vpack.c.bf16 %v9919, %v9915
    %v12681 = vpack.c.bf16 %v10689, %v10685
    %v12682 = vpack.c.bf16 %v10691, %v10687
    %v12683 = vpack.c.bf16 %v11336, %v11333
    %v12684 = vpack.c.bf16 %v9155, %v9151
    %v12685 = vpack.c.bf16 %v9157, %v9153
    %v12686 = vpack.c.bf16 %v9927, %v9923
    %v12687 = vpack.c.bf16 %v9929, %v9925
    %v12688 = vpack.c.bf16 %v10699, %v10695
    %v12689 = vpack.c.bf16 %v10701, %v10697
    %v12690 = vpack.c.bf16 %v11344, %v11341
    %v12803 = vunpack.c.l.b16 %v12579
    %v12804 = vunpack.c.l.b16 %v12580
    %v12805 = vunpack.c.l.b16 %v12581
    %v12806 = vunpack.c.l.b16 %v12582
    %v12807 = vunpack.c.l.b16 %v12583
    %v12808 = vunpack.c.l.b16 %v12584
    %v12809 = vunpack.c.l.b16 %v12585
    %v12810 = vunpack.c.h.b16 %v12579
    %v12811 = vunpack.c.h.b16 %v12580
    %v12812 = vunpack.c.h.b16 %v12581
    %v12813 = vunpack.c.h.b16 %v12582
    %v12814 = vunpack.c.h.b16 %v12583
    %v12815 = vunpack.c.h.b16 %v12584
    %v12816 = vunpack.c.h.b16 %v12585
    %v12817 = vunpack.c.l.b16 %v12586
    %v12818 = vunpack.c.l.b16 %v12587
    %v12819 = vunpack.c.l.b16 %v12588
    %v12820 = vunpack.c.l.b16 %v12589
    %v12821 = vunpack.c.l.b16 %v12590
    %v12822 = vunpack.c.l.b16 %v12591
    %v12823 = vunpack.c.l.b16 %v12592
    %v12824 = vunpack.c.h.b16 %v12586
    %v12825 = vunpack.c.h.b16 %v12587
    %v12826 = vunpack.c.h.b16 %v12588
    %v12827 = vunpack.c.h.b16 %v12589
    %v12828 = vunpack.c.h.b16 %v12590
    %v12829 = vunpack.c.h.b16 %v12591
    %v12830 = vunpack.c.h.b16 %v12592
    %v12831 = vunpack.c.l.b16 %v12593
    %v12832 = vunpack.c.l.b16 %v12594
    %v12833 = vunpack.c.l.b16 %v12595
    %v12834 = vunpack.c.l.b16 %v12596
    %v12835 = vunpack.c.l.b16 %v12597
    %v12836 = vunpack.c.l.b16 %v12598
    %v12837 = vunpack.c.l.b16 %v12599
    %v12838 = vunpack.c.h.b16 %v12593
    %v12839 = vunpack.c.h.b16 %v12594
    %v12840 = vunpack.c.h.b16 %v12595
    %v12841 = vunpack.c.h.b16 %v12596
    %v12842 = vunpack.c.h.b16 %v12597
    %v12843 = vunpack.c.h.b16 %v12598
    %v12844 = vunpack.c.h.b16 %v12599
    %v12845 = vunpack.c.l.b16 %v12600
    %v12846 = vunpack.c.l.b16 %v12601
    %v12847 = vunpack.c.l.b16 %v12602
    %v12848 = vunpack.c.l.b16 %v12603
    %v12849 = vunpack.c.l.b16 %v12604
    %v12850 = vunpack.c.l.b16 %v12605
    %v12851 = vunpack.c.l.b16 %v12606
    %v12852 = vunpack.c.h.b16 %v12600
    %v12853 = vunpack.c.h.b16 %v12601
    %v12854 = vunpack.c.h.b16 %v12602
    %v12855 = vunpack.c.h.b16 %v12603
    %v12856 = vunpack.c.h.b16 %v12604
    %v12857 = vunpack.c.h.b16 %v12605
    %v12858 = vunpack.c.h.b16 %v12606
    %v12859 = vunpack.c.l.b16 %v12607
    %v12860 = vunpack.c.l.b16 %v12608
    %v12861 = vunpack.c.l.b16 %v12609
    %v12862 = vunpack.c.l.b16 %v12610
    %v12863 = vunpack.c.l.b16 %v12611
    %v12864 = vunpack.c.l.b16 %v12612
    %v12865 = vunpack.c.l.b16 %v12613
    %v12866 = vunpack.c.h.b16 %v12607
    %v12867 = vunpack.c.h.b16 %v12608
    %v12868 = vunpack.c.h.b16 %v12609
    %v12869 = vunpack.c.h.b16 %v12610
    %v12870 = vunpack.c.h.b16 %v12611
    %v12871 = vunpack.c.h.b16 %v12612
    %v12872 = vunpack.c.h.b16 %v12613
    %v12873 = vunpack.c.l.b16 %v12614
    %v12874 = vunpack.c.l.b16 %v12615
    %v12875 = vunpack.c.l.b16 %v12616
    %v12876 = vunpack.c.l.b16 %v12617
    %v12877 = vunpack.c.l.b16 %v12618
    %v12878 = vunpack.c.l.b16 %v12619
    %v12879 = vunpack.c.l.b16 %v12620
    %v12880 = vunpack.c.h.b16 %v12614
    %v12881 = vunpack.c.h.b16 %v12615
    %v12882 = vunpack.c.h.b16 %v12616
    %v12883 = vunpack.c.h.b16 %v12617
    %v12884 = vunpack.c.h.b16 %v12618
    %v12885 = vunpack.c.h.b16 %v12619
    %v12886 = vunpack.c.h.b16 %v12620
    %v12887 = vunpack.c.l.b16 %v12621
    %v12888 = vunpack.c.l.b16 %v12622
    %v12889 = vunpack.c.l.b16 %v12623
    %v12890 = vunpack.c.l.b16 %v12624
    %v12891 = vunpack.c.l.b16 %v12625
    %v12892 = vunpack.c.l.b16 %v12626
    %v12893 = vunpack.c.l.b16 %v12627
    %v12894 = vunpack.c.h.b16 %v12621
    %v12895 = vunpack.c.h.b16 %v12622
    %v12896 = vunpack.c.h.b16 %v12623
    %v12897 = vunpack.c.h.b16 %v12624
    %v12898 = vunpack.c.h.b16 %v12625
    %v12899 = vunpack.c.h.b16 %v12626
    %v12900 = vunpack.c.h.b16 %v12627
    %v12901 = vunpack.c.l.b16 %v12628
    %v12902 = vunpack.c.l.b16 %v12629
    %v12903 = vunpack.c.l.b16 %v12630
    %v12904 = vunpack.c.l.b16 %v12631
    %v12905 = vunpack.c.l.b16 %v12632
    %v12906 = vunpack.c.l.b16 %v12633
    %v12907 = vunpack.c.l.b16 %v12634
    %v12908 = vunpack.c.h.b16 %v12628
    %v12909 = vunpack.c.h.b16 %v12629
    %v12910 = vunpack.c.h.b16 %v12630
    %v12911 = vunpack.c.h.b16 %v12631
    %v12912 = vunpack.c.h.b16 %v12632
    %v12913 = vunpack.c.h.b16 %v12633
    %v12914 = vunpack.c.h.b16 %v12634
    %v12915 = vunpack.c.l.b16 %v12635
    %v12916 = vunpack.c.l.b16 %v12636
    %v12917 = vunpack.c.l.b16 %v12637
    %v12918 = vunpack.c.l.b16 %v12638
    %v12919 = vunpack.c.l.b16 %v12639
    %v12920 = vunpack.c.l.b16 %v12640
    %v12921 = vunpack.c.l.b16 %v12641
    %v12922 = vunpack.c.h.b16 %v12635
    %v12923 = vunpack.c.h.b16 %v12636
    %v12924 = vunpack.c.h.b16 %v12637
    %v12925 = vunpack.c.h.b16 %v12638
    %v12926 = vunpack.c.h.b16 %v12639
    %v12927 = vunpack.c.h.b16 %v12640
    %v12928 = vunpack.c.h.b16 %v12641
    %v12929 = vunpack.c.l.b16 %v12642
    %v12930 = vunpack.c.l.b16 %v12643
    %v12931 = vunpack.c.l.b16 %v12644
    %v12932 = vunpack.c.l.b16 %v12645
    %v12933 = vunpack.c.l.b16 %v12646
    %v12934 = vunpack.c.l.b16 %v12647
    %v12935 = vunpack.c.l.b16 %v12648
    %v12936 = vunpack.c.h.b16 %v12642
    %v12937 = vunpack.c.h.b16 %v12643
    %v12938 = vunpack.c.h.b16 %v12644
    %v12939 = vunpack.c.h.b16 %v12645
    %v12940 = vunpack.c.h.b16 %v12646
    %v12941 = vunpack.c.h.b16 %v12647
    %v12942 = vunpack.c.h.b16 %v12648
    %v12943 = vunpack.c.l.b16 %v12649
    %v12944 = vunpack.c.l.b16 %v12650
    %v12945 = vunpack.c.l.b16 %v12651
    %v12946 = vunpack.c.l.b16 %v12652
    %v12947 = vunpack.c.l.b16 %v12653
    %v12948 = vunpack.c.l.b16 %v12654
    %v12949 = vunpack.c.l.b16 %v12655
    %v12950 = vunpack.c.h.b16 %v12649
    %v12951 = vunpack.c.h.b16 %v12650
    %v12952 = vunpack.c.h.b16 %v12651
    %v12953 = vunpack.c.h.b16 %v12652
    %v12954 = vunpack.c.h.b16 %v12653
    %v12955 = vunpack.c.h.b16 %v12654
    %v12956 = vunpack.c.h.b16 %v12655
    %v12957 = vunpack.c.l.b16 %v12656
    %v12958 = vunpack.c.l.b16 %v12657
    %v12959 = vunpack.c.l.b16 %v12658
    %v12960 = vunpack.c.l.b16 %v12659
    %v12961 = vunpack.c.l.b16 %v12660
    %v12962 = vunpack.c.l.b16 %v12661
    %v12963 = vunpack.c.l.b16 %v12662
    %v12964 = vunpack.c.h.b16 %v12656
    %v12965 = vunpack.c.h.b16 %v12657
    %v12966 = vunpack.c.h.b16 %v12658
    %v12967 = vunpack.c.h.b16 %v12659
    %v12968 = vunpack.c.h.b16 %v12660
    %v12969 = vunpack.c.h.b16 %v12661
    %v12970 = vunpack.c.h.b16 %v12662
    %v12971 = vunpack.c.l.b16 %v12663
    %v12972 = vunpack.c.l.b16 %v12664
    %v12973 = vunpack.c.l.b16 %v12665
    %v12974 = vunpack.c.l.b16 %v12666
    %v12975 = vunpack.c.l.b16 %v12667
    %v12976 = vunpack.c.l.b16 %v12668
    %v12977 = vunpack.c.l.b16 %v12669
    %v12978 = vunpack.c.h.b16 %v12663
    %v12979 = vunpack.c.h.b16 %v12664
    %v12980 = vunpack.c.h.b16 %v12665
    %v12981 = vunpack.c.h.b16 %v12666
    %v12982 = vunpack.c.h.b16 %v12667
    %v12983 = vunpack.c.h.b16 %v12668
    %v12984 = vunpack.c.h.b16 %v12669
    %v12985 = vunpack.c.l.b16 %v12670
    %v12986 = vunpack.c.l.b16 %v12671
    %v12987 = vunpack.c.l.b16 %v12672
    %v12988 = vunpack.c.l.b16 %v12673
    %v12989 = vunpack.c.l.b16 %v12674
    %v12990 = vunpack.c.l.b16 %v12675
    %v12991 = vunpack.c.l.b16 %v12676
    %v12992 = vunpack.c.h.b16 %v12670
    %v12993 = vunpack.c.h.b16 %v12671
    %v12994 = vunpack.c.h.b16 %v12672
    %v12995 = vunpack.c.h.b16 %v12673
    %v12996 = vunpack.c.h.b16 %v12674
    %v12997 = vunpack.c.h.b16 %v12675
    %v12998 = vunpack.c.h.b16 %v12676
    %v12999 = vunpack.c.l.b16 %v12677
    %v13000 = vunpack.c.l.b16 %v12678
    %v13001 = vunpack.c.l.b16 %v12679
    %v13002 = vunpack.c.l.b16 %v12680
    %v13003 = vunpack.c.l.b16 %v12681
    %v13004 = vunpack.c.l.b16 %v12682
    %v13005 = vunpack.c.l.b16 %v12683
    %v13006 = vunpack.c.h.b16 %v12677
    %v13007 = vunpack.c.h.b16 %v12678
    %v13008 = vunpack.c.h.b16 %v12679
    %v13009 = vunpack.c.h.b16 %v12680
    %v13010 = vunpack.c.h.b16 %v12681
    %v13011 = vunpack.c.h.b16 %v12682
    %v13012 = vunpack.c.h.b16 %v12683
    %v13013 = vunpack.c.l.b16 %v12684
    %v13014 = vunpack.c.l.b16 %v12685
    %v13015 = vunpack.c.l.b16 %v12686
    %v13016 = vunpack.c.l.b16 %v12687
    %v13017 = vunpack.c.l.b16 %v12688
    %v13018 = vunpack.c.l.b16 %v12689
    %v13019 = vunpack.c.l.b16 %v12690
    %v13020 = vunpack.c.h.b16 %v12684
    %v13021 = vunpack.c.h.b16 %v12685
    %v13022 = vunpack.c.h.b16 %v12686
    %v13023 = vunpack.c.h.b16 %v12687
    %v13024 = vunpack.c.h.b16 %v12688
    %v13025 = vunpack.c.h.b16 %v12689
    %v13026 = vunpack.c.h.b16 %v12690
    %v13027 = vpack.c.b16 %v12804, %v12803
    %v13028 = vpack.c.b16 %v12806, %v12805
    %v13029 = vpack.c.b16 %v12808, %v12807
    %v13030 = vpack.c.b16 %v12809, %v12809
    %v13031 = vpack.c.b16 %v12811, %v12810
    %v13032 = vpack.c.b16 %v12813, %v12812
    %v13033 = vpack.c.b16 %v12815, %v12814
    %v13034 = vpack.c.b16 %v12816, %v12816
    %v13035 = vpack.c.b16 %v12818, %v12817
    %v13036 = vpack.c.b16 %v12820, %v12819
    %v13037 = vpack.c.b16 %v12822, %v12821
    %v13038 = vpack.c.b16 %v12823, %v12823
    %v13039 = vpack.c.b16 %v12825, %v12824
    %v13040 = vpack.c.b16 %v12827, %v12826
    %v13041 = vpack.c.b16 %v12829, %v12828
    %v13042 = vpack.c.b16 %v12830, %v12830
    %v13043 = vpack.c.b16 %v12832, %v12831
    %v13044 = vpack.c.b16 %v12834, %v12833
    %v13045 = vpack.c.b16 %v12836, %v12835
    %v13046 = vpack.c.b16 %v12837, %v12837
    %v13047 = vpack.c.b16 %v12839, %v12838
    %v13048 = vpack.c.b16 %v12841, %v12840
    %v13049 = vpack.c.b16 %v12843, %v12842
    %v13050 = vpack.c.b16 %v12844, %v12844
    %v13051 = vpack.c.b16 %v12846, %v12845
    %v13052 = vpack.c.b16 %v12848, %v12847
    %v13053 = vpack.c.b16 %v12850, %v12849
    %v13054 = vpack.c.b16 %v12851, %v12851
    %v13055 = vpack.c.b16 %v12853, %v12852
    %v13056 = vpack.c.b16 %v12855, %v12854
    %v13057 = vpack.c.b16 %v12857, %v12856
    %v13058 = vpack.c.b16 %v12858, %v12858
    %v13059 = vpack.c.b16 %v12860, %v12859
    %v13060 = vpack.c.b16 %v12862, %v12861
    %v13061 = vpack.c.b16 %v12864, %v12863
    %v13062 = vpack.c.b16 %v12865, %v12865
    %v13063 = vpack.c.b16 %v12867, %v12866
    %v13064 = vpack.c.b16 %v12869, %v12868
    %v13065 = vpack.c.b16 %v12871, %v12870
    %v13066 = vpack.c.b16 %v12872, %v12872
    %v13067 = vpack.c.b16 %v12874, %v12873
    %v13068 = vpack.c.b16 %v12876, %v12875
    %v13069 = vpack.c.b16 %v12878, %v12877
    %v13070 = vpack.c.b16 %v12879, %v12879
    %v13071 = vpack.c.b16 %v12881, %v12880
    %v13072 = vpack.c.b16 %v12883, %v12882
    %v13073 = vpack.c.b16 %v12885, %v12884
    %v13074 = vpack.c.b16 %v12886, %v12886
    %v13075 = vpack.c.b16 %v12888, %v12887
    %v13076 = vpack.c.b16 %v12890, %v12889
    %v13077 = vpack.c.b16 %v12892, %v12891
    %v13078 = vpack.c.b16 %v12893, %v12893
    %v13079 = vpack.c.b16 %v12895, %v12894
    %v13080 = vpack.c.b16 %v12897, %v12896
    %v13081 = vpack.c.b16 %v12899, %v12898
    %v13082 = vpack.c.b16 %v12900, %v12900
    %v13083 = vpack.c.b16 %v12902, %v12901
    %v13084 = vpack.c.b16 %v12904, %v12903
    %v13085 = vpack.c.b16 %v12906, %v12905
    %v13086 = vpack.c.b16 %v12907, %v12907
    %v13087 = vpack.c.b16 %v12909, %v12908
    %v13088 = vpack.c.b16 %v12911, %v12910
    %v13089 = vpack.c.b16 %v12913, %v12912
    %v13090 = vpack.c.b16 %v12914, %v12914
    %v13091 = vpack.c.b16 %v12916, %v12915
    %v13092 = vpack.c.b16 %v12918, %v12917
    %v13093 = vpack.c.b16 %v12920, %v12919
    %v13094 = vpack.c.b16 %v12921, %v12921
    %v13095 = vpack.c.b16 %v12923, %v12922
    %v13096 = vpack.c.b16 %v12925, %v12924
    %v13097 = vpack.c.b16 %v12927, %v12926
    %v13098 = vpack.c.b16 %v12928, %v12928
    %v13099 = vpack.c.b16 %v12930, %v12929
    %v13100 = vpack.c.b16 %v12932, %v12931
    %v13101 = vpack.c.b16 %v12934, %v12933
    %v13102 = vpack.c.b16 %v12935, %v12935
    %v13103 = vpack.c.b16 %v12937, %v12936
    %v13104 = vpack.c.b16 %v12939, %v12938
    %v13105 = vpack.c.b16 %v12941, %v12940
    %v13106 = vpack.c.b16 %v12942, %v12942
    %v13107 = vpack.c.b16 %v12944, %v12943
    %v13108 = vpack.c.b16 %v12946, %v12945
    %v13109 = vpack.c.b16 %v12948, %v12947
    %v13110 = vpack.c.b16 %v12949, %v12949
    %v13111 = vpack.c.b16 %v12951, %v12950
    %v13112 = vpack.c.b16 %v12953, %v12952
    %v13113 = vpack.c.b16 %v12955, %v12954
    %v13114 = vpack.c.b16 %v12956, %v12956
    %v13115 = vpack.c.b16 %v12958, %v12957
    %v13116 = vpack.c.b16 %v12960, %v12959
    %v13117 = vpack.c.b16 %v12962, %v12961
    %v13118 = vpack.c.b16 %v12963, %v12963
    %v13119 = vpack.c.b16 %v12965, %v12964
    %v13120 = vpack.c.b16 %v12967, %v12966
    %v13121 = vpack.c.b16 %v12969, %v12968
    %v13122 = vpack.c.b16 %v12970, %v12970
    %v13123 = vpack.c.b16 %v12972, %v12971
    %v13124 = vpack.c.b16 %v12974, %v12973
    %v13125 = vpack.c.b16 %v12976, %v12975
    %v13126 = vpack.c.b16 %v12977, %v12977
    %v13127 = vpack.c.b16 %v12979, %v12978
    %v13128 = vpack.c.b16 %v12981, %v12980
    %v13129 = vpack.c.b16 %v12983, %v12982
    %v13130 = vpack.c.b16 %v12984, %v12984
    %v13131 = vpack.c.b16 %v12986, %v12985
    %v13132 = vpack.c.b16 %v12988, %v12987
    %v13133 = vpack.c.b16 %v12990, %v12989
    %v13134 = vpack.c.b16 %v12991, %v12991
    %v13135 = vpack.c.b16 %v12993, %v12992
    %v13136 = vpack.c.b16 %v12995, %v12994
    %v13137 = vpack.c.b16 %v12997, %v12996
    %v13138 = vpack.c.b16 %v12998, %v12998
    %v13139 = vpack.c.b16 %v13000, %v12999
    %v13140 = vpack.c.b16 %v13002, %v13001
    %v13141 = vpack.c.b16 %v13004, %v13003
    %v13142 = vpack.c.b16 %v13005, %v13005
    %v13143 = vpack.c.b16 %v13007, %v13006
    %v13144 = vpack.c.b16 %v13009, %v13008
    %v13145 = vpack.c.b16 %v13011, %v13010
    %v13146 = vpack.c.b16 %v13012, %v13012
    %v13147 = vpack.c.b16 %v13014, %v13013
    %v13148 = vpack.c.b16 %v13016, %v13015
    %v13149 = vpack.c.b16 %v13018, %v13017
    %v13150 = vpack.c.b16 %v13019, %v13019
    %v13151 = vpack.c.b16 %v13021, %v13020
    %v13152 = vpack.c.b16 %v13023, %v13022
    %v13153 = vpack.c.b16 %v13025, %v13024
    %v13154 = vpack.c.b16 %v13026, %v13026
    %13283 = vst [vmem:[#allocation12] sm:$0xff] %v13027
    %13284 = vst [vmem:[#allocation12 + $0x8] sm:$0xff] %v13028
    %13285 = vst [vmem:[#allocation12 + $0x10] sm:$0xff] %v13029
    %13286 = vst [vmem:[#allocation12 + $0x18] sm:$0xf] %v13030
    %13287 = vst [vmem:[#allocation12 + $0x1c] sm:$0xff] %v13031
    %13288 = vst [vmem:[#allocation12 + $0x24] sm:$0xff] %v13032
    %13289 = vst [vmem:[#allocation12 + $0x2c] sm:$0xff] %v13033
    %13290 = vst [vmem:[#allocation12 + $0x34] sm:$0xf] %v13034
    %13291 = vst [vmem:[#allocation12 + $0x38] sm:$0xff] %v13035
    %13292 = vst [vmem:[#allocation12 + $0x40] sm:$0xff] %v13036
    %13293 = vst [vmem:[#allocation12 + $0x48] sm:$0xff] %v13037
    %13294 = vst [vmem:[#allocation12 + $0x50] sm:$0xf] %v13038
    %13295 = vst [vmem:[#allocation12 + $0x54] sm:$0xff] %v13039
    %13296 = vst [vmem:[#allocation12 + $0x5c] sm:$0xff] %v13040
    %13297 = vst [vmem:[#allocation12 + $0x64] sm:$0xff] %v13041
    %13298 = vst [vmem:[#allocation12 + $0x6c] sm:$0xf] %v13042
    %13299 = vst [vmem:[#allocation12 + $0x70] sm:$0xff] %v13043
    %13300 = vst [vmem:[#allocation12 + $0x78] sm:$0xff] %v13044
    %13301 = vst [vmem:[#allocation12 + $0x80] sm:$0xff] %v13045
    %13302 = vst [vmem:[#allocation12 + $0x88] sm:$0xf] %v13046
    %13303 = vst [vmem:[#allocation12 + $0x8c] sm:$0xff] %v13047
    %13304 = vst [vmem:[#allocation12 + $0x94] sm:$0xff] %v13048
    %13305 = vst [vmem:[#allocation12 + $0x9c] sm:$0xff] %v13049
    %13306 = vst [vmem:[#allocation12 + $0xa4] sm:$0xf] %v13050
    %13307 = vst [vmem:[#allocation12 + $0xa8] sm:$0xff] %v13051
    %13308 = vst [vmem:[#allocation12 + $0xb0] sm:$0xff] %v13052
    %13309 = vst [vmem:[#allocation12 + $0xb8] sm:$0xff] %v13053
    %13310 = vst [vmem:[#allocation12 + $0xc0] sm:$0xf] %v13054
    %13311 = vst [vmem:[#allocation12 + $0xc4] sm:$0xff] %v13055
    %13312 = vst [vmem:[#allocation12 + $0xcc] sm:$0xff] %v13056
    %13313 = vst [vmem:[#allocation12 + $0xd4] sm:$0xff] %v13057
    %13314 = vst [vmem:[#allocation12 + $0xdc] sm:$0xf] %v13058
    %13315 = vst [vmem:[#allocation12 + $0xe0] sm:$0xff] %v13059
    %13316 = vst [vmem:[#allocation12 + $0xe8] sm:$0xff] %v13060
    %13317 = vst [vmem:[#allocation12 + $0xf0] sm:$0xff] %v13061
    %13318 = vst [vmem:[#allocation12 + $0xf8] sm:$0xf] %v13062
    %13319 = vst [vmem:[#allocation12 + $0xfc] sm:$0xff] %v13063
    %13320 = vst [vmem:[#allocation12 + $0x104] sm:$0xff] %v13064
    %13321 = vst [vmem:[#allocation12 + $0x10c] sm:$0xff] %v13065
    %13322 = vst [vmem:[#allocation12 + $0x114] sm:$0xf] %v13066
    %13323 = vst [vmem:[#allocation12 + $0x118] sm:$0xff] %v13067
    %13324 = vst [vmem:[#allocation12 + $0x120] sm:$0xff] %v13068
    %13325 = vst [vmem:[#allocation12 + $0x128] sm:$0xff] %v13069
    %13326 = vst [vmem:[#allocation12 + $0x130] sm:$0xf] %v13070
    %13327 = vst [vmem:[#allocation12 + $0x134] sm:$0xff] %v13071
    %13328 = vst [vmem:[#allocation12 + $0x13c] sm:$0xff] %v13072
    %13329 = vst [vmem:[#allocation12 + $0x144] sm:$0xff] %v13073
    %13330 = vst [vmem:[#allocation12 + $0x14c] sm:$0xf] %v13074
    %13331 = vst [vmem:[#allocation12 + $0x150] sm:$0xff] %v13075
    %13332 = vst [vmem:[#allocation12 + $0x158] sm:$0xff] %v13076
    %13333 = vst [vmem:[#allocation12 + $0x160] sm:$0xff] %v13077
    %13334 = vst [vmem:[#allocation12 + $0x168] sm:$0xf] %v13078
    %13335 = vst [vmem:[#allocation12 + $0x16c] sm:$0xff] %v13079
    %13336 = vst [vmem:[#allocation12 + $0x174] sm:$0xff] %v13080
    %13337 = vst [vmem:[#allocation12 + $0x17c] sm:$0xff] %v13081
    %13338 = vst [vmem:[#allocation12 + $0x184] sm:$0xf] %v13082
    %13339 = vst [vmem:[#allocation12 + $0x188] sm:$0xff] %v13083
    %13340 = vst [vmem:[#allocation12 + $0x190] sm:$0xff] %v13084
    %13341 = vst [vmem:[#allocation12 + $0x198] sm:$0xff] %v13085
    %13342 = vst [vmem:[#allocation12 + $0x1a0] sm:$0xf] %v13086
    %13343 = vst [vmem:[#allocation12 + $0x1a4] sm:$0xff] %v13087
    %13344 = vst [vmem:[#allocation12 + $0x1ac] sm:$0xff] %v13088
    %13345 = vst [vmem:[#allocation12 + $0x1b4] sm:$0xff] %v13089
    %13346 = vst [vmem:[#allocation12 + $0x1bc] sm:$0xf] %v13090
    %13347 = vst [vmem:[#allocation12 + $0x1c0] sm:$0xff] %v13091
    %13348 = vst [vmem:[#allocation12 + $0x1c8] sm:$0xff] %v13092
    %13349 = vst [vmem:[#allocation12 + $0x1d0] sm:$0xff] %v13093
    %13350 = vst [vmem:[#allocation12 + $0x1d8] sm:$0xf] %v13094
    %13351 = vst [vmem:[#allocation12 + $0x1dc] sm:$0xff] %v13095
    %13352 = vst [vmem:[#allocation12 + $0x1e4] sm:$0xff] %v13096
    %13353 = vst [vmem:[#allocation12 + $0x1ec] sm:$0xff] %v13097
    %13354 = vst [vmem:[#allocation12 + $0x1f4] sm:$0xf] %v13098
    %13355 = vst [vmem:[#allocation12 + $0x1f8] sm:$0xff] %v13099
    %13356 = vst [vmem:[#allocation12 + $0x200] sm:$0xff] %v13100
    %13357 = vst [vmem:[#allocation12 + $0x208] sm:$0xff] %v13101
    %13358 = vst [vmem:[#allocation12 + $0x210] sm:$0xf] %v13102
    %13359 = vst [vmem:[#allocation12 + $0x214] sm:$0xff] %v13103
    %13360 = vst [vmem:[#allocation12 + $0x21c] sm:$0xff] %v13104
    %13361 = vst [vmem:[#allocation12 + $0x224] sm:$0xff] %v13105
    %13362 = vst [vmem:[#allocation12 + $0x22c] sm:$0xf] %v13106
    %13363 = vst [vmem:[#allocation12 + $0x230] sm:$0xff] %v13107
    %13364 = vst [vmem:[#allocation12 + $0x238] sm:$0xff] %v13108
    %13365 = vst [vmem:[#allocation12 + $0x240] sm:$0xff] %v13109
    %13366 = vst [vmem:[#allocation12 + $0x248] sm:$0xf] %v13110
    %13367 = vst [vmem:[#allocation12 + $0x24c] sm:$0xff] %v13111
    %13368 = vst [vmem:[#allocation12 + $0x254] sm:$0xff] %v13112
    %13369 = vst [vmem:[#allocation12 + $0x25c] sm:$0xff] %v13113
    %13370 = vst [vmem:[#allocation12 + $0x264] sm:$0xf] %v13114
    %13371 = vst [vmem:[#allocation12 + $0x268] sm:$0xff] %v13115
    %13372 = vst [vmem:[#allocation12 + $0x270] sm:$0xff] %v13116
    %13373 = vst [vmem:[#allocation12 + $0x278] sm:$0xff] %v13117
    %13374 = vst [vmem:[#allocation12 + $0x280] sm:$0xf] %v13118
    %13375 = vst [vmem:[#allocation12 + $0x284] sm:$0xff] %v13119
    %13376 = vst [vmem:[#allocation12 + $0x28c] sm:$0xff] %v13120
    %13377 = vst [vmem:[#allocation12 + $0x294] sm:$0xff] %v13121
    %13378 = vst [vmem:[#allocation12 + $0x29c] sm:$0xf] %v13122
    %13379 = vst [vmem:[#allocation12 + $0x2a0] sm:$0xff] %v13123
    %13380 = vst [vmem:[#allocation12 + $0x2a8] sm:$0xff] %v13124
    %13381 = vst [vmem:[#allocation12 + $0x2b0] sm:$0xff] %v13125
    %13382 = vst [vmem:[#allocation12 + $0x2b8] sm:$0xf] %v13126
    %13383 = vst [vmem:[#allocation12 + $0x2bc] sm:$0xff] %v13127
    %13384 = vst [vmem:[#allocation12 + $0x2c4] sm:$0xff] %v13128
    %13385 = vst [vmem:[#allocation12 + $0x2cc] sm:$0xff] %v13129
    %13386 = vst [vmem:[#allocation12 + $0x2d4] sm:$0xf] %v13130
    %13387 = vst [vmem:[#allocation12 + $0x2d8] sm:$0xff] %v13131
    %13388 = vst [vmem:[#allocation12 + $0x2e0] sm:$0xff] %v13132
    %13389 = vst [vmem:[#allocation12 + $0x2e8] sm:$0xff] %v13133
    %13390 = vst [vmem:[#allocation12 + $0x2f0] sm:$0xf] %v13134
    %13391 = vst [vmem:[#allocation12 + $0x2f4] sm:$0xff] %v13135
    %13392 = vst [vmem:[#allocation12 + $0x2fc] sm:$0xff] %v13136
    %13393 = vst [vmem:[#allocation12 + $0x304] sm:$0xff] %v13137
    %13394 = vst [vmem:[#allocation12 + $0x30c] sm:$0xf] %v13138
    %13395 = vst [vmem:[#allocation12 + $0x310] sm:$0xff] %v13139
    %13396 = vst [vmem:[#allocation12 + $0x318] sm:$0xff] %v13140
    %13397 = vst [vmem:[#allocation12 + $0x320] sm:$0xff] %v13141
    %13398 = vst [vmem:[#allocation12 + $0x328] sm:$0xf] %v13142
    %13399 = vst [vmem:[#allocation12 + $0x32c] sm:$0xff] %v13143
    %13400 = vst [vmem:[#allocation12 + $0x334] sm:$0xff] %v13144
    %13401 = vst [vmem:[#allocation12 + $0x33c] sm:$0xff] %v13145
    %13402 = vst [vmem:[#allocation12 + $0x344] sm:$0xf] %v13146
    %13403 = vst [vmem:[#allocation12 + $0x348] sm:$0xff] %v13147
    %13404 = vst [vmem:[#allocation12 + $0x350] sm:$0xff] %v13148
    %13405 = vst [vmem:[#allocation12 + $0x358] sm:$0xff] %v13149
    %13406 = vst [vmem:[#allocation12 + $0x360] sm:$0xf] %v13150
    %13407 = vst [vmem:[#allocation12 + $0x364] sm:$0xff] %v13151
    %13408 = vst [vmem:[#allocation12 + $0x36c] sm:$0xff] %v13152
    %13409 = vst [vmem:[#allocation12 + $0x374] sm:$0xff] %v13153
    %13410 = vst [vmem:[#allocation12 + $0x37c] sm:$0xf] %v13154
    // Predicated region
    $region42: #{tpu_custom_call.1} parent=1 // pred_check
      _
    $region43: #{tpu_custom_call.1} parent=1 // pred_check_branch
      %13412 = sbr.rel (0) target = $region45
    $region44: #{tpu_custom_call.1} parent=1 // pred_region
      %s13414 = ssub.s32 14336, 14336
      %13415 = vsyncadd [#allocation4], %s13414
      %s13416 = sshll.u32 [#allocation11], 4
      %s13417 = int_to_ptr.vmem [resolvable:$true] %s13416
      %13422 = dma.vmem_to_hbm [thread:$0]  %s13417, 14336, %s5, [#allocation4], 128, 128, 8
    $region45: #{tpu_custom_call.1} parent=1 // pred_fallthru
      _
    // Predicated region
    $region46: #{tpu_custom_call.1} parent=1 // pred_check
      _
    $region47: #{tpu_custom_call.1} parent=1 // pred_check_branch
      %13424 = sbr.rel (0) target = $region49
    $region48: #{tpu_custom_call.1} parent=1 // pred_region
      %s13426 = ssub.s32 14336, 14336
      %13427 = vsyncadd [#allocation13], %s13426
      %s13428 = sshll.u32 [#allocation12], 4
      %s13429 = int_to_ptr.vmem [resolvable:$true] %s13428
      %13434 = dma.vmem_to_hbm [thread:$0]  %s13429, 14336, %s6, [#allocation13], 448, 448, 28
    $region49: #{tpu_custom_call.1} parent=1 // pred_fallthru
      _
    // Predicated region
    $region50: #{tpu_custom_call.1} parent=1 // pred_check
      _
    $region51: #{tpu_custom_call.1} parent=1 // pred_check_branch
      %13436 = sbr.rel (0) target = $region53
    $region52: #{tpu_custom_call.1} parent=1 // pred_region
      %13437 = dma.done [#allocation4], 14336
    $region53: #{tpu_custom_call.1} parent=1 // pred_fallthru
      _
    // Predicated region
    $region54: #{tpu_custom_call.1} parent=1 // pred_check
      _
    $region55: #{tpu_custom_call.1} parent=1 // pred_check_branch
      %13439 = sbr.rel (0) target = $region57
    $region56: #{tpu_custom_call.1} parent=1 // pred_region
      %13440 = dma.done [#allocation13], 14336
    $region57: #{tpu_custom_call.1} parent=1 // pred_fallthru
      _
    %13441 = vsyncpa [#allocation3], 1
    %13442 = vsyncpa [#allocation6], 1
    %13443 = vsyncpa [#allocation9], 1
    %13444 = vsyncpa [#allocation4], 1
    %13445 = vsyncpa [#allocation13], 1

</llo_original>
